<compile_context>
chip_gen: v7x
topology: tpu7x:2x2x1
jax: 0.10.0
libtpu: 0.0.40
codegen_flags: <defaults>
</compile_context>

<pallas_src>
import jax
import jax.numpy as jnp
from jax.experimental import pallas as pl
from jax.experimental.pallas import tpu as pltpu


# Phase decomposition of ConvTranspose2d(kernel=4, stride=2, padding=1):
#   out[co, 2q+r, 2p+s] =
#       sum_{ci, a, b} x[ci, q + _DOFF[r][a], p + _DOFF[s][b]]
#                      * W[ci, co, _KOFF[r][a], _KOFF[s][b]]
# (out-of-range x treated as zero).
_KOFF = ((1, 3), (2, 0))   # kernel tap index (kh or kw) for (phase, tap)
_DOFF = ((0, -1), (0, 1))  # input offset     (rows or cols) for (phase, tap)


# ----------------------------------------------------------------------------
# Kernels
# ----------------------------------------------------------------------------
def _head_kernel(z_ref, cond_ref, wl_ref, bl_ref, wz_ref, wc_ref,
                 scale_ref, shift_ref, o_ref):
    """Linear(24->c_dim)+ReLU, 1x1->4x4 deconv (matmul), BN+ReLU, fused."""
    # cond embedding
    ce = jnp.dot(cond_ref[...], wl_ref[...],
                 preferred_element_type=jnp.float32) + bl_ref[...]
    ce = jnp.maximum(ce, 0.0)
    # ConvTranspose2d(k=4, s=1, p=0) on a 1x1 input == matmul; the channel
    # concat cat([z, cond_emb]) is realised as a split matmul (no concat).
    h = (jnp.dot(z_ref[...], wz_ref[...], preferred_element_type=jnp.float32)
         + jnp.dot(ce, wc_ref[...], preferred_element_type=jnp.float32))
    # Fused BatchNorm (inference affine) + ReLU; output is lane-dense.
    o_ref[...] = jnp.maximum(h * scale_ref[...] + shift_ref[...], 0.0)


def _make_deconv_kernel(ih, iw, act):
    """One stride-2 ConvTranspose (+BN affine +activation) for one image."""
    n = ih * iw

    def kernel(x_ref, w_ref, mask_ref, scale_ref, shift_ref, o_ref):
        # x_ref    : (1, cin, (ih+2)*iw + 2)  height-padded, flattened input
        # w_ref    : (4, cout, 4*cin)         phase-packed deconv weights
        # mask_ref : (2, n)                   width-boundary validity masks
        # scale/shift_ref : (cout, 1)         fused BatchNorm affine
        # o_ref    : (1, 4, cout, n)          phase-major output (lane-dense)
        scale = scale_ref[...]
        shift = shift_ref[...]
        for r in range(2):
            for s in range(2):
                taps = []
                for a in range(2):
                    for b in range(2):
                        # Column/row offsets become a single flat shift
                        # because the padded row stride equals iw.
                        start = 1 + (_DOFF[r][a] + 1) * iw + _DOFF[s][b]
                        t = x_ref[0, :, start:start + n]          # (cin, n)
                        if b == 1:  # shifted-column tap: zero wrapped lanes
                            t = t * mask_ref[s:s + 1, :]
                        taps.append(t)
                rhs = jnp.concatenate(taps, axis=0)               # (4cin, n)
                y = jnp.dot(w_ref[2 * r + s], rhs,
                            preferred_element_type=jnp.float32)   # (cout, n)
                o_ref[0, 2 * r + s, :, :] = act(y * scale + shift)

    return kernel


# ----------------------------------------------------------------------------
# Wrapper / parameter packing
# ----------------------------------------------------------------------------
# TODO(synk): BatchNorm2d is implemented in inference mode (running-stats
# affine); training-mode batch statistics are not computed in-kernel.
def _bn_affine(bn, eps=1e-5):
    gamma, beta, mean, var = bn
    scale = gamma * jax.lax.rsqrt(var + eps)
    return scale, beta - mean * scale


def _pack_deconv_weight(w):
    """(cin, cout, 4, 4) torch ConvTranspose2d weight -> (4, cout, 4*cin)."""
    phases = []
    for r in range(2):
        for s in range(2):
            taps = [w[:, :, _KOFF[r][a], _KOFF[s][b]]
                    for a in range(2) for b in range(2)]        # each (cin, cout)
            phases.append(jnp.concatenate(taps, axis=0).T)      # (cout, 4*cin)
    return jnp.stack(phases, axis=0).astype(jnp.float32)        # (4, cout, 4*cin)


def _deconv_block(x, w, bn_affine, act):
    """ConvTranspose2d(k=4, s=2, p=1, bias=False) + BN affine + activation."""
    B, cin, ih, iw = x.shape
    cout = w.shape[1]
    n = ih * iw
    nf = (ih + 2) * iw + 2

    wph = _pack_deconv_weight(w)
    if bn_affine is None:
        scale = jnp.ones((cout, 1), jnp.float32)
        shift = jnp.zeros((cout, 1), jnp.float32)
    else:
        s_, t_ = bn_affine
        scale = s_.reshape(cout, 1).astype(jnp.float32)
        shift = t_.reshape(cout, 1).astype(jnp.float32)

    # Validity masks for the +/-1 column taps (zero where the flat shift
    # would wrap across an image row).
    p_idx = jnp.arange(n, dtype=jnp.int32) % iw
    mask = jnp.stack([p_idx != 0, p_idx != iw - 1]).astype(jnp.float32)  # (2, n)

    # 1-px height pad, flatten spatial, 1 extra zero each end of the flat axis.
    xh = jnp.pad(x.astype(jnp.float32), ((0, 0), (0, 0), (1, 1), (0, 0)))
    xf = jnp.pad(xh.reshape(B, cin, (ih + 2) * iw), ((0, 0), (0, 0), (1, 1)))

    out = pl.pallas_call(
        _make_deconv_kernel(ih, iw, act),
        out_shape=jax.ShapeDtypeStruct((B, 4, cout, n), jnp.float32),
        grid=(B,),
        in_specs=[
            pl.BlockSpec((1, cin, nf), lambda b: (b, 0, 0)),
            pl.BlockSpec((4, cout, 4 * cin), lambda b: (0, 0, 0)),
            pl.BlockSpec((2, n), lambda b: (0, 0)),
            pl.BlockSpec((cout, 1), lambda b: (0, 0)),
            pl.BlockSpec((cout, 1), lambda b: (0, 0)),
        ],
        out_specs=pl.BlockSpec((1, 4, cout, n), lambda b: (b, 0, 0, 0)),
        compiler_params=pltpu.CompilerParams(
            dimension_semantics=("parallel",)),
    )(xf, wph, mask, scale, shift)

    # Interleave the 4 output phases back to NCHW (cheap, output-sized glue).
    out = out.reshape(B, 2, 2, cout, ih, iw)
    return out.transpose(0, 3, 4, 1, 5, 2).reshape(B, cout, 2 * ih, 2 * iw)


def generator_forward(z, cond, params):
    """z: (B, z_dim, 1, 1); cond: (B, 24) -> (B, n_channel, 64, 64)."""
    B = z.shape[0]
    z2 = z.reshape(B, -1).astype(jnp.float32)
    cond = cond.astype(jnp.float32)
    z_dim = z2.shape[1]
    cond_in = cond.shape[1]

    lin_w = params["lin_w"].astype(jnp.float32)          # (c_dim, 24) torch
    lin_b = params["lin_b"].astype(jnp.float32)          # (c_dim,)
    c_dim = lin_w.shape[0]

    w1 = params["w1"].astype(jnp.float32)                # (z+c, C1, 4, 4)
    C1 = w1.shape[1]
    w1m = w1.reshape(z_dim + c_dim, C1 * 16)             # col = co*16+kh*4+kw
    s1, t1 = _bn_affine(params["bn1"])

    head_out = pl.pallas_call(
        _head_kernel,
        out_shape=jax.ShapeDtypeStruct((B, C1 * 16), jnp.float32),
        in_specs=[
            pl.BlockSpec((B, z_dim), lambda: (0, 0)),
            pl.BlockSpec((B, cond_in), lambda: (0, 0)),
            pl.BlockSpec((cond_in, c_dim), lambda: (0, 0)),
            pl.BlockSpec((1, c_dim), lambda: (0, 0)),
            pl.BlockSpec((z_dim, C1 * 16), lambda: (0, 0)),
            pl.BlockSpec((c_dim, C1 * 16), lambda: (0, 0)),
            pl.BlockSpec((1, C1 * 16), lambda: (0, 0)),
            pl.BlockSpec((1, C1 * 16), lambda: (0, 0)),
        ],
        out_specs=pl.BlockSpec((B, C1 * 16), lambda: (0, 0)),
    )(z2, cond, lin_w.T, lin_b.reshape(1, c_dim),
      w1m[:z_dim], w1m[z_dim:],
      jnp.repeat(s1, 16).reshape(1, C1 * 16),
      jnp.repeat(t1, 16).reshape(1, C1 * 16))

    x = head_out.reshape(B, C1, 4, 4)

    relu = lambda v: jnp.maximum(v, 0.0)
    x = _deconv_block(x, params["w2"], _bn_affine(params["bn2"]), relu)
    x = _deconv_block(x, params["w3"], _bn_affine(params["bn3"]), relu)
    x = _deconv_block(x, params["w4"], _bn_affine(params["bn4"]), relu)
    x = _deconv_block(x, params["w5"], None, jnp.tanh)
    return x


# ----------------------------------------------------------------------------
# Pure-JAX reference (independent formulation via dilated convs)
# ----------------------------------------------------------------------------
def _reference_forward(z, cond, params):
    B = z.shape[0]
    ce = jnp.maximum(cond @ params["lin_w"].T + params["lin_b"], 0.0)
    x = jnp.concatenate([z.reshape(B, -1), ce], axis=1)[:, :, None, None]

    def conv_t(h, w, stride, pad):
        k = w.shape[2]
        w_f = jnp.flip(w, (2, 3)).transpose(1, 0, 2, 3)   # (cout, cin, kh, kw)
        return jax.lax.conv_general_dilated(
            h, w_f, window_strides=(1, 1),
            padding=[(k - 1 - pad, k - 1 - pad)] * 2,
            lhs_dilation=(stride, stride),
            dimension_numbers=("NCHW", "OIHW", "NCHW"))

    def bn(h, p):
        g, b, m, v = p
        inv = 1.0 / jnp.sqrt(v + 1e-5)
        return ((h - m[None, :, None, None]) * (g * inv)[None, :, None, None]
                + b[None, :, None, None])

    h = jnp.maximum(bn(conv_t(x, params["w1"], 1, 0), params["bn1"]), 0.0)
    h = jnp.maximum(bn(conv_t(h, params["w2"], 2, 1), params["bn2"]), 0.0)
    h = jnp.maximum(bn(conv_t(h, params["w3"], 2, 1), params["bn3"]), 0.0)
    h = jnp.maximum(bn(conv_t(h, params["w4"], 2, 1), params["bn4"]), 0.0)
    return jnp.tanh(conv_t(h, params["w5"], 2, 1))


# ----------------------------------------------------------------------------
if __name__ == "__main__":
    key = jax.random.PRNGKey(0)
    keys = jax.random.split(key, 16)

    # args: z_dim=16, c_dim=8, input_dim=4, n_channel=3
    B, z_dim, c_dim, d, n_channel = 2, 16, 8, 4, 3
    C1, C2, C3, C4 = 8 * d, 4 * d, 2 * d, d          # 32, 16, 8, 4

    def nrm(k, shape, scale):
        return (scale * jax.random.normal(k, shape)).astype(jnp.float32)

    params = {
        "lin_w": nrm(keys[0], (c_dim, 24), 0.2),
        "lin_b": nrm(keys[1], (c_dim,), 0.1),
        "w1": nrm(keys[2], (z_dim + c_dim, C1, 4, 4), 0.05),
        "w2": nrm(keys[3], (C1, C2, 4, 4), 0.05),
        "w3": nrm(keys[4], (C2, C3, 4, 4), 0.08),
        "w4": nrm(keys[5], (C3, C4, 4, 4), 0.12),
        "w5": nrm(keys[6], (C4, n_channel, 4, 4), 0.2),
    }
    kidx = 7
    for name, ch in (("bn1", C1), ("bn2", C2), ("bn3", C3), ("bn4", C4)):
        sub = jax.random.split(keys[kidx], 4)
        kidx += 1
        params[name] = (
            1.0 + 0.1 * jax.random.normal(sub[0], (ch,), dtype=jnp.float32),
            0.1 * jax.random.normal(sub[1], (ch,), dtype=jnp.float32),
            0.1 * jax.random.normal(sub[2], (ch,), dtype=jnp.float32),
            0.5 + jax.random.uniform(sub[3], (ch,), dtype=jnp.float32),
        )

    z = nrm(keys[11], (B, z_dim, 1, 1), 1.0)
    cond = nrm(keys[12], (B, 24), 1.0)

    fwd = jax.jit(generator_forward)
    y = jax.block_until_ready(fwd(z, cond, params))
    assert y.shape == (B, n_channel, 64, 64), y.shape

    ref = _reference_forward(z, cond, params)
    err = float(jnp.max(jnp.abs(y - ref)))
    assert err < 5e-4, f"max abs err {err}"

    print("KERNEL_OK")
</pallas_src>

<mosaic_0001>
module attributes {stable_mosaic.version = 11 : i64} {
  func.func @_head_kernel(%arg0: memref<2x16xf32, #tpu.memory_space<vmem>>, %arg1: memref<2x24xf32, #tpu.memory_space<vmem>>, %arg2: memref<24x8xf32, #tpu.memory_space<vmem>>, %arg3: memref<1x8xf32, #tpu.memory_space<vmem>>, %arg4: memref<16x512xf32, #tpu.memory_space<vmem>>, %arg5: memref<8x512xf32, #tpu.memory_space<vmem>>, %arg6: memref<1x512xf32, #tpu.memory_space<vmem>>, %arg7: memref<1x512xf32, #tpu.memory_space<vmem>>, %arg8: memref<2x512xf32, #tpu.memory_space<vmem>>) attributes {dimension_semantics = [], scalar_prefetch = 0 : i64, scratch_operands = 0 : i64, tpu.core_type = #tpu.core_type<tc>} {
    %c0 = arith.constant 0 : index
    %c0_0 = arith.constant 0 : index
    %0 = vector.load %arg1[%c0, %c0_0] : memref<2x24xf32, #tpu.memory_space<vmem>>, vector<2x24xf32>
    %c0_1 = arith.constant 0 : index
    %c0_2 = arith.constant 0 : index
    %1 = vector.load %arg2[%c0_1, %c0_2] : memref<24x8xf32, #tpu.memory_space<vmem>>, vector<24x8xf32>
    %cst = arith.constant dense<0.000000e+00> : vector<2x8xf32>
    %2 = tpu.matmul %0, %1, %cst {dimension_numbers = #tpu.dot_dimension_numbers<[1], [0], [0], [1], [0, 0, 1, 1], [], []>} : vector<2x24xf32>, vector<24x8xf32>, vector<2x8xf32> -> vector<2x8xf32>
    %c0_3 = arith.constant 0 : index
    %c0_4 = arith.constant 0 : index
    %3 = vector.load %arg3[%c0_3, %c0_4] : memref<1x8xf32, #tpu.memory_space<vmem>>, vector<1x8xf32>
    %4 = vector.broadcast %3 : vector<1x8xf32> to vector<2x8xf32>
    %5 = arith.addf %2, %4 : vector<2x8xf32>
    %cst_5 = arith.constant 0.000000e+00 : f32
    %6 = vector.broadcast %cst_5 : f32 to vector<2x8xf32>
    %7 = arith.maximumf %5, %6 : vector<2x8xf32>
    %c0_6 = arith.constant 0 : index
    %c0_7 = arith.constant 0 : index
    %8 = vector.load %arg0[%c0_6, %c0_7] : memref<2x16xf32, #tpu.memory_space<vmem>>, vector<2x16xf32>
    %c0_8 = arith.constant 0 : index
    %c0_9 = arith.constant 0 : index
    %9 = vector.load %arg4[%c0_8, %c0_9] : memref<16x512xf32, #tpu.memory_space<vmem>>, vector<16x512xf32>
    %cst_10 = arith.constant dense<0.000000e+00> : vector<2x512xf32>
    %10 = tpu.matmul %8, %9, %cst_10 {dimension_numbers = #tpu.dot_dimension_numbers<[1], [0], [0], [1], [0, 0, 1, 1], [], []>} : vector<2x16xf32>, vector<16x512xf32>, vector<2x512xf32> -> vector<2x512xf32>
    %c0_11 = arith.constant 0 : index
    %c0_12 = arith.constant 0 : index
    %11 = vector.load %arg5[%c0_11, %c0_12] : memref<8x512xf32, #tpu.memory_space<vmem>>, vector<8x512xf32>
    %cst_13 = arith.constant dense<0.000000e+00> : vector<2x512xf32>
    %12 = tpu.matmul %7, %11, %cst_13 {dimension_numbers = #tpu.dot_dimension_numbers<[1], [0], [0], [1], [0, 0, 1, 1], [], []>} : vector<2x8xf32>, vector<8x512xf32>, vector<2x512xf32> -> vector<2x512xf32>
    %13 = arith.addf %10, %12 : vector<2x512xf32>
    %c0_14 = arith.constant 0 : index
    %c0_15 = arith.constant 0 : index
    %14 = vector.load %arg6[%c0_14, %c0_15] : memref<1x512xf32, #tpu.memory_space<vmem>>, vector<1x512xf32>
    %15 = vector.broadcast %14 : vector<1x512xf32> to vector<2x512xf32>
    %16 = arith.mulf %13, %15 : vector<2x512xf32>
    %c0_16 = arith.constant 0 : index
    %c0_17 = arith.constant 0 : index
    %17 = vector.load %arg7[%c0_16, %c0_17] : memref<1x512xf32, #tpu.memory_space<vmem>>, vector<1x512xf32>
    %18 = vector.broadcast %17 : vector<1x512xf32> to vector<2x512xf32>
    %19 = arith.addf %16, %18 : vector<2x512xf32>
    %cst_18 = arith.constant 0.000000e+00 : f32
    %20 = vector.broadcast %cst_18 : f32 to vector<2x512xf32>
    %21 = arith.maximumf %19, %20 : vector<2x512xf32>
    %c0_19 = arith.constant 0 : index
    %c0_20 = arith.constant 0 : index
    %22 = vector.load %arg8[%c0_19, %c0_20] : memref<2x512xf32, #tpu.memory_space<vmem>>, vector<2x512xf32>
    tpu.vector_store %arg8[%c0_19, %c0_20], %21 {strides = array<i32>} : memref<2x512xf32, #tpu.memory_space<vmem>>, vector<2x512xf32>,
    return
  }
}

module attributes {stable_mosaic.version = 11 : i64} {
  func.func @kernel(%arg0: i32, %arg1: memref<1x32x26xf32, #tpu.memory_space<vmem>>, %arg2: memref<4x16x128xf32, #tpu.memory_space<vmem>>, %arg3: memref<2x16xf32, #tpu.memory_space<vmem>>, %arg4: memref<16x1xf32, #tpu.memory_space<vmem>>, %arg5: memref<16x1xf32, #tpu.memory_space<vmem>>, %arg6: memref<1x4x16x16xf32, #tpu.memory_space<vmem>>) attributes {dimension_semantics = [#tpu.dimension_semantics<parallel>], iteration_bounds = array<i64: 2>, scalar_prefetch = 0 : i64, scratch_operands = 0 : i64, tpu.core_type = #tpu.core_type<tc>, window_params = [{transform_indices = @transform_0, window_bounds = array<i64: 1, 32, 26>}, {pipeline_mode = #tpu.pipeline_mode<synchronous>, transform_indices = @transform_1, window_bounds = array<i64: 4, 16, 128>}, {pipeline_mode = #tpu.pipeline_mode<synchronous>, transform_indices = @transform_2, window_bounds = array<i64: 2, 16>}, {pipeline_mode = #tpu.pipeline_mode<synchronous>, transform_indices = @transform_3, window_bounds = array<i64: 16, 1>}, {pipeline_mode = #tpu.pipeline_mode<synchronous>, transform_indices = @transform_4, window_bounds = array<i64: 16, 1>}, {transform_indices = @transform_5, window_bounds = array<i64: 1, 4, 16, 16>}]} {
    %c0 = arith.constant 0 : index
    %c0_0 = arith.constant 0 : index
    %0 = vector.load %arg4[%c0, %c0_0] : memref<16x1xf32, #tpu.memory_space<vmem>>, vector<16x1xf32>
    %c0_1 = arith.constant 0 : index
    %c0_2 = arith.constant 0 : index
    %1 = vector.load %arg5[%c0_1, %c0_2] : memref<16x1xf32, #tpu.memory_space<vmem>>, vector<16x1xf32>
    %c0_3 = arith.constant 0 : index
    %c0_4 = arith.constant 0 : index
    %c5 = arith.constant 5 : index
    %2 = vector.load %arg1[%c0_3, %c0_4, %c5] : memref<1x32x26xf32, #tpu.memory_space<vmem>>, vector<1x32x16xf32>
    %3 = vector.shape_cast %2 : vector<1x32x16xf32> to vector<32x16xf32>
    %c0_5 = arith.constant 0 : index
    %c0_6 = arith.constant 0 : index
    %c4 = arith.constant 4 : index
    %4 = vector.load %arg1[%c0_5, %c0_6, %c4] : memref<1x32x26xf32, #tpu.memory_space<vmem>>, vector<1x32x16xf32>
    %5 = vector.shape_cast %4 : vector<1x32x16xf32> to vector<32x16xf32>
    %c0_7 = arith.constant 0 : index
    %c0_8 = arith.constant 0 : index
    %6 = vector.load %arg3[%c0_7, %c0_8] : memref<2x16xf32, #tpu.memory_space<vmem>>, vector<1x16xf32>
    %7 = vector.broadcast %6 : vector<1x16xf32> to vector<32x16xf32>
    %8 = arith.mulf %5, %7 : vector<32x16xf32>
    %c0_9 = arith.constant 0 : index
    %c0_10 = arith.constant 0 : index
    %c1 = arith.constant 1 : index
    %9 = vector.load %arg1[%c0_9, %c0_10, %c1] : memref<1x32x26xf32, #tpu.memory_space<vmem>>, vector<1x32x16xf32>
    %10 = vector.shape_cast %9 : vector<1x32x16xf32> to vector<32x16xf32>
    %c0_11 = arith.constant 0 : index
    %c0_12 = arith.constant 0 : index
    %c0_13 = arith.constant 0 : index
    %11 = vector.load %arg1[%c0_11, %c0_12, %c0_13] : memref<1x32x26xf32, #tpu.memory_space<vmem>>, vector<1x32x16xf32>
    %12 = vector.shape_cast %11 : vector<1x32x16xf32> to vector<32x16xf32>
    %c0_14 = arith.constant 0 : index
    %c0_15 = arith.constant 0 : index
    %13 = vector.load %arg3[%c0_14, %c0_15] : memref<2x16xf32, #tpu.memory_space<vmem>>, vector<1x16xf32>
    %14 = vector.broadcast %13 : vector<1x16xf32> to vector<32x16xf32>
    %15 = arith.mulf %12, %14 : vector<32x16xf32>
    %16 = tpu.concatenate %3, %8, %10, %15 in 0 : vector<32x16xf32>, vector<32x16xf32>, vector<32x16xf32>, vector<32x16xf32> -> vector<128x16xf32>
    %c0_16 = arith.constant 0 : index
    %c0_17 = arith.constant 0 : index
    %c0_18 = arith.constant 0 : index
    %17 = vector.load %arg2[%c0_16, %c0_17, %c0_18] : memref<4x16x128xf32, #tpu.memory_space<vmem>>, vector<1x16x128xf32>
    %18 = vector.shape_cast %17 : vector<1x16x128xf32> to vector<16x128xf32>
    %cst = arith.constant dense<0.000000e+00> : vector<16x16xf32>
    %19 = tpu.matmul %18, %16, %cst {dimension_numbers = #tpu.dot_dimension_numbers<[1], [0], [0], [1], [0, 0, 1, 1], [], []>} : vector<16x128xf32>, vector<128x16xf32>, vector<16x16xf32> -> vector<16x16xf32>
    %20 = vector.broadcast %0 : vector<16x1xf32> to vector<16x16xf32>
    %21 = arith.mulf %19, %20 : vector<16x16xf32>
    %22 = vector.broadcast %1 : vector<16x1xf32> to vector<16x16xf32>
    %23 = arith.addf %21, %22 : vector<16x16xf32>
    %cst_19 = arith.constant 0.000000e+00 : f32
    %24 = vector.broadcast %cst_19 : f32 to vector<16x16xf32>
    %25 = arith.maximumf %23, %24 : vector<16x16xf32>
    %c0_20 = arith.constant 0 : index
    %c0_21 = arith.constant 0 : index
    %c0_22 = arith.constant 0 : index
    %c0_23 = arith.constant 0 : index
    %26 = vector.load %arg6[%c0_20, %c0_21, %c0_22, %c0_23] : memref<1x4x16x16xf32, #tpu.memory_space<vmem>>, vector<1x1x16x16xf32>
    %27 = vector.shape_cast %26 : vector<1x1x16x16xf32> to vector<16x16xf32>
    %28 = vector.shape_cast %25 : vector<16x16xf32> to vector<1x1x16x16xf32>
    tpu.vector_store %arg6[%c0_20, %c0_21, %c0_22, %c0_23], %28 {strides = array<i32>} : memref<1x4x16x16xf32, #tpu.memory_space<vmem>>, vector<1x1x16x16xf32>,
    %c0_24 = arith.constant 0 : index
    %c0_25 = arith.constant 0 : index
    %c5_26 = arith.constant 5 : index
    %29 = vector.load %arg1[%c0_24, %c0_25, %c5_26] : memref<1x32x26xf32, #tpu.memory_space<vmem>>, vector<1x32x16xf32>
    %30 = vector.shape_cast %29 : vector<1x32x16xf32> to vector<32x16xf32>
    %c0_27 = arith.constant 0 : index
    %c0_28 = arith.constant 0 : index
    %c6 = arith.constant 6 : index
    %31 = vector.load %arg1[%c0_27, %c0_28, %c6] : memref<1x32x26xf32, #tpu.memory_space<vmem>>, vector<1x32x16xf32>
    %32 = vector.shape_cast %31 : vector<1x32x16xf32> to vector<32x16xf32>
    %c1_29 = arith.constant 1 : index
    %c0_30 = arith.constant 0 : index
    %33 = vector.load %arg3[%c1_29, %c0_30] : memref<2x16xf32, #tpu.memory_space<vmem>>, vector<1x16xf32>
    %34 = vector.broadcast %33 : vector<1x16xf32> to vector<32x16xf32>
    %35 = arith.mulf %32, %34 : vector<32x16xf32>
    %c0_31 = arith.constant 0 : index
    %c0_32 = arith.constant 0 : index
    %c1_33 = arith.constant 1 : index
    %36 = vector.load %arg1[%c0_31, %c0_32, %c1_33] : memref<1x32x26xf32, #tpu.memory_space<vmem>>, vector<1x32x16xf32>
    %37 = vector.shape_cast %36 : vector<1x32x16xf32> to vector<32x16xf32>
    %c0_34 = arith.constant 0 : index
    %c0_35 = arith.constant 0 : index
    %c2 = arith.constant 2 : index
    %38 = vector.load %arg1[%c0_34, %c0_35, %c2] : memref<1x32x26xf32, #tpu.memory_space<vmem>>, vector<1x32x16xf32>
    %39 = vector.shape_cast %38 : vector<1x32x16xf32> to vector<32x16xf32>
    %c1_36 = arith.constant 1 : index
    %c0_37 = arith.constant 0 : index
    %40 = vector.load %arg3[%c1_36, %c0_37] : memref<2x16xf32, #tpu.memory_space<vmem>>, vector<1x16xf32>
    %41 = vector.broadcast %40 : vector<1x16xf32> to vector<32x16xf32>
    %42 = arith.mulf %39, %41 : vector<32x16xf32>
    %43 = tpu.concatenate %30, %35, %37, %42 in 0 : vector<32x16xf32>, vector<32x16xf32>, vector<32x16xf32>, vector<32x16xf32> -> vector<128x16xf32>
    %c1_38 = arith.constant 1 : index
    %c0_39 = arith.constant 0 : index
    %c0_40 = arith.constant 0 : index
    %44 = vector.load %arg2[%c1_38, %c0_39, %c0_40] : memref<4x16x128xf32, #tpu.memory_space<vmem>>, vector<1x16x128xf32>
    %45 = vector.shape_cast %44 : vector<1x16x128xf32> to vector<16x128xf32>
    %cst_41 = arith.constant dense<0.000000e+00> : vector<16x16xf32>
    %46 = tpu.matmul %45, %43, %cst_41 {dimension_numbers = #tpu.dot_dimension_numbers<[1], [0], [0], [1], [0, 0, 1, 1], [], []>} : vector<16x128xf32>, vector<128x16xf32>, vector<16x16xf32> -> vector<16x16xf32>
    %47 = vector.broadcast %0 : vector<16x1xf32> to vector<16x16xf32>
    %48 = arith.mulf %46, %47 : vector<16x16xf32>
    %49 = vector.broadcast %1 : vector<16x1xf32> to vector<16x16xf32>
    %50 = arith.addf %48, %49 : vector<16x16xf32>
    %cst_42 = arith.constant 0.000000e+00 : f32
    %51 = vector.broadcast %cst_42 : f32 to vector<16x16xf32>
    %52 = arith.maximumf %50, %51 : vector<16x16xf32>
    %c0_43 = arith.constant 0 : index
    %c1_44 = arith.constant 1 : index
    %c0_45 = arith.constant 0 : index
    %c0_46 = arith.constant 0 : index
    %53 = vector.load %arg6[%c0_43, %c1_44, %c0_45, %c0_46] : memref<1x4x16x16xf32, #tpu.memory_space<vmem>>, vector<1x1x16x16xf32>
    %54 = vector.shape_cast %53 : vector<1x1x16x16xf32> to vector<16x16xf32>
    %55 = vector.shape_cast %52 : vector<16x16xf32> to vector<1x1x16x16xf32>
    tpu.vector_store %arg6[%c0_43, %c1_44, %c0_45, %c0_46], %55 {strides = array<i32>} : memref<1x4x16x16xf32, #tpu.memory_space<vmem>>, vector<1x1x16x16xf32>,
    %c0_47 = arith.constant 0 : index
    %c0_48 = arith.constant 0 : index
    %c5_49 = arith.constant 5 : index
    %56 = vector.load %arg1[%c0_47, %c0_48, %c5_49] : memref<1x32x26xf32, #tpu.memory_space<vmem>>, vector<1x32x16xf32>
    %57 = vector.shape_cast %56 : vector<1x32x16xf32> to vector<32x16xf32>
    %c0_50 = arith.constant 0 : index
    %c0_51 = arith.constant 0 : index
    %c4_52 = arith.constant 4 : index
    %58 = vector.load %arg1[%c0_50, %c0_51, %c4_52] : memref<1x32x26xf32, #tpu.memory_space<vmem>>, vector<1x32x16xf32>
    %59 = vector.shape_cast %58 : vector<1x32x16xf32> to vector<32x16xf32>
    %c0_53 = arith.constant 0 : index
    %c0_54 = arith.constant 0 : index
    %60 = vector.load %arg3[%c0_53, %c0_54] : memref<2x16xf32, #tpu.memory_space<vmem>>, vector<1x16xf32>
    %61 = vector.broadcast %60 : vector<1x16xf32> to vector<32x16xf32>
    %62 = arith.mulf %59, %61 : vector<32x16xf32>
    %c0_55 = arith.constant 0 : index
    %c0_56 = arith.constant 0 : index
    %c9 = arith.constant 9 : index
    %63 = vector.load %arg1[%c0_55, %c0_56, %c9] : memref<1x32x26xf32, #tpu.memory_space<vmem>>, vector<1x32x16xf32>
    %64 = vector.shape_cast %63 : vector<1x32x16xf32> to vector<32x16xf32>
    %c0_57 = arith.constant 0 : index
    %c0_58 = arith.constant 0 : index
    %c8 = arith.constant 8 : index
    %65 = vector.load %arg1[%c0_57, %c0_58, %c8] : memref<1x32x26xf32, #tpu.memory_space<vmem>>, vector<1x32x16xf32>
    %66 = vector.shape_cast %65 : vector<1x32x16xf32> to vector<32x16xf32>
    %c0_59 = arith.constant 0 : index
    %c0_60 = arith.constant 0 : index
    %67 = vector.load %arg3[%c0_59, %c0_60] : memref<2x16xf32, #tpu.memory_space<vmem>>, vector<1x16xf32>
    %68 = vector.broadcast %67 : vector<1x16xf32> to vector<32x16xf32>
    %69 = arith.mulf %66, %68 : vector<32x16xf32>
    %70 = tpu.concatenate %57, %62, %64, %69 in 0 : vector<32x16xf32>, vector<32x16xf32>, vector<32x16xf32>, vector<32x16xf32> -> vector<128x16xf32>
    %c2_61 = arith.constant 2 : index
    %c0_62 = arith.constant 0 : index
    %c0_63 = arith.constant 0 : index
    %71 = vector.load %arg2[%c2_61, %c0_62, %c0_63] : memref<4x16x128xf32, #tpu.memory_space<vmem>>, vector<1x16x128xf32>
    %72 = vector.shape_cast %71 : vector<1x16x128xf32> to vector<16x128xf32>
    %cst_64 = arith.constant dense<0.000000e+00> : vector<16x16xf32>
    %73 = tpu.matmul %72, %70, %cst_64 {dimension_numbers = #tpu.dot_dimension_numbers<[1], [0], [0], [1], [0, 0, 1, 1], [], []>} : vector<16x128xf32>, vector<128x16xf32>, vector<16x16xf32> -> vector<16x16xf32>
    %74 = vector.broadcast %0 : vector<16x1xf32> to vector<16x16xf32>
    %75 = arith.mulf %73, %74 : vector<16x16xf32>
    %76 = vector.broadcast %1 : vector<16x1xf32> to vector<16x16xf32>
    %77 = arith.addf %75, %76 : vector<16x16xf32>
    %cst_65 = arith.constant 0.000000e+00 : f32
    %78 = vector.broadcast %cst_65 : f32 to vector<16x16xf32>
    %79 = arith.maximumf %77, %78 : vector<16x16xf32>
    %c0_66 = arith.constant 0 : index
    %c2_67 = arith.constant 2 : index
    %c0_68 = arith.constant 0 : index
    %c0_69 = arith.constant 0 : index
    %80 = vector.load %arg6[%c0_66, %c2_67, %c0_68, %c0_69] : memref<1x4x16x16xf32, #tpu.memory_space<vmem>>, vector<1x1x16x16xf32>
    %81 = vector.shape_cast %80 : vector<1x1x16x16xf32> to vector<16x16xf32>
    %82 = vector.shape_cast %79 : vector<16x16xf32> to vector<1x1x16x16xf32>
    tpu.vector_store %arg6[%c0_66, %c2_67, %c0_68, %c0_69], %82 {strides = array<i32>} : memref<1x4x16x16xf32, #tpu.memory_space<vmem>>, vector<1x1x16x16xf32>,
    %c0_70 = arith.constant 0 : index
    %c0_71 = arith.constant 0 : index
    %c5_72 = arith.constant 5 : index
    %83 = vector.load %arg1[%c0_70, %c0_71, %c5_72] : memref<1x32x26xf32, #tpu.memory_space<vmem>>, vector<1x32x16xf32>
    %84 = vector.shape_cast %83 : vector<1x32x16xf32> to vector<32x16xf32>
    %c0_73 = arith.constant 0 : index
    %c0_74 = arith.constant 0 : index
    %c6_75 = arith.constant 6 : index
    %85 = vector.load %arg1[%c0_73, %c0_74, %c6_75] : memref<1x32x26xf32, #tpu.memory_space<vmem>>, vector<1x32x16xf32>
    %86 = vector.shape_cast %85 : vector<1x32x16xf32> to vector<32x16xf32>
    %c1_76 = arith.constant 1 : index
    %c0_77 = arith.constant 0 : index
    %87 = vector.load %arg3[%c1_76, %c0_77] : memref<2x16xf32, #tpu.memory_space<vmem>>, vector<1x16xf32>
    %88 = vector.broadcast %87 : vector<1x16xf32> to vector<32x16xf32>
    %89 = arith.mulf %86, %88 : vector<32x16xf32>
    %c0_78 = arith.constant 0 : index
    %c0_79 = arith.constant 0 : index
    %c9_80 = arith.constant 9 : index
    %90 = vector.load %arg1[%c0_78, %c0_79, %c9_80] : memref<1x32x26xf32, #tpu.memory_space<vmem>>, vector<1x32x16xf32>
    %91 = vector.shape_cast %90 : vector<1x32x16xf32> to vector<32x16xf32>
    %c0_81 = arith.constant 0 : index
    %c0_82 = arith.constant 0 : index
    %c10 = arith.constant 10 : index
    %92 = vector.load %arg1[%c0_81, %c0_82, %c10] : memref<1x32x26xf32, #tpu.memory_space<vmem>>, vector<1x32x16xf32>
    %93 = vector.shape_cast %92 : vector<1x32x16xf32> to vector<32x16xf32>
    %c1_83 = arith.constant 1 : index
    %c0_84 = arith.constant 0 : index
    %94 = vector.load %arg3[%c1_83, %c0_84] : memref<2x16xf32, #tpu.memory_space<vmem>>, vector<1x16xf32>
    %95 = vector.broadcast %94 : vector<1x16xf32> to vector<32x16xf32>
    %96 = arith.mulf %93, %95 : vector<32x16xf32>
    %97 = tpu.concatenate %84, %89, %91, %96 in 0 : vector<32x16xf32>, vector<32x16xf32>, vector<32x16xf32>, vector<32x16xf32> -> vector<128x16xf32>
    %c3 = arith.constant 3 : index
    %c0_85 = arith.constant 0 : index
    %c0_86 = arith.constant 0 : index
    %98 = vector.load %arg2[%c3, %c0_85, %c0_86] : memref<4x16x128xf32, #tpu.memory_space<vmem>>, vector<1x16x128xf32>
    %99 = vector.shape_cast %98 : vector<1x16x128xf32> to vector<16x128xf32>
    %cst_87 = arith.constant dense<0.000000e+00> : vector<16x16xf32>
    %100 = tpu.matmul %99, %97, %cst_87 {dimension_numbers = #tpu.dot_dimension_numbers<[1], [0], [0], [1], [0, 0, 1, 1], [], []>} : vector<16x128xf32>, vector<128x16xf32>, vector<16x16xf32> -> vector<16x16xf32>
    %101 = vector.broadcast %0 : vector<16x1xf32> to vector<16x16xf32>
    %102 = arith.mulf %100, %101 : vector<16x16xf32>
    %103 = vector.broadcast %1 : vector<16x1xf32> to vector<16x16xf32>
    %104 = arith.addf %102, %103 : vector<16x16xf32>
    %cst_88 = arith.constant 0.000000e+00 : f32
    %105 = vector.broadcast %cst_88 : f32 to vector<16x16xf32>
    %106 = arith.maximumf %104, %105 : vector<16x16xf32>
    %c0_89 = arith.constant 0 : index
    %c3_90 = arith.constant 3 : index
    %c0_91 = arith.constant 0 : index
    %c0_92 = arith.constant 0 : index
    %107 = vector.load %arg6[%c0_89, %c3_90, %c0_91, %c0_92] : memref<1x4x16x16xf32, #tpu.memory_space<vmem>>, vector<1x1x16x16xf32>
    %108 = vector.shape_cast %107 : vector<1x1x16x16xf32> to vector<16x16xf32>
    %109 = vector.shape_cast %106 : vector<16x16xf32> to vector<1x1x16x16xf32>
    tpu.vector_store %arg6[%c0_89, %c3_90, %c0_91, %c0_92], %109 {strides = array<i32>} : memref<1x4x16x16xf32, #tpu.memory_space<vmem>>, vector<1x1x16x16xf32>,
    return
  }
  func.func @transform_0(%arg0: i32) -> (i32, i32, i32) {
    %c0_i32 = arith.constant 0 : i32
    %c0_i32_0 = arith.constant 0 : i32
    %c0_i32_1 = arith.constant 0 : i32
    return %arg0, %c0_i32, %c0_i32_0 : i32, i32, i32
  }
  func.func @transform_1(%arg0: i32) -> (i32, i32, i32) {
    %c0_i32 = arith.constant 0 : i32
    %c0_i32_0 = arith.constant 0 : i32
    %c0_i32_1 = arith.constant 0 : i32
    %c0_i32_2 = arith.constant 0 : i32
    return %c0_i32, %c0_i32_0, %c0_i32_1 : i32, i32, i32
  }
  func.func @transform_2(%arg0: i32) -> (i32, i32) {
    %c0_i32 = arith.constant 0 : i32
    %c0_i32_0 = arith.constant 0 : i32
    %c0_i32_1 = arith.constant 0 : i32
    return %c0_i32, %c0_i32_0 : i32, i32
  }
  func.func @transform_3(%arg0: i32) -> (i32, i32) {
    %c0_i32 = arith.constant 0 : i32
    %c0_i32_0 = arith.constant 0 : i32
    %c0_i32_1 = arith.constant 0 : i32
    return %c0_i32, %c0_i32_0 : i32, i32
  }
  func.func @transform_4(%arg0: i32) -> (i32, i32) {
    %c0_i32 = arith.constant 0 : i32
    %c0_i32_0 = arith.constant 0 : i32
    %c0_i32_1 = arith.constant 0 : i32
    return %c0_i32, %c0_i32_0 : i32, i32
  }
  func.func @transform_5(%arg0: i32) -> (i32, i32, i32, i32) {
    %c0_i32 = arith.constant 0 : i32
    %c0_i32_0 = arith.constant 0 : i32
    %c0_i32_1 = arith.constant 0 : i32
    %c0_i32_2 = arith.constant 0 : i32
    return %arg0, %c0_i32, %c0_i32_0, %c0_i32_1 : i32, i32, i32, i32
  }
}

module attributes {stable_mosaic.version = 11 : i64} {
  func.func @kernel(%arg0: i32, %arg1: memref<1x16x82xf32, #tpu.memory_space<vmem>>, %arg2: memref<4x8x64xf32, #tpu.memory_space<vmem>>, %arg3: memref<2x64xf32, #tpu.memory_space<vmem>>, %arg4: memref<8x1xf32, #tpu.memory_space<vmem>>, %arg5: memref<8x1xf32, #tpu.memory_space<vmem>>, %arg6: memref<1x4x8x64xf32, #tpu.memory_space<vmem>>) attributes {dimension_semantics = [#tpu.dimension_semantics<parallel>], iteration_bounds = array<i64: 2>, scalar_prefetch = 0 : i64, scratch_operands = 0 : i64, tpu.core_type = #tpu.core_type<tc>, window_params = [{transform_indices = @transform_0, window_bounds = array<i64: 1, 16, 82>}, {pipeline_mode = #tpu.pipeline_mode<synchronous>, transform_indices = @transform_1, window_bounds = array<i64: 4, 8, 64>}, {pipeline_mode = #tpu.pipeline_mode<synchronous>, transform_indices = @transform_2, window_bounds = array<i64: 2, 64>}, {pipeline_mode = #tpu.pipeline_mode<synchronous>, transform_indices = @transform_3, window_bounds = array<i64: 8, 1>}, {pipeline_mode = #tpu.pipeline_mode<synchronous>, transform_indices = @transform_4, window_bounds = array<i64: 8, 1>}, {transform_indices = @transform_5, window_bounds = array<i64: 1, 4, 8, 64>}]} {
    %c0 = arith.constant 0 : index
    %c0_0 = arith.constant 0 : index
    %0 = vector.load %arg4[%c0, %c0_0] : memref<8x1xf32, #tpu.memory_space<vmem>>, vector<8x1xf32>
    %c0_1 = arith.constant 0 : index
    %c0_2 = arith.constant 0 : index
    %1 = vector.load %arg5[%c0_1, %c0_2] : memref<8x1xf32, #tpu.memory_space<vmem>>, vector<8x1xf32>
    %c0_3 = arith.constant 0 : index
    %c0_4 = arith.constant 0 : index
    %c9 = arith.constant 9 : index
    %2 = vector.load %arg1[%c0_3, %c0_4, %c9] : memref<1x16x82xf32, #tpu.memory_space<vmem>>, vector<1x16x64xf32>
    %3 = vector.shape_cast %2 : vector<1x16x64xf32> to vector<16x64xf32>
    %c0_5 = arith.constant 0 : index
    %c0_6 = arith.constant 0 : index
    %c8 = arith.constant 8 : index
    %4 = vector.load %arg1[%c0_5, %c0_6, %c8] : memref<1x16x82xf32, #tpu.memory_space<vmem>>, vector<1x16x64xf32>
    %5 = vector.shape_cast %4 : vector<1x16x64xf32> to vector<16x64xf32>
    %c0_7 = arith.constant 0 : index
    %c0_8 = arith.constant 0 : index
    %6 = vector.load %arg3[%c0_7, %c0_8] : memref<2x64xf32, #tpu.memory_space<vmem>>, vector<1x64xf32>
    %7 = vector.broadcast %6 : vector<1x64xf32> to vector<16x64xf32>
    %8 = arith.mulf %5, %7 : vector<16x64xf32>
    %c0_9 = arith.constant 0 : index
    %c0_10 = arith.constant 0 : index
    %c1 = arith.constant 1 : index
    %9 = vector.load %arg1[%c0_9, %c0_10, %c1] : memref<1x16x82xf32, #tpu.memory_space<vmem>>, vector<1x16x64xf32>
    %10 = vector.shape_cast %9 : vector<1x16x64xf32> to vector<16x64xf32>
    %c0_11 = arith.constant 0 : index
    %c0_12 = arith.constant 0 : index
    %c0_13 = arith.constant 0 : index
    %11 = vector.load %arg1[%c0_11, %c0_12, %c0_13] : memref<1x16x82xf32, #tpu.memory_space<vmem>>, vector<1x16x64xf32>
    %12 = vector.shape_cast %11 : vector<1x16x64xf32> to vector<16x64xf32>
    %c0_14 = arith.constant 0 : index
    %c0_15 = arith.constant 0 : index
    %13 = vector.load %arg3[%c0_14, %c0_15] : memref<2x64xf32, #tpu.memory_space<vmem>>, vector<1x64xf32>
    %14 = vector.broadcast %13 : vector<1x64xf32> to vector<16x64xf32>
    %15 = arith.mulf %12, %14 : vector<16x64xf32>
    %16 = tpu.concatenate %3, %8, %10, %15 in 0 : vector<16x64xf32>, vector<16x64xf32>, vector<16x64xf32>, vector<16x64xf32> -> vector<64x64xf32>
    %c0_16 = arith.constant 0 : index
    %c0_17 = arith.constant 0 : index
    %c0_18 = arith.constant 0 : index
    %17 = vector.load %arg2[%c0_16, %c0_17, %c0_18] : memref<4x8x64xf32, #tpu.memory_space<vmem>>, vector<1x8x64xf32>
    %18 = vector.shape_cast %17 : vector<1x8x64xf32> to vector<8x64xf32>
    %cst = arith.constant dense<0.000000e+00> : vector<8x64xf32>
    %19 = tpu.matmul %18, %16, %cst {dimension_numbers = #tpu.dot_dimension_numbers<[1], [0], [0], [1], [0, 0, 1, 1], [], []>} : vector<8x64xf32>, vector<64x64xf32>, vector<8x64xf32> -> vector<8x64xf32>
    %20 = vector.broadcast %0 : vector<8x1xf32> to vector<8x64xf32>
    %21 = arith.mulf %19, %20 : vector<8x64xf32>
    %22 = vector.broadcast %1 : vector<8x1xf32> to vector<8x64xf32>
    %23 = arith.addf %21, %22 : vector<8x64xf32>
    %cst_19 = arith.constant 0.000000e+00 : f32
    %24 = vector.broadcast %cst_19 : f32 to vector<8x64xf32>
    %25 = arith.maximumf %23, %24 : vector<8x64xf32>
    %c0_20 = arith.constant 0 : index
    %c0_21 = arith.constant 0 : index
    %c0_22 = arith.constant 0 : index
    %c0_23 = arith.constant 0 : index
    %26 = vector.load %arg6[%c0_20, %c0_21, %c0_22, %c0_23] : memref<1x4x8x64xf32, #tpu.memory_space<vmem>>, vector<1x1x8x64xf32>
    %27 = vector.shape_cast %26 : vector<1x1x8x64xf32> to vector<8x64xf32>
    %28 = vector.shape_cast %25 : vector<8x64xf32> to vector<1x1x8x64xf32>
    tpu.vector_store %arg6[%c0_20, %c0_21, %c0_22, %c0_23], %28 {strides = array<i32>} : memref<1x4x8x64xf32, #tpu.memory_space<vmem>>, vector<1x1x8x64xf32>,
    %c0_24 = arith.constant 0 : index
    %c0_25 = arith.constant 0 : index
    %c9_26 = arith.constant 9 : index
    %29 = vector.load %arg1[%c0_24, %c0_25, %c9_26] : memref<1x16x82xf32, #tpu.memory_space<vmem>>, vector<1x16x64xf32>
    %30 = vector.shape_cast %29 : vector<1x16x64xf32> to vector<16x64xf32>
    %c0_27 = arith.constant 0 : index
    %c0_28 = arith.constant 0 : index
    %c10 = arith.constant 10 : index
    %31 = vector.load %arg1[%c0_27, %c0_28, %c10] : memref<1x16x82xf32, #tpu.memory_space<vmem>>, vector<1x16x64xf32>
    %32 = vector.shape_cast %31 : vector<1x16x64xf32> to vector<16x64xf32>
    %c1_29 = arith.constant 1 : index
    %c0_30 = arith.constant 0 : index
    %33 = vector.load %arg3[%c1_29, %c0_30] : memref<2x64xf32, #tpu.memory_space<vmem>>, vector<1x64xf32>
    %34 = vector.broadcast %33 : vector<1x64xf32> to vector<16x64xf32>
    %35 = arith.mulf %32, %34 : vector<16x64xf32>
    %c0_31 = arith.constant 0 : index
    %c0_32 = arith.constant 0 : index
    %c1_33 = arith.constant 1 : index
    %36 = vector.load %arg1[%c0_31, %c0_32, %c1_33] : memref<1x16x82xf32, #tpu.memory_space<vmem>>, vector<1x16x64xf32>
    %37 = vector.shape_cast %36 : vector<1x16x64xf32> to vector<16x64xf32>
    %c0_34 = arith.constant 0 : index
    %c0_35 = arith.constant 0 : index
    %c2 = arith.constant 2 : index
    %38 = vector.load %arg1[%c0_34, %c0_35, %c2] : memref<1x16x82xf32, #tpu.memory_space<vmem>>, vector<1x16x64xf32>
    %39 = vector.shape_cast %38 : vector<1x16x64xf32> to vector<16x64xf32>
    %c1_36 = arith.constant 1 : index
    %c0_37 = arith.constant 0 : index
    %40 = vector.load %arg3[%c1_36, %c0_37] : memref<2x64xf32, #tpu.memory_space<vmem>>, vector<1x64xf32>
    %41 = vector.broadcast %40 : vector<1x64xf32> to vector<16x64xf32>
    %42 = arith.mulf %39, %41 : vector<16x64xf32>
    %43 = tpu.concatenate %30, %35, %37, %42 in 0 : vector<16x64xf32>, vector<16x64xf32>, vector<16x64xf32>, vector<16x64xf32> -> vector<64x64xf32>
    %c1_38 = arith.constant 1 : index
    %c0_39 = arith.constant 0 : index
    %c0_40 = arith.constant 0 : index
    %44 = vector.load %arg2[%c1_38, %c0_39, %c0_40] : memref<4x8x64xf32, #tpu.memory_space<vmem>>, vector<1x8x64xf32>
    %45 = vector.shape_cast %44 : vector<1x8x64xf32> to vector<8x64xf32>
    %cst_41 = arith.constant dense<0.000000e+00> : vector<8x64xf32>
    %46 = tpu.matmul %45, %43, %cst_41 {dimension_numbers = #tpu.dot_dimension_numbers<[1], [0], [0], [1], [0, 0, 1, 1], [], []>} : vector<8x64xf32>, vector<64x64xf32>, vector<8x64xf32> -> vector<8x64xf32>
    %47 = vector.broadcast %0 : vector<8x1xf32> to vector<8x64xf32>
    %48 = arith.mulf %46, %47 : vector<8x64xf32>
    %49 = vector.broadcast %1 : vector<8x1xf32> to vector<8x64xf32>
    %50 = arith.addf %48, %49 : vector<8x64xf32>
    %cst_42 = arith.constant 0.000000e+00 : f32
    %51 = vector.broadcast %cst_42 : f32 to vector<8x64xf32>
    %52 = arith.maximumf %50, %51 : vector<8x64xf32>
    %c0_43 = arith.constant 0 : index
    %c1_44 = arith.constant 1 : index
    %c0_45 = arith.constant 0 : index
    %c0_46 = arith.constant 0 : index
    %53 = vector.load %arg6[%c0_43, %c1_44, %c0_45, %c0_46] : memref<1x4x8x64xf32, #tpu.memory_space<vmem>>, vector<1x1x8x64xf32>
    %54 = vector.shape_cast %53 : vector<1x1x8x64xf32> to vector<8x64xf32>
    %55 = vector.shape_cast %52 : vector<8x64xf32> to vector<1x1x8x64xf32>
    tpu.vector_store %arg6[%c0_43, %c1_44, %c0_45, %c0_46], %55 {strides = array<i32>} : memref<1x4x8x64xf32, #tpu.memory_space<vmem>>, vector<1x1x8x64xf32>,
    %c0_47 = arith.constant 0 : index
    %c0_48 = arith.constant 0 : index
    %c9_49 = arith.constant 9 : index
    %56 = vector.load %arg1[%c0_47, %c0_48, %c9_49] : memref<1x16x82xf32, #tpu.memory_space<vmem>>, vector<1x16x64xf32>
    %57 = vector.shape_cast %56 : vector<1x16x64xf32> to vector<16x64xf32>
    %c0_50 = arith.constant 0 : index
    %c0_51 = arith.constant 0 : index
    %c8_52 = arith.constant 8 : index
    %58 = vector.load %arg1[%c0_50, %c0_51, %c8_52] : memref<1x16x82xf32, #tpu.memory_space<vmem>>, vector<1x16x64xf32>
    %59 = vector.shape_cast %58 : vector<1x16x64xf32> to vector<16x64xf32>
    %c0_53 = arith.constant 0 : index
    %c0_54 = arith.constant 0 : index
    %60 = vector.load %arg3[%c0_53, %c0_54] : memref<2x64xf32, #tpu.memory_space<vmem>>, vector<1x64xf32>
    %61 = vector.broadcast %60 : vector<1x64xf32> to vector<16x64xf32>
    %62 = arith.mulf %59, %61 : vector<16x64xf32>
    %c0_55 = arith.constant 0 : index
    %c0_56 = arith.constant 0 : index
    %c17 = arith.constant 17 : index
    %63 = vector.load %arg1[%c0_55, %c0_56, %c17] : memref<1x16x82xf32, #tpu.memory_space<vmem>>, vector<1x16x64xf32>
    %64 = vector.shape_cast %63 : vector<1x16x64xf32> to vector<16x64xf32>
    %c0_57 = arith.constant 0 : index
    %c0_58 = arith.constant 0 : index
    %c16 = arith.constant 16 : index
    %65 = vector.load %arg1[%c0_57, %c0_58, %c16] : memref<1x16x82xf32, #tpu.memory_space<vmem>>, vector<1x16x64xf32>
    %66 = vector.shape_cast %65 : vector<1x16x64xf32> to vector<16x64xf32>
    %c0_59 = arith.constant 0 : index
    %c0_60 = arith.constant 0 : index
    %67 = vector.load %arg3[%c0_59, %c0_60] : memref<2x64xf32, #tpu.memory_space<vmem>>, vector<1x64xf32>
    %68 = vector.broadcast %67 : vector<1x64xf32> to vector<16x64xf32>
    %69 = arith.mulf %66, %68 : vector<16x64xf32>
    %70 = tpu.concatenate %57, %62, %64, %69 in 0 : vector<16x64xf32>, vector<16x64xf32>, vector<16x64xf32>, vector<16x64xf32> -> vector<64x64xf32>
    %c2_61 = arith.constant 2 : index
    %c0_62 = arith.constant 0 : index
    %c0_63 = arith.constant 0 : index
    %71 = vector.load %arg2[%c2_61, %c0_62, %c0_63] : memref<4x8x64xf32, #tpu.memory_space<vmem>>, vector<1x8x64xf32>
    %72 = vector.shape_cast %71 : vector<1x8x64xf32> to vector<8x64xf32>
    %cst_64 = arith.constant dense<0.000000e+00> : vector<8x64xf32>
    %73 = tpu.matmul %72, %70, %cst_64 {dimension_numbers = #tpu.dot_dimension_numbers<[1], [0], [0], [1], [0, 0, 1, 1], [], []>} : vector<8x64xf32>, vector<64x64xf32>, vector<8x64xf32> -> vector<8x64xf32>
    %74 = vector.broadcast %0 : vector<8x1xf32> to vector<8x64xf32>
    %75 = arith.mulf %73, %74 : vector<8x64xf32>
    %76 = vector.broadcast %1 : vector<8x1xf32> to vector<8x64xf32>
    %77 = arith.addf %75, %76 : vector<8x64xf32>
    %cst_65 = arith.constant 0.000000e+00 : f32
    %78 = vector.broadcast %cst_65 : f32 to vector<8x64xf32>
    %79 = arith.maximumf %77, %78 : vector<8x64xf32>
    %c0_66 = arith.constant 0 : index
    %c2_67 = arith.constant 2 : index
    %c0_68 = arith.constant 0 : index
    %c0_69 = arith.constant 0 : index
    %80 = vector.load %arg6[%c0_66, %c2_67, %c0_68, %c0_69] : memref<1x4x8x64xf32, #tpu.memory_space<vmem>>, vector<1x1x8x64xf32>
    %81 = vector.shape_cast %80 : vector<1x1x8x64xf32> to vector<8x64xf32>
    %82 = vector.shape_cast %79 : vector<8x64xf32> to vector<1x1x8x64xf32>
    tpu.vector_store %arg6[%c0_66, %c2_67, %c0_68, %c0_69], %82 {strides = array<i32>} : memref<1x4x8x64xf32, #tpu.memory_space<vmem>>, vector<1x1x8x64xf32>,
    %c0_70 = arith.constant 0 : index
    %c0_71 = arith.constant 0 : index
    %c9_72 = arith.constant 9 : index
    %83 = vector.load %arg1[%c0_70, %c0_71, %c9_72] : memref<1x16x82xf32, #tpu.memory_space<vmem>>, vector<1x16x64xf32>
    %84 = vector.shape_cast %83 : vector<1x16x64xf32> to vector<16x64xf32>
    %c0_73 = arith.constant 0 : index
    %c0_74 = arith.constant 0 : index
    %c10_75 = arith.constant 10 : index
    %85 = vector.load %arg1[%c0_73, %c0_74, %c10_75] : memref<1x16x82xf32, #tpu.memory_space<vmem>>, vector<1x16x64xf32>
    %86 = vector.shape_cast %85 : vector<1x16x64xf32> to vector<16x64xf32>
    %c1_76 = arith.constant 1 : index
    %c0_77 = arith.constant 0 : index
    %87 = vector.load %arg3[%c1_76, %c0_77] : memref<2x64xf32, #tpu.memory_space<vmem>>, vector<1x64xf32>
    %88 = vector.broadcast %87 : vector<1x64xf32> to vector<16x64xf32>
    %89 = arith.mulf %86, %88 : vector<16x64xf32>
    %c0_78 = arith.constant 0 : index
    %c0_79 = arith.constant 0 : index
    %c17_80 = arith.constant 17 : index
    %90 = vector.load %arg1[%c0_78, %c0_79, %c17_80] : memref<1x16x82xf32, #tpu.memory_space<vmem>>, vector<1x16x64xf32>
    %91 = vector.shape_cast %90 : vector<1x16x64xf32> to vector<16x64xf32>
    %c0_81 = arith.constant 0 : index
    %c0_82 = arith.constant 0 : index
    %c18 = arith.constant 18 : index
    %92 = vector.load %arg1[%c0_81, %c0_82, %c18] : memref<1x16x82xf32, #tpu.memory_space<vmem>>, vector<1x16x64xf32>
    %93 = vector.shape_cast %92 : vector<1x16x64xf32> to vector<16x64xf32>
    %c1_83 = arith.constant 1 : index
    %c0_84 = arith.constant 0 : index
    %94 = vector.load %arg3[%c1_83, %c0_84] : memref<2x64xf32, #tpu.memory_space<vmem>>, vector<1x64xf32>
    %95 = vector.broadcast %94 : vector<1x64xf32> to vector<16x64xf32>
    %96 = arith.mulf %93, %95 : vector<16x64xf32>
    %97 = tpu.concatenate %84, %89, %91, %96 in 0 : vector<16x64xf32>, vector<16x64xf32>, vector<16x64xf32>, vector<16x64xf32> -> vector<64x64xf32>
    %c3 = arith.constant 3 : index
    %c0_85 = arith.constant 0 : index
    %c0_86 = arith.constant 0 : index
    %98 = vector.load %arg2[%c3, %c0_85, %c0_86] : memref<4x8x64xf32, #tpu.memory_space<vmem>>, vector<1x8x64xf32>
    %99 = vector.shape_cast %98 : vector<1x8x64xf32> to vector<8x64xf32>
    %cst_87 = arith.constant dense<0.000000e+00> : vector<8x64xf32>
    %100 = tpu.matmul %99, %97, %cst_87 {dimension_numbers = #tpu.dot_dimension_numbers<[1], [0], [0], [1], [0, 0, 1, 1], [], []>} : vector<8x64xf32>, vector<64x64xf32>, vector<8x64xf32> -> vector<8x64xf32>
    %101 = vector.broadcast %0 : vector<8x1xf32> to vector<8x64xf32>
    %102 = arith.mulf %100, %101 : vector<8x64xf32>
    %103 = vector.broadcast %1 : vector<8x1xf32> to vector<8x64xf32>
    %104 = arith.addf %102, %103 : vector<8x64xf32>
    %cst_88 = arith.constant 0.000000e+00 : f32
    %105 = vector.broadcast %cst_88 : f32 to vector<8x64xf32>
    %106 = arith.maximumf %104, %105 : vector<8x64xf32>
    %c0_89 = arith.constant 0 : index
    %c3_90 = arith.constant 3 : index
    %c0_91 = arith.constant 0 : index
    %c0_92 = arith.constant 0 : index
    %107 = vector.load %arg6[%c0_89, %c3_90, %c0_91, %c0_92] : memref<1x4x8x64xf32, #tpu.memory_space<vmem>>, vector<1x1x8x64xf32>
    %108 = vector.shape_cast %107 : vector<1x1x8x64xf32> to vector<8x64xf32>
    %109 = vector.shape_cast %106 : vector<8x64xf32> to vector<1x1x8x64xf32>
    tpu.vector_store %arg6[%c0_89, %c3_90, %c0_91, %c0_92], %109 {strides = array<i32>} : memref<1x4x8x64xf32, #tpu.memory_space<vmem>>, vector<1x1x8x64xf32>,
    return
  }
  func.func @transform_0(%arg0: i32) -> (i32, i32, i32) {
    %c0_i32 = arith.constant 0 : i32
    %c0_i32_0 = arith.constant 0 : i32
    %c0_i32_1 = arith.constant 0 : i32
    return %arg0, %c0_i32, %c0_i32_0 : i32, i32, i32
  }
  func.func @transform_1(%arg0: i32) -> (i32, i32, i32) {
    %c0_i32 = arith.constant 0 : i32
    %c0_i32_0 = arith.constant 0 : i32
    %c0_i32_1 = arith.constant 0 : i32
    %c0_i32_2 = arith.constant 0 : i32
    return %c0_i32, %c0_i32_0, %c0_i32_1 : i32, i32, i32
  }
  func.func @transform_2(%arg0: i32) -> (i32, i32) {
    %c0_i32 = arith.constant 0 : i32
    %c0_i32_0 = arith.constant 0 : i32
    %c0_i32_1 = arith.constant 0 : i32
    return %c0_i32, %c0_i32_0 : i32, i32
  }
  func.func @transform_3(%arg0: i32) -> (i32, i32) {
    %c0_i32 = arith.constant 0 : i32
    %c0_i32_0 = arith.constant 0 : i32
    %c0_i32_1 = arith.constant 0 : i32
    return %c0_i32, %c0_i32_0 : i32, i32
  }
  func.func @transform_4(%arg0: i32) -> (i32, i32) {
    %c0_i32 = arith.constant 0 : i32
    %c0_i32_0 = arith.constant 0 : i32
    %c0_i32_1 = arith.constant 0 : i32
    return %c0_i32, %c0_i32_0 : i32, i32
  }
  func.func @transform_5(%arg0: i32) -> (i32, i32, i32, i32) {
    %c0_i32 = arith.constant 0 : i32
    %c0_i32_0 = arith.constant 0 : i32
    %c0_i32_1 = arith.constant 0 : i32
    %c0_i32_2 = arith.constant 0 : i32
    return %arg0, %c0_i32, %c0_i32_0, %c0_i32_1 : i32, i32, i32, i32
  }
}

module attributes {stable_mosaic.version = 11 : i64} {
  func.func @kernel(%arg0: i32, %arg1: memref<1x8x290xf32, #tpu.memory_space<vmem>>, %arg2: memref<4x4x32xf32, #tpu.memory_space<vmem>>, %arg3: memref<2x256xf32, #tpu.memory_space<vmem>>, %arg4: memref<4x1xf32, #tpu.memory_space<vmem>>, %arg5: memref<4x1xf32, #tpu.memory_space<vmem>>, %arg6: memref<1x4x4x256xf32, #tpu.memory_space<vmem>>) attributes {dimension_semantics = [#tpu.dimension_semantics<parallel>], iteration_bounds = array<i64: 2>, scalar_prefetch = 0 : i64, scratch_operands = 0 : i64, tpu.core_type = #tpu.core_type<tc>, window_params = [{transform_indices = @transform_0, window_bounds = array<i64: 1, 8, 290>}, {pipeline_mode = #tpu.pipeline_mode<synchronous>, transform_indices = @transform_1, window_bounds = array<i64: 4, 4, 32>}, {pipeline_mode = #tpu.pipeline_mode<synchronous>, transform_indices = @transform_2, window_bounds = array<i64: 2, 256>}, {pipeline_mode = #tpu.pipeline_mode<synchronous>, transform_indices = @transform_3, window_bounds = array<i64: 4, 1>}, {pipeline_mode = #tpu.pipeline_mode<synchronous>, transform_indices = @transform_4, window_bounds = array<i64: 4, 1>}, {transform_indices = @transform_5, window_bounds = array<i64: 1, 4, 4, 256>}]} {
    %c0 = arith.constant 0 : index
    %c0_0 = arith.constant 0 : index
    %0 = vector.load %arg4[%c0, %c0_0] : memref<4x1xf32, #tpu.memory_space<vmem>>, vector<4x1xf32>
    %c0_1 = arith.constant 0 : index
    %c0_2 = arith.constant 0 : index
    %1 = vector.load %arg5[%c0_1, %c0_2] : memref<4x1xf32, #tpu.memory_space<vmem>>, vector<4x1xf32>
    %c0_3 = arith.constant 0 : index
    %c0_4 = arith.constant 0 : index
    %c17 = arith.constant 17 : index
    %2 = vector.load %arg1[%c0_3, %c0_4, %c17] : memref<1x8x290xf32, #tpu.memory_space<vmem>>, vector<1x8x256xf32>
    %3 = vector.shape_cast %2 : vector<1x8x256xf32> to vector<8x256xf32>
    %c0_5 = arith.constant 0 : index
    %c0_6 = arith.constant 0 : index
    %c16 = arith.constant 16 : index
    %4 = vector.load %arg1[%c0_5, %c0_6, %c16] : memref<1x8x290xf32, #tpu.memory_space<vmem>>, vector<1x8x256xf32>
    %5 = vector.shape_cast %4 : vector<1x8x256xf32> to vector<8x256xf32>
    %c0_7 = arith.constant 0 : index
    %c0_8 = arith.constant 0 : index
    %6 = vector.load %arg3[%c0_7, %c0_8] : memref<2x256xf32, #tpu.memory_space<vmem>>, vector<1x256xf32>
    %7 = vector.broadcast %6 : vector<1x256xf32> to vector<8x256xf32>
    %8 = arith.mulf %5, %7 : vector<8x256xf32>
    %c0_9 = arith.constant 0 : index
    %c0_10 = arith.constant 0 : index
    %c1 = arith.constant 1 : index
    %9 = vector.load %arg1[%c0_9, %c0_10, %c1] : memref<1x8x290xf32, #tpu.memory_space<vmem>>, vector<1x8x256xf32>
    %10 = vector.shape_cast %9 : vector<1x8x256xf32> to vector<8x256xf32>
    %c0_11 = arith.constant 0 : index
    %c0_12 = arith.constant 0 : index
    %c0_13 = arith.constant 0 : index
    %11 = vector.load %arg1[%c0_11, %c0_12, %c0_13] : memref<1x8x290xf32, #tpu.memory_space<vmem>>, vector<1x8x256xf32>
    %12 = vector.shape_cast %11 : vector<1x8x256xf32> to vector<8x256xf32>
    %c0_14 = arith.constant 0 : index
    %c0_15 = arith.constant 0 : index
    %13 = vector.load %arg3[%c0_14, %c0_15] : memref<2x256xf32, #tpu.memory_space<vmem>>, vector<1x256xf32>
    %14 = vector.broadcast %13 : vector<1x256xf32> to vector<8x256xf32>
    %15 = arith.mulf %12, %14 : vector<8x256xf32>
    %16 = tpu.concatenate %3, %8, %10, %15 in 0 : vector<8x256xf32>, vector<8x256xf32>, vector<8x256xf32>, vector<8x256xf32> -> vector<32x256xf32>
    %c0_16 = arith.constant 0 : index
    %c0_17 = arith.constant 0 : index
    %c0_18 = arith.constant 0 : index
    %17 = vector.load %arg2[%c0_16, %c0_17, %c0_18] : memref<4x4x32xf32, #tpu.memory_space<vmem>>, vector<1x4x32xf32>
    %18 = vector.shape_cast %17 : vector<1x4x32xf32> to vector<4x32xf32>
    %cst = arith.constant dense<0.000000e+00> : vector<4x256xf32>
    %19 = tpu.matmul %18, %16, %cst {dimension_numbers = #tpu.dot_dimension_numbers<[1], [0], [0], [1], [0, 0, 1, 1], [], []>} : vector<4x32xf32>, vector<32x256xf32>, vector<4x256xf32> -> vector<4x256xf32>
    %20 = vector.broadcast %0 : vector<4x1xf32> to vector<4x256xf32>
    %21 = arith.mulf %19, %20 : vector<4x256xf32>
    %22 = vector.broadcast %1 : vector<4x1xf32> to vector<4x256xf32>
    %23 = arith.addf %21, %22 : vector<4x256xf32>
    %cst_19 = arith.constant 0.000000e+00 : f32
    %24 = vector.broadcast %cst_19 : f32 to vector<4x256xf32>
    %25 = arith.maximumf %23, %24 : vector<4x256xf32>
    %c0_20 = arith.constant 0 : index
    %c0_21 = arith.constant 0 : index
    %c0_22 = arith.constant 0 : index
    %c0_23 = arith.constant 0 : index
    %26 = vector.load %arg6[%c0_20, %c0_21, %c0_22, %c0_23] : memref<1x4x4x256xf32, #tpu.memory_space<vmem>>, vector<1x1x4x256xf32>
    %27 = vector.shape_cast %26 : vector<1x1x4x256xf32> to vector<4x256xf32>
    %28 = vector.shape_cast %25 : vector<4x256xf32> to vector<1x1x4x256xf32>
    tpu.vector_store %arg6[%c0_20, %c0_21, %c0_22, %c0_23], %28 {strides = array<i32>} : memref<1x4x4x256xf32, #tpu.memory_space<vmem>>, vector<1x1x4x256xf32>,
    %c0_24 = arith.constant 0 : index
    %c0_25 = arith.constant 0 : index
    %c17_26 = arith.constant 17 : index
    %29 = vector.load %arg1[%c0_24, %c0_25, %c17_26] : memref<1x8x290xf32, #tpu.memory_space<vmem>>, vector<1x8x256xf32>
    %30 = vector.shape_cast %29 : vector<1x8x256xf32> to vector<8x256xf32>
    %c0_27 = arith.constant 0 : index
    %c0_28 = arith.constant 0 : index
    %c18 = arith.constant 18 : index
    %31 = vector.load %arg1[%c0_27, %c0_28, %c18] : memref<1x8x290xf32, #tpu.memory_space<vmem>>, vector<1x8x256xf32>
    %32 = vector.shape_cast %31 : vector<1x8x256xf32> to vector<8x256xf32>
    %c1_29 = arith.constant 1 : index
    %c0_30 = arith.constant 0 : index
    %33 = vector.load %arg3[%c1_29, %c0_30] : memref<2x256xf32, #tpu.memory_space<vmem>>, vector<1x256xf32>
    %34 = vector.broadcast %33 : vector<1x256xf32> to vector<8x256xf32>
    %35 = arith.mulf %32, %34 : vector<8x256xf32>
    %c0_31 = arith.constant 0 : index
    %c0_32 = arith.constant 0 : index
    %c1_33 = arith.constant 1 : index
    %36 = vector.load %arg1[%c0_31, %c0_32, %c1_33] : memref<1x8x290xf32, #tpu.memory_space<vmem>>, vector<1x8x256xf32>
    %37 = vector.shape_cast %36 : vector<1x8x256xf32> to vector<8x256xf32>
    %c0_34 = arith.constant 0 : index
    %c0_35 = arith.constant 0 : index
    %c2 = arith.constant 2 : index
    %38 = vector.load %arg1[%c0_34, %c0_35, %c2] : memref<1x8x290xf32, #tpu.memory_space<vmem>>, vector<1x8x256xf32>
    %39 = vector.shape_cast %38 : vector<1x8x256xf32> to vector<8x256xf32>
    %c1_36 = arith.constant 1 : index
    %c0_37 = arith.constant 0 : index
    %40 = vector.load %arg3[%c1_36, %c0_37] : memref<2x256xf32, #tpu.memory_space<vmem>>, vector<1x256xf32>
    %41 = vector.broadcast %40 : vector<1x256xf32> to vector<8x256xf32>
    %42 = arith.mulf %39, %41 : vector<8x256xf32>
    %43 = tpu.concatenate %30, %35, %37, %42 in 0 : vector<8x256xf32>, vector<8x256xf32>, vector<8x256xf32>, vector<8x256xf32> -> vector<32x256xf32>
    %c1_38 = arith.constant 1 : index
    %c0_39 = arith.constant 0 : index
    %c0_40 = arith.constant 0 : index
    %44 = vector.load %arg2[%c1_38, %c0_39, %c0_40] : memref<4x4x32xf32, #tpu.memory_space<vmem>>, vector<1x4x32xf32>
    %45 = vector.shape_cast %44 : vector<1x4x32xf32> to vector<4x32xf32>
    %cst_41 = arith.constant dense<0.000000e+00> : vector<4x256xf32>
    %46 = tpu.matmul %45, %43, %cst_41 {dimension_numbers = #tpu.dot_dimension_numbers<[1], [0], [0], [1], [0, 0, 1, 1], [], []>} : vector<4x32xf32>, vector<32x256xf32>, vector<4x256xf32> -> vector<4x256xf32>
    %47 = vector.broadcast %0 : vector<4x1xf32> to vector<4x256xf32>
    %48 = arith.mulf %46, %47 : vector<4x256xf32>
    %49 = vector.broadcast %1 : vector<4x1xf32> to vector<4x256xf32>
    %50 = arith.addf %48, %49 : vector<4x256xf32>
    %cst_42 = arith.constant 0.000000e+00 : f32
    %51 = vector.broadcast %cst_42 : f32 to vector<4x256xf32>
    %52 = arith.maximumf %50, %51 : vector<4x256xf32>
    %c0_43 = arith.constant 0 : index
    %c1_44 = arith.constant 1 : index
    %c0_45 = arith.constant 0 : index
    %c0_46 = arith.constant 0 : index
    %53 = vector.load %arg6[%c0_43, %c1_44, %c0_45, %c0_46] : memref<1x4x4x256xf32, #tpu.memory_space<vmem>>, vector<1x1x4x256xf32>
    %54 = vector.shape_cast %53 : vector<1x1x4x256xf32> to vector<4x256xf32>
    %55 = vector.shape_cast %52 : vector<4x256xf32> to vector<1x1x4x256xf32>
    tpu.vector_store %arg6[%c0_43, %c1_44, %c0_45, %c0_46], %55 {strides = array<i32>} : memref<1x4x4x256xf32, #tpu.memory_space<vmem>>, vector<1x1x4x256xf32>,
    %c0_47 = arith.constant 0 : index
    %c0_48 = arith.constant 0 : index
    %c17_49 = arith.constant 17 : index
    %56 = vector.load %arg1[%c0_47, %c0_48, %c17_49] : memref<1x8x290xf32, #tpu.memory_space<vmem>>, vector<1x8x256xf32>
    %57 = vector.shape_cast %56 : vector<1x8x256xf32> to vector<8x256xf32>
    %c0_50 = arith.constant 0 : index
    %c0_51 = arith.constant 0 : index
    %c16_52 = arith.constant 16 : index
    %58 = vector.load %arg1[%c0_50, %c0_51, %c16_52] : memref<1x8x290xf32, #tpu.memory_space<vmem>>, vector<1x8x256xf32>
    %59 = vector.shape_cast %58 : vector<1x8x256xf32> to vector<8x256xf32>
    %c0_53 = arith.constant 0 : index
    %c0_54 = arith.constant 0 : index
    %60 = vector.load %arg3[%c0_53, %c0_54] : memref<2x256xf32, #tpu.memory_space<vmem>>, vector<1x256xf32>
    %61 = vector.broadcast %60 : vector<1x256xf32> to vector<8x256xf32>
    %62 = arith.mulf %59, %61 : vector<8x256xf32>
    %c0_55 = arith.constant 0 : index
    %c0_56 = arith.constant 0 : index
    %c33 = arith.constant 33 : index
    %63 = vector.load %arg1[%c0_55, %c0_56, %c33] : memref<1x8x290xf32, #tpu.memory_space<vmem>>, vector<1x8x256xf32>
    %64 = vector.shape_cast %63 : vector<1x8x256xf32> to vector<8x256xf32>
    %c0_57 = arith.constant 0 : index
    %c0_58 = arith.constant 0 : index
    %c32 = arith.constant 32 : index
    %65 = vector.load %arg1[%c0_57, %c0_58, %c32] : memref<1x8x290xf32, #tpu.memory_space<vmem>>, vector<1x8x256xf32>
    %66 = vector.shape_cast %65 : vector<1x8x256xf32> to vector<8x256xf32>
    %c0_59 = arith.constant 0 : index
    %c0_60 = arith.constant 0 : index
    %67 = vector.load %arg3[%c0_59, %c0_60] : memref<2x256xf32, #tpu.memory_space<vmem>>, vector<1x256xf32>
    %68 = vector.broadcast %67 : vector<1x256xf32> to vector<8x256xf32>
    %69 = arith.mulf %66, %68 : vector<8x256xf32>
    %70 = tpu.concatenate %57, %62, %64, %69 in 0 : vector<8x256xf32>, vector<8x256xf32>, vector<8x256xf32>, vector<8x256xf32> -> vector<32x256xf32>
    %c2_61 = arith.constant 2 : index
    %c0_62 = arith.constant 0 : index
    %c0_63 = arith.constant 0 : index
    %71 = vector.load %arg2[%c2_61, %c0_62, %c0_63] : memref<4x4x32xf32, #tpu.memory_space<vmem>>, vector<1x4x32xf32>
    %72 = vector.shape_cast %71 : vector<1x4x32xf32> to vector<4x32xf32>
    %cst_64 = arith.constant dense<0.000000e+00> : vector<4x256xf32>
    %73 = tpu.matmul %72, %70, %cst_64 {dimension_numbers = #tpu.dot_dimension_numbers<[1], [0], [0], [1], [0, 0, 1, 1], [], []>} : vector<4x32xf32>, vector<32x256xf32>, vector<4x256xf32> -> vector<4x256xf32>
    %74 = vector.broadcast %0 : vector<4x1xf32> to vector<4x256xf32>
    %75 = arith.mulf %73, %74 : vector<4x256xf32>
    %76 = vector.broadcast %1 : vector<4x1xf32> to vector<4x256xf32>
    %77 = arith.addf %75, %76 : vector<4x256xf32>
    %cst_65 = arith.constant 0.000000e+00 : f32
    %78 = vector.broadcast %cst_65 : f32 to vector<4x256xf32>
    %79 = arith.maximumf %77, %78 : vector<4x256xf32>
    %c0_66 = arith.constant 0 : index
    %c2_67 = arith.constant 2 : index
    %c0_68 = arith.constant 0 : index
    %c0_69 = arith.constant 0 : index
    %80 = vector.load %arg6[%c0_66, %c2_67, %c0_68, %c0_69] : memref<1x4x4x256xf32, #tpu.memory_space<vmem>>, vector<1x1x4x256xf32>
    %81 = vector.shape_cast %80 : vector<1x1x4x256xf32> to vector<4x256xf32>
    %82 = vector.shape_cast %79 : vector<4x256xf32> to vector<1x1x4x256xf32>
    tpu.vector_store %arg6[%c0_66, %c2_67, %c0_68, %c0_69], %82 {strides = array<i32>} : memref<1x4x4x256xf32, #tpu.memory_space<vmem>>, vector<1x1x4x256xf32>,
    %c0_70 = arith.constant 0 : index
    %c0_71 = arith.constant 0 : index
    %c17_72 = arith.constant 17 : index
    %83 = vector.load %arg1[%c0_70, %c0_71, %c17_72] : memref<1x8x290xf32, #tpu.memory_space<vmem>>, vector<1x8x256xf32>
    %84 = vector.shape_cast %83 : vector<1x8x256xf32> to vector<8x256xf32>
    %c0_73 = arith.constant 0 : index
    %c0_74 = arith.constant 0 : index
    %c18_75 = arith.constant 18 : index
    %85 = vector.load %arg1[%c0_73, %c0_74, %c18_75] : memref<1x8x290xf32, #tpu.memory_space<vmem>>, vector<1x8x256xf32>
    %86 = vector.shape_cast %85 : vector<1x8x256xf32> to vector<8x256xf32>
    %c1_76 = arith.constant 1 : index
    %c0_77 = arith.constant 0 : index
    %87 = vector.load %arg3[%c1_76, %c0_77] : memref<2x256xf32, #tpu.memory_space<vmem>>, vector<1x256xf32>
    %88 = vector.broadcast %87 : vector<1x256xf32> to vector<8x256xf32>
    %89 = arith.mulf %86, %88 : vector<8x256xf32>
    %c0_78 = arith.constant 0 : index
    %c0_79 = arith.constant 0 : index
    %c33_80 = arith.constant 33 : index
    %90 = vector.load %arg1[%c0_78, %c0_79, %c33_80] : memref<1x8x290xf32, #tpu.memory_space<vmem>>, vector<1x8x256xf32>
    %91 = vector.shape_cast %90 : vector<1x8x256xf32> to vector<8x256xf32>
    %c0_81 = arith.constant 0 : index
    %c0_82 = arith.constant 0 : index
    %c34 = arith.constant 34 : index
    %92 = vector.load %arg1[%c0_81, %c0_82, %c34] : memref<1x8x290xf32, #tpu.memory_space<vmem>>, vector<1x8x256xf32>
    %93 = vector.shape_cast %92 : vector<1x8x256xf32> to vector<8x256xf32>
    %c1_83 = arith.constant 1 : index
    %c0_84 = arith.constant 0 : index
    %94 = vector.load %arg3[%c1_83, %c0_84] : memref<2x256xf32, #tpu.memory_space<vmem>>, vector<1x256xf32>
    %95 = vector.broadcast %94 : vector<1x256xf32> to vector<8x256xf32>
    %96 = arith.mulf %93, %95 : vector<8x256xf32>
    %97 = tpu.concatenate %84, %89, %91, %96 in 0 : vector<8x256xf32>, vector<8x256xf32>, vector<8x256xf32>, vector<8x256xf32> -> vector<32x256xf32>
    %c3 = arith.constant 3 : index
    %c0_85 = arith.constant 0 : index
    %c0_86 = arith.constant 0 : index
    %98 = vector.load %arg2[%c3, %c0_85, %c0_86] : memref<4x4x32xf32, #tpu.memory_space<vmem>>, vector<1x4x32xf32>
    %99 = vector.shape_cast %98 : vector<1x4x32xf32> to vector<4x32xf32>
    %cst_87 = arith.constant dense<0.000000e+00> : vector<4x256xf32>
    %100 = tpu.matmul %99, %97, %cst_87 {dimension_numbers = #tpu.dot_dimension_numbers<[1], [0], [0], [1], [0, 0, 1, 1], [], []>} : vector<4x32xf32>, vector<32x256xf32>, vector<4x256xf32> -> vector<4x256xf32>
    %101 = vector.broadcast %0 : vector<4x1xf32> to vector<4x256xf32>
    %102 = arith.mulf %100, %101 : vector<4x256xf32>
    %103 = vector.broadcast %1 : vector<4x1xf32> to vector<4x256xf32>
    %104 = arith.addf %102, %103 : vector<4x256xf32>
    %cst_88 = arith.constant 0.000000e+00 : f32
    %105 = vector.broadcast %cst_88 : f32 to vector<4x256xf32>
    %106 = arith.maximumf %104, %105 : vector<4x256xf32>
    %c0_89 = arith.constant 0 : index
    %c3_90 = arith.constant 3 : index
    %c0_91 = arith.constant 0 : index
    %c0_92 = arith.constant 0 : index
    %107 = vector.load %arg6[%c0_89, %c3_90, %c0_91, %c0_92] : memref<1x4x4x256xf32, #tpu.memory_space<vmem>>, vector<1x1x4x256xf32>
    %108 = vector.shape_cast %107 : vector<1x1x4x256xf32> to vector<4x256xf32>
    %109 = vector.shape_cast %106 : vector<4x256xf32> to vector<1x1x4x256xf32>
    tpu.vector_store %arg6[%c0_89, %c3_90, %c0_91, %c0_92], %109 {strides = array<i32>} : memref<1x4x4x256xf32, #tpu.memory_space<vmem>>, vector<1x1x4x256xf32>,
    return
  }
  func.func @transform_0(%arg0: i32) -> (i32, i32, i32) {
    %c0_i32 = arith.constant 0 : i32
    %c0_i32_0 = arith.constant 0 : i32
    %c0_i32_1 = arith.constant 0 : i32
    return %arg0, %c0_i32, %c0_i32_0 : i32, i32, i32
  }
  func.func @transform_1(%arg0: i32) -> (i32, i32, i32) {
    %c0_i32 = arith.constant 0 : i32
    %c0_i32_0 = arith.constant 0 : i32
    %c0_i32_1 = arith.constant 0 : i32
    %c0_i32_2 = arith.constant 0 : i32
    return %c0_i32, %c0_i32_0, %c0_i32_1 : i32, i32, i32
  }
  func.func @transform_2(%arg0: i32) -> (i32, i32) {
    %c0_i32 = arith.constant 0 : i32
    %c0_i32_0 = arith.constant 0 : i32
    %c0_i32_1 = arith.constant 0 : i32
    return %c0_i32, %c0_i32_0 : i32, i32
  }
  func.func @transform_3(%arg0: i32) -> (i32, i32) {
    %c0_i32 = arith.constant 0 : i32
    %c0_i32_0 = arith.constant 0 : i32
    %c0_i32_1 = arith.constant 0 : i32
    return %c0_i32, %c0_i32_0 : i32, i32
  }
  func.func @transform_4(%arg0: i32) -> (i32, i32) {
    %c0_i32 = arith.constant 0 : i32
    %c0_i32_0 = arith.constant 0 : i32
    %c0_i32_1 = arith.constant 0 : i32
    return %c0_i32, %c0_i32_0 : i32, i32
  }
  func.func @transform_5(%arg0: i32) -> (i32, i32, i32, i32) {
    %c0_i32 = arith.constant 0 : i32
    %c0_i32_0 = arith.constant 0 : i32
    %c0_i32_1 = arith.constant 0 : i32
    %c0_i32_2 = arith.constant 0 : i32
    return %arg0, %c0_i32, %c0_i32_0, %c0_i32_1 : i32, i32, i32, i32
  }
}

module attributes {stable_mosaic.version = 11 : i64} {
  func.func @kernel(%arg0: i32, %arg1: memref<1x4x1090xf32, #tpu.memory_space<vmem>>, %arg2: memref<4x3x16xf32, #tpu.memory_space<vmem>>, %arg3: memref<2x1024xf32, #tpu.memory_space<vmem>>, %arg4: memref<3x1xf32, #tpu.memory_space<vmem>>, %arg5: memref<3x1xf32, #tpu.memory_space<vmem>>, %arg6: memref<1x4x3x1024xf32, #tpu.memory_space<vmem>>) attributes {dimension_semantics = [#tpu.dimension_semantics<parallel>], iteration_bounds = array<i64: 2>, scalar_prefetch = 0 : i64, scratch_operands = 0 : i64, tpu.core_type = #tpu.core_type<tc>, window_params = [{transform_indices = @transform_0, window_bounds = array<i64: 1, 4, 1090>}, {pipeline_mode = #tpu.pipeline_mode<synchronous>, transform_indices = @transform_1, window_bounds = array<i64: 4, 3, 16>}, {pipeline_mode = #tpu.pipeline_mode<synchronous>, transform_indices = @transform_2, window_bounds = array<i64: 2, 1024>}, {pipeline_mode = #tpu.pipeline_mode<synchronous>, transform_indices = @transform_3, window_bounds = array<i64: 3, 1>}, {pipeline_mode = #tpu.pipeline_mode<synchronous>, transform_indices = @transform_4, window_bounds = array<i64: 3, 1>}, {transform_indices = @transform_5, window_bounds = array<i64: 1, 4, 3, 1024>}]} {
    %c0 = arith.constant 0 : index
    %c0_0 = arith.constant 0 : index
    %0 = vector.load %arg4[%c0, %c0_0] : memref<3x1xf32, #tpu.memory_space<vmem>>, vector<3x1xf32>
    %c0_1 = arith.constant 0 : index
    %c0_2 = arith.constant 0 : index
    %1 = vector.load %arg5[%c0_1, %c0_2] : memref<3x1xf32, #tpu.memory_space<vmem>>, vector<3x1xf32>
    %c0_3 = arith.constant 0 : index
    %c0_4 = arith.constant 0 : index
    %c33 = arith.constant 33 : index
    %2 = vector.load %arg1[%c0_3, %c0_4, %c33] : memref<1x4x1090xf32, #tpu.memory_space<vmem>>, vector<1x4x1024xf32>
    %3 = vector.shape_cast %2 : vector<1x4x1024xf32> to vector<4x1024xf32>
    %c0_5 = arith.constant 0 : index
    %c0_6 = arith.constant 0 : index
    %c32 = arith.constant 32 : index
    %4 = vector.load %arg1[%c0_5, %c0_6, %c32] : memref<1x4x1090xf32, #tpu.memory_space<vmem>>, vector<1x4x1024xf32>
    %5 = vector.shape_cast %4 : vector<1x4x1024xf32> to vector<4x1024xf32>
    %c0_7 = arith.constant 0 : index
    %c0_8 = arith.constant 0 : index
    %6 = vector.load %arg3[%c0_7, %c0_8] : memref<2x1024xf32, #tpu.memory_space<vmem>>, vector<1x1024xf32>
    %7 = vector.broadcast %6 : vector<1x1024xf32> to vector<4x1024xf32>
    %8 = arith.mulf %5, %7 : vector<4x1024xf32>
    %c0_9 = arith.constant 0 : index
    %c0_10 = arith.constant 0 : index
    %c1 = arith.constant 1 : index
    %9 = vector.load %arg1[%c0_9, %c0_10, %c1] : memref<1x4x1090xf32, #tpu.memory_space<vmem>>, vector<1x4x1024xf32>
    %10 = vector.shape_cast %9 : vector<1x4x1024xf32> to vector<4x1024xf32>
    %c0_11 = arith.constant 0 : index
    %c0_12 = arith.constant 0 : index
    %c0_13 = arith.constant 0 : index
    %11 = vector.load %arg1[%c0_11, %c0_12, %c0_13] : memref<1x4x1090xf32, #tpu.memory_space<vmem>>, vector<1x4x1024xf32>
    %12 = vector.shape_cast %11 : vector<1x4x1024xf32> to vector<4x1024xf32>
    %c0_14 = arith.constant 0 : index
    %c0_15 = arith.constant 0 : index
    %13 = vector.load %arg3[%c0_14, %c0_15] : memref<2x1024xf32, #tpu.memory_space<vmem>>, vector<1x1024xf32>
    %14 = vector.broadcast %13 : vector<1x1024xf32> to vector<4x1024xf32>
    %15 = arith.mulf %12, %14 : vector<4x1024xf32>
    %16 = tpu.concatenate %3, %8, %10, %15 in 0 : vector<4x1024xf32>, vector<4x1024xf32>, vector<4x1024xf32>, vector<4x1024xf32> -> vector<16x1024xf32>
    %c0_16 = arith.constant 0 : index
    %c0_17 = arith.constant 0 : index
    %c0_18 = arith.constant 0 : index
    %17 = vector.load %arg2[%c0_16, %c0_17, %c0_18] : memref<4x3x16xf32, #tpu.memory_space<vmem>>, vector<1x3x16xf32>
    %18 = vector.shape_cast %17 : vector<1x3x16xf32> to vector<3x16xf32>
    %cst = arith.constant dense<0.000000e+00> : vector<3x1024xf32>
    %19 = tpu.matmul %18, %16, %cst {dimension_numbers = #tpu.dot_dimension_numbers<[1], [0], [0], [1], [0, 0, 1, 1], [], []>} : vector<3x16xf32>, vector<16x1024xf32>, vector<3x1024xf32> -> vector<3x1024xf32>
    %20 = vector.broadcast %0 : vector<3x1xf32> to vector<3x1024xf32>
    %21 = arith.mulf %19, %20 : vector<3x1024xf32>
    %22 = vector.broadcast %1 : vector<3x1xf32> to vector<3x1024xf32>
    %23 = arith.addf %21, %22 : vector<3x1024xf32>
    %24 = math.tanh %23 : vector<3x1024xf32>
    %c0_19 = arith.constant 0 : index
    %c0_20 = arith.constant 0 : index
    %c0_21 = arith.constant 0 : index
    %c0_22 = arith.constant 0 : index
    %25 = vector.load %arg6[%c0_19, %c0_20, %c0_21, %c0_22] : memref<1x4x3x1024xf32, #tpu.memory_space<vmem>>, vector<1x1x3x1024xf32>
    %26 = vector.shape_cast %25 : vector<1x1x3x1024xf32> to vector<3x1024xf32>
    %27 = vector.shape_cast %24 : vector<3x1024xf32> to vector<1x1x3x1024xf32>
    tpu.vector_store %arg6[%c0_19, %c0_20, %c0_21, %c0_22], %27 {strides = array<i32>} : memref<1x4x3x1024xf32, #tpu.memory_space<vmem>>, vector<1x1x3x1024xf32>,
    %c0_23 = arith.constant 0 : index
    %c0_24 = arith.constant 0 : index
    %c33_25 = arith.constant 33 : index
    %28 = vector.load %arg1[%c0_23, %c0_24, %c33_25] : memref<1x4x1090xf32, #tpu.memory_space<vmem>>, vector<1x4x1024xf32>
    %29 = vector.shape_cast %28 : vector<1x4x1024xf32> to vector<4x1024xf32>
    %c0_26 = arith.constant 0 : index
    %c0_27 = arith.constant 0 : index
    %c34 = arith.constant 34 : index
    %30 = vector.load %arg1[%c0_26, %c0_27, %c34] : memref<1x4x1090xf32, #tpu.memory_space<vmem>>, vector<1x4x1024xf32>
    %31 = vector.shape_cast %30 : vector<1x4x1024xf32> to vector<4x1024xf32>
    %c1_28 = arith.constant 1 : index
    %c0_29 = arith.constant 0 : index
    %32 = vector.load %arg3[%c1_28, %c0_29] : memref<2x1024xf32, #tpu.memory_space<vmem>>, vector<1x1024xf32>
    %33 = vector.broadcast %32 : vector<1x1024xf32> to vector<4x1024xf32>
    %34 = arith.mulf %31, %33 : vector<4x1024xf32>
    %c0_30 = arith.constant 0 : index
    %c0_31 = arith.constant 0 : index
    %c1_32 = arith.constant 1 : index
    %35 = vector.load %arg1[%c0_30, %c0_31, %c1_32] : memref<1x4x1090xf32, #tpu.memory_space<vmem>>, vector<1x4x1024xf32>
    %36 = vector.shape_cast %35 : vector<1x4x1024xf32> to vector<4x1024xf32>
    %c0_33 = arith.constant 0 : index
    %c0_34 = arith.constant 0 : index
    %c2 = arith.constant 2 : index
    %37 = vector.load %arg1[%c0_33, %c0_34, %c2] : memref<1x4x1090xf32, #tpu.memory_space<vmem>>, vector<1x4x1024xf32>
    %38 = vector.shape_cast %37 : vector<1x4x1024xf32> to vector<4x1024xf32>
    %c1_35 = arith.constant 1 : index
    %c0_36 = arith.constant 0 : index
    %39 = vector.load %arg3[%c1_35, %c0_36] : memref<2x1024xf32, #tpu.memory_space<vmem>>, vector<1x1024xf32>
    %40 = vector.broadcast %39 : vector<1x1024xf32> to vector<4x1024xf32>
    %41 = arith.mulf %38, %40 : vector<4x1024xf32>
    %42 = tpu.concatenate %29, %34, %36, %41 in 0 : vector<4x1024xf32>, vector<4x1024xf32>, vector<4x1024xf32>, vector<4x1024xf32> -> vector<16x1024xf32>
    %c1_37 = arith.constant 1 : index
    %c0_38 = arith.constant 0 : index
    %c0_39 = arith.constant 0 : index
    %43 = vector.load %arg2[%c1_37, %c0_38, %c0_39] : memref<4x3x16xf32, #tpu.memory_space<vmem>>, vector<1x3x16xf32>
    %44 = vector.shape_cast %43 : vector<1x3x16xf32> to vector<3x16xf32>
    %cst_40 = arith.constant dense<0.000000e+00> : vector<3x1024xf32>
    %45 = tpu.matmul %44, %42, %cst_40 {dimension_numbers = #tpu.dot_dimension_numbers<[1], [0], [0], [1], [0, 0, 1, 1], [], []>} : vector<3x16xf32>, vector<16x1024xf32>, vector<3x1024xf32> -> vector<3x1024xf32>
    %46 = vector.broadcast %0 : vector<3x1xf32> to vector<3x1024xf32>
    %47 = arith.mulf %45, %46 : vector<3x1024xf32>
    %48 = vector.broadcast %1 : vector<3x1xf32> to vector<3x1024xf32>
    %49 = arith.addf %47, %48 : vector<3x1024xf32>
    %50 = math.tanh %49 : vector<3x1024xf32>
    %c0_41 = arith.constant 0 : index
    %c1_42 = arith.constant 1 : index
    %c0_43 = arith.constant 0 : index
    %c0_44 = arith.constant 0 : index
    %51 = vector.load %arg6[%c0_41, %c1_42, %c0_43, %c0_44] : memref<1x4x3x1024xf32, #tpu.memory_space<vmem>>, vector<1x1x3x1024xf32>
    %52 = vector.shape_cast %51 : vector<1x1x3x1024xf32> to vector<3x1024xf32>
    %53 = vector.shape_cast %50 : vector<3x1024xf32> to vector<1x1x3x1024xf32>
    tpu.vector_store %arg6[%c0_41, %c1_42, %c0_43, %c0_44], %53 {strides = array<i32>} : memref<1x4x3x1024xf32, #tpu.memory_space<vmem>>, vector<1x1x3x1024xf32>,
    %c0_45 = arith.constant 0 : index
    %c0_46 = arith.constant 0 : index
    %c33_47 = arith.constant 33 : index
    %54 = vector.load %arg1[%c0_45, %c0_46, %c33_47] : memref<1x4x1090xf32, #tpu.memory_space<vmem>>, vector<1x4x1024xf32>
    %55 = vector.shape_cast %54 : vector<1x4x1024xf32> to vector<4x1024xf32>
    %c0_48 = arith.constant 0 : index
    %c0_49 = arith.constant 0 : index
    %c32_50 = arith.constant 32 : index
    %56 = vector.load %arg1[%c0_48, %c0_49, %c32_50] : memref<1x4x1090xf32, #tpu.memory_space<vmem>>, vector<1x4x1024xf32>
    %57 = vector.shape_cast %56 : vector<1x4x1024xf32> to vector<4x1024xf32>
    %c0_51 = arith.constant 0 : index
    %c0_52 = arith.constant 0 : index
    %58 = vector.load %arg3[%c0_51, %c0_52] : memref<2x1024xf32, #tpu.memory_space<vmem>>, vector<1x1024xf32>
    %59 = vector.broadcast %58 : vector<1x1024xf32> to vector<4x1024xf32>
    %60 = arith.mulf %57, %59 : vector<4x1024xf32>
    %c0_53 = arith.constant 0 : index
    %c0_54 = arith.constant 0 : index
    %c65 = arith.constant 65 : index
    %61 = vector.load %arg1[%c0_53, %c0_54, %c65] : memref<1x4x1090xf32, #tpu.memory_space<vmem>>, vector<1x4x1024xf32>
    %62 = vector.shape_cast %61 : vector<1x4x1024xf32> to vector<4x1024xf32>
    %c0_55 = arith.constant 0 : index
    %c0_56 = arith.constant 0 : index
    %c64 = arith.constant 64 : index
    %63 = vector.load %arg1[%c0_55, %c0_56, %c64] : memref<1x4x1090xf32, #tpu.memory_space<vmem>>, vector<1x4x1024xf32>
    %64 = vector.shape_cast %63 : vector<1x4x1024xf32> to vector<4x1024xf32>
    %c0_57 = arith.constant 0 : index
    %c0_58 = arith.constant 0 : index
    %65 = vector.load %arg3[%c0_57, %c0_58] : memref<2x1024xf32, #tpu.memory_space<vmem>>, vector<1x1024xf32>
    %66 = vector.broadcast %65 : vector<1x1024xf32> to vector<4x1024xf32>
    %67 = arith.mulf %64, %66 : vector<4x1024xf32>
    %68 = tpu.concatenate %55, %60, %62, %67 in 0 : vector<4x1024xf32>, vector<4x1024xf32>, vector<4x1024xf32>, vector<4x1024xf32> -> vector<16x1024xf32>
    %c2_59 = arith.constant 2 : index
    %c0_60 = arith.constant 0 : index
    %c0_61 = arith.constant 0 : index
    %69 = vector.load %arg2[%c2_59, %c0_60, %c0_61] : memref<4x3x16xf32, #tpu.memory_space<vmem>>, vector<1x3x16xf32>
    %70 = vector.shape_cast %69 : vector<1x3x16xf32> to vector<3x16xf32>
    %cst_62 = arith.constant dense<0.000000e+00> : vector<3x1024xf32>
    %71 = tpu.matmul %70, %68, %cst_62 {dimension_numbers = #tpu.dot_dimension_numbers<[1], [0], [0], [1], [0, 0, 1, 1], [], []>} : vector<3x16xf32>, vector<16x1024xf32>, vector<3x1024xf32> -> vector<3x1024xf32>
    %72 = vector.broadcast %0 : vector<3x1xf32> to vector<3x1024xf32>
    %73 = arith.mulf %71, %72 : vector<3x1024xf32>
    %74 = vector.broadcast %1 : vector<3x1xf32> to vector<3x1024xf32>
    %75 = arith.addf %73, %74 : vector<3x1024xf32>
    %76 = math.tanh %75 : vector<3x1024xf32>
    %c0_63 = arith.constant 0 : index
    %c2_64 = arith.constant 2 : index
    %c0_65 = arith.constant 0 : index
    %c0_66 = arith.constant 0 : index
    %77 = vector.load %arg6[%c0_63, %c2_64, %c0_65, %c0_66] : memref<1x4x3x1024xf32, #tpu.memory_space<vmem>>, vector<1x1x3x1024xf32>
    %78 = vector.shape_cast %77 : vector<1x1x3x1024xf32> to vector<3x1024xf32>
    %79 = vector.shape_cast %76 : vector<3x1024xf32> to vector<1x1x3x1024xf32>
    tpu.vector_store %arg6[%c0_63, %c2_64, %c0_65, %c0_66], %79 {strides = array<i32>} : memref<1x4x3x1024xf32, #tpu.memory_space<vmem>>, vector<1x1x3x1024xf32>,
    %c0_67 = arith.constant 0 : index
    %c0_68 = arith.constant 0 : index
    %c33_69 = arith.constant 33 : index
    %80 = vector.load %arg1[%c0_67, %c0_68, %c33_69] : memref<1x4x1090xf32, #tpu.memory_space<vmem>>, vector<1x4x1024xf32>
    %81 = vector.shape_cast %80 : vector<1x4x1024xf32> to vector<4x1024xf32>
    %c0_70 = arith.constant 0 : index
    %c0_71 = arith.constant 0 : index
    %c34_72 = arith.constant 34 : index
    %82 = vector.load %arg1[%c0_70, %c0_71, %c34_72] : memref<1x4x1090xf32, #tpu.memory_space<vmem>>, vector<1x4x1024xf32>
    %83 = vector.shape_cast %82 : vector<1x4x1024xf32> to vector<4x1024xf32>
    %c1_73 = arith.constant 1 : index
    %c0_74 = arith.constant 0 : index
    %84 = vector.load %arg3[%c1_73, %c0_74] : memref<2x1024xf32, #tpu.memory_space<vmem>>, vector<1x1024xf32>
    %85 = vector.broadcast %84 : vector<1x1024xf32> to vector<4x1024xf32>
    %86 = arith.mulf %83, %85 : vector<4x1024xf32>
    %c0_75 = arith.constant 0 : index
    %c0_76 = arith.constant 0 : index
    %c65_77 = arith.constant 65 : index
    %87 = vector.load %arg1[%c0_75, %c0_76, %c65_77] : memref<1x4x1090xf32, #tpu.memory_space<vmem>>, vector<1x4x1024xf32>
    %88 = vector.shape_cast %87 : vector<1x4x1024xf32> to vector<4x1024xf32>
    %c0_78 = arith.constant 0 : index
    %c0_79 = arith.constant 0 : index
    %c66 = arith.constant 66 : index
    %89 = vector.load %arg1[%c0_78, %c0_79, %c66] : memref<1x4x1090xf32, #tpu.memory_space<vmem>>, vector<1x4x1024xf32>
    %90 = vector.shape_cast %89 : vector<1x4x1024xf32> to vector<4x1024xf32>
    %c1_80 = arith.constant 1 : index
    %c0_81 = arith.constant 0 : index
    %91 = vector.load %arg3[%c1_80, %c0_81] : memref<2x1024xf32, #tpu.memory_space<vmem>>, vector<1x1024xf32>
    %92 = vector.broadcast %91 : vector<1x1024xf32> to vector<4x1024xf32>
    %93 = arith.mulf %90, %92 : vector<4x1024xf32>
    %94 = tpu.concatenate %81, %86, %88, %93 in 0 : vector<4x1024xf32>, vector<4x1024xf32>, vector<4x1024xf32>, vector<4x1024xf32> -> vector<16x1024xf32>
    %c3 = arith.constant 3 : index
    %c0_82 = arith.constant 0 : index
    %c0_83 = arith.constant 0 : index
    %95 = vector.load %arg2[%c3, %c0_82, %c0_83] : memref<4x3x16xf32, #tpu.memory_space<vmem>>, vector<1x3x16xf32>
    %96 = vector.shape_cast %95 : vector<1x3x16xf32> to vector<3x16xf32>
    %cst_84 = arith.constant dense<0.000000e+00> : vector<3x1024xf32>
    %97 = tpu.matmul %96, %94, %cst_84 {dimension_numbers = #tpu.dot_dimension_numbers<[1], [0], [0], [1], [0, 0, 1, 1], [], []>} : vector<3x16xf32>, vector<16x1024xf32>, vector<3x1024xf32> -> vector<3x1024xf32>
    %98 = vector.broadcast %0 : vector<3x1xf32> to vector<3x1024xf32>
    %99 = arith.mulf %97, %98 : vector<3x1024xf32>
    %100 = vector.broadcast %1 : vector<3x1xf32> to vector<3x1024xf32>
    %101 = arith.addf %99, %100 : vector<3x1024xf32>
    %102 = math.tanh %101 : vector<3x1024xf32>
    %c0_85 = arith.constant 0 : index
    %c3_86 = arith.constant 3 : index
    %c0_87 = arith.constant 0 : index
    %c0_88 = arith.constant 0 : index
    %103 = vector.load %arg6[%c0_85, %c3_86, %c0_87, %c0_88] : memref<1x4x3x1024xf32, #tpu.memory_space<vmem>>, vector<1x1x3x1024xf32>
    %104 = vector.shape_cast %103 : vector<1x1x3x1024xf32> to vector<3x1024xf32>
    %105 = vector.shape_cast %102 : vector<3x1024xf32> to vector<1x1x3x1024xf32>
    tpu.vector_store %arg6[%c0_85, %c3_86, %c0_87, %c0_88], %105 {strides = array<i32>} : memref<1x4x3x1024xf32, #tpu.memory_space<vmem>>, vector<1x1x3x1024xf32>,
    return
  }
  func.func @transform_0(%arg0: i32) -> (i32, i32, i32) {
    %c0_i32 = arith.constant 0 : i32
    %c0_i32_0 = arith.constant 0 : i32
    %c0_i32_1 = arith.constant 0 : i32
    return %arg0, %c0_i32, %c0_i32_0 : i32, i32, i32
  }
  func.func @transform_1(%arg0: i32) -> (i32, i32, i32) {
    %c0_i32 = arith.constant 0 : i32
    %c0_i32_0 = arith.constant 0 : i32
    %c0_i32_1 = arith.constant 0 : i32
    %c0_i32_2 = arith.constant 0 : i32
    return %c0_i32, %c0_i32_0, %c0_i32_1 : i32, i32, i32
  }
  func.func @transform_2(%arg0: i32) -> (i32, i32) {
    %c0_i32 = arith.constant 0 : i32
    %c0_i32_0 = arith.constant 0 : i32
    %c0_i32_1 = arith.constant 0 : i32
    return %c0_i32, %c0_i32_0 : i32, i32
  }
  func.func @transform_3(%arg0: i32) -> (i32, i32) {
    %c0_i32 = arith.constant 0 : i32
    %c0_i32_0 = arith.constant 0 : i32
    %c0_i32_1 = arith.constant 0 : i32
    return %c0_i32, %c0_i32_0 : i32, i32
  }
  func.func @transform_4(%arg0: i32) -> (i32, i32) {
    %c0_i32 = arith.constant 0 : i32
    %c0_i32_0 = arith.constant 0 : i32
    %c0_i32_1 = arith.constant 0 : i32
    return %c0_i32, %c0_i32_0 : i32, i32
  }
  func.func @transform_5(%arg0: i32) -> (i32, i32, i32, i32) {
    %c0_i32 = arith.constant 0 : i32
    %c0_i32_0 = arith.constant 0 : i32
    %c0_i32_1 = arith.constant 0 : i32
    %c0_i32_2 = arith.constant 0 : i32
    return %arg0, %c0_i32, %c0_i32_0, %c0_i32_1 : i32, i32, i32, i32
  }
}

</mosaic_0001>

<llo_original>
// kernel: generator_forward.5
$region0: #{generator_forward.5}
  #allocation0 [shape = 'u32[]', space=smem, size = 0x4, offset = 0x4, fixed_abs, tag = 'smem constant byte address 0x4 - core index']
  #allocation1 [shape = 'u32[144,128]{1,0:T(1,128)}', space=vmem, size = 0x12000, scoped, tag = 'internal scratch']
  %s0 = inlined_call_operand.hbm [shape: f32[2,16], index: 0, kind: input, shape index: {}]
  %s1 = inlined_call_operand.hbm [shape: f32[2,24], index: 1, kind: input, shape index: {}]
  %s2 = inlined_call_operand.vmem [shape: f32[24,8], index: 2, kind: input, shape index: {}]
  %s3 = inlined_call_operand.hbm [shape: f32[1,8], index: 3, kind: input, shape index: {}]
  %s4 = inlined_call_operand.vmem [shape: f32[16,512], index: 4, kind: input, shape index: {}]
  %s5 = inlined_call_operand.vmem [shape: f32[8,512], index: 5, kind: input, shape index: {}]
  %s6 = inlined_call_operand.vmem [shape: f32[1,512], index: 6, kind: input, shape index: {}]
  %s7 = inlined_call_operand.vmem [shape: f32[1,512], index: 7, kind: input, shape index: {}]
  %s8 = inlined_call_operand.vmem [shape: f32[2,512], index: 8, kind: output, shape index: {}]
  %s9 = sld [smem:[#allocation0]]
  $region54: #{generator_forward.5} parent=0
    _
  %s11 = ssub.s32 1, %s9
  %s12 = scalar_select 0, %s11, %s9
  $region1: #{generator_forward.5} parent=0
    #allocation2 [shape = 'u8[1024]{0}', space=vmem, size = 0x400, scoped, tag = 'input window, operand 0, single buffered']
    #allocation3 [shape = 's32[1]{0}', space=sflag, size = 0x4, scoped, tag = 'scoped memory for generator_forward.5']
    #allocation4 [shape = 'u8[1024]{0}', space=vmem, size = 0x400, scoped, tag = 'input window, operand 1, single buffered']
    #allocation5 [shape = 's32[1]{0}', space=sflag, size = 0x4, scoped, tag = 'scoped memory for generator_forward.5']
    #allocation6 [shape = 'u8[512]{0}', space=vmem, size = 0x400, scoped, tag = 'input window, operand 3, single buffered']
    %13 = vsyncpa [#allocation3], 0
    %14 = vsyncpa [#allocation5], 0
    // Predicated region
    $region2: #{generator_forward.5} parent=1 // pred_check
      _
    $region3: #{generator_forward.5} parent=1 // pred_check_branch
      %16 = sbr.rel (0) target = $region5
    $region4: #{generator_forward.5} parent=1 // pred_region
      %s18 = ssub.s32 32, 32
      %19 = vsyncadd [#allocation3], %s18
      %s21 = sshll.u32 [#allocation2], 4
      %s22 = int_to_ptr.vmem [resolvable:$true] %s21
      %24 = dma.hbm_to_vmem [thread:$0]  %s0, 32, %s22, [#allocation3]
    $region5: #{generator_forward.5} parent=1 // pred_fallthru
      _
    // Predicated region
    $region6: #{generator_forward.5} parent=1 // pred_check
      _
    $region7: #{generator_forward.5} parent=1 // pred_check_branch
      %26 = sbr.rel (0) target = $region9
    $region8: #{generator_forward.5} parent=1 // pred_region
      %s28 = ssub.s32 32, 32
      %29 = vsyncadd [#allocation5], %s28
      %s31 = sshll.u32 [#allocation4], 4
      %s32 = int_to_ptr.vmem [resolvable:$true] %s31
      %34 = dma.hbm_to_vmem [thread:$0]  %s1, 32, %s32, [#allocation5]
    $region9: #{generator_forward.5} parent=1 // pred_fallthru
      _
    // Predicated region
    $region10: #{generator_forward.5} parent=1 // pred_check
      _
    $region11: #{generator_forward.5} parent=1 // pred_check_branch
      %36 = sbr.rel (0) target = $region13
    $region12: #{generator_forward.5} parent=1 // pred_region
      _
    $region13: #{generator_forward.5} parent=1 // pred_fallthru
      _
    // Predicated region
    $region14: #{generator_forward.5} parent=1 // pred_check
      _
    $region15: #{generator_forward.5} parent=1 // pred_check_branch
      %38 = sbr.rel (0) target = $region17
    $region16: #{generator_forward.5} parent=1 // pred_region
      %s40 = ssub.s32 16, 16
      %41 = vsyncadd [#allocation5], %s40
      %s43 = sshll.u32 [#allocation6], 4
      %s44 = int_to_ptr.vmem [resolvable:$true] %s43
      %46 = dma.hbm_to_vmem [thread:$0]  %s3, 16, %s44, [#allocation5]
    $region17: #{generator_forward.5} parent=1 // pred_fallthru
      _
    // Predicated region
    $region18: #{generator_forward.5} parent=1 // pred_check
      _
    $region19: #{generator_forward.5} parent=1 // pred_check_branch
      %48 = sbr.rel (0) target = $region21
    $region20: #{generator_forward.5} parent=1 // pred_region
      _
    $region21: #{generator_forward.5} parent=1 // pred_fallthru
      _
    // Predicated region
    $region22: #{generator_forward.5} parent=1 // pred_check
      _
    $region23: #{generator_forward.5} parent=1 // pred_check_branch
      %50 = sbr.rel (0) target = $region25
    $region24: #{generator_forward.5} parent=1 // pred_region
      _
    $region25: #{generator_forward.5} parent=1 // pred_fallthru
      _
    // Predicated region
    $region26: #{generator_forward.5} parent=1 // pred_check
      _
    $region27: #{generator_forward.5} parent=1 // pred_check_branch
      %52 = sbr.rel (0) target = $region29
    $region28: #{generator_forward.5} parent=1 // pred_region
      _
    $region29: #{generator_forward.5} parent=1 // pred_fallthru
      _
    // Predicated region
    $region30: #{generator_forward.5} parent=1 // pred_check
      _
    $region31: #{generator_forward.5} parent=1 // pred_check_branch
      %54 = sbr.rel (0) target = $region33
    $region32: #{generator_forward.5} parent=1 // pred_region
      _
    $region33: #{generator_forward.5} parent=1 // pred_fallthru
      _
    // Predicated region
    $region34: #{generator_forward.5} parent=1 // pred_check
      _
    $region35: #{generator_forward.5} parent=1 // pred_check_branch
      %56 = sbr.rel (0) target = $region37
    $region36: #{generator_forward.5} parent=1 // pred_region
      %57 = dma.done [#allocation3], 32
    $region37: #{generator_forward.5} parent=1 // pred_fallthru
      _
    // Predicated region
    $region38: #{generator_forward.5} parent=1 // pred_check
      _
    $region39: #{generator_forward.5} parent=1 // pred_check_branch
      %59 = sbr.rel (0) target = $region41
    $region40: #{generator_forward.5} parent=1 // pred_region
      %60 = dma.done [#allocation5], 32
    $region41: #{generator_forward.5} parent=1 // pred_fallthru
      _
    // Predicated region
    $region42: #{generator_forward.5} parent=1 // pred_check
      _
    $region43: #{generator_forward.5} parent=1 // pred_check_branch
      %62 = sbr.rel (0) target = $region45
    $region44: #{generator_forward.5} parent=1 // pred_region
      %63 = dma.done [#allocation5], 16
    $region45: #{generator_forward.5} parent=1 // pred_fallthru
      _
    %v64 = vld [vmem:[#allocation4] sm:$0x3]
    %v65 = vld [vmem:[%s2] sm:$0xff]
    %v66 = vld [vmem:[%s2 + $0x8] sm:$0xff]
    %v67 = vld [vmem:[%s2 + $0x10] sm:$0xff]
    %v68 = vld [vmem:[#allocation6] sm:$0x1]
    %v70 = vlaneseq
    %v71 = vshrl.u32 %v70, 7
    %v72 = vsub.s32 0, %v71
    %v73 = vrot.slane %v68, %v72
    %vm75 = vcmask 195584
    %v77 = vsel %vm75, %v64, 0
    %79 = vmatprep.subr.mxu0 0.0
    %80 = vmatpush1.msra.mxu0 %v65
    %81 = vmatprep.subr.mxu0 0.0
    %82 = vmatpush1.msra.mxu0 %v66
    %83 = vmatprep.subr.mxu0 0.0
    %84 = vmatpush1.msra.mxu0 %v67
    %85 = vmatprep.subr.mxu0 0.0
    %86 = vmatpush1.msra.mxu0 0.0
    %87 = vmatprep.subr.mxu0 0.0
    %88 = vmatpush1.msra.mxu0 0.0
    %89 = vmatprep.subr.mxu0 0.0
    %90 = vmatpush1.msra.mxu0 0.0
    %91 = vmatprep.subr.mxu0 0.0
    %92 = vmatpush1.msra.mxu0 0.0
    %93 = vmatprep.subr.mxu0 0.0
    %94 = vmatpush1.msra.mxu0 0.0
    %95 = vmatprep.subr.mxu0 0.0
    %96 = vmatpush1.msra.mxu0 0.0
    %97 = vmatprep.subr.mxu0 0.0
    %98 = vmatpush1.msra.mxu0 0.0
    %99 = vmatprep.subr.mxu0 0.0
    %100 = vmatpush1.msra.mxu0 0.0
    %101 = vmatprep.subr.mxu0 0.0
    %102 = vmatpush1.msra.mxu0 0.0
    %103 = vmatprep.subr.mxu0 0.0
    %104 = vmatpush1.msra.mxu0 0.0
    %105 = vmatprep.subr.mxu0 0.0
    %106 = vmatpush1.msra.mxu0 0.0
    %107 = vmatprep.subr.mxu0 0.0
    %108 = vmatpush1.msra.mxu0 0.0
    %109 = vmatprep.subr.mxu0 0.0
    %110 = vmatpush1.msra.mxu0 0.0
    %111 = vmatprep.subr.mxu0 0.0
    %112 = vmatpush1.msra.mxu0 0.0
    %113 = vmatprep.subr.mxu0 0.0
    %114 = vmatpush1.msra.mxu0 0.0
    %115 = vmatprep.subr.mxu0 0.0
    %116 = vmatpush1.msra.mxu0 0.0
    %117 = vmatprep.subr.mxu0 0.0
    %118 = vmatpush1.msra.mxu0 0.0
    %119 = vmatprep.subr.mxu0 0.0
    %120 = vmatpush1.msra.mxu0 0.0
    %121 = vmatprep.subr.mxu0 0.0
    %122 = vmatpush1.msra.mxu0 0.0
    %123 = vmatprep.subr.mxu0 0.0
    %124 = vmatpush1.msra.mxu0 0.0
    %125 = vmatprep.subr.mxu0 0.0
    %126 = vmatpush1.msra.mxu0 0.0
    %127 = vmatprep.subr.mxu0 0.0
    %128 = vmatpush1.msra.mxu0 0.0
    %129 = vmatprep.subr.mxu0 0.0
    %130 = vmatpush1.msra.mxu0 0.0
    %131 = vmatprep.subr.mxu0 0.0
    %132 = vmatpush1.msra.mxu0 0.0
    %133 = vmatprep.subr.mxu0 0.0
    %134 = vmatpush1.msra.mxu0 0.0
    %135 = vmatprep.subr.mxu0 0.0
    %136 = vmatpush1.msra.mxu0 0.0
    %137 = vmatprep.subr.mxu0 0.0
    %138 = vmatpush1.msra.mxu0 0.0
    %139 = vmatprep.subr.mxu0 0.0
    %140 = vmatpush1.msra.mxu0 0.0
    %141 = vmatprep.subr.mxu0 0.0
    %142 = vmatpush1.msra.mxu0 0.0
    %143 = vmatprep.mubr.f32.mxu0 0.0
    %144 = vmatmul.mubr.f32.gmra.mrb[0].mxu0 %v77
    %v145 = vpop.f32.mrb[0].mxu0
    %v146 = vadd.f32 %v73, %v145
    %v147 = vpop.f32.mrb[0].mxu0
    %148 = vdwg.mxu0
    %v149 = vmax.f32 %v146, 0.0
    %v150 = vld [vmem:[#allocation2] sm:$0x3]
    %v151 = vld [vmem:[%s4] sm:$0xff]
    %v152 = vld [vmem:[%s4 + $0x8] sm:$0xff]
    %v153 = vld [vmem:[%s4 + $0x10] sm:$0xff]
    %v154 = vld [vmem:[%s4 + $0x18] sm:$0xff]
    %v155 = vld [vmem:[%s4 + $0x20] sm:$0xff]
    %v156 = vld [vmem:[%s4 + $0x28] sm:$0xff]
    %v157 = vld [vmem:[%s4 + $0x30] sm:$0xff]
    %v158 = vld [vmem:[%s4 + $0x38] sm:$0xff]
    %v159 = vld [vmem:[%s5] sm:$0xff]
    %v160 = vld [vmem:[%s5 + $0x8] sm:$0xff]
    %v161 = vld [vmem:[%s5 + $0x10] sm:$0xff]
    %v162 = vld [vmem:[%s5 + $0x18] sm:$0xff]
    %vm163 = vcmask 64512
    %v165 = vsel %vm163, %v149, 0
    %167 = vmatprep.subr.mxu0 %v160
    %168 = vmatpush1.msra.mxu0 %v159
    %169 = vmatprep.subr.mxu0 0.0
    %170 = vmatpush1.msra.mxu0 0.0
    %171 = vmatprep.subr.mxu0 0.0
    %172 = vmatpush1.msra.mxu0 0.0
    %173 = vmatprep.subr.mxu0 0.0
    %174 = vmatpush1.msra.mxu0 0.0
    %175 = vmatprep.subr.mxu0 0.0
    %176 = vmatpush1.msra.mxu0 0.0
    %177 = vmatprep.subr.mxu0 0.0
    %178 = vmatpush1.msra.mxu0 0.0
    %179 = vmatprep.subr.mxu0 0.0
    %180 = vmatpush1.msra.mxu0 0.0
    %181 = vmatprep.subr.mxu0 0.0
    %182 = vmatpush1.msra.mxu0 0.0
    %183 = vmatprep.subr.mxu0 0.0
    %184 = vmatpush1.msra.mxu0 0.0
    %185 = vmatprep.subr.mxu0 0.0
    %186 = vmatpush1.msra.mxu0 0.0
    %187 = vmatprep.subr.mxu0 0.0
    %188 = vmatpush1.msra.mxu0 0.0
    %189 = vmatprep.subr.mxu0 0.0
    %190 = vmatpush1.msra.mxu0 0.0
    %191 = vmatprep.subr.mxu0 0.0
    %192 = vmatpush1.msra.mxu0 0.0
    %193 = vmatprep.subr.mxu0 0.0
    %194 = vmatpush1.msra.mxu0 0.0
    %195 = vmatprep.subr.mxu0 0.0
    %196 = vmatpush1.msra.mxu0 0.0
    %197 = vmatprep.subr.mxu0 0.0
    %198 = vmatpush1.msra.mxu0 0.0
    %199 = vmatprep.subr.mxu0 0.0
    %200 = vmatpush1.msra.mxu0 0.0
    %201 = vmatprep.subr.mxu0 0.0
    %202 = vmatpush1.msra.mxu0 0.0
    %203 = vmatprep.subr.mxu0 0.0
    %204 = vmatpush1.msra.mxu0 0.0
    %205 = vmatprep.subr.mxu0 0.0
    %206 = vmatpush1.msra.mxu0 0.0
    %207 = vmatprep.subr.mxu0 0.0
    %208 = vmatpush1.msra.mxu0 0.0
    %209 = vmatprep.subr.mxu0 0.0
    %210 = vmatpush1.msra.mxu0 0.0
    %211 = vmatprep.subr.mxu0 0.0
    %212 = vmatpush1.msra.mxu0 0.0
    %213 = vmatprep.subr.mxu0 0.0
    %214 = vmatpush1.msra.mxu0 0.0
    %215 = vmatprep.subr.mxu0 0.0
    %216 = vmatpush1.msra.mxu0 0.0
    %217 = vmatprep.subr.mxu0 0.0
    %218 = vmatpush1.msra.mxu0 0.0
    %219 = vmatprep.subr.mxu0 0.0
    %220 = vmatpush1.msra.mxu0 0.0
    %221 = vmatprep.subr.mxu0 0.0
    %222 = vmatpush1.msra.mxu0 0.0
    %223 = vmatprep.subr.mxu0 0.0
    %224 = vmatpush1.msra.mxu0 0.0
    %225 = vmatprep.subr.mxu0 0.0
    %226 = vmatpush1.msra.mxu0 0.0
    %227 = vmatprep.subr.mxu0 0.0
    %228 = vmatpush1.msra.mxu0 0.0
    %229 = vmatprep.subr.mxu0 0.0
    %230 = vmatpush1.msra.mxu0 0.0
    %231 = vmatprep.mubr.f32.mxu0 0.0
    %232 = vmatmul.mubr.f32.gmra.mrb[0].mxu0 %v165
    %v233 = vpop.f32.mrb[0].mxu0
    %v234 = vadd.f32 0.0, %v233
    %v235 = vpop.f32.mrb[0].mxu0
    %v236 = vadd.f32 0.0, %v235
    %237 = vdwg.mxu0
    %238 = vmatprep.subr.mxu0 %v162
    %239 = vmatpush1.msra.mxu0 %v161
    %240 = vmatprep.subr.mxu0 0.0
    %241 = vmatpush1.msra.mxu0 0.0
    %242 = vmatprep.subr.mxu0 0.0
    %243 = vmatpush1.msra.mxu0 0.0
    %244 = vmatprep.subr.mxu0 0.0
    %245 = vmatpush1.msra.mxu0 0.0
    %246 = vmatprep.subr.mxu0 0.0
    %247 = vmatpush1.msra.mxu0 0.0
    %248 = vmatprep.subr.mxu0 0.0
    %249 = vmatpush1.msra.mxu0 0.0
    %250 = vmatprep.subr.mxu0 0.0
    %251 = vmatpush1.msra.mxu0 0.0
    %252 = vmatprep.subr.mxu0 0.0
    %253 = vmatpush1.msra.mxu0 0.0
    %254 = vmatprep.subr.mxu0 0.0
    %255 = vmatpush1.msra.mxu0 0.0
    %256 = vmatprep.subr.mxu0 0.0
    %257 = vmatpush1.msra.mxu0 0.0
    %258 = vmatprep.subr.mxu0 0.0
    %259 = vmatpush1.msra.mxu0 0.0
    %260 = vmatprep.subr.mxu0 0.0
    %261 = vmatpush1.msra.mxu0 0.0
    %262 = vmatprep.subr.mxu0 0.0
    %263 = vmatpush1.msra.mxu0 0.0
    %264 = vmatprep.subr.mxu0 0.0
    %265 = vmatpush1.msra.mxu0 0.0
    %266 = vmatprep.subr.mxu0 0.0
    %267 = vmatpush1.msra.mxu0 0.0
    %268 = vmatprep.subr.mxu0 0.0
    %269 = vmatpush1.msra.mxu0 0.0
    %270 = vmatprep.subr.mxu0 0.0
    %271 = vmatpush1.msra.mxu0 0.0
    %272 = vmatprep.subr.mxu0 0.0
    %273 = vmatpush1.msra.mxu0 0.0
    %274 = vmatprep.subr.mxu0 0.0
    %275 = vmatpush1.msra.mxu0 0.0
    %276 = vmatprep.subr.mxu0 0.0
    %277 = vmatpush1.msra.mxu0 0.0
    %278 = vmatprep.subr.mxu0 0.0
    %279 = vmatpush1.msra.mxu0 0.0
    %280 = vmatprep.subr.mxu0 0.0
    %281 = vmatpush1.msra.mxu0 0.0
    %282 = vmatprep.subr.mxu0 0.0
    %283 = vmatpush1.msra.mxu0 0.0
    %284 = vmatprep.subr.mxu0 0.0
    %285 = vmatpush1.msra.mxu0 0.0
    %286 = vmatprep.subr.mxu0 0.0
    %287 = vmatpush1.msra.mxu0 0.0
    %288 = vmatprep.subr.mxu0 0.0
    %289 = vmatpush1.msra.mxu0 0.0
    %290 = vmatprep.subr.mxu0 0.0
    %291 = vmatpush1.msra.mxu0 0.0
    %292 = vmatprep.subr.mxu0 0.0
    %293 = vmatpush1.msra.mxu0 0.0
    %294 = vmatprep.subr.mxu0 0.0
    %295 = vmatpush1.msra.mxu0 0.0
    %296 = vmatprep.subr.mxu0 0.0
    %297 = vmatpush1.msra.mxu0 0.0
    %298 = vmatprep.subr.mxu0 0.0
    %299 = vmatpush1.msra.mxu0 0.0
    %300 = vmatprep.subr.mxu0 0.0
    %301 = vmatpush1.msra.mxu0 0.0
    %302 = vmatprep.mubr.f32.mxu0 0.0
    %303 = vmatmul.mubr.f32.gmra.mrb[0].mxu0 %v165
    %v304 = vpop.f32.mrb[0].mxu0
    %v305 = vadd.f32 0.0, %v304
    %v306 = vpop.f32.mrb[0].mxu0
    %v307 = vadd.f32 0.0, %v306
    %308 = vdwg.mxu0
    %vm309 = vcmask 130048
    %v311 = vsel %vm309, %v150, 0
    %313 = vmatprep.subr.mxu0 %v152
    %314 = vmatpush1.msra.mxu0 %v151
    %315 = vmatprep.subr.mxu0 %v156
    %316 = vmatpush1.msra.mxu0 %v155
    %317 = vmatprep.subr.mxu0 0.0
    %318 = vmatpush1.msra.mxu0 0.0
    %319 = vmatprep.subr.mxu0 0.0
    %320 = vmatpush1.msra.mxu0 0.0
    %321 = vmatprep.subr.mxu0 0.0
    %322 = vmatpush1.msra.mxu0 0.0
    %323 = vmatprep.subr.mxu0 0.0
    %324 = vmatpush1.msra.mxu0 0.0
    %325 = vmatprep.subr.mxu0 0.0
    %326 = vmatpush1.msra.mxu0 0.0
    %327 = vmatprep.subr.mxu0 0.0
    %328 = vmatpush1.msra.mxu0 0.0
    %329 = vmatprep.subr.mxu0 0.0
    %330 = vmatpush1.msra.mxu0 0.0
    %331 = vmatprep.subr.mxu0 0.0
    %332 = vmatpush1.msra.mxu0 0.0
    %333 = vmatprep.subr.mxu0 0.0
    %334 = vmatpush1.msra.mxu0 0.0
    %335 = vmatprep.subr.mxu0 0.0
    %336 = vmatpush1.msra.mxu0 0.0
    %337 = vmatprep.subr.mxu0 0.0
    %338 = vmatpush1.msra.mxu0 0.0
    %339 = vmatprep.subr.mxu0 0.0
    %340 = vmatpush1.msra.mxu0 0.0
    %341 = vmatprep.subr.mxu0 0.0
    %342 = vmatpush1.msra.mxu0 0.0
    %343 = vmatprep.subr.mxu0 0.0
    %344 = vmatpush1.msra.mxu0 0.0
    %345 = vmatprep.subr.mxu0 0.0
    %346 = vmatpush1.msra.mxu0 0.0
    %347 = vmatprep.subr.mxu0 0.0
    %348 = vmatpush1.msra.mxu0 0.0
    %349 = vmatprep.subr.mxu0 0.0
    %350 = vmatpush1.msra.mxu0 0.0
    %351 = vmatprep.subr.mxu0 0.0
    %352 = vmatpush1.msra.mxu0 0.0
    %353 = vmatprep.subr.mxu0 0.0
    %354 = vmatpush1.msra.mxu0 0.0
    %355 = vmatprep.subr.mxu0 0.0
    %356 = vmatpush1.msra.mxu0 0.0
    %357 = vmatprep.subr.mxu0 0.0
    %358 = vmatpush1.msra.mxu0 0.0
    %359 = vmatprep.subr.mxu0 0.0
    %360 = vmatpush1.msra.mxu0 0.0
    %361 = vmatprep.subr.mxu0 0.0
    %362 = vmatpush1.msra.mxu0 0.0
    %363 = vmatprep.subr.mxu0 0.0
    %364 = vmatpush1.msra.mxu0 0.0
    %365 = vmatprep.subr.mxu0 0.0
    %366 = vmatpush1.msra.mxu0 0.0
    %367 = vmatprep.subr.mxu0 0.0
    %368 = vmatpush1.msra.mxu0 0.0
    %369 = vmatprep.subr.mxu0 0.0
    %370 = vmatpush1.msra.mxu0 0.0
    %371 = vmatprep.subr.mxu0 0.0
    %372 = vmatpush1.msra.mxu0 0.0
    %373 = vmatprep.subr.mxu0 0.0
    %374 = vmatpush1.msra.mxu0 0.0
    %375 = vmatprep.subr.mxu0 0.0
    %376 = vmatpush1.msra.mxu0 0.0
    %377 = vmatprep.mubr.f32.mxu0 0.0
    %378 = vmatmul.mubr.f32.gmra.mrb[0].mxu0 %v311
    %v379 = vpop.f32.mrb[0].mxu0
    %v380 = vadd.f32 %v234, %v379
    %v381 = vpop.f32.mrb[0].mxu0
    %v382 = vadd.f32 %v236, %v381
    %383 = vdwg.mxu0
    %384 = vmatprep.subr.mxu0 %v154
    %385 = vmatpush1.msra.mxu0 %v153
    %386 = vmatprep.subr.mxu0 %v158
    %387 = vmatpush1.msra.mxu0 %v157
    %388 = vmatprep.subr.mxu0 0.0
    %389 = vmatpush1.msra.mxu0 0.0
    %390 = vmatprep.subr.mxu0 0.0
    %391 = vmatpush1.msra.mxu0 0.0
    %392 = vmatprep.subr.mxu0 0.0
    %393 = vmatpush1.msra.mxu0 0.0
    %394 = vmatprep.subr.mxu0 0.0
    %395 = vmatpush1.msra.mxu0 0.0
    %396 = vmatprep.subr.mxu0 0.0
    %397 = vmatpush1.msra.mxu0 0.0
    %398 = vmatprep.subr.mxu0 0.0
    %399 = vmatpush1.msra.mxu0 0.0
    %400 = vmatprep.subr.mxu0 0.0
    %401 = vmatpush1.msra.mxu0 0.0
    %402 = vmatprep.subr.mxu0 0.0
    %403 = vmatpush1.msra.mxu0 0.0
    %404 = vmatprep.subr.mxu0 0.0
    %405 = vmatpush1.msra.mxu0 0.0
    %406 = vmatprep.subr.mxu0 0.0
    %407 = vmatpush1.msra.mxu0 0.0
    %408 = vmatprep.subr.mxu0 0.0
    %409 = vmatpush1.msra.mxu0 0.0
    %410 = vmatprep.subr.mxu0 0.0
    %411 = vmatpush1.msra.mxu0 0.0
    %412 = vmatprep.subr.mxu0 0.0
    %413 = vmatpush1.msra.mxu0 0.0
    %414 = vmatprep.subr.mxu0 0.0
    %415 = vmatpush1.msra.mxu0 0.0
    %416 = vmatprep.subr.mxu0 0.0
    %417 = vmatpush1.msra.mxu0 0.0
    %418 = vmatprep.subr.mxu0 0.0
    %419 = vmatpush1.msra.mxu0 0.0
    %420 = vmatprep.subr.mxu0 0.0
    %421 = vmatpush1.msra.mxu0 0.0
    %422 = vmatprep.subr.mxu0 0.0
    %423 = vmatpush1.msra.mxu0 0.0
    %424 = vmatprep.subr.mxu0 0.0
    %425 = vmatpush1.msra.mxu0 0.0
    %426 = vmatprep.subr.mxu0 0.0
    %427 = vmatpush1.msra.mxu0 0.0
    %428 = vmatprep.subr.mxu0 0.0
    %429 = vmatpush1.msra.mxu0 0.0
    %430 = vmatprep.subr.mxu0 0.0
    %431 = vmatpush1.msra.mxu0 0.0
    %432 = vmatprep.subr.mxu0 0.0
    %433 = vmatpush1.msra.mxu0 0.0
    %434 = vmatprep.subr.mxu0 0.0
    %435 = vmatpush1.msra.mxu0 0.0
    %436 = vmatprep.subr.mxu0 0.0
    %437 = vmatpush1.msra.mxu0 0.0
    %438 = vmatprep.subr.mxu0 0.0
    %439 = vmatpush1.msra.mxu0 0.0
    %440 = vmatprep.subr.mxu0 0.0
    %441 = vmatpush1.msra.mxu0 0.0
    %442 = vmatprep.subr.mxu0 0.0
    %443 = vmatpush1.msra.mxu0 0.0
    %444 = vmatprep.subr.mxu0 0.0
    %445 = vmatpush1.msra.mxu0 0.0
    %446 = vmatprep.subr.mxu0 0.0
    %447 = vmatpush1.msra.mxu0 0.0
    %448 = vmatprep.mubr.f32.mxu0 0.0
    %449 = vmatmul.mubr.f32.gmra.mrb[0].mxu0 %v311
    %v450 = vpop.f32.mrb[0].mxu0
    %v451 = vadd.f32 %v305, %v450
    %v452 = vpop.f32.mrb[0].mxu0
    %v453 = vadd.f32 %v307, %v452
    %454 = vdwg.mxu0
    %v455 = vld [vmem:[%s6] sm:$0xf]
    %v457 = vlaneseq
    %v458 = vshrl.u32 %v457, 7
    %v459 = vsub.s32 0, %v458
    %v460 = vrot.slane %v455, %v459
    %v461 = vlaneseq
    %v462 = vshrl.u32 %v461, 7
    %v463 = vsub.s32 1, %v462
    %v464 = vrot.slane %v455, %v463
    %v465 = vlaneseq
    %v466 = vshrl.u32 %v465, 7
    %v467 = vsub.s32 2, %v466
    %v468 = vrot.slane %v455, %v467
    %v469 = vlaneseq
    %v470 = vshrl.u32 %v469, 7
    %v471 = vsub.s32 3, %v470
    %v472 = vrot.slane %v455, %v471
    %v477 = vmul.f32 %v380, %v460
    %v478 = vmul.f32 %v382, %v464
    %v479 = vmul.f32 %v451, %v468
    %v480 = vmul.f32 %v453, %v472
    %v481 = vld [vmem:[%s7] sm:$0xf]
    %v483 = vlaneseq
    %v484 = vshrl.u32 %v483, 7
    %v485 = vsub.s32 0, %v484
    %v486 = vrot.slane %v481, %v485
    %v487 = vlaneseq
    %v488 = vshrl.u32 %v487, 7
    %v489 = vsub.s32 1, %v488
    %v490 = vrot.slane %v481, %v489
    %v491 = vlaneseq
    %v492 = vshrl.u32 %v491, 7
    %v493 = vsub.s32 2, %v492
    %v494 = vrot.slane %v481, %v493
    %v495 = vlaneseq
    %v496 = vshrl.u32 %v495, 7
    %v497 = vsub.s32 3, %v496
    %v498 = vrot.slane %v481, %v497
    %v503 = vadd.f32 %v477, %v486
    %v504 = vadd.f32 %v478, %v490
    %v505 = vadd.f32 %v479, %v494
    %v506 = vadd.f32 %v480, %v498
    %v507 = vmax.f32 %v503, 0.0
    %v508 = vmax.f32 %v504, 0.0
    %v509 = vmax.f32 %v505, 0.0
    %v510 = vmax.f32 %v506, 0.0
    %v515 = vcombine.low %v507, %v508
    %v516 = vcombine.low %v509, %v510
    %v518 = vunpack.c.l.s4 1983009808
    %v519 = vunpack.c.0.s8 %v518
    %v520 = vlaneseq
    %v521 = vshrl.u32 %v520, 7
    %v522 = vsub.s32 %v519, %v521
    %v523 = vrot.slane %v515, %v522
    %v525 = vunpack.c.l.s4 1983009808
    %v526 = vunpack.c.0.s8 %v525
    %v527 = vlaneseq
    %v528 = vshrl.u32 %v527, 7
    %v529 = vsub.s32 %v526, %v528
    %v530 = vrot.slane %v516, %v529
    %v531 = vcombine.low %v523, %v530
    %533 = vst [vmem:[%s8] sm:$0xff] %v531
    // Predicated region
    $region46: #{generator_forward.5} parent=1 // pred_check
      _
    $region47: #{generator_forward.5} parent=1 // pred_check_branch
      %535 = sbr.rel (0) target = $region49
    $region48: #{generator_forward.5} parent=1 // pred_region
      _
    $region49: #{generator_forward.5} parent=1 // pred_fallthru
      _
    // Predicated region
    $region50: #{generator_forward.5} parent=1 // pred_check
      _
    $region51: #{generator_forward.5} parent=1 // pred_check_branch
      %537 = sbr.rel (0) target = $region53
    $region52: #{generator_forward.5} parent=1 // pred_region
      _
    $region53: #{generator_forward.5} parent=1 // pred_fallthru
      _
    %538 = vsyncpa [#allocation3], 1
    %539 = vsyncpa [#allocation5], 1

// kernel: generator_forward.6
$region0: #{generator_forward.6}
  #allocation0 [shape = 'u32[]', space=smem, size = 0x4, offset = 0x4, fixed_abs, tag = 'smem constant byte address 0x4 - core index']
  #allocation1 [shape = 'u32[144,128]{1,0:T(1,128)}', space=vmem, size = 0x12000, scoped, tag = 'internal scratch']
  %s0 = inlined_call_operand.vmem [shape: f32[2,32,26], index: 0, kind: input, shape index: {}]
  %s1 = inlined_call_operand.vmem [shape: f32[4,16,128], index: 1, kind: input, shape index: {}]
  %s2 = inlined_call_operand.vmem [shape: f32[2,16], index: 2, kind: input, shape index: {}]
  %s3 = inlined_call_operand.vmem [shape: f32[16,1], index: 3, kind: input, shape index: {}]
  %s4 = inlined_call_operand.vmem [shape: f32[16,1], index: 4, kind: input, shape index: {}]
  %s5 = inlined_call_operand.vmem [shape: f32[2,4,16,16], index: 5, kind: output, shape index: {}]
  %s6 = sld [smem:[#allocation0]]
  $region53: #{generator_forward.6} parent=0
    _
  %s8 = ssub.s32 1, %s6
  %s9 = scalar_select 0, %s8, %s6
  loop: start=0, step=1, limit=4
  $region2: #{generator_forward.6} parent=0 // loop_pre_header
    _
  $region3: #{generator_forward.6} parent=0 // loop_header
    %s11 = sphi 0, %s15
    %p12 = scmp.ge.s32.totalorder %s11, 4
    %s21 = sphi 0, %s23
    %s24 = sphi 0, %s21
    %s25 = sphi 0, %s24
    %s41 = sphi 0, %s25
    %s45 = sphi 0, %s45
    %s47 = sphi 0, %s45
    %s48 = sphi 0, %s47
    %s62 = sphi 0, %s48
    %s66 = sphi 0, %s66
    %s68 = sphi 0, %s66
    %s69 = sphi 0, %s68
    %s83 = sphi 0, %s69
    %s87 = sphi 0, %s87
    %s89 = sphi 0, %s87
    %s90 = sphi 0, %s89
    %s104 = sphi 0, %s90
    %s108 = sphi 0, %s108
    %s110 = sphi 0, %s108
    %s111 = sphi 0, %s110
    %s125 = sphi 0, %s111
    %s131 = sphi 0, %s133
    %s134 = sphi 0, %s131
    %s135 = sphi 0, %s134
    %s151 = sphi 0, %s135
  $region4: #{generator_forward.6} parent=0 // loop_header_branch
    %14 = sbr.rel (%p12) target = $region8
  $region5: #{generator_forward.6} parent=0 // loop_body
    %s16 = ssub.s32 %s11, 1
    %s17 = ssub.s32 %s11, 2
    %s18 = sadd.s32 %s11, 1
    %s19 = ssub.s32 %s11, %s18
    %p20 = scmp.eq.s32.totalorder %s19, 0
    %s22 = sadd.s32 %s21, 1
    %s23 = scalar_select %p20, %s21, %s22
    %p26 = pneg %p20
    %p27 = scmp.eq.s32.totalorder %s11, 1
    %p28 = por %p26, %p27
    %p29 = scmp.ne.s32.totalorder %s21, %s24
    %p30 = scmp.eq.s32.totalorder %s11, 0
    %p31 = por %p29, %p30
    %p32 = scmp.ne.s32.totalorder %s21, %s24
    %p33 = scmp.eq.s32.totalorder %s16, 1
    %p34 = por %p32, %p33
    %p35 = scmp.ne.s32.totalorder %s24, %s25
    %p36 = scmp.eq.s32.totalorder %s16, 0
    %p37 = por %p35, %p36
    %p38 = scmp.ne.s32.totalorder %s24, %s25
    %p39 = scmp.eq.s32.totalorder %s17, 1
    %p40 = por %p38, %p39
    %p42 = scmp.ne.s32.totalorder %s25, %s41
    %p43 = scmp.eq.s32.totalorder %s17, 0
    %p44 = por %p42, %p43
    %s46 = sadd.s32 %s45, 1
    %p49 = scmp.eq.s32.totalorder %s11, 1
    %p50 = scmp.ne.s32.totalorder %s45, %s47
    %p51 = scmp.eq.s32.totalorder %s11, 0
    %p52 = por %p50, %p51
    %p53 = scmp.ne.s32.totalorder %s45, %s47
    %p54 = scmp.eq.s32.totalorder %s16, 1
    %p55 = por %p53, %p54
    %p56 = scmp.ne.s32.totalorder %s47, %s48
    %p57 = scmp.eq.s32.totalorder %s16, 0
    %p58 = por %p56, %p57
    %p59 = scmp.ne.s32.totalorder %s47, %s48
    %p60 = scmp.eq.s32.totalorder %s17, 1
    %p61 = por %p59, %p60
    %p63 = scmp.ne.s32.totalorder %s48, %s62
    %p64 = scmp.eq.s32.totalorder %s17, 0
    %p65 = por %p63, %p64
    %s67 = sadd.s32 %s66, 1
    %p70 = scmp.eq.s32.totalorder %s11, 1
    %p71 = scmp.ne.s32.totalorder %s66, %s68
    %p72 = scmp.eq.s32.totalorder %s11, 0
    %p73 = por %p71, %p72
    %p74 = scmp.ne.s32.totalorder %s66, %s68
    %p75 = scmp.eq.s32.totalorder %s16, 1
    %p76 = por %p74, %p75
    %p77 = scmp.ne.s32.totalorder %s68, %s69
    %p78 = scmp.eq.s32.totalorder %s16, 0
    %p79 = por %p77, %p78
    %p80 = scmp.ne.s32.totalorder %s68, %s69
    %p81 = scmp.eq.s32.totalorder %s17, 1
    %p82 = por %p80, %p81
    %p84 = scmp.ne.s32.totalorder %s69, %s83
    %p85 = scmp.eq.s32.totalorder %s17, 0
    %p86 = por %p84, %p85
    %s88 = sadd.s32 %s87, 1
    %p91 = scmp.eq.s32.totalorder %s11, 1
    %p92 = scmp.ne.s32.totalorder %s87, %s89
    %p93 = scmp.eq.s32.totalorder %s11, 0
    %p94 = por %p92, %p93
    %p95 = scmp.ne.s32.totalorder %s87, %s89
    %p96 = scmp.eq.s32.totalorder %s16, 1
    %p97 = por %p95, %p96
    %p98 = scmp.ne.s32.totalorder %s89, %s90
    %p99 = scmp.eq.s32.totalorder %s16, 0
    %p100 = por %p98, %p99
    %p101 = scmp.ne.s32.totalorder %s89, %s90
    %p102 = scmp.eq.s32.totalorder %s17, 1
    %p103 = por %p101, %p102
    %p105 = scmp.ne.s32.totalorder %s90, %s104
    %p106 = scmp.eq.s32.totalorder %s17, 0
    %p107 = por %p105, %p106
    %s109 = sadd.s32 %s108, 1
    %p112 = scmp.eq.s32.totalorder %s11, 1
    %p113 = scmp.ne.s32.totalorder %s108, %s110
    %p114 = scmp.eq.s32.totalorder %s11, 0
    %p115 = por %p113, %p114
    %p116 = scmp.ne.s32.totalorder %s108, %s110
    %p117 = scmp.eq.s32.totalorder %s16, 1
    %p118 = por %p116, %p117
    %p119 = scmp.ne.s32.totalorder %s110, %s111
    %p120 = scmp.eq.s32.totalorder %s16, 0
    %p121 = por %p119, %p120
    %p122 = scmp.ne.s32.totalorder %s110, %s111
    %p123 = scmp.eq.s32.totalorder %s17, 1
    %p124 = por %p122, %p123
    %p126 = scmp.ne.s32.totalorder %s111, %s125
    %p127 = scmp.eq.s32.totalorder %s17, 0
    %p128 = por %p126, %p127
    %s129 = ssub.s32 %s11, %s18
    %p130 = scmp.eq.s32.totalorder %s129, 0
    %s132 = sadd.s32 %s131, 1
    %s133 = scalar_select %p130, %s131, %s132
    %p136 = pneg %p130
    %p137 = scmp.eq.s32.totalorder %s11, 1
    %p138 = por %p136, %p137
    %p139 = scmp.ne.s32.totalorder %s131, %s134
    %p140 = scmp.eq.s32.totalorder %s11, 0
    %p141 = por %p139, %p140
    %p142 = scmp.ne.s32.totalorder %s131, %s134
    %p143 = scmp.eq.s32.totalorder %s16, 1
    %p144 = por %p142, %p143
    %p145 = scmp.ne.s32.totalorder %s134, %s135
    %p146 = scmp.eq.s32.totalorder %s16, 0
    %p147 = por %p145, %p146
    %p148 = scmp.ne.s32.totalorder %s134, %s135
    %p149 = scmp.eq.s32.totalorder %s17, 1
    %p150 = por %p148, %p149
    %p152 = scmp.ne.s32.totalorder %s135, %s151
    %p153 = scmp.eq.s32.totalorder %s17, 0
    %p154 = por %p152, %p153
    %p155 = scmp.le.s32.totalorder 1, %s11
    %p156 = scmp.lt.s32.totalorder %s11, 3
    %p157 = pnand %p155, %p156
    %p158 = pneg %p157
    // Predicated region
    $region9: #{generator_forward.6} parent=5 // pred_check
      _
    $region10: #{generator_forward.6} parent=5 // pred_check_branch
      %160 = sbr.rel (%p157) target = $region12
    $region11: #{generator_forward.6} parent=5 // pred_region
      %s161 = ssub.s32 %s11, 1
      // Predicated region
      $region13: #{generator_forward.6} parent=11 // pred_check
        %p162 = pneg %p58
      $region14: #{generator_forward.6} parent=11 // pred_check_branch
        %164 = sbr.rel (%p162) target = $region16
      $region15: #{generator_forward.6} parent=11 // pred_region
        _
      $region16: #{generator_forward.6} parent=11 // pred_fallthru
        _
      // Predicated region
      $region17: #{generator_forward.6} parent=11 // pred_check
        %p165 = pneg %p79
      $region18: #{generator_forward.6} parent=11 // pred_check_branch
        %167 = sbr.rel (%p165) target = $region20
      $region19: #{generator_forward.6} parent=11 // pred_region
        _
      $region20: #{generator_forward.6} parent=11 // pred_fallthru
        _
      // Predicated region
      $region21: #{generator_forward.6} parent=11 // pred_check
        %p168 = pneg %p100
      $region22: #{generator_forward.6} parent=11 // pred_check_branch
        %170 = sbr.rel (%p168) target = $region24
      $region23: #{generator_forward.6} parent=11 // pred_region
        _
      $region24: #{generator_forward.6} parent=11 // pred_fallthru
        _
      // Predicated region
      $region25: #{generator_forward.6} parent=11 // pred_check
        %p171 = pneg %p121
      $region26: #{generator_forward.6} parent=11 // pred_check_branch
        %173 = sbr.rel (%p171) target = $region28
      $region27: #{generator_forward.6} parent=11 // pred_region
        _
      $region28: #{generator_forward.6} parent=11 // pred_fallthru
        _
    $region12: #{generator_forward.6} parent=5 // pred_fallthru
      _
    %p174 = scmp.lt.s32.totalorder %s11, 2
    // Predicated region
    $region29: #{generator_forward.6} parent=5 // pred_check
      %p175 = pneg %p174
    $region30: #{generator_forward.6} parent=5 // pred_check_branch
      %177 = sbr.rel (%p175) target = $region32
    $region31: #{generator_forward.6} parent=5 // pred_region
      // Predicated region
      $region33: #{generator_forward.6} parent=31 // pred_check
        %p178 = pneg %p31
      $region34: #{generator_forward.6} parent=31 // pred_check_branch
        %180 = sbr.rel (%p178) target = $region36
      $region35: #{generator_forward.6} parent=31 // pred_region
        %p181 = scmp.lt.s32.totalorder %s11, 1
        %s182 = scalar_select %p181, %s11, 1
        %s183 = smul.addr %s182, 4
        %s184 = smul.addr %s183, 8
        %s185 = scalar_lea.vmem %s0, %s184
      $region36: #{generator_forward.6} parent=31 // pred_fallthru
        _
    $region32: #{generator_forward.6} parent=5 // pred_fallthru
      _
    %p186 = scmp.le.s32.totalorder 1, %s11
    %p187 = scmp.lt.s32.totalorder %s11, 3
    %p188 = pnand %p186, %p187
    %p189 = pneg %p188
    // Predicated region
    $region37: #{generator_forward.6} parent=5 // pred_check
      _
    $region38: #{generator_forward.6} parent=5 // pred_check_branch
      %191 = sbr.rel (%p188) target = $region40
    $region39: #{generator_forward.6} parent=5 // pred_region
      %s192 = ssub.s32 %s11, 1
      %p193 = scmp.lt.s32.totalorder %s16, 1
      %s194 = scalar_select %p193, %s16, 1
      %s195 = smul.addr %s194, 4
      %s196 = smul.addr %s195, 8
      %s197 = scalar_lea.vmem %s0, %s196
      %p198 = pneg %p37
      %p199 = pneg %p34
      %p200 = pneg %p58
      %p201 = pneg %p55
      %p202 = pneg %p79
      %p203 = pneg %p76
      %p204 = pneg %p100
      %p205 = pneg %p97
      %p206 = pneg %p121
      %p207 = pneg %p118
      %p208 = pneg %p147
      %p209 = pneg %p144
      %p210 = scmp.lt.s32.totalorder %s16, 1
      %s211 = scalar_select %p210, %s16, 1
      %s212 = smul.addr %s211, 8
      %s213 = smul.addr %s212, 8
      %s214 = scalar_lea.vmem %s5, %s213
      %p215 = scmp.lt.s32.totalorder %s16, 1
      %s216 = scalar_select %p215, %s16, 1
      %s217 = smul.addr %s216, 4
      %s218 = smul.addr %s217, 8
      %s219 = scalar_lea.vmem %s0, %s218
      %p220 = scmp.lt.s32.totalorder %s16, 1
      %s221 = scalar_select %p220, %s16, 1
      %s222 = smul.addr %s221, 8
      %s223 = smul.addr %s222, 8
      %s224 = scalar_lea.vmem %s5, %s223
      %v225 = vld [vmem:[%s3] sm:$0xff]
      %v226 = vld [vmem:[%s3 + $0x8] sm:$0xff]
      %v227 = vld [vmem:[%s4] sm:$0xff]
      %v228 = vld [vmem:[%s4 + $0x8] sm:$0xff]
      %v229 = vld [vmem:[%s219] sm:$0xff]
      %v230 = vld [vmem:[%s219 + $0x8] sm:$0xff]
      %v231 = vld [vmem:[%s219 + $0x10] sm:$0xff]
      %v232 = vld [vmem:[%s219 + $0x18] sm:$0xff]
      %v233 = vld [vmem:[%s2] sm:$0x1]
      %v234 = vlaneseq
      %v235 = vshrl.u32 %v234, 7
      %v236 = vsub.s32 0, %v235
      %v237 = vrot.slane %v233, %v236
      %239 = vrot.lane.b32.xlu0 %v237, 4
      %v240 = vpop.permute.xlu0 %239
      %v242 = vmul.f32 %v229, %v240
      %v243 = vmul.f32 %v230, %v240
      %v244 = vmul.f32 %v231, %v240
      %v245 = vmul.f32 %v232, %v240
      %v246 = vmul.f32 %v229, %v237
      %v247 = vmul.f32 %v230, %v237
      %v248 = vmul.f32 %v231, %v237
      %v249 = vmul.f32 %v232, %v237
      %254 = vrot.lane.b32.xlu0 %v242, 1
      %v255 = vpop.permute.xlu0 %254
      %256 = vrot.lane.b32.xlu0 %v243, 1
      %v257 = vpop.permute.xlu0 %256
      %258 = vrot.lane.b32.xlu0 %v244, 1
      %v259 = vpop.permute.xlu0 %258
      %260 = vrot.lane.b32.xlu0 %v245, 1
      %v261 = vpop.permute.xlu0 %260
      %266 = vrot.lane.b32.xlu0 %v229, 4
      %v267 = vpop.permute.xlu0 %266
      %268 = vrot.lane.b32.xlu0 %v230, 4
      %v269 = vpop.permute.xlu0 %268
      %270 = vrot.lane.b32.xlu0 %v231, 4
      %v271 = vpop.permute.xlu0 %270
      %272 = vrot.lane.b32.xlu0 %v232, 4
      %v273 = vpop.permute.xlu0 %272
      %278 = vrot.lane.b32.xlu0 %v246, 5
      %v279 = vpop.permute.xlu0 %278
      %280 = vrot.lane.b32.xlu0 %v247, 5
      %v281 = vpop.permute.xlu0 %280
      %282 = vrot.lane.b32.xlu0 %v248, 5
      %v283 = vpop.permute.xlu0 %282
      %284 = vrot.lane.b32.xlu0 %v249, 5
      %v285 = vpop.permute.xlu0 %284
      %v286 = vld [vmem:[%s1] sm:$0xff]
      %v287 = vld [vmem:[%s1 + $0x8] sm:$0xff]
      %288 = vrot.lane.b32.xlu0 %v229, 123
      %v289 = vpop.permute.xlu0 %288
      %290 = vrot.lane.b32.xlu0 %v230, 123
      %v291 = vpop.permute.xlu0 %290
      %292 = vrot.lane.b32.xlu0 %v231, 123
      %v293 = vpop.permute.xlu0 %292
      %294 = vrot.lane.b32.xlu0 %v232, 123
      %v295 = vpop.permute.xlu0 %294
      %296 = vrot.lane.b32.xlu0 %v255, 123
      %v297 = vpop.permute.xlu0 %296
      %298 = vrot.lane.b32.xlu0 %v257, 123
      %v299 = vpop.permute.xlu0 %298
      %300 = vrot.lane.b32.xlu0 %v259, 123
      %v301 = vpop.permute.xlu0 %300
      %302 = vrot.lane.b32.xlu0 %v261, 123
      %v303 = vpop.permute.xlu0 %302
      %304 = vrot.lane.b32.xlu0 %v267, 123
      %v305 = vpop.permute.xlu0 %304
      %306 = vrot.lane.b32.xlu0 %v269, 123
      %v307 = vpop.permute.xlu0 %306
      %308 = vrot.lane.b32.xlu0 %v271, 123
      %v309 = vpop.permute.xlu0 %308
      %310 = vrot.lane.b32.xlu0 %v273, 123
      %v311 = vpop.permute.xlu0 %310
      %312 = vrot.lane.b32.xlu0 %v279, 123
      %v313 = vpop.permute.xlu0 %312
      %314 = vrot.lane.b32.xlu0 %v281, 123
      %v315 = vpop.permute.xlu0 %314
      %316 = vrot.lane.b32.xlu0 %v283, 123
      %v317 = vpop.permute.xlu0 %316
      %318 = vrot.lane.b32.xlu0 %v285, 123
      %v319 = vpop.permute.xlu0 %318
      %336 = vmatprep.subr.mxu0 0.0
      %337 = vmatpush1.msra.mxu0 %v289
      %338 = vmatprep.subr.mxu0 0.0
      %339 = vmatpush1.msra.mxu0 %v291
      %340 = vmatprep.subr.mxu0 0.0
      %341 = vmatpush1.msra.mxu0 %v293
      %342 = vmatprep.subr.mxu0 0.0
      %343 = vmatpush1.msra.mxu0 %v295
      %344 = vmatprep.subr.mxu0 0.0
      %345 = vmatpush1.msra.mxu0 %v297
      %346 = vmatprep.subr.mxu0 0.0
      %347 = vmatpush1.msra.mxu0 %v299
      %348 = vmatprep.subr.mxu0 0.0
      %349 = vmatpush1.msra.mxu0 %v301
      %350 = vmatprep.subr.mxu0 0.0
      %351 = vmatpush1.msra.mxu0 %v303
      %352 = vmatprep.subr.mxu0 0.0
      %353 = vmatpush1.msra.mxu0 %v305
      %354 = vmatprep.subr.mxu0 0.0
      %355 = vmatpush1.msra.mxu0 %v307
      %356 = vmatprep.subr.mxu0 0.0
      %357 = vmatpush1.msra.mxu0 %v309
      %358 = vmatprep.subr.mxu0 0.0
      %359 = vmatpush1.msra.mxu0 %v311
      %360 = vmatprep.subr.mxu0 0.0
      %361 = vmatpush1.msra.mxu0 %v313
      %362 = vmatprep.subr.mxu0 0.0
      %363 = vmatpush1.msra.mxu0 %v315
      %364 = vmatprep.subr.mxu0 0.0
      %365 = vmatpush1.msra.mxu0 %v317
      %366 = vmatprep.subr.mxu0 0.0
      %367 = vmatpush1.msra.mxu0 %v319
      %368 = vmatprep.subr.mxu0 0.0
      %369 = vmatpush1.msra.mxu0 0.0
      %370 = vmatprep.subr.mxu0 0.0
      %371 = vmatpush1.msra.mxu0 0.0
      %372 = vmatprep.subr.mxu0 0.0
      %373 = vmatpush1.msra.mxu0 0.0
      %374 = vmatprep.subr.mxu0 0.0
      %375 = vmatpush1.msra.mxu0 0.0
      %376 = vmatprep.subr.mxu0 0.0
      %377 = vmatpush1.msra.mxu0 0.0
      %378 = vmatprep.subr.mxu0 0.0
      %379 = vmatpush1.msra.mxu0 0.0
      %380 = vmatprep.subr.mxu0 0.0
      %381 = vmatpush1.msra.mxu0 0.0
      %382 = vmatprep.subr.mxu0 0.0
      %383 = vmatpush1.msra.mxu0 0.0
      %384 = vmatprep.subr.mxu0 0.0
      %385 = vmatpush1.msra.mxu0 0.0
      %386 = vmatprep.subr.mxu0 0.0
      %387 = vmatpush1.msra.mxu0 0.0
      %388 = vmatprep.subr.mxu0 0.0
      %389 = vmatpush1.msra.mxu0 0.0
      %390 = vmatprep.subr.mxu0 0.0
      %391 = vmatpush1.msra.mxu0 0.0
      %392 = vmatprep.subr.mxu0 0.0
      %393 = vmatpush1.msra.mxu0 0.0
      %394 = vmatprep.subr.mxu0 0.0
      %395 = vmatpush1.msra.mxu0 0.0
      %396 = vmatprep.subr.mxu0 0.0
      %397 = vmatpush1.msra.mxu0 0.0
      %398 = vmatprep.subr.mxu0 0.0
      %399 = vmatpush1.msra.mxu0 0.0
      %400 = vmatprep.mubr.f32.mxu0 0.0
      %401 = vmatmul.mubr.f32.gmra.mrb[0].mxu0 %v286
      %v402 = vpop.f32.mrb[0].mxu0
      %v403 = vadd.f32 0.0, %v402
      %v404 = vpop.f32.mrb[0].mxu0
      %405 = vmatprep.mubr.f32.mxu0 0.0
      %406 = vmatmul.mubr.f32.gmra.mrb[0].mxu0 %v287
      %v407 = vpop.f32.mrb[0].mxu0
      %v408 = vadd.f32 0.0, %v407
      %v409 = vpop.f32.mrb[0].mxu0
      %410 = vdwg.mxu0
      %412 = vset.pattern.permute.xlu0 0
      %413 = vperm.xlu0 %412, %v225
      %v414 = vpop.permute.xlu0 %413
      %417 = vset.pattern.permute.xlu0 0
      %418 = vperm.xlu0 %417, %v226
      %v419 = vpop.permute.xlu0 %418
      %v421 = vmul.f32 %v403, %v414
      %v422 = vmul.f32 %v408, %v419
      %424 = vset.pattern.permute.xlu0 0
      %425 = vperm.xlu0 %424, %v227
      %v426 = vpop.permute.xlu0 %425
      %429 = vset.pattern.permute.xlu0 0
      %430 = vperm.xlu0 %429, %v228
      %v431 = vpop.permute.xlu0 %430
      %v433 = vadd.f32 %v421, %v426
      %v434 = vadd.f32 %v422, %v431
      %v435 = vmax.f32 %v433, 0.0
      %v436 = vmax.f32 %v434, 0.0
      %vm437 = vcmask 130048
      %438 = vst.msk [vmem:[%s224] sm:$0xff] %vm437, %v435
      %439 = vst.msk [vmem:[%s224 + $0x8] sm:$0xff] %vm437, %v436
      %v440 = vld [vmem:[%s219] sm:$0xff]
      %v441 = vld [vmem:[%s219 + $0x8] sm:$0xff]
      %v442 = vld [vmem:[%s219 + $0x10] sm:$0xff]
      %v443 = vld [vmem:[%s219 + $0x18] sm:$0xff]
      %v444 = vld [vmem:[%s2 + $0x1] sm:$0x1]
      %v445 = vlaneseq
      %v446 = vshrl.u32 %v445, 7
      %v447 = vsub.s32 0, %v446
      %v448 = vrot.slane %v444, %v447
      %450 = vrot.lane.b32.xlu0 %v448, 6
      %v451 = vpop.permute.xlu0 %450
      %v453 = vmul.f32 %v440, %v451
      %v454 = vmul.f32 %v441, %v451
      %v455 = vmul.f32 %v442, %v451
      %v456 = vmul.f32 %v443, %v451
      %457 = vrot.lane.b32.xlu0 %v448, 2
      %v458 = vpop.permute.xlu0 %457
      %v460 = vmul.f32 %v440, %v458
      %v461 = vmul.f32 %v441, %v458
      %v462 = vmul.f32 %v442, %v458
      %v463 = vmul.f32 %v443, %v458
      %468 = vrot.lane.b32.xlu0 %v453, 127
      %v469 = vpop.permute.xlu0 %468
      %470 = vrot.lane.b32.xlu0 %v454, 127
      %v471 = vpop.permute.xlu0 %470
      %472 = vrot.lane.b32.xlu0 %v455, 127
      %v473 = vpop.permute.xlu0 %472
      %474 = vrot.lane.b32.xlu0 %v456, 127
      %v475 = vpop.permute.xlu0 %474
      %480 = vrot.lane.b32.xlu0 %v440, 4
      %v481 = vpop.permute.xlu0 %480
      %482 = vrot.lane.b32.xlu0 %v441, 4
      %v483 = vpop.permute.xlu0 %482
      %484 = vrot.lane.b32.xlu0 %v442, 4
      %v485 = vpop.permute.xlu0 %484
      %486 = vrot.lane.b32.xlu0 %v443, 4
      %v487 = vpop.permute.xlu0 %486
      %492 = vrot.lane.b32.xlu0 %v460, 3
      %v493 = vpop.permute.xlu0 %492
      %494 = vrot.lane.b32.xlu0 %v461, 3
      %v495 = vpop.permute.xlu0 %494
      %496 = vrot.lane.b32.xlu0 %v462, 3
      %v497 = vpop.permute.xlu0 %496
      %498 = vrot.lane.b32.xlu0 %v463, 3
      %v499 = vpop.permute.xlu0 %498
      %s500 = scalar_lea.vmem %s1, 16
      %v501 = vld [vmem:[%s500] sm:$0xff]
      %v502 = vld [vmem:[%s500 + $0x8] sm:$0xff]
      %503 = vrot.lane.b32.xlu0 %v440, 123
      %v504 = vpop.permute.xlu0 %503
      %505 = vrot.lane.b32.xlu0 %v441, 123
      %v506 = vpop.permute.xlu0 %505
      %507 = vrot.lane.b32.xlu0 %v442, 123
      %v508 = vpop.permute.xlu0 %507
      %509 = vrot.lane.b32.xlu0 %v443, 123
      %v510 = vpop.permute.xlu0 %509
      %511 = vrot.lane.b32.xlu0 %v469, 123
      %v512 = vpop.permute.xlu0 %511
      %513 = vrot.lane.b32.xlu0 %v471, 123
      %v514 = vpop.permute.xlu0 %513
      %515 = vrot.lane.b32.xlu0 %v473, 123
      %v516 = vpop.permute.xlu0 %515
      %517 = vrot.lane.b32.xlu0 %v475, 123
      %v518 = vpop.permute.xlu0 %517
      %519 = vrot.lane.b32.xlu0 %v481, 123
      %v520 = vpop.permute.xlu0 %519
      %521 = vrot.lane.b32.xlu0 %v483, 123
      %v522 = vpop.permute.xlu0 %521
      %523 = vrot.lane.b32.xlu0 %v485, 123
      %v524 = vpop.permute.xlu0 %523
      %525 = vrot.lane.b32.xlu0 %v487, 123
      %v526 = vpop.permute.xlu0 %525
      %527 = vrot.lane.b32.xlu0 %v493, 123
      %v528 = vpop.permute.xlu0 %527
      %529 = vrot.lane.b32.xlu0 %v495, 123
      %v530 = vpop.permute.xlu0 %529
      %531 = vrot.lane.b32.xlu0 %v497, 123
      %v532 = vpop.permute.xlu0 %531
      %533 = vrot.lane.b32.xlu0 %v499, 123
      %v534 = vpop.permute.xlu0 %533
      %551 = vmatprep.subr.mxu0 0.0
      %552 = vmatpush1.msra.mxu0 %v504
      %553 = vmatprep.subr.mxu0 0.0
      %554 = vmatpush1.msra.mxu0 %v506
      %555 = vmatprep.subr.mxu0 0.0
      %556 = vmatpush1.msra.mxu0 %v508
      %557 = vmatprep.subr.mxu0 0.0
      %558 = vmatpush1.msra.mxu0 %v510
      %559 = vmatprep.subr.mxu0 0.0
      %560 = vmatpush1.msra.mxu0 %v512
      %561 = vmatprep.subr.mxu0 0.0
      %562 = vmatpush1.msra.mxu0 %v514
      %563 = vmatprep.subr.mxu0 0.0
      %564 = vmatpush1.msra.mxu0 %v516
      %565 = vmatprep.subr.mxu0 0.0
      %566 = vmatpush1.msra.mxu0 %v518
      %567 = vmatprep.subr.mxu0 0.0
      %568 = vmatpush1.msra.mxu0 %v520
      %569 = vmatprep.subr.mxu0 0.0
      %570 = vmatpush1.msra.mxu0 %v522
      %571 = vmatprep.subr.mxu0 0.0
      %572 = vmatpush1.msra.mxu0 %v524
      %573 = vmatprep.subr.mxu0 0.0
      %574 = vmatpush1.msra.mxu0 %v526
      %575 = vmatprep.subr.mxu0 0.0
      %576 = vmatpush1.msra.mxu0 %v528
      %577 = vmatprep.subr.mxu0 0.0
      %578 = vmatpush1.msra.mxu0 %v530
      %579 = vmatprep.subr.mxu0 0.0
      %580 = vmatpush1.msra.mxu0 %v532
      %581 = vmatprep.subr.mxu0 0.0
      %582 = vmatpush1.msra.mxu0 %v534
      %583 = vmatprep.subr.mxu0 0.0
      %584 = vmatpush1.msra.mxu0 0.0
      %585 = vmatprep.subr.mxu0 0.0
      %586 = vmatpush1.msra.mxu0 0.0
      %587 = vmatprep.subr.mxu0 0.0
      %588 = vmatpush1.msra.mxu0 0.0
      %589 = vmatprep.subr.mxu0 0.0
      %590 = vmatpush1.msra.mxu0 0.0
      %591 = vmatprep.subr.mxu0 0.0
      %592 = vmatpush1.msra.mxu0 0.0
      %593 = vmatprep.subr.mxu0 0.0
      %594 = vmatpush1.msra.mxu0 0.0
      %595 = vmatprep.subr.mxu0 0.0
      %596 = vmatpush1.msra.mxu0 0.0
      %597 = vmatprep.subr.mxu0 0.0
      %598 = vmatpush1.msra.mxu0 0.0
      %599 = vmatprep.subr.mxu0 0.0
      %600 = vmatpush1.msra.mxu0 0.0
      %601 = vmatprep.subr.mxu0 0.0
      %602 = vmatpush1.msra.mxu0 0.0
      %603 = vmatprep.subr.mxu0 0.0
      %604 = vmatpush1.msra.mxu0 0.0
      %605 = vmatprep.subr.mxu0 0.0
      %606 = vmatpush1.msra.mxu0 0.0
      %607 = vmatprep.subr.mxu0 0.0
      %608 = vmatpush1.msra.mxu0 0.0
      %609 = vmatprep.subr.mxu0 0.0
      %610 = vmatpush1.msra.mxu0 0.0
      %611 = vmatprep.subr.mxu0 0.0
      %612 = vmatpush1.msra.mxu0 0.0
      %613 = vmatprep.subr.mxu0 0.0
      %614 = vmatpush1.msra.mxu0 0.0
      %615 = vmatprep.mubr.f32.mxu0 0.0
      %616 = vmatmul.mubr.f32.gmra.mrb[0].mxu0 %v501
      %v617 = vpop.f32.mrb[0].mxu0
      %v618 = vadd.f32 0.0, %v617
      %v619 = vpop.f32.mrb[0].mxu0
      %620 = vmatprep.mubr.f32.mxu0 0.0
      %621 = vmatmul.mubr.f32.gmra.mrb[0].mxu0 %v502
      %v622 = vpop.f32.mrb[0].mxu0
      %v623 = vadd.f32 0.0, %v622
      %v624 = vpop.f32.mrb[0].mxu0
      %625 = vdwg.mxu0
      %v626 = vmul.f32 %v618, %v414
      %v627 = vmul.f32 %v623, %v419
      %v628 = vadd.f32 %v626, %v426
      %v629 = vadd.f32 %v627, %v431
      %v630 = vmax.f32 %v628, 0.0
      %v631 = vmax.f32 %v629, 0.0
      %s632 = scalar_lea.vmem %s224, 16
      %633 = vst.msk [vmem:[%s632] sm:$0xff] %vm437, %v630
      %634 = vst.msk [vmem:[%s632 + $0x8] sm:$0xff] %vm437, %v631
      %v635 = vld [vmem:[%s219] sm:$0xff]
      %v636 = vld [vmem:[%s219 + $0x8] sm:$0xff]
      %v637 = vld [vmem:[%s219 + $0x10] sm:$0xff]
      %v638 = vld [vmem:[%s219 + $0x18] sm:$0xff]
      %v639 = vld [vmem:[%s2] sm:$0x1]
      %v640 = vlaneseq
      %v641 = vshrl.u32 %v640, 7
      %v642 = vsub.s32 0, %v641
      %v643 = vrot.slane %v639, %v642
      %645 = vrot.lane.b32.xlu0 %v643, 4
      %v646 = vpop.permute.xlu0 %645
      %v648 = vmul.f32 %v635, %v646
      %v649 = vmul.f32 %v636, %v646
      %v650 = vmul.f32 %v637, %v646
      %v651 = vmul.f32 %v638, %v646
      %652 = vrot.lane.b32.xlu0 %v643, 8
      %v653 = vpop.permute.xlu0 %652
      %v655 = vmul.f32 %v635, %v653
      %v656 = vmul.f32 %v636, %v653
      %v657 = vmul.f32 %v637, %v653
      %v658 = vmul.f32 %v638, %v653
      %663 = vrot.lane.b32.xlu0 %v648, 1
      %v664 = vpop.permute.xlu0 %663
      %665 = vrot.lane.b32.xlu0 %v649, 1
      %v666 = vpop.permute.xlu0 %665
      %667 = vrot.lane.b32.xlu0 %v650, 1
      %v668 = vpop.permute.xlu0 %667
      %669 = vrot.lane.b32.xlu0 %v651, 1
      %v670 = vpop.permute.xlu0 %669
      %675 = vrot.lane.b32.xlu0 %v635, 124
      %v676 = vpop.permute.xlu0 %675
      %677 = vrot.lane.b32.xlu0 %v636, 124
      %v678 = vpop.permute.xlu0 %677
      %679 = vrot.lane.b32.xlu0 %v637, 124
      %v680 = vpop.permute.xlu0 %679
      %681 = vrot.lane.b32.xlu0 %v638, 124
      %v682 = vpop.permute.xlu0 %681
      %687 = vrot.lane.b32.xlu0 %v655, 125
      %v688 = vpop.permute.xlu0 %687
      %689 = vrot.lane.b32.xlu0 %v656, 125
      %v690 = vpop.permute.xlu0 %689
      %691 = vrot.lane.b32.xlu0 %v657, 125
      %v692 = vpop.permute.xlu0 %691
      %693 = vrot.lane.b32.xlu0 %v658, 125
      %v694 = vpop.permute.xlu0 %693
      %s695 = scalar_lea.vmem %s1, 32
      %v696 = vld [vmem:[%s695] sm:$0xff]
      %v697 = vld [vmem:[%s695 + $0x8] sm:$0xff]
      %698 = vrot.lane.b32.xlu0 %v635, 123
      %v699 = vpop.permute.xlu0 %698
      %700 = vrot.lane.b32.xlu0 %v636, 123
      %v701 = vpop.permute.xlu0 %700
      %702 = vrot.lane.b32.xlu0 %v637, 123
      %v703 = vpop.permute.xlu0 %702
      %704 = vrot.lane.b32.xlu0 %v638, 123
      %v705 = vpop.permute.xlu0 %704
      %706 = vrot.lane.b32.xlu0 %v664, 123
      %v707 = vpop.permute.xlu0 %706
      %708 = vrot.lane.b32.xlu0 %v666, 123
      %v709 = vpop.permute.xlu0 %708
      %710 = vrot.lane.b32.xlu0 %v668, 123
      %v711 = vpop.permute.xlu0 %710
      %712 = vrot.lane.b32.xlu0 %v670, 123
      %v713 = vpop.permute.xlu0 %712
      %714 = vrot.lane.b32.xlu0 %v676, 123
      %v715 = vpop.permute.xlu0 %714
      %716 = vrot.lane.b32.xlu0 %v678, 123
      %v717 = vpop.permute.xlu0 %716
      %718 = vrot.lane.b32.xlu0 %v680, 123
      %v719 = vpop.permute.xlu0 %718
      %720 = vrot.lane.b32.xlu0 %v682, 123
      %v721 = vpop.permute.xlu0 %720
      %722 = vrot.lane.b32.xlu0 %v688, 123
      %v723 = vpop.permute.xlu0 %722
      %724 = vrot.lane.b32.xlu0 %v690, 123
      %v725 = vpop.permute.xlu0 %724
      %726 = vrot.lane.b32.xlu0 %v692, 123
      %v727 = vpop.permute.xlu0 %726
      %728 = vrot.lane.b32.xlu0 %v694, 123
      %v729 = vpop.permute.xlu0 %728
      %746 = vmatprep.subr.mxu0 0.0
      %747 = vmatpush1.msra.mxu0 %v699
      %748 = vmatprep.subr.mxu0 0.0
      %749 = vmatpush1.msra.mxu0 %v701
      %750 = vmatprep.subr.mxu0 0.0
      %751 = vmatpush1.msra.mxu0 %v703
      %752 = vmatprep.subr.mxu0 0.0
      %753 = vmatpush1.msra.mxu0 %v705
      %754 = vmatprep.subr.mxu0 0.0
      %755 = vmatpush1.msra.mxu0 %v707
      %756 = vmatprep.subr.mxu0 0.0
      %757 = vmatpush1.msra.mxu0 %v709
      %758 = vmatprep.subr.mxu0 0.0
      %759 = vmatpush1.msra.mxu0 %v711
      %760 = vmatprep.subr.mxu0 0.0
      %761 = vmatpush1.msra.mxu0 %v713
      %762 = vmatprep.subr.mxu0 0.0
      %763 = vmatpush1.msra.mxu0 %v715
      %764 = vmatprep.subr.mxu0 0.0
      %765 = vmatpush1.msra.mxu0 %v717
      %766 = vmatprep.subr.mxu0 0.0
      %767 = vmatpush1.msra.mxu0 %v719
      %768 = vmatprep.subr.mxu0 0.0
      %769 = vmatpush1.msra.mxu0 %v721
      %770 = vmatprep.subr.mxu0 0.0
      %771 = vmatpush1.msra.mxu0 %v723
      %772 = vmatprep.subr.mxu0 0.0
      %773 = vmatpush1.msra.mxu0 %v725
      %774 = vmatprep.subr.mxu0 0.0
      %775 = vmatpush1.msra.mxu0 %v727
      %776 = vmatprep.subr.mxu0 0.0
      %777 = vmatpush1.msra.mxu0 %v729
      %778 = vmatprep.subr.mxu0 0.0
      %779 = vmatpush1.msra.mxu0 0.0
      %780 = vmatprep.subr.mxu0 0.0
      %781 = vmatpush1.msra.mxu0 0.0
      %782 = vmatprep.subr.mxu0 0.0
      %783 = vmatpush1.msra.mxu0 0.0
      %784 = vmatprep.subr.mxu0 0.0
      %785 = vmatpush1.msra.mxu0 0.0
      %786 = vmatprep.subr.mxu0 0.0
      %787 = vmatpush1.msra.mxu0 0.0
      %788 = vmatprep.subr.mxu0 0.0
      %789 = vmatpush1.msra.mxu0 0.0
      %790 = vmatprep.subr.mxu0 0.0
      %791 = vmatpush1.msra.mxu0 0.0
      %792 = vmatprep.subr.mxu0 0.0
      %793 = vmatpush1.msra.mxu0 0.0
      %794 = vmatprep.subr.mxu0 0.0
      %795 = vmatpush1.msra.mxu0 0.0
      %796 = vmatprep.subr.mxu0 0.0
      %797 = vmatpush1.msra.mxu0 0.0
      %798 = vmatprep.subr.mxu0 0.0
      %799 = vmatpush1.msra.mxu0 0.0
      %800 = vmatprep.subr.mxu0 0.0
      %801 = vmatpush1.msra.mxu0 0.0
      %802 = vmatprep.subr.mxu0 0.0
      %803 = vmatpush1.msra.mxu0 0.0
      %804 = vmatprep.subr.mxu0 0.0
      %805 = vmatpush1.msra.mxu0 0.0
      %806 = vmatprep.subr.mxu0 0.0
      %807 = vmatpush1.msra.mxu0 0.0
      %808 = vmatprep.subr.mxu0 0.0
      %809 = vmatpush1.msra.mxu0 0.0
      %810 = vmatprep.mubr.f32.mxu0 0.0
      %811 = vmatmul.mubr.f32.gmra.mrb[0].mxu0 %v696
      %v812 = vpop.f32.mrb[0].mxu0
      %v813 = vadd.f32 0.0, %v812
      %v814 = vpop.f32.mrb[0].mxu0
      %815 = vmatprep.mubr.f32.mxu0 0.0
      %816 = vmatmul.mubr.f32.gmra.mrb[0].mxu0 %v697
      %v817 = vpop.f32.mrb[0].mxu0
      %v818 = vadd.f32 0.0, %v817
      %v819 = vpop.f32.mrb[0].mxu0
      %820 = vdwg.mxu0
      %v821 = vmul.f32 %v813, %v414
      %v822 = vmul.f32 %v818, %v419
      %v823 = vadd.f32 %v821, %v426
      %v824 = vadd.f32 %v822, %v431
      %v825 = vmax.f32 %v823, 0.0
      %v826 = vmax.f32 %v824, 0.0
      %s827 = scalar_lea.vmem %s224, 32
      %828 = vst.msk [vmem:[%s827] sm:$0xff] %vm437, %v825
      %829 = vst.msk [vmem:[%s827 + $0x8] sm:$0xff] %vm437, %v826
      %v830 = vld [vmem:[%s219] sm:$0xff]
      %v831 = vld [vmem:[%s219 + $0x8] sm:$0xff]
      %v832 = vld [vmem:[%s219 + $0x10] sm:$0xff]
      %v833 = vld [vmem:[%s219 + $0x18] sm:$0xff]
      %v834 = vld [vmem:[%s2 + $0x1] sm:$0x1]
      %v835 = vlaneseq
      %v836 = vshrl.u32 %v835, 7
      %v837 = vsub.s32 0, %v836
      %v838 = vrot.slane %v834, %v837
      %840 = vrot.lane.b32.xlu0 %v838, 6
      %v841 = vpop.permute.xlu0 %840
      %v843 = vmul.f32 %v830, %v841
      %v844 = vmul.f32 %v831, %v841
      %v845 = vmul.f32 %v832, %v841
      %v846 = vmul.f32 %v833, %v841
      %847 = vrot.lane.b32.xlu0 %v838, 10
      %v848 = vpop.permute.xlu0 %847
      %v850 = vmul.f32 %v830, %v848
      %v851 = vmul.f32 %v831, %v848
      %v852 = vmul.f32 %v832, %v848
      %v853 = vmul.f32 %v833, %v848
      %858 = vrot.lane.b32.xlu0 %v843, 127
      %v859 = vpop.permute.xlu0 %858
      %860 = vrot.lane.b32.xlu0 %v844, 127
      %v861 = vpop.permute.xlu0 %860
      %862 = vrot.lane.b32.xlu0 %v845, 127
      %v863 = vpop.permute.xlu0 %862
      %864 = vrot.lane.b32.xlu0 %v846, 127
      %v865 = vpop.permute.xlu0 %864
      %870 = vrot.lane.b32.xlu0 %v830, 124
      %v871 = vpop.permute.xlu0 %870
      %872 = vrot.lane.b32.xlu0 %v831, 124
      %v873 = vpop.permute.xlu0 %872
      %874 = vrot.lane.b32.xlu0 %v832, 124
      %v875 = vpop.permute.xlu0 %874
      %876 = vrot.lane.b32.xlu0 %v833, 124
      %v877 = vpop.permute.xlu0 %876
      %882 = vrot.lane.b32.xlu0 %v850, 123
      %v883 = vpop.permute.xlu0 %882
      %884 = vrot.lane.b32.xlu0 %v851, 123
      %v885 = vpop.permute.xlu0 %884
      %886 = vrot.lane.b32.xlu0 %v852, 123
      %v887 = vpop.permute.xlu0 %886
      %888 = vrot.lane.b32.xlu0 %v853, 123
      %v889 = vpop.permute.xlu0 %888
      %s890 = scalar_lea.vmem %s1, 48
      %v891 = vld [vmem:[%s890] sm:$0xff]
      %v892 = vld [vmem:[%s890 + $0x8] sm:$0xff]
      %893 = vrot.lane.b32.xlu0 %v830, 123
      %v894 = vpop.permute.xlu0 %893
      %895 = vrot.lane.b32.xlu0 %v831, 123
      %v896 = vpop.permute.xlu0 %895
      %897 = vrot.lane.b32.xlu0 %v832, 123
      %v898 = vpop.permute.xlu0 %897
      %899 = vrot.lane.b32.xlu0 %v833, 123
      %v900 = vpop.permute.xlu0 %899
      %901 = vrot.lane.b32.xlu0 %v859, 123
      %v902 = vpop.permute.xlu0 %901
      %903 = vrot.lane.b32.xlu0 %v861, 123
      %v904 = vpop.permute.xlu0 %903
      %905 = vrot.lane.b32.xlu0 %v863, 123
      %v906 = vpop.permute.xlu0 %905
      %907 = vrot.lane.b32.xlu0 %v865, 123
      %v908 = vpop.permute.xlu0 %907
      %909 = vrot.lane.b32.xlu0 %v871, 123
      %v910 = vpop.permute.xlu0 %909
      %911 = vrot.lane.b32.xlu0 %v873, 123
      %v912 = vpop.permute.xlu0 %911
      %913 = vrot.lane.b32.xlu0 %v875, 123
      %v914 = vpop.permute.xlu0 %913
      %915 = vrot.lane.b32.xlu0 %v877, 123
      %v916 = vpop.permute.xlu0 %915
      %917 = vrot.lane.b32.xlu0 %v883, 123
      %v918 = vpop.permute.xlu0 %917
      %919 = vrot.lane.b32.xlu0 %v885, 123
      %v920 = vpop.permute.xlu0 %919
      %921 = vrot.lane.b32.xlu0 %v887, 123
      %v922 = vpop.permute.xlu0 %921
      %923 = vrot.lane.b32.xlu0 %v889, 123
      %v924 = vpop.permute.xlu0 %923
      %941 = vmatprep.subr.mxu0 0.0
      %942 = vmatpush1.msra.mxu0 %v894
      %943 = vmatprep.subr.mxu0 0.0
      %944 = vmatpush1.msra.mxu0 %v896
      %945 = vmatprep.subr.mxu0 0.0
      %946 = vmatpush1.msra.mxu0 %v898
      %947 = vmatprep.subr.mxu0 0.0
      %948 = vmatpush1.msra.mxu0 %v900
      %949 = vmatprep.subr.mxu0 0.0
      %950 = vmatpush1.msra.mxu0 %v902
      %951 = vmatprep.subr.mxu0 0.0
      %952 = vmatpush1.msra.mxu0 %v904
      %953 = vmatprep.subr.mxu0 0.0
      %954 = vmatpush1.msra.mxu0 %v906
      %955 = vmatprep.subr.mxu0 0.0
      %956 = vmatpush1.msra.mxu0 %v908
      %957 = vmatprep.subr.mxu0 0.0
      %958 = vmatpush1.msra.mxu0 %v910
      %959 = vmatprep.subr.mxu0 0.0
      %960 = vmatpush1.msra.mxu0 %v912
      %961 = vmatprep.subr.mxu0 0.0
      %962 = vmatpush1.msra.mxu0 %v914
      %963 = vmatprep.subr.mxu0 0.0
      %964 = vmatpush1.msra.mxu0 %v916
      %965 = vmatprep.subr.mxu0 0.0
      %966 = vmatpush1.msra.mxu0 %v918
      %967 = vmatprep.subr.mxu0 0.0
      %968 = vmatpush1.msra.mxu0 %v920
      %969 = vmatprep.subr.mxu0 0.0
      %970 = vmatpush1.msra.mxu0 %v922
      %971 = vmatprep.subr.mxu0 0.0
      %972 = vmatpush1.msra.mxu0 %v924
      %973 = vmatprep.subr.mxu0 0.0
      %974 = vmatpush1.msra.mxu0 0.0
      %975 = vmatprep.subr.mxu0 0.0
      %976 = vmatpush1.msra.mxu0 0.0
      %977 = vmatprep.subr.mxu0 0.0
      %978 = vmatpush1.msra.mxu0 0.0
      %979 = vmatprep.subr.mxu0 0.0
      %980 = vmatpush1.msra.mxu0 0.0
      %981 = vmatprep.subr.mxu0 0.0
      %982 = vmatpush1.msra.mxu0 0.0
      %983 = vmatprep.subr.mxu0 0.0
      %984 = vmatpush1.msra.mxu0 0.0
      %985 = vmatprep.subr.mxu0 0.0
      %986 = vmatpush1.msra.mxu0 0.0
      %987 = vmatprep.subr.mxu0 0.0
      %988 = vmatpush1.msra.mxu0 0.0
      %989 = vmatprep.subr.mxu0 0.0
      %990 = vmatpush1.msra.mxu0 0.0
      %991 = vmatprep.subr.mxu0 0.0
      %992 = vmatpush1.msra.mxu0 0.0
      %993 = vmatprep.subr.mxu0 0.0
      %994 = vmatpush1.msra.mxu0 0.0
      %995 = vmatprep.subr.mxu0 0.0
      %996 = vmatpush1.msra.mxu0 0.0
      %997 = vmatprep.subr.mxu0 0.0
      %998 = vmatpush1.msra.mxu0 0.0
      %999 = vmatprep.subr.mxu0 0.0
      %1000 = vmatpush1.msra.mxu0 0.0
      %1001 = vmatprep.subr.mxu0 0.0
      %1002 = vmatpush1.msra.mxu0 0.0
      %1003 = vmatprep.subr.mxu0 0.0
      %1004 = vmatpush1.msra.mxu0 0.0
      %1005 = vmatprep.mubr.f32.mxu0 0.0
      %1006 = vmatmul.mubr.f32.gmra.mrb[0].mxu0 %v891
      %v1007 = vpop.f32.mrb[0].mxu0
      %v1008 = vadd.f32 0.0, %v1007
      %v1009 = vpop.f32.mrb[0].mxu0
      %1010 = vmatprep.mubr.f32.mxu0 0.0
      %1011 = vmatmul.mubr.f32.gmra.mrb[0].mxu0 %v892
      %v1012 = vpop.f32.mrb[0].mxu0
      %v1013 = vadd.f32 0.0, %v1012
      %v1014 = vpop.f32.mrb[0].mxu0
      %1015 = vdwg.mxu0
      %v1016 = vmul.f32 %v1008, %v414
      %v1017 = vmul.f32 %v1013, %v419
      %v1018 = vadd.f32 %v1016, %v426
      %v1019 = vadd.f32 %v1017, %v431
      %v1020 = vmax.f32 %v1018, 0.0
      %v1021 = vmax.f32 %v1019, 0.0
      %s1022 = scalar_lea.vmem %s224, 48
      %1023 = vst.msk [vmem:[%s1022] sm:$0xff] %vm437, %v1020
      %1024 = vst.msk [vmem:[%s1022 + $0x8] sm:$0xff] %vm437, %v1021
      %p1025 = scmp.lt.s32.totalorder %s16, 1
      %s1026 = scalar_select %p1025, %s16, 1
      %s1027 = smul.addr %s1026, 8
      %s1028 = smul.addr %s1027, 8
      %s1029 = scalar_lea.vmem %s5, %s1028
      // Predicated region
      $region41: #{generator_forward.6} parent=39 // pred_check
        %p1030 = pneg %p144
      $region42: #{generator_forward.6} parent=39 // pred_check_branch
        %1032 = sbr.rel (%p1030) target = $region44
      $region43: #{generator_forward.6} parent=39 // pred_region
        _
      $region44: #{generator_forward.6} parent=39 // pred_fallthru
        _
    $region40: #{generator_forward.6} parent=5 // pred_fallthru
      _
    %p1033 = scmp.le.s32.totalorder 2, %s11
    // Predicated region
    $region45: #{generator_forward.6} parent=5 // pred_check
      %p1034 = pneg %p1033
    $region46: #{generator_forward.6} parent=5 // pred_check_branch
      %1036 = sbr.rel (%p1034) target = $region48
    $region47: #{generator_forward.6} parent=5 // pred_region
      %s1037 = ssub.s32 %s11, 2
      // Predicated region
      $region49: #{generator_forward.6} parent=47 // pred_check
        %p1038 = pneg %p150
      $region50: #{generator_forward.6} parent=47 // pred_check_branch
        %1040 = sbr.rel (%p1038) target = $region52
      $region51: #{generator_forward.6} parent=47 // pred_region
        %p1041 = scmp.lt.s32.totalorder %s17, 1
        %s1042 = scalar_select %p1041, %s17, 1
        %s1043 = smul.addr %s1042, 8
        %s1044 = smul.addr %s1043, 8
        %s1045 = scalar_lea.vmem %s5, %s1044
      $region52: #{generator_forward.6} parent=47 // pred_fallthru
        _
    $region48: #{generator_forward.6} parent=5 // pred_fallthru
      _
  $region6: #{generator_forward.6} parent=0 // loop_footer
    %s15 = sadd.s32 1, %s11
  $region7: #{generator_forward.6} parent=0 // loop_footer_branch
    %10 = sbr.rel target = $region3
  $region8: #{generator_forward.6} parent=0 // loop_exit
    _

// kernel: generator_forward.7
$region0: #{generator_forward.7}
  #allocation0 [shape = 'u32[]', space=smem, size = 0x4, offset = 0x4, fixed_abs, tag = 'smem constant byte address 0x4 - core index']
  #allocation1 [shape = 'u32[144,128]{1,0:T(1,128)}', space=vmem, size = 0x12000, scoped, tag = 'internal scratch']
  %s0 = inlined_call_operand.vmem [shape: f32[2,16,82], index: 0, kind: input, shape index: {}]
  %s1 = inlined_call_operand.vmem [shape: f32[4,8,64], index: 1, kind: input, shape index: {}]
  %s2 = inlined_call_operand.vmem [shape: f32[2,64], index: 2, kind: input, shape index: {}]
  %s3 = inlined_call_operand.vmem [shape: f32[8,1], index: 3, kind: input, shape index: {}]
  %s4 = inlined_call_operand.vmem [shape: f32[8,1], index: 4, kind: input, shape index: {}]
  %s5 = inlined_call_operand.vmem [shape: f32[2,4,8,64], index: 5, kind: output, shape index: {}]
  %s6 = sld [smem:[#allocation0]]
  $region53: #{generator_forward.7} parent=0
    _
  %s8 = ssub.s32 1, %s6
  %s9 = scalar_select 0, %s8, %s6
  loop: start=0, step=1, limit=4
  $region2: #{generator_forward.7} parent=0 // loop_pre_header
    _
  $region3: #{generator_forward.7} parent=0 // loop_header
    %s11 = sphi 0, %s15
    %p12 = scmp.ge.s32.totalorder %s11, 4
    %s21 = sphi 0, %s23
    %s24 = sphi 0, %s21
    %s25 = sphi 0, %s24
    %s41 = sphi 0, %s25
    %s45 = sphi 0, %s45
    %s47 = sphi 0, %s45
    %s48 = sphi 0, %s47
    %s62 = sphi 0, %s48
    %s66 = sphi 0, %s66
    %s68 = sphi 0, %s66
    %s69 = sphi 0, %s68
    %s83 = sphi 0, %s69
    %s87 = sphi 0, %s87
    %s89 = sphi 0, %s87
    %s90 = sphi 0, %s89
    %s104 = sphi 0, %s90
    %s108 = sphi 0, %s108
    %s110 = sphi 0, %s108
    %s111 = sphi 0, %s110
    %s125 = sphi 0, %s111
    %s131 = sphi 0, %s133
    %s134 = sphi 0, %s131
    %s135 = sphi 0, %s134
    %s151 = sphi 0, %s135
  $region4: #{generator_forward.7} parent=0 // loop_header_branch
    %14 = sbr.rel (%p12) target = $region8
  $region5: #{generator_forward.7} parent=0 // loop_body
    %s16 = ssub.s32 %s11, 1
    %s17 = ssub.s32 %s11, 2
    %s18 = sadd.s32 %s11, 1
    %s19 = ssub.s32 %s11, %s18
    %p20 = scmp.eq.s32.totalorder %s19, 0
    %s22 = sadd.s32 %s21, 1
    %s23 = scalar_select %p20, %s21, %s22
    %p26 = pneg %p20
    %p27 = scmp.eq.s32.totalorder %s11, 1
    %p28 = por %p26, %p27
    %p29 = scmp.ne.s32.totalorder %s21, %s24
    %p30 = scmp.eq.s32.totalorder %s11, 0
    %p31 = por %p29, %p30
    %p32 = scmp.ne.s32.totalorder %s21, %s24
    %p33 = scmp.eq.s32.totalorder %s16, 1
    %p34 = por %p32, %p33
    %p35 = scmp.ne.s32.totalorder %s24, %s25
    %p36 = scmp.eq.s32.totalorder %s16, 0
    %p37 = por %p35, %p36
    %p38 = scmp.ne.s32.totalorder %s24, %s25
    %p39 = scmp.eq.s32.totalorder %s17, 1
    %p40 = por %p38, %p39
    %p42 = scmp.ne.s32.totalorder %s25, %s41
    %p43 = scmp.eq.s32.totalorder %s17, 0
    %p44 = por %p42, %p43
    %s46 = sadd.s32 %s45, 1
    %p49 = scmp.eq.s32.totalorder %s11, 1
    %p50 = scmp.ne.s32.totalorder %s45, %s47
    %p51 = scmp.eq.s32.totalorder %s11, 0
    %p52 = por %p50, %p51
    %p53 = scmp.ne.s32.totalorder %s45, %s47
    %p54 = scmp.eq.s32.totalorder %s16, 1
    %p55 = por %p53, %p54
    %p56 = scmp.ne.s32.totalorder %s47, %s48
    %p57 = scmp.eq.s32.totalorder %s16, 0
    %p58 = por %p56, %p57
    %p59 = scmp.ne.s32.totalorder %s47, %s48
    %p60 = scmp.eq.s32.totalorder %s17, 1
    %p61 = por %p59, %p60
    %p63 = scmp.ne.s32.totalorder %s48, %s62
    %p64 = scmp.eq.s32.totalorder %s17, 0
    %p65 = por %p63, %p64
    %s67 = sadd.s32 %s66, 1
    %p70 = scmp.eq.s32.totalorder %s11, 1
    %p71 = scmp.ne.s32.totalorder %s66, %s68
    %p72 = scmp.eq.s32.totalorder %s11, 0
    %p73 = por %p71, %p72
    %p74 = scmp.ne.s32.totalorder %s66, %s68
    %p75 = scmp.eq.s32.totalorder %s16, 1
    %p76 = por %p74, %p75
    %p77 = scmp.ne.s32.totalorder %s68, %s69
    %p78 = scmp.eq.s32.totalorder %s16, 0
    %p79 = por %p77, %p78
    %p80 = scmp.ne.s32.totalorder %s68, %s69
    %p81 = scmp.eq.s32.totalorder %s17, 1
    %p82 = por %p80, %p81
    %p84 = scmp.ne.s32.totalorder %s69, %s83
    %p85 = scmp.eq.s32.totalorder %s17, 0
    %p86 = por %p84, %p85
    %s88 = sadd.s32 %s87, 1
    %p91 = scmp.eq.s32.totalorder %s11, 1
    %p92 = scmp.ne.s32.totalorder %s87, %s89
    %p93 = scmp.eq.s32.totalorder %s11, 0
    %p94 = por %p92, %p93
    %p95 = scmp.ne.s32.totalorder %s87, %s89
    %p96 = scmp.eq.s32.totalorder %s16, 1
    %p97 = por %p95, %p96
    %p98 = scmp.ne.s32.totalorder %s89, %s90
    %p99 = scmp.eq.s32.totalorder %s16, 0
    %p100 = por %p98, %p99
    %p101 = scmp.ne.s32.totalorder %s89, %s90
    %p102 = scmp.eq.s32.totalorder %s17, 1
    %p103 = por %p101, %p102
    %p105 = scmp.ne.s32.totalorder %s90, %s104
    %p106 = scmp.eq.s32.totalorder %s17, 0
    %p107 = por %p105, %p106
    %s109 = sadd.s32 %s108, 1
    %p112 = scmp.eq.s32.totalorder %s11, 1
    %p113 = scmp.ne.s32.totalorder %s108, %s110
    %p114 = scmp.eq.s32.totalorder %s11, 0
    %p115 = por %p113, %p114
    %p116 = scmp.ne.s32.totalorder %s108, %s110
    %p117 = scmp.eq.s32.totalorder %s16, 1
    %p118 = por %p116, %p117
    %p119 = scmp.ne.s32.totalorder %s110, %s111
    %p120 = scmp.eq.s32.totalorder %s16, 0
    %p121 = por %p119, %p120
    %p122 = scmp.ne.s32.totalorder %s110, %s111
    %p123 = scmp.eq.s32.totalorder %s17, 1
    %p124 = por %p122, %p123
    %p126 = scmp.ne.s32.totalorder %s111, %s125
    %p127 = scmp.eq.s32.totalorder %s17, 0
    %p128 = por %p126, %p127
    %s129 = ssub.s32 %s11, %s18
    %p130 = scmp.eq.s32.totalorder %s129, 0
    %s132 = sadd.s32 %s131, 1
    %s133 = scalar_select %p130, %s131, %s132
    %p136 = pneg %p130
    %p137 = scmp.eq.s32.totalorder %s11, 1
    %p138 = por %p136, %p137
    %p139 = scmp.ne.s32.totalorder %s131, %s134
    %p140 = scmp.eq.s32.totalorder %s11, 0
    %p141 = por %p139, %p140
    %p142 = scmp.ne.s32.totalorder %s131, %s134
    %p143 = scmp.eq.s32.totalorder %s16, 1
    %p144 = por %p142, %p143
    %p145 = scmp.ne.s32.totalorder %s134, %s135
    %p146 = scmp.eq.s32.totalorder %s16, 0
    %p147 = por %p145, %p146
    %p148 = scmp.ne.s32.totalorder %s134, %s135
    %p149 = scmp.eq.s32.totalorder %s17, 1
    %p150 = por %p148, %p149
    %p152 = scmp.ne.s32.totalorder %s135, %s151
    %p153 = scmp.eq.s32.totalorder %s17, 0
    %p154 = por %p152, %p153
    %p155 = scmp.le.s32.totalorder 1, %s11
    %p156 = scmp.lt.s32.totalorder %s11, 3
    %p157 = pnand %p155, %p156
    %p158 = pneg %p157
    // Predicated region
    $region9: #{generator_forward.7} parent=5 // pred_check
      _
    $region10: #{generator_forward.7} parent=5 // pred_check_branch
      %160 = sbr.rel (%p157) target = $region12
    $region11: #{generator_forward.7} parent=5 // pred_region
      %s161 = ssub.s32 %s11, 1
      // Predicated region
      $region13: #{generator_forward.7} parent=11 // pred_check
        %p162 = pneg %p58
      $region14: #{generator_forward.7} parent=11 // pred_check_branch
        %164 = sbr.rel (%p162) target = $region16
      $region15: #{generator_forward.7} parent=11 // pred_region
        _
      $region16: #{generator_forward.7} parent=11 // pred_fallthru
        _
      // Predicated region
      $region17: #{generator_forward.7} parent=11 // pred_check
        %p165 = pneg %p79
      $region18: #{generator_forward.7} parent=11 // pred_check_branch
        %167 = sbr.rel (%p165) target = $region20
      $region19: #{generator_forward.7} parent=11 // pred_region
        _
      $region20: #{generator_forward.7} parent=11 // pred_fallthru
        _
      // Predicated region
      $region21: #{generator_forward.7} parent=11 // pred_check
        %p168 = pneg %p100
      $region22: #{generator_forward.7} parent=11 // pred_check_branch
        %170 = sbr.rel (%p168) target = $region24
      $region23: #{generator_forward.7} parent=11 // pred_region
        _
      $region24: #{generator_forward.7} parent=11 // pred_fallthru
        _
      // Predicated region
      $region25: #{generator_forward.7} parent=11 // pred_check
        %p171 = pneg %p121
      $region26: #{generator_forward.7} parent=11 // pred_check_branch
        %173 = sbr.rel (%p171) target = $region28
      $region27: #{generator_forward.7} parent=11 // pred_region
        _
      $region28: #{generator_forward.7} parent=11 // pred_fallthru
        _
    $region12: #{generator_forward.7} parent=5 // pred_fallthru
      _
    %p174 = scmp.lt.s32.totalorder %s11, 2
    // Predicated region
    $region29: #{generator_forward.7} parent=5 // pred_check
      %p175 = pneg %p174
    $region30: #{generator_forward.7} parent=5 // pred_check_branch
      %177 = sbr.rel (%p175) target = $region32
    $region31: #{generator_forward.7} parent=5 // pred_region
      // Predicated region
      $region33: #{generator_forward.7} parent=31 // pred_check
        %p178 = pneg %p31
      $region34: #{generator_forward.7} parent=31 // pred_check_branch
        %180 = sbr.rel (%p178) target = $region36
      $region35: #{generator_forward.7} parent=31 // pred_region
        %p181 = scmp.lt.s32.totalorder %s11, 1
        %s182 = scalar_select %p181, %s11, 1
        %s183 = smul.addr %s182, 2
        %s184 = smul.addr %s183, 8
        %s185 = scalar_lea.vmem %s0, %s184
      $region36: #{generator_forward.7} parent=31 // pred_fallthru
        _
    $region32: #{generator_forward.7} parent=5 // pred_fallthru
      _
    %p186 = scmp.le.s32.totalorder 1, %s11
    %p187 = scmp.lt.s32.totalorder %s11, 3
    %p188 = pnand %p186, %p187
    %p189 = pneg %p188
    // Predicated region
    $region37: #{generator_forward.7} parent=5 // pred_check
      _
    $region38: #{generator_forward.7} parent=5 // pred_check_branch
      %191 = sbr.rel (%p188) target = $region40
    $region39: #{generator_forward.7} parent=5 // pred_region
      %s192 = ssub.s32 %s11, 1
      %p193 = scmp.lt.s32.totalorder %s16, 1
      %s194 = scalar_select %p193, %s16, 1
      %s195 = smul.addr %s194, 2
      %s196 = smul.addr %s195, 8
      %s197 = scalar_lea.vmem %s0, %s196
      %p198 = pneg %p37
      %p199 = pneg %p34
      %p200 = pneg %p58
      %p201 = pneg %p55
      %p202 = pneg %p79
      %p203 = pneg %p76
      %p204 = pneg %p100
      %p205 = pneg %p97
      %p206 = pneg %p121
      %p207 = pneg %p118
      %p208 = pneg %p147
      %p209 = pneg %p144
      %p210 = scmp.lt.s32.totalorder %s16, 1
      %s211 = scalar_select %p210, %s16, 1
      %s212 = smul.addr %s211, 4
      %s213 = smul.addr %s212, 8
      %s214 = scalar_lea.vmem %s5, %s213
      %p215 = scmp.lt.s32.totalorder %s16, 1
      %s216 = scalar_select %p215, %s16, 1
      %s217 = smul.addr %s216, 2
      %s218 = smul.addr %s217, 8
      %s219 = scalar_lea.vmem %s0, %s218
      %p220 = scmp.lt.s32.totalorder %s16, 1
      %s221 = scalar_select %p220, %s16, 1
      %s222 = smul.addr %s221, 4
      %s223 = smul.addr %s222, 8
      %s224 = scalar_lea.vmem %s5, %s223
      %v225 = vld [vmem:[%s3] sm:$0xff]
      %v226 = vld [vmem:[%s4] sm:$0xff]
      %v227 = vld [vmem:[%s219] sm:$0xff]
      %v228 = vld [vmem:[%s219 + $0x8] sm:$0xff]
      %v229 = vld [vmem:[%s2] sm:$0x1]
      %v230 = vlaneseq
      %v231 = vshrl.u32 %v230, 7
      %v232 = vsub.s32 0, %v231
      %v233 = vrot.slane %v229, %v232
      %235 = vrot.lane.b32.xlu0 %v233, 8
      %v236 = vpop.permute.xlu0 %235
      %v238 = vmul.f32 %v227, %v236
      %v239 = vmul.f32 %v228, %v236
      %v240 = vmul.f32 %v227, %v233
      %v241 = vmul.f32 %v228, %v233
      %244 = vrot.lane.b32.xlu0 %v238, 1
      %v245 = vpop.permute.xlu0 %244
      %246 = vrot.lane.b32.xlu0 %v239, 1
      %v247 = vpop.permute.xlu0 %246
      %250 = vrot.lane.b32.xlu0 %v227, 8
      %v251 = vpop.permute.xlu0 %250
      %252 = vrot.lane.b32.xlu0 %v228, 8
      %v253 = vpop.permute.xlu0 %252
      %256 = vrot.lane.b32.xlu0 %v240, 9
      %v257 = vpop.permute.xlu0 %256
      %258 = vrot.lane.b32.xlu0 %v241, 9
      %v259 = vpop.permute.xlu0 %258
      %v260 = vld [vmem:[%s1] sm:$0xff]
      %261 = vrot.lane.b32.xlu0 %v227, 119
      %v262 = vpop.permute.xlu0 %261
      %263 = vrot.lane.b32.xlu0 %v228, 119
      %v264 = vpop.permute.xlu0 %263
      %265 = vrot.lane.b32.xlu0 %v245, 119
      %v266 = vpop.permute.xlu0 %265
      %267 = vrot.lane.b32.xlu0 %v247, 119
      %v268 = vpop.permute.xlu0 %267
      %269 = vrot.lane.b32.xlu0 %v251, 119
      %v270 = vpop.permute.xlu0 %269
      %271 = vrot.lane.b32.xlu0 %v253, 119
      %v272 = vpop.permute.xlu0 %271
      %273 = vrot.lane.b32.xlu0 %v257, 119
      %v274 = vpop.permute.xlu0 %273
      %275 = vrot.lane.b32.xlu0 %v259, 119
      %v276 = vpop.permute.xlu0 %275
      %vm285 = vcmask 523264
      %v287 = vsel %vm285, %v260, 0
      %289 = vmatprep.subr.mxu0 0.0
      %290 = vmatpush1.msra.mxu0 %v262
      %291 = vmatprep.subr.mxu0 0.0
      %292 = vmatpush1.msra.mxu0 %v264
      %293 = vmatprep.subr.mxu0 0.0
      %294 = vmatpush1.msra.mxu0 %v266
      %295 = vmatprep.subr.mxu0 0.0
      %296 = vmatpush1.msra.mxu0 %v268
      %297 = vmatprep.subr.mxu0 0.0
      %298 = vmatpush1.msra.mxu0 %v270
      %299 = vmatprep.subr.mxu0 0.0
      %300 = vmatpush1.msra.mxu0 %v272
      %301 = vmatprep.subr.mxu0 0.0
      %302 = vmatpush1.msra.mxu0 %v274
      %303 = vmatprep.subr.mxu0 0.0
      %304 = vmatpush1.msra.mxu0 %v276
      %305 = vmatprep.subr.mxu0 0.0
      %306 = vmatpush1.msra.mxu0 0.0
      %307 = vmatprep.subr.mxu0 0.0
      %308 = vmatpush1.msra.mxu0 0.0
      %309 = vmatprep.subr.mxu0 0.0
      %310 = vmatpush1.msra.mxu0 0.0
      %311 = vmatprep.subr.mxu0 0.0
      %312 = vmatpush1.msra.mxu0 0.0
      %313 = vmatprep.subr.mxu0 0.0
      %314 = vmatpush1.msra.mxu0 0.0
      %315 = vmatprep.subr.mxu0 0.0
      %316 = vmatpush1.msra.mxu0 0.0
      %317 = vmatprep.subr.mxu0 0.0
      %318 = vmatpush1.msra.mxu0 0.0
      %319 = vmatprep.subr.mxu0 0.0
      %320 = vmatpush1.msra.mxu0 0.0
      %321 = vmatprep.subr.mxu0 0.0
      %322 = vmatpush1.msra.mxu0 0.0
      %323 = vmatprep.subr.mxu0 0.0
      %324 = vmatpush1.msra.mxu0 0.0
      %325 = vmatprep.subr.mxu0 0.0
      %326 = vmatpush1.msra.mxu0 0.0
      %327 = vmatprep.subr.mxu0 0.0
      %328 = vmatpush1.msra.mxu0 0.0
      %329 = vmatprep.subr.mxu0 0.0
      %330 = vmatpush1.msra.mxu0 0.0
      %331 = vmatprep.subr.mxu0 0.0
      %332 = vmatpush1.msra.mxu0 0.0
      %333 = vmatprep.subr.mxu0 0.0
      %334 = vmatpush1.msra.mxu0 0.0
      %335 = vmatprep.subr.mxu0 0.0
      %336 = vmatpush1.msra.mxu0 0.0
      %337 = vmatprep.subr.mxu0 0.0
      %338 = vmatpush1.msra.mxu0 0.0
      %339 = vmatprep.subr.mxu0 0.0
      %340 = vmatpush1.msra.mxu0 0.0
      %341 = vmatprep.subr.mxu0 0.0
      %342 = vmatpush1.msra.mxu0 0.0
      %343 = vmatprep.subr.mxu0 0.0
      %344 = vmatpush1.msra.mxu0 0.0
      %345 = vmatprep.subr.mxu0 0.0
      %346 = vmatpush1.msra.mxu0 0.0
      %347 = vmatprep.subr.mxu0 0.0
      %348 = vmatpush1.msra.mxu0 0.0
      %349 = vmatprep.subr.mxu0 0.0
      %350 = vmatpush1.msra.mxu0 0.0
      %351 = vmatprep.subr.mxu0 0.0
      %352 = vmatpush1.msra.mxu0 0.0
      %353 = vmatprep.mubr.f32.mxu0 0.0
      %354 = vmatmul.mubr.f32.gmra.mrb[0].mxu0 %v287
      %v355 = vpop.f32.mrb[0].mxu0
      %v356 = vadd.f32 0.0, %v355
      %v357 = vpop.f32.mrb[0].mxu0
      %358 = vdwg.mxu0
      %360 = vset.pattern.permute.xlu0 0
      %361 = vperm.xlu0 %360, %v225
      %v362 = vpop.permute.xlu0 %361
      %v364 = vmul.f32 %v356, %v362
      %366 = vset.pattern.permute.xlu0 0
      %367 = vperm.xlu0 %366, %v226
      %v368 = vpop.permute.xlu0 %367
      %v370 = vadd.f32 %v364, %v368
      %v371 = vmax.f32 %v370, 0.0
      %372 = vst.msk [vmem:[%s224] sm:$0xff] %vm285, %v371
      %v373 = vld [vmem:[%s219] sm:$0xff]
      %v374 = vld [vmem:[%s219 + $0x8] sm:$0xff]
      %v375 = vld [vmem:[%s2 + $0x1] sm:$0x1]
      %v376 = vlaneseq
      %v377 = vshrl.u32 %v376, 7
      %v378 = vsub.s32 0, %v377
      %v379 = vrot.slane %v375, %v378
      %381 = vrot.lane.b32.xlu0 %v379, 10
      %v382 = vpop.permute.xlu0 %381
      %v384 = vmul.f32 %v373, %v382
      %v385 = vmul.f32 %v374, %v382
      %386 = vrot.lane.b32.xlu0 %v379, 2
      %v387 = vpop.permute.xlu0 %386
      %v389 = vmul.f32 %v373, %v387
      %v390 = vmul.f32 %v374, %v387
      %393 = vrot.lane.b32.xlu0 %v384, 127
      %v394 = vpop.permute.xlu0 %393
      %395 = vrot.lane.b32.xlu0 %v385, 127
      %v396 = vpop.permute.xlu0 %395
      %399 = vrot.lane.b32.xlu0 %v373, 8
      %v400 = vpop.permute.xlu0 %399
      %401 = vrot.lane.b32.xlu0 %v374, 8
      %v402 = vpop.permute.xlu0 %401
      %405 = vrot.lane.b32.xlu0 %v389, 7
      %v406 = vpop.permute.xlu0 %405
      %407 = vrot.lane.b32.xlu0 %v390, 7
      %v408 = vpop.permute.xlu0 %407
      %s409 = scalar_lea.vmem %s1, 8
      %v410 = vld [vmem:[%s409] sm:$0xff]
      %411 = vrot.lane.b32.xlu0 %v373, 119
      %v412 = vpop.permute.xlu0 %411
      %413 = vrot.lane.b32.xlu0 %v374, 119
      %v414 = vpop.permute.xlu0 %413
      %415 = vrot.lane.b32.xlu0 %v394, 119
      %v416 = vpop.permute.xlu0 %415
      %417 = vrot.lane.b32.xlu0 %v396, 119
      %v418 = vpop.permute.xlu0 %417
      %419 = vrot.lane.b32.xlu0 %v400, 119
      %v420 = vpop.permute.xlu0 %419
      %421 = vrot.lane.b32.xlu0 %v402, 119
      %v422 = vpop.permute.xlu0 %421
      %423 = vrot.lane.b32.xlu0 %v406, 119
      %v424 = vpop.permute.xlu0 %423
      %425 = vrot.lane.b32.xlu0 %v408, 119
      %v426 = vpop.permute.xlu0 %425
      %v436 = vsel %vm285, %v410, 0
      %438 = vmatprep.subr.mxu0 0.0
      %439 = vmatpush1.msra.mxu0 %v412
      %440 = vmatprep.subr.mxu0 0.0
      %441 = vmatpush1.msra.mxu0 %v414
      %442 = vmatprep.subr.mxu0 0.0
      %443 = vmatpush1.msra.mxu0 %v416
      %444 = vmatprep.subr.mxu0 0.0
      %445 = vmatpush1.msra.mxu0 %v418
      %446 = vmatprep.subr.mxu0 0.0
      %447 = vmatpush1.msra.mxu0 %v420
      %448 = vmatprep.subr.mxu0 0.0
      %449 = vmatpush1.msra.mxu0 %v422
      %450 = vmatprep.subr.mxu0 0.0
      %451 = vmatpush1.msra.mxu0 %v424
      %452 = vmatprep.subr.mxu0 0.0
      %453 = vmatpush1.msra.mxu0 %v426
      %454 = vmatprep.subr.mxu0 0.0
      %455 = vmatpush1.msra.mxu0 0.0
      %456 = vmatprep.subr.mxu0 0.0
      %457 = vmatpush1.msra.mxu0 0.0
      %458 = vmatprep.subr.mxu0 0.0
      %459 = vmatpush1.msra.mxu0 0.0
      %460 = vmatprep.subr.mxu0 0.0
      %461 = vmatpush1.msra.mxu0 0.0
      %462 = vmatprep.subr.mxu0 0.0
      %463 = vmatpush1.msra.mxu0 0.0
      %464 = vmatprep.subr.mxu0 0.0
      %465 = vmatpush1.msra.mxu0 0.0
      %466 = vmatprep.subr.mxu0 0.0
      %467 = vmatpush1.msra.mxu0 0.0
      %468 = vmatprep.subr.mxu0 0.0
      %469 = vmatpush1.msra.mxu0 0.0
      %470 = vmatprep.subr.mxu0 0.0
      %471 = vmatpush1.msra.mxu0 0.0
      %472 = vmatprep.subr.mxu0 0.0
      %473 = vmatpush1.msra.mxu0 0.0
      %474 = vmatprep.subr.mxu0 0.0
      %475 = vmatpush1.msra.mxu0 0.0
      %476 = vmatprep.subr.mxu0 0.0
      %477 = vmatpush1.msra.mxu0 0.0
      %478 = vmatprep.subr.mxu0 0.0
      %479 = vmatpush1.msra.mxu0 0.0
      %480 = vmatprep.subr.mxu0 0.0
      %481 = vmatpush1.msra.mxu0 0.0
      %482 = vmatprep.subr.mxu0 0.0
      %483 = vmatpush1.msra.mxu0 0.0
      %484 = vmatprep.subr.mxu0 0.0
      %485 = vmatpush1.msra.mxu0 0.0
      %486 = vmatprep.subr.mxu0 0.0
      %487 = vmatpush1.msra.mxu0 0.0
      %488 = vmatprep.subr.mxu0 0.0
      %489 = vmatpush1.msra.mxu0 0.0
      %490 = vmatprep.subr.mxu0 0.0
      %491 = vmatpush1.msra.mxu0 0.0
      %492 = vmatprep.subr.mxu0 0.0
      %493 = vmatpush1.msra.mxu0 0.0
      %494 = vmatprep.subr.mxu0 0.0
      %495 = vmatpush1.msra.mxu0 0.0
      %496 = vmatprep.subr.mxu0 0.0
      %497 = vmatpush1.msra.mxu0 0.0
      %498 = vmatprep.subr.mxu0 0.0
      %499 = vmatpush1.msra.mxu0 0.0
      %500 = vmatprep.subr.mxu0 0.0
      %501 = vmatpush1.msra.mxu0 0.0
      %502 = vmatprep.mubr.f32.mxu0 0.0
      %503 = vmatmul.mubr.f32.gmra.mrb[0].mxu0 %v436
      %v504 = vpop.f32.mrb[0].mxu0
      %v505 = vadd.f32 0.0, %v504
      %v506 = vpop.f32.mrb[0].mxu0
      %507 = vdwg.mxu0
      %v508 = vmul.f32 %v505, %v362
      %v509 = vadd.f32 %v508, %v368
      %v510 = vmax.f32 %v509, 0.0
      %s511 = scalar_lea.vmem %s224, 8
      %512 = vst.msk [vmem:[%s511] sm:$0xff] %vm285, %v510
      %v513 = vld [vmem:[%s219] sm:$0xff]
      %v514 = vld [vmem:[%s219 + $0x8] sm:$0xff]
      %v515 = vld [vmem:[%s2] sm:$0x1]
      %v516 = vlaneseq
      %v517 = vshrl.u32 %v516, 7
      %v518 = vsub.s32 0, %v517
      %v519 = vrot.slane %v515, %v518
      %521 = vrot.lane.b32.xlu0 %v519, 8
      %v522 = vpop.permute.xlu0 %521
      %v524 = vmul.f32 %v513, %v522
      %v525 = vmul.f32 %v514, %v522
      %526 = vrot.lane.b32.xlu0 %v519, 16
      %v527 = vpop.permute.xlu0 %526
      %v529 = vmul.f32 %v513, %v527
      %v530 = vmul.f32 %v514, %v527
      %533 = vrot.lane.b32.xlu0 %v524, 1
      %v534 = vpop.permute.xlu0 %533
      %535 = vrot.lane.b32.xlu0 %v525, 1
      %v536 = vpop.permute.xlu0 %535
      %539 = vrot.lane.b32.xlu0 %v513, 120
      %v540 = vpop.permute.xlu0 %539
      %541 = vrot.lane.b32.xlu0 %v514, 120
      %v542 = vpop.permute.xlu0 %541
      %545 = vrot.lane.b32.xlu0 %v529, 121
      %v546 = vpop.permute.xlu0 %545
      %547 = vrot.lane.b32.xlu0 %v530, 121
      %v548 = vpop.permute.xlu0 %547
      %s549 = scalar_lea.vmem %s1, 16
      %v550 = vld [vmem:[%s549] sm:$0xff]
      %551 = vrot.lane.b32.xlu0 %v513, 119
      %v552 = vpop.permute.xlu0 %551
      %553 = vrot.lane.b32.xlu0 %v514, 119
      %v554 = vpop.permute.xlu0 %553
      %555 = vrot.lane.b32.xlu0 %v534, 119
      %v556 = vpop.permute.xlu0 %555
      %557 = vrot.lane.b32.xlu0 %v536, 119
      %v558 = vpop.permute.xlu0 %557
      %559 = vrot.lane.b32.xlu0 %v540, 119
      %v560 = vpop.permute.xlu0 %559
      %561 = vrot.lane.b32.xlu0 %v542, 119
      %v562 = vpop.permute.xlu0 %561
      %563 = vrot.lane.b32.xlu0 %v546, 119
      %v564 = vpop.permute.xlu0 %563
      %565 = vrot.lane.b32.xlu0 %v548, 119
      %v566 = vpop.permute.xlu0 %565
      %v576 = vsel %vm285, %v550, 0
      %578 = vmatprep.subr.mxu0 0.0
      %579 = vmatpush1.msra.mxu0 %v552
      %580 = vmatprep.subr.mxu0 0.0
      %581 = vmatpush1.msra.mxu0 %v554
      %582 = vmatprep.subr.mxu0 0.0
      %583 = vmatpush1.msra.mxu0 %v556
      %584 = vmatprep.subr.mxu0 0.0
      %585 = vmatpush1.msra.mxu0 %v558
      %586 = vmatprep.subr.mxu0 0.0
      %587 = vmatpush1.msra.mxu0 %v560
      %588 = vmatprep.subr.mxu0 0.0
      %589 = vmatpush1.msra.mxu0 %v562
      %590 = vmatprep.subr.mxu0 0.0
      %591 = vmatpush1.msra.mxu0 %v564
      %592 = vmatprep.subr.mxu0 0.0
      %593 = vmatpush1.msra.mxu0 %v566
      %594 = vmatprep.subr.mxu0 0.0
      %595 = vmatpush1.msra.mxu0 0.0
      %596 = vmatprep.subr.mxu0 0.0
      %597 = vmatpush1.msra.mxu0 0.0
      %598 = vmatprep.subr.mxu0 0.0
      %599 = vmatpush1.msra.mxu0 0.0
      %600 = vmatprep.subr.mxu0 0.0
      %601 = vmatpush1.msra.mxu0 0.0
      %602 = vmatprep.subr.mxu0 0.0
      %603 = vmatpush1.msra.mxu0 0.0
      %604 = vmatprep.subr.mxu0 0.0
      %605 = vmatpush1.msra.mxu0 0.0
      %606 = vmatprep.subr.mxu0 0.0
      %607 = vmatpush1.msra.mxu0 0.0
      %608 = vmatprep.subr.mxu0 0.0
      %609 = vmatpush1.msra.mxu0 0.0
      %610 = vmatprep.subr.mxu0 0.0
      %611 = vmatpush1.msra.mxu0 0.0
      %612 = vmatprep.subr.mxu0 0.0
      %613 = vmatpush1.msra.mxu0 0.0
      %614 = vmatprep.subr.mxu0 0.0
      %615 = vmatpush1.msra.mxu0 0.0
      %616 = vmatprep.subr.mxu0 0.0
      %617 = vmatpush1.msra.mxu0 0.0
      %618 = vmatprep.subr.mxu0 0.0
      %619 = vmatpush1.msra.mxu0 0.0
      %620 = vmatprep.subr.mxu0 0.0
      %621 = vmatpush1.msra.mxu0 0.0
      %622 = vmatprep.subr.mxu0 0.0
      %623 = vmatpush1.msra.mxu0 0.0
      %624 = vmatprep.subr.mxu0 0.0
      %625 = vmatpush1.msra.mxu0 0.0
      %626 = vmatprep.subr.mxu0 0.0
      %627 = vmatpush1.msra.mxu0 0.0
      %628 = vmatprep.subr.mxu0 0.0
      %629 = vmatpush1.msra.mxu0 0.0
      %630 = vmatprep.subr.mxu0 0.0
      %631 = vmatpush1.msra.mxu0 0.0
      %632 = vmatprep.subr.mxu0 0.0
      %633 = vmatpush1.msra.mxu0 0.0
      %634 = vmatprep.subr.mxu0 0.0
      %635 = vmatpush1.msra.mxu0 0.0
      %636 = vmatprep.subr.mxu0 0.0
      %637 = vmatpush1.msra.mxu0 0.0
      %638 = vmatprep.subr.mxu0 0.0
      %639 = vmatpush1.msra.mxu0 0.0
      %640 = vmatprep.subr.mxu0 0.0
      %641 = vmatpush1.msra.mxu0 0.0
      %642 = vmatprep.mubr.f32.mxu0 0.0
      %643 = vmatmul.mubr.f32.gmra.mrb[0].mxu0 %v576
      %v644 = vpop.f32.mrb[0].mxu0
      %v645 = vadd.f32 0.0, %v644
      %v646 = vpop.f32.mrb[0].mxu0
      %647 = vdwg.mxu0
      %v648 = vmul.f32 %v645, %v362
      %v649 = vadd.f32 %v648, %v368
      %v650 = vmax.f32 %v649, 0.0
      %s651 = scalar_lea.vmem %s224, 16
      %652 = vst.msk [vmem:[%s651] sm:$0xff] %vm285, %v650
      %v653 = vld [vmem:[%s219] sm:$0xff]
      %v654 = vld [vmem:[%s219 + $0x8] sm:$0xff]
      %v655 = vld [vmem:[%s2 + $0x1] sm:$0x1]
      %v656 = vlaneseq
      %v657 = vshrl.u32 %v656, 7
      %v658 = vsub.s32 0, %v657
      %v659 = vrot.slane %v655, %v658
      %661 = vrot.lane.b32.xlu0 %v659, 10
      %v662 = vpop.permute.xlu0 %661
      %v664 = vmul.f32 %v653, %v662
      %v665 = vmul.f32 %v654, %v662
      %666 = vrot.lane.b32.xlu0 %v659, 18
      %v667 = vpop.permute.xlu0 %666
      %v669 = vmul.f32 %v653, %v667
      %v670 = vmul.f32 %v654, %v667
      %673 = vrot.lane.b32.xlu0 %v664, 127
      %v674 = vpop.permute.xlu0 %673
      %675 = vrot.lane.b32.xlu0 %v665, 127
      %v676 = vpop.permute.xlu0 %675
      %679 = vrot.lane.b32.xlu0 %v653, 120
      %v680 = vpop.permute.xlu0 %679
      %681 = vrot.lane.b32.xlu0 %v654, 120
      %v682 = vpop.permute.xlu0 %681
      %685 = vrot.lane.b32.xlu0 %v669, 119
      %v686 = vpop.permute.xlu0 %685
      %687 = vrot.lane.b32.xlu0 %v670, 119
      %v688 = vpop.permute.xlu0 %687
      %s689 = scalar_lea.vmem %s1, 24
      %v690 = vld [vmem:[%s689] sm:$0xff]
      %691 = vrot.lane.b32.xlu0 %v653, 119
      %v692 = vpop.permute.xlu0 %691
      %693 = vrot.lane.b32.xlu0 %v654, 119
      %v694 = vpop.permute.xlu0 %693
      %695 = vrot.lane.b32.xlu0 %v674, 119
      %v696 = vpop.permute.xlu0 %695
      %697 = vrot.lane.b32.xlu0 %v676, 119
      %v698 = vpop.permute.xlu0 %697
      %699 = vrot.lane.b32.xlu0 %v680, 119
      %v700 = vpop.permute.xlu0 %699
      %701 = vrot.lane.b32.xlu0 %v682, 119
      %v702 = vpop.permute.xlu0 %701
      %703 = vrot.lane.b32.xlu0 %v686, 119
      %v704 = vpop.permute.xlu0 %703
      %705 = vrot.lane.b32.xlu0 %v688, 119
      %v706 = vpop.permute.xlu0 %705
      %v716 = vsel %vm285, %v690, 0
      %718 = vmatprep.subr.mxu0 0.0
      %719 = vmatpush1.msra.mxu0 %v692
      %720 = vmatprep.subr.mxu0 0.0
      %721 = vmatpush1.msra.mxu0 %v694
      %722 = vmatprep.subr.mxu0 0.0
      %723 = vmatpush1.msra.mxu0 %v696
      %724 = vmatprep.subr.mxu0 0.0
      %725 = vmatpush1.msra.mxu0 %v698
      %726 = vmatprep.subr.mxu0 0.0
      %727 = vmatpush1.msra.mxu0 %v700
      %728 = vmatprep.subr.mxu0 0.0
      %729 = vmatpush1.msra.mxu0 %v702
      %730 = vmatprep.subr.mxu0 0.0
      %731 = vmatpush1.msra.mxu0 %v704
      %732 = vmatprep.subr.mxu0 0.0
      %733 = vmatpush1.msra.mxu0 %v706
      %734 = vmatprep.subr.mxu0 0.0
      %735 = vmatpush1.msra.mxu0 0.0
      %736 = vmatprep.subr.mxu0 0.0
      %737 = vmatpush1.msra.mxu0 0.0
      %738 = vmatprep.subr.mxu0 0.0
      %739 = vmatpush1.msra.mxu0 0.0
      %740 = vmatprep.subr.mxu0 0.0
      %741 = vmatpush1.msra.mxu0 0.0
      %742 = vmatprep.subr.mxu0 0.0
      %743 = vmatpush1.msra.mxu0 0.0
      %744 = vmatprep.subr.mxu0 0.0
      %745 = vmatpush1.msra.mxu0 0.0
      %746 = vmatprep.subr.mxu0 0.0
      %747 = vmatpush1.msra.mxu0 0.0
      %748 = vmatprep.subr.mxu0 0.0
      %749 = vmatpush1.msra.mxu0 0.0
      %750 = vmatprep.subr.mxu0 0.0
      %751 = vmatpush1.msra.mxu0 0.0
      %752 = vmatprep.subr.mxu0 0.0
      %753 = vmatpush1.msra.mxu0 0.0
      %754 = vmatprep.subr.mxu0 0.0
      %755 = vmatpush1.msra.mxu0 0.0
      %756 = vmatprep.subr.mxu0 0.0
      %757 = vmatpush1.msra.mxu0 0.0
      %758 = vmatprep.subr.mxu0 0.0
      %759 = vmatpush1.msra.mxu0 0.0
      %760 = vmatprep.subr.mxu0 0.0
      %761 = vmatpush1.msra.mxu0 0.0
      %762 = vmatprep.subr.mxu0 0.0
      %763 = vmatpush1.msra.mxu0 0.0
      %764 = vmatprep.subr.mxu0 0.0
      %765 = vmatpush1.msra.mxu0 0.0
      %766 = vmatprep.subr.mxu0 0.0
      %767 = vmatpush1.msra.mxu0 0.0
      %768 = vmatprep.subr.mxu0 0.0
      %769 = vmatpush1.msra.mxu0 0.0
      %770 = vmatprep.subr.mxu0 0.0
      %771 = vmatpush1.msra.mxu0 0.0
      %772 = vmatprep.subr.mxu0 0.0
      %773 = vmatpush1.msra.mxu0 0.0
      %774 = vmatprep.subr.mxu0 0.0
      %775 = vmatpush1.msra.mxu0 0.0
      %776 = vmatprep.subr.mxu0 0.0
      %777 = vmatpush1.msra.mxu0 0.0
      %778 = vmatprep.subr.mxu0 0.0
      %779 = vmatpush1.msra.mxu0 0.0
      %780 = vmatprep.subr.mxu0 0.0
      %781 = vmatpush1.msra.mxu0 0.0
      %782 = vmatprep.mubr.f32.mxu0 0.0
      %783 = vmatmul.mubr.f32.gmra.mrb[0].mxu0 %v716
      %v784 = vpop.f32.mrb[0].mxu0
      %v785 = vadd.f32 0.0, %v784
      %v786 = vpop.f32.mrb[0].mxu0
      %787 = vdwg.mxu0
      %v788 = vmul.f32 %v785, %v362
      %v789 = vadd.f32 %v788, %v368
      %v790 = vmax.f32 %v789, 0.0
      %s791 = scalar_lea.vmem %s224, 24
      %792 = vst.msk [vmem:[%s791] sm:$0xff] %vm285, %v790
      %p793 = scmp.lt.s32.totalorder %s16, 1
      %s794 = scalar_select %p793, %s16, 1
      %s795 = smul.addr %s794, 4
      %s796 = smul.addr %s795, 8
      %s797 = scalar_lea.vmem %s5, %s796
      // Predicated region
      $region41: #{generator_forward.7} parent=39 // pred_check
        %p798 = pneg %p144
      $region42: #{generator_forward.7} parent=39 // pred_check_branch
        %800 = sbr.rel (%p798) target = $region44
      $region43: #{generator_forward.7} parent=39 // pred_region
        _
      $region44: #{generator_forward.7} parent=39 // pred_fallthru
        _
    $region40: #{generator_forward.7} parent=5 // pred_fallthru
      _
    %p801 = scmp.le.s32.totalorder 2, %s11
    // Predicated region
    $region45: #{generator_forward.7} parent=5 // pred_check
      %p802 = pneg %p801
    $region46: #{generator_forward.7} parent=5 // pred_check_branch
      %804 = sbr.rel (%p802) target = $region48
    $region47: #{generator_forward.7} parent=5 // pred_region
      %s805 = ssub.s32 %s11, 2
      // Predicated region
      $region49: #{generator_forward.7} parent=47 // pred_check
        %p806 = pneg %p150
      $region50: #{generator_forward.7} parent=47 // pred_check_branch
        %808 = sbr.rel (%p806) target = $region52
      $region51: #{generator_forward.7} parent=47 // pred_region
        %p809 = scmp.lt.s32.totalorder %s17, 1
        %s810 = scalar_select %p809, %s17, 1
        %s811 = smul.addr %s810, 4
        %s812 = smul.addr %s811, 8
        %s813 = scalar_lea.vmem %s5, %s812
      $region52: #{generator_forward.7} parent=47 // pred_fallthru
        _
    $region48: #{generator_forward.7} parent=5 // pred_fallthru
      _
  $region6: #{generator_forward.7} parent=0 // loop_footer
    %s15 = sadd.s32 1, %s11
  $region7: #{generator_forward.7} parent=0 // loop_footer_branch
    %10 = sbr.rel target = $region3
  $region8: #{generator_forward.7} parent=0 // loop_exit
    _

// kernel: generator_forward.8
$region0: #{generator_forward.8}
  #allocation0 [shape = 'u32[]', space=smem, size = 0x4, offset = 0x4, fixed_abs, tag = 'smem constant byte address 0x4 - core index']
  #allocation1 [shape = 'u32[144,128]{1,0:T(1,128)}', space=vmem, size = 0x12000, scoped, tag = 'internal scratch']
  %s0 = inlined_call_operand.vmem [shape: f32[2,8,290], index: 0, kind: input, shape index: {}]
  %s1 = inlined_call_operand.vmem [shape: f32[4,4,32], index: 1, kind: input, shape index: {}]
  %s2 = inlined_call_operand.vmem [shape: f32[2,256], index: 2, kind: input, shape index: {}]
  %s3 = inlined_call_operand.vmem [shape: f32[4,1], index: 3, kind: input, shape index: {}]
  %s4 = inlined_call_operand.vmem [shape: f32[4,1], index: 4, kind: input, shape index: {}]
  %s5 = inlined_call_operand.vmem [shape: f32[2,4,4,256], index: 5, kind: output, shape index: {}]
  %s6 = sld [smem:[#allocation0]]
  $region53: #{generator_forward.8} parent=0
    _
  %s8 = ssub.s32 1, %s6
  %s9 = scalar_select 0, %s8, %s6
  loop: start=0, step=1, limit=4
  $region2: #{generator_forward.8} parent=0 // loop_pre_header
    _
  $region3: #{generator_forward.8} parent=0 // loop_header
    %s11 = sphi 0, %s15
    %p12 = scmp.ge.s32.totalorder %s11, 4
    %s21 = sphi 0, %s23
    %s24 = sphi 0, %s21
    %s25 = sphi 0, %s24
    %s41 = sphi 0, %s25
    %s45 = sphi 0, %s45
    %s47 = sphi 0, %s45
    %s48 = sphi 0, %s47
    %s62 = sphi 0, %s48
    %s66 = sphi 0, %s66
    %s68 = sphi 0, %s66
    %s69 = sphi 0, %s68
    %s83 = sphi 0, %s69
    %s87 = sphi 0, %s87
    %s89 = sphi 0, %s87
    %s90 = sphi 0, %s89
    %s104 = sphi 0, %s90
    %s108 = sphi 0, %s108
    %s110 = sphi 0, %s108
    %s111 = sphi 0, %s110
    %s125 = sphi 0, %s111
    %s131 = sphi 0, %s133
    %s134 = sphi 0, %s131
    %s135 = sphi 0, %s134
    %s151 = sphi 0, %s135
  $region4: #{generator_forward.8} parent=0 // loop_header_branch
    %14 = sbr.rel (%p12) target = $region8
  $region5: #{generator_forward.8} parent=0 // loop_body
    %s16 = ssub.s32 %s11, 1
    %s17 = ssub.s32 %s11, 2
    %s18 = sadd.s32 %s11, 1
    %s19 = ssub.s32 %s11, %s18
    %p20 = scmp.eq.s32.totalorder %s19, 0
    %s22 = sadd.s32 %s21, 1
    %s23 = scalar_select %p20, %s21, %s22
    %p26 = pneg %p20
    %p27 = scmp.eq.s32.totalorder %s11, 1
    %p28 = por %p26, %p27
    %p29 = scmp.ne.s32.totalorder %s21, %s24
    %p30 = scmp.eq.s32.totalorder %s11, 0
    %p31 = por %p29, %p30
    %p32 = scmp.ne.s32.totalorder %s21, %s24
    %p33 = scmp.eq.s32.totalorder %s16, 1
    %p34 = por %p32, %p33
    %p35 = scmp.ne.s32.totalorder %s24, %s25
    %p36 = scmp.eq.s32.totalorder %s16, 0
    %p37 = por %p35, %p36
    %p38 = scmp.ne.s32.totalorder %s24, %s25
    %p39 = scmp.eq.s32.totalorder %s17, 1
    %p40 = por %p38, %p39
    %p42 = scmp.ne.s32.totalorder %s25, %s41
    %p43 = scmp.eq.s32.totalorder %s17, 0
    %p44 = por %p42, %p43
    %s46 = sadd.s32 %s45, 1
    %p49 = scmp.eq.s32.totalorder %s11, 1
    %p50 = scmp.ne.s32.totalorder %s45, %s47
    %p51 = scmp.eq.s32.totalorder %s11, 0
    %p52 = por %p50, %p51
    %p53 = scmp.ne.s32.totalorder %s45, %s47
    %p54 = scmp.eq.s32.totalorder %s16, 1
    %p55 = por %p53, %p54
    %p56 = scmp.ne.s32.totalorder %s47, %s48
    %p57 = scmp.eq.s32.totalorder %s16, 0
    %p58 = por %p56, %p57
    %p59 = scmp.ne.s32.totalorder %s47, %s48
    %p60 = scmp.eq.s32.totalorder %s17, 1
    %p61 = por %p59, %p60
    %p63 = scmp.ne.s32.totalorder %s48, %s62
    %p64 = scmp.eq.s32.totalorder %s17, 0
    %p65 = por %p63, %p64
    %s67 = sadd.s32 %s66, 1
    %p70 = scmp.eq.s32.totalorder %s11, 1
    %p71 = scmp.ne.s32.totalorder %s66, %s68
    %p72 = scmp.eq.s32.totalorder %s11, 0
    %p73 = por %p71, %p72
    %p74 = scmp.ne.s32.totalorder %s66, %s68
    %p75 = scmp.eq.s32.totalorder %s16, 1
    %p76 = por %p74, %p75
    %p77 = scmp.ne.s32.totalorder %s68, %s69
    %p78 = scmp.eq.s32.totalorder %s16, 0
    %p79 = por %p77, %p78
    %p80 = scmp.ne.s32.totalorder %s68, %s69
    %p81 = scmp.eq.s32.totalorder %s17, 1
    %p82 = por %p80, %p81
    %p84 = scmp.ne.s32.totalorder %s69, %s83
    %p85 = scmp.eq.s32.totalorder %s17, 0
    %p86 = por %p84, %p85
    %s88 = sadd.s32 %s87, 1
    %p91 = scmp.eq.s32.totalorder %s11, 1
    %p92 = scmp.ne.s32.totalorder %s87, %s89
    %p93 = scmp.eq.s32.totalorder %s11, 0
    %p94 = por %p92, %p93
    %p95 = scmp.ne.s32.totalorder %s87, %s89
    %p96 = scmp.eq.s32.totalorder %s16, 1
    %p97 = por %p95, %p96
    %p98 = scmp.ne.s32.totalorder %s89, %s90
    %p99 = scmp.eq.s32.totalorder %s16, 0
    %p100 = por %p98, %p99
    %p101 = scmp.ne.s32.totalorder %s89, %s90
    %p102 = scmp.eq.s32.totalorder %s17, 1
    %p103 = por %p101, %p102
    %p105 = scmp.ne.s32.totalorder %s90, %s104
    %p106 = scmp.eq.s32.totalorder %s17, 0
    %p107 = por %p105, %p106
    %s109 = sadd.s32 %s108, 1
    %p112 = scmp.eq.s32.totalorder %s11, 1
    %p113 = scmp.ne.s32.totalorder %s108, %s110
    %p114 = scmp.eq.s32.totalorder %s11, 0
    %p115 = por %p113, %p114
    %p116 = scmp.ne.s32.totalorder %s108, %s110
    %p117 = scmp.eq.s32.totalorder %s16, 1
    %p118 = por %p116, %p117
    %p119 = scmp.ne.s32.totalorder %s110, %s111
    %p120 = scmp.eq.s32.totalorder %s16, 0
    %p121 = por %p119, %p120
    %p122 = scmp.ne.s32.totalorder %s110, %s111
    %p123 = scmp.eq.s32.totalorder %s17, 1
    %p124 = por %p122, %p123
    %p126 = scmp.ne.s32.totalorder %s111, %s125
    %p127 = scmp.eq.s32.totalorder %s17, 0
    %p128 = por %p126, %p127
    %s129 = ssub.s32 %s11, %s18
    %p130 = scmp.eq.s32.totalorder %s129, 0
    %s132 = sadd.s32 %s131, 1
    %s133 = scalar_select %p130, %s131, %s132
    %p136 = pneg %p130
    %p137 = scmp.eq.s32.totalorder %s11, 1
    %p138 = por %p136, %p137
    %p139 = scmp.ne.s32.totalorder %s131, %s134
    %p140 = scmp.eq.s32.totalorder %s11, 0
    %p141 = por %p139, %p140
    %p142 = scmp.ne.s32.totalorder %s131, %s134
    %p143 = scmp.eq.s32.totalorder %s16, 1
    %p144 = por %p142, %p143
    %p145 = scmp.ne.s32.totalorder %s134, %s135
    %p146 = scmp.eq.s32.totalorder %s16, 0
    %p147 = por %p145, %p146
    %p148 = scmp.ne.s32.totalorder %s134, %s135
    %p149 = scmp.eq.s32.totalorder %s17, 1
    %p150 = por %p148, %p149
    %p152 = scmp.ne.s32.totalorder %s135, %s151
    %p153 = scmp.eq.s32.totalorder %s17, 0
    %p154 = por %p152, %p153
    %p155 = scmp.le.s32.totalorder 1, %s11
    %p156 = scmp.lt.s32.totalorder %s11, 3
    %p157 = pnand %p155, %p156
    %p158 = pneg %p157
    // Predicated region
    $region9: #{generator_forward.8} parent=5 // pred_check
      _
    $region10: #{generator_forward.8} parent=5 // pred_check_branch
      %160 = sbr.rel (%p157) target = $region12
    $region11: #{generator_forward.8} parent=5 // pred_region
      %s161 = ssub.s32 %s11, 1
      // Predicated region
      $region13: #{generator_forward.8} parent=11 // pred_check
        %p162 = pneg %p58
      $region14: #{generator_forward.8} parent=11 // pred_check_branch
        %164 = sbr.rel (%p162) target = $region16
      $region15: #{generator_forward.8} parent=11 // pred_region
        _
      $region16: #{generator_forward.8} parent=11 // pred_fallthru
        _
      // Predicated region
      $region17: #{generator_forward.8} parent=11 // pred_check
        %p165 = pneg %p79
      $region18: #{generator_forward.8} parent=11 // pred_check_branch
        %167 = sbr.rel (%p165) target = $region20
      $region19: #{generator_forward.8} parent=11 // pred_region
        _
      $region20: #{generator_forward.8} parent=11 // pred_fallthru
        _
      // Predicated region
      $region21: #{generator_forward.8} parent=11 // pred_check
        %p168 = pneg %p100
      $region22: #{generator_forward.8} parent=11 // pred_check_branch
        %170 = sbr.rel (%p168) target = $region24
      $region23: #{generator_forward.8} parent=11 // pred_region
        _
      $region24: #{generator_forward.8} parent=11 // pred_fallthru
        _
      // Predicated region
      $region25: #{generator_forward.8} parent=11 // pred_check
        %p171 = pneg %p121
      $region26: #{generator_forward.8} parent=11 // pred_check_branch
        %173 = sbr.rel (%p171) target = $region28
      $region27: #{generator_forward.8} parent=11 // pred_region
        _
      $region28: #{generator_forward.8} parent=11 // pred_fallthru
        _
    $region12: #{generator_forward.8} parent=5 // pred_fallthru
      _
    %p174 = scmp.lt.s32.totalorder %s11, 2
    // Predicated region
    $region29: #{generator_forward.8} parent=5 // pred_check
      %p175 = pneg %p174
    $region30: #{generator_forward.8} parent=5 // pred_check_branch
      %177 = sbr.rel (%p175) target = $region32
    $region31: #{generator_forward.8} parent=5 // pred_region
      // Predicated region
      $region33: #{generator_forward.8} parent=31 // pred_check
        %p178 = pneg %p31
      $region34: #{generator_forward.8} parent=31 // pred_check_branch
        %180 = sbr.rel (%p178) target = $region36
      $region35: #{generator_forward.8} parent=31 // pred_region
        %p181 = scmp.lt.s32.totalorder %s11, 1
        %s182 = scalar_select %p181, %s11, 1
        %s183 = smul.addr %s182, 3
        %s184 = smul.addr %s183, 8
        %s185 = scalar_lea.vmem %s0, %s184
      $region36: #{generator_forward.8} parent=31 // pred_fallthru
        _
    $region32: #{generator_forward.8} parent=5 // pred_fallthru
      _
    %p186 = scmp.le.s32.totalorder 1, %s11
    %p187 = scmp.lt.s32.totalorder %s11, 3
    %p188 = pnand %p186, %p187
    %p189 = pneg %p188
    // Predicated region
    $region37: #{generator_forward.8} parent=5 // pred_check
      _
    $region38: #{generator_forward.8} parent=5 // pred_check_branch
      %191 = sbr.rel (%p188) target = $region40
    $region39: #{generator_forward.8} parent=5 // pred_region
      %s192 = ssub.s32 %s11, 1
      %p193 = scmp.lt.s32.totalorder %s16, 1
      %s194 = scalar_select %p193, %s16, 1
      %s195 = smul.addr %s194, 3
      %s196 = smul.addr %s195, 8
      %s197 = scalar_lea.vmem %s0, %s196
      %p198 = pneg %p37
      %p199 = pneg %p34
      %p200 = pneg %p58
      %p201 = pneg %p55
      %p202 = pneg %p79
      %p203 = pneg %p76
      %p204 = pneg %p100
      %p205 = pneg %p97
      %p206 = pneg %p121
      %p207 = pneg %p118
      %p208 = pneg %p147
      %p209 = pneg %p144
      %p210 = scmp.lt.s32.totalorder %s16, 1
      %s211 = scalar_select %p210, %s16, 1
      %s212 = smul.addr %s211, 8
      %s213 = smul.addr %s212, 4
      %s214 = scalar_lea.vmem %s5, %s213
      %p215 = scmp.lt.s32.totalorder %s16, 1
      %s216 = scalar_select %p215, %s16, 1
      %s217 = smul.addr %s216, 3
      %s218 = smul.addr %s217, 8
      %s219 = scalar_lea.vmem %s0, %s218
      %p220 = scmp.lt.s32.totalorder %s16, 1
      %s221 = scalar_select %p220, %s16, 1
      %s222 = smul.addr %s221, 8
      %s223 = smul.addr %s222, 4
      %s224 = scalar_lea.vmem %s5, %s223
      %v225 = vld [vmem:[%s3] sm:$0xf]
      %v226 = vld [vmem:[%s4] sm:$0xf]
      %v227 = vld [vmem:[%s219] sm:$0xff]
      %v228 = vld [vmem:[%s219 + $0x8] sm:$0xff]
      %v229 = vld [vmem:[%s219 + $0x10] sm:$0xff]
      %v230 = vld [vmem:[%s2] ss:$2 sm:$0x3]
      %v232 = vlaneseq
      %v233 = vshrl.u32 %v232, 7
      %v234 = vsub.s32 0, %v233
      %v235 = vrot.slane %v230, %v234
      %v236 = vlaneseq
      %v237 = vshrl.u32 %v236, 7
      %v238 = vsub.s32 1, %v237
      %v239 = vrot.slane %v230, %v238
      %242 = vrot.lane.b32.xlu0 %v235, 16
      %v243 = vpop.permute.xlu0 %242
      %244 = vrot.lane.b32.xlu0 %v239, 16
      %v245 = vpop.permute.xlu0 %244
      %vm246 = vcmask 130048
      %v247 = vsel %vm246, %v243, %v245
      %v251 = vmul.f32 %v227, %v243
      %v252 = vmul.f32 %v228, %v247
      %v253 = vmul.f32 %v229, %v245
      %v254 = vmul.f32 %v227, %v235
      %v255 = vmul.f32 %v228, %v239
      %259 = vrot.lane.b32.xlu0 %v251, 1
      %v260 = vpop.permute.xlu0 %259
      %261 = vrot.lane.b32.xlu0 %v252, 1
      %v262 = vpop.permute.xlu0 %261
      %263 = vrot.lane.b32.xlu0 %v253, 1
      %v264 = vpop.permute.xlu0 %263
      %vm265 = vcmask 7168
      %v266 = vsel %vm265, %v260, %v262
      %v267 = vsel %vm265, %v262, %v264
      %271 = vrot.lane.b32.xlu0 %v227, 16
      %v272 = vpop.permute.xlu0 %271
      %273 = vrot.lane.b32.xlu0 %v228, 16
      %v274 = vpop.permute.xlu0 %273
      %275 = vrot.lane.b32.xlu0 %v229, 16
      %v276 = vpop.permute.xlu0 %275
      %v277 = vsel %vm246, %v272, %v274
      %v278 = vsel %vm246, %v274, %v276
      %281 = vrot.lane.b32.xlu0 %v254, 17
      %v282 = vpop.permute.xlu0 %281
      %283 = vrot.lane.b32.xlu0 %v255, 17
      %v284 = vpop.permute.xlu0 %283
      %vm285 = vcmask 138240
      %v286 = vsel %vm285, %v282, %v284
      %v287 = vld [vmem:[%s1] sm:$0xf]
      %288 = vrot.lane.b32.xlu0 %v227, 111
      %v289 = vpop.permute.xlu0 %288
      %290 = vrot.lane.b32.xlu0 %v228, 111
      %v291 = vpop.permute.xlu0 %290
      %292 = vrot.lane.b32.xlu0 %v229, 111
      %v293 = vpop.permute.xlu0 %292
      %294 = vrot.lane.b32.xlu0 %v260, 111
      %v295 = vpop.permute.xlu0 %294
      %296 = vrot.lane.b32.xlu0 %v266, 111
      %v297 = vpop.permute.xlu0 %296
      %298 = vrot.lane.b32.xlu0 %v267, 111
      %v299 = vpop.permute.xlu0 %298
      %300 = vrot.lane.b32.xlu0 %v272, 111
      %v301 = vpop.permute.xlu0 %300
      %302 = vrot.lane.b32.xlu0 %v277, 111
      %v303 = vpop.permute.xlu0 %302
      %304 = vrot.lane.b32.xlu0 %v278, 111
      %v305 = vpop.permute.xlu0 %304
      %306 = vrot.lane.b32.xlu0 %v282, 111
      %v307 = vpop.permute.xlu0 %306
      %308 = vrot.lane.b32.xlu0 %v286, 111
      %v309 = vpop.permute.xlu0 %308
      %310 = vrot.lane.b32.xlu0 %v284, 111
      %v311 = vpop.permute.xlu0 %310
      %vm312 = vcmask 908288
      %v313 = vsel %vm312, %v289, %v291
      %v314 = vsel %vm312, %v291, %v293
      %v315 = vsel %vm312, %v295, %v297
      %v316 = vsel %vm312, %v297, %v299
      %v317 = vsel %vm312, %v301, %v303
      %v318 = vsel %vm312, %v303, %v305
      %v319 = vsel %vm312, %v307, %v309
      %v320 = vsel %vm312, %v309, %v311
      %vm329 = vcmask 261120
      %v331 = vsel %vm329, %v287, 0
      %333 = vmatprep.subr.mxu0 %v314
      %334 = vmatpush1.msra.mxu0 %v313
      %335 = vmatprep.subr.mxu0 %v316
      %336 = vmatpush1.msra.mxu0 %v315
      %337 = vmatprep.subr.mxu0 %v318
      %338 = vmatpush1.msra.mxu0 %v317
      %339 = vmatprep.subr.mxu0 %v320
      %340 = vmatpush1.msra.mxu0 %v319
      %341 = vmatprep.subr.mxu0 0.0
      %342 = vmatpush1.msra.mxu0 0.0
      %343 = vmatprep.subr.mxu0 0.0
      %344 = vmatpush1.msra.mxu0 0.0
      %345 = vmatprep.subr.mxu0 0.0
      %346 = vmatpush1.msra.mxu0 0.0
      %347 = vmatprep.subr.mxu0 0.0
      %348 = vmatpush1.msra.mxu0 0.0
      %349 = vmatprep.subr.mxu0 0.0
      %350 = vmatpush1.msra.mxu0 0.0
      %351 = vmatprep.subr.mxu0 0.0
      %352 = vmatpush1.msra.mxu0 0.0
      %353 = vmatprep.subr.mxu0 0.0
      %354 = vmatpush1.msra.mxu0 0.0
      %355 = vmatprep.subr.mxu0 0.0
      %356 = vmatpush1.msra.mxu0 0.0
      %357 = vmatprep.subr.mxu0 0.0
      %358 = vmatpush1.msra.mxu0 0.0
      %359 = vmatprep.subr.mxu0 0.0
      %360 = vmatpush1.msra.mxu0 0.0
      %361 = vmatprep.subr.mxu0 0.0
      %362 = vmatpush1.msra.mxu0 0.0
      %363 = vmatprep.subr.mxu0 0.0
      %364 = vmatpush1.msra.mxu0 0.0
      %365 = vmatprep.subr.mxu0 0.0
      %366 = vmatpush1.msra.mxu0 0.0
      %367 = vmatprep.subr.mxu0 0.0
      %368 = vmatpush1.msra.mxu0 0.0
      %369 = vmatprep.subr.mxu0 0.0
      %370 = vmatpush1.msra.mxu0 0.0
      %371 = vmatprep.subr.mxu0 0.0
      %372 = vmatpush1.msra.mxu0 0.0
      %373 = vmatprep.subr.mxu0 0.0
      %374 = vmatpush1.msra.mxu0 0.0
      %375 = vmatprep.subr.mxu0 0.0
      %376 = vmatpush1.msra.mxu0 0.0
      %377 = vmatprep.subr.mxu0 0.0
      %378 = vmatpush1.msra.mxu0 0.0
      %379 = vmatprep.subr.mxu0 0.0
      %380 = vmatpush1.msra.mxu0 0.0
      %381 = vmatprep.subr.mxu0 0.0
      %382 = vmatpush1.msra.mxu0 0.0
      %383 = vmatprep.subr.mxu0 0.0
      %384 = vmatpush1.msra.mxu0 0.0
      %385 = vmatprep.subr.mxu0 0.0
      %386 = vmatpush1.msra.mxu0 0.0
      %387 = vmatprep.subr.mxu0 0.0
      %388 = vmatpush1.msra.mxu0 0.0
      %389 = vmatprep.subr.mxu0 0.0
      %390 = vmatpush1.msra.mxu0 0.0
      %391 = vmatprep.subr.mxu0 0.0
      %392 = vmatpush1.msra.mxu0 0.0
      %393 = vmatprep.subr.mxu0 0.0
      %394 = vmatpush1.msra.mxu0 0.0
      %395 = vmatprep.subr.mxu0 0.0
      %396 = vmatpush1.msra.mxu0 0.0
      %397 = vmatprep.mubr.f32.mxu0 0.0
      %398 = vmatmul.mubr.f32.gmra.mrb[0].mxu0 %v331
      %v399 = vpop.f32.mrb[0].mxu0
      %v400 = vadd.f32 0.0, %v399
      %v401 = vpop.f32.mrb[0].mxu0
      %v402 = vadd.f32 0.0, %v401
      %403 = vdwg.mxu0
      %405 = vset.pattern.permute.xlu0 0
      %406 = vperm.xlu0 %405, %v225
      %v407 = vpop.permute.xlu0 %406
      %v409 = vmul.f32 %v400, %v407
      %v410 = vmul.f32 %v402, %v407
      %412 = vset.pattern.permute.xlu0 0
      %413 = vperm.xlu0 %412, %v226
      %v414 = vpop.permute.xlu0 %413
      %v416 = vadd.f32 %v409, %v414
      %v417 = vadd.f32 %v410, %v414
      %v418 = vmax.f32 %v416, 0.0
      %v419 = vmax.f32 %v417, 0.0
      %v422 = vcombine.low %v418, %v419
      %424 = vst [vmem:[%s224] sm:$0xff] %v422
      %v425 = vld [vmem:[%s219] sm:$0xff]
      %v426 = vld [vmem:[%s219 + $0x8] sm:$0xff]
      %v427 = vld [vmem:[%s219 + $0x10] sm:$0xff]
      %s428 = scalar_lea.vmem %s2, 1
      %v429 = vld [vmem:[%s428] ss:$2 sm:$0x3]
      %v431 = vlaneseq
      %v432 = vshrl.u32 %v431, 7
      %v433 = vsub.s32 0, %v432
      %v434 = vrot.slane %v429, %v433
      %v435 = vlaneseq
      %v436 = vshrl.u32 %v435, 7
      %v437 = vsub.s32 1, %v436
      %v438 = vrot.slane %v429, %v437
      %439 = vrot.lane.b32.xlu0 %v434, 18
      %v440 = vpop.permute.xlu0 %439
      %441 = vrot.lane.b32.xlu0 %v438, 18
      %v442 = vpop.permute.xlu0 %441
      %vm443 = vcmask 146432
      %v444 = vsel %vm443, %v440, %v442
      %v448 = vmul.f32 %v425, %v440
      %v449 = vmul.f32 %v426, %v444
      %v450 = vmul.f32 %v427, %v442
      %451 = vrot.lane.b32.xlu0 %v434, 2
      %v452 = vpop.permute.xlu0 %451
      %453 = vrot.lane.b32.xlu0 %v438, 2
      %v454 = vpop.permute.xlu0 %453
      %vm455 = vcmask 15360
      %v456 = vsel %vm455, %v452, %v454
      %v460 = vmul.f32 %v425, %v452
      %v461 = vmul.f32 %v426, %v456
      %v462 = vmul.f32 %v427, %v454
      %466 = vrot.lane.b32.xlu0 %v448, 127
      %v467 = vpop.permute.xlu0 %466
      %468 = vrot.lane.b32.xlu0 %v449, 127
      %v469 = vpop.permute.xlu0 %468
      %470 = vrot.lane.b32.xlu0 %v450, 127
      %v471 = vpop.permute.xlu0 %470
      %vm472 = vcmask 1039360
      %v473 = vsel %vm472, %v467, %v469
      %v474 = vsel %vm472, %v469, %v471
      %478 = vrot.lane.b32.xlu0 %v425, 16
      %v479 = vpop.permute.xlu0 %478
      %480 = vrot.lane.b32.xlu0 %v426, 16
      %v481 = vpop.permute.xlu0 %480
      %482 = vrot.lane.b32.xlu0 %v427, 16
      %v483 = vpop.permute.xlu0 %482
      %v484 = vsel %vm246, %v479, %v481
      %v485 = vsel %vm246, %v481, %v483
      %489 = vrot.lane.b32.xlu0 %v460, 15
      %v490 = vpop.permute.xlu0 %489
      %491 = vrot.lane.b32.xlu0 %v461, 15
      %v492 = vpop.permute.xlu0 %491
      %493 = vrot.lane.b32.xlu0 %v462, 15
      %v494 = vpop.permute.xlu0 %493
      %vm495 = vcmask 121856
      %v496 = vsel %vm495, %v490, %v492
      %v497 = vsel %vm495, %v492, %v494
      %s498 = scalar_lea.vmem %s1, 4
      %v499 = vld [vmem:[%s498] sm:$0xf]
      %500 = vrot.lane.b32.xlu0 %v425, 111
      %v501 = vpop.permute.xlu0 %500
      %502 = vrot.lane.b32.xlu0 %v426, 111
      %v503 = vpop.permute.xlu0 %502
      %504 = vrot.lane.b32.xlu0 %v427, 111
      %v505 = vpop.permute.xlu0 %504
      %506 = vrot.lane.b32.xlu0 %v473, 111
      %v507 = vpop.permute.xlu0 %506
      %508 = vrot.lane.b32.xlu0 %v474, 111
      %v509 = vpop.permute.xlu0 %508
      %510 = vrot.lane.b32.xlu0 %v471, 111
      %v511 = vpop.permute.xlu0 %510
      %512 = vrot.lane.b32.xlu0 %v479, 111
      %v513 = vpop.permute.xlu0 %512
      %514 = vrot.lane.b32.xlu0 %v484, 111
      %v515 = vpop.permute.xlu0 %514
      %516 = vrot.lane.b32.xlu0 %v485, 111
      %v517 = vpop.permute.xlu0 %516
      %518 = vrot.lane.b32.xlu0 %v490, 111
      %v519 = vpop.permute.xlu0 %518
      %520 = vrot.lane.b32.xlu0 %v496, 111
      %v521 = vpop.permute.xlu0 %520
      %522 = vrot.lane.b32.xlu0 %v497, 111
      %v523 = vpop.permute.xlu0 %522
      %v524 = vsel %vm312, %v501, %v503
      %v525 = vsel %vm312, %v503, %v505
      %v526 = vsel %vm312, %v507, %v509
      %v527 = vsel %vm312, %v509, %v511
      %v528 = vsel %vm312, %v513, %v515
      %v529 = vsel %vm312, %v515, %v517
      %v530 = vsel %vm312, %v519, %v521
      %v531 = vsel %vm312, %v521, %v523
      %v541 = vsel %vm329, %v499, 0
      %543 = vmatprep.subr.mxu0 %v525
      %544 = vmatpush1.msra.mxu0 %v524
      %545 = vmatprep.subr.mxu0 %v527
      %546 = vmatpush1.msra.mxu0 %v526
      %547 = vmatprep.subr.mxu0 %v529
      %548 = vmatpush1.msra.mxu0 %v528
      %549 = vmatprep.subr.mxu0 %v531
      %550 = vmatpush1.msra.mxu0 %v530
      %551 = vmatprep.subr.mxu0 0.0
      %552 = vmatpush1.msra.mxu0 0.0
      %553 = vmatprep.subr.mxu0 0.0
      %554 = vmatpush1.msra.mxu0 0.0
      %555 = vmatprep.subr.mxu0 0.0
      %556 = vmatpush1.msra.mxu0 0.0
      %557 = vmatprep.subr.mxu0 0.0
      %558 = vmatpush1.msra.mxu0 0.0
      %559 = vmatprep.subr.mxu0 0.0
      %560 = vmatpush1.msra.mxu0 0.0
      %561 = vmatprep.subr.mxu0 0.0
      %562 = vmatpush1.msra.mxu0 0.0
      %563 = vmatprep.subr.mxu0 0.0
      %564 = vmatpush1.msra.mxu0 0.0
      %565 = vmatprep.subr.mxu0 0.0
      %566 = vmatpush1.msra.mxu0 0.0
      %567 = vmatprep.subr.mxu0 0.0
      %568 = vmatpush1.msra.mxu0 0.0
      %569 = vmatprep.subr.mxu0 0.0
      %570 = vmatpush1.msra.mxu0 0.0
      %571 = vmatprep.subr.mxu0 0.0
      %572 = vmatpush1.msra.mxu0 0.0
      %573 = vmatprep.subr.mxu0 0.0
      %574 = vmatpush1.msra.mxu0 0.0
      %575 = vmatprep.subr.mxu0 0.0
      %576 = vmatpush1.msra.mxu0 0.0
      %577 = vmatprep.subr.mxu0 0.0
      %578 = vmatpush1.msra.mxu0 0.0
      %579 = vmatprep.subr.mxu0 0.0
      %580 = vmatpush1.msra.mxu0 0.0
      %581 = vmatprep.subr.mxu0 0.0
      %582 = vmatpush1.msra.mxu0 0.0
      %583 = vmatprep.subr.mxu0 0.0
      %584 = vmatpush1.msra.mxu0 0.0
      %585 = vmatprep.subr.mxu0 0.0
      %586 = vmatpush1.msra.mxu0 0.0
      %587 = vmatprep.subr.mxu0 0.0
      %588 = vmatpush1.msra.mxu0 0.0
      %589 = vmatprep.subr.mxu0 0.0
      %590 = vmatpush1.msra.mxu0 0.0
      %591 = vmatprep.subr.mxu0 0.0
      %592 = vmatpush1.msra.mxu0 0.0
      %593 = vmatprep.subr.mxu0 0.0
      %594 = vmatpush1.msra.mxu0 0.0
      %595 = vmatprep.subr.mxu0 0.0
      %596 = vmatpush1.msra.mxu0 0.0
      %597 = vmatprep.subr.mxu0 0.0
      %598 = vmatpush1.msra.mxu0 0.0
      %599 = vmatprep.subr.mxu0 0.0
      %600 = vmatpush1.msra.mxu0 0.0
      %601 = vmatprep.subr.mxu0 0.0
      %602 = vmatpush1.msra.mxu0 0.0
      %603 = vmatprep.subr.mxu0 0.0
      %604 = vmatpush1.msra.mxu0 0.0
      %605 = vmatprep.subr.mxu0 0.0
      %606 = vmatpush1.msra.mxu0 0.0
      %607 = vmatprep.mubr.f32.mxu0 0.0
      %608 = vmatmul.mubr.f32.gmra.mrb[0].mxu0 %v541
      %v609 = vpop.f32.mrb[0].mxu0
      %v610 = vadd.f32 0.0, %v609
      %v611 = vpop.f32.mrb[0].mxu0
      %v612 = vadd.f32 0.0, %v611
      %613 = vdwg.mxu0
      %v614 = vmul.f32 %v610, %v407
      %v615 = vmul.f32 %v612, %v407
      %v616 = vadd.f32 %v614, %v414
      %v617 = vadd.f32 %v615, %v414
      %v618 = vmax.f32 %v616, 0.0
      %v619 = vmax.f32 %v617, 0.0
      %v622 = vcombine.low %v618, %v619
      %s624 = scalar_lea.vmem %s224, 8
      %625 = vst [vmem:[%s624] sm:$0xff] %v622
      %v626 = vld [vmem:[%s219] sm:$0xff]
      %v627 = vld [vmem:[%s219 + $0x8] sm:$0xff]
      %v628 = vld [vmem:[%s219 + $0x10] sm:$0xff]
      %v629 = vld [vmem:[%s2] ss:$2 sm:$0x3]
      %v631 = vlaneseq
      %v632 = vshrl.u32 %v631, 7
      %v633 = vsub.s32 0, %v632
      %v634 = vrot.slane %v629, %v633
      %v635 = vlaneseq
      %v636 = vshrl.u32 %v635, 7
      %v637 = vsub.s32 1, %v636
      %v638 = vrot.slane %v629, %v637
      %639 = vrot.lane.b32.xlu0 %v634, 16
      %v640 = vpop.permute.xlu0 %639
      %641 = vrot.lane.b32.xlu0 %v638, 16
      %v642 = vpop.permute.xlu0 %641
      %v643 = vsel %vm246, %v640, %v642
      %v647 = vmul.f32 %v626, %v640
      %v648 = vmul.f32 %v627, %v643
      %v649 = vmul.f32 %v628, %v642
      %650 = vrot.lane.b32.xlu0 %v634, 32
      %v651 = vpop.permute.xlu0 %650
      %652 = vrot.lane.b32.xlu0 %v638, 32
      %v653 = vpop.permute.xlu0 %652
      %v654 = vsel %vm329, %v651, %v653
      %v658 = vmul.f32 %v626, %v651
      %v659 = vmul.f32 %v627, %v654
      %v660 = vmul.f32 %v628, %v653
      %664 = vrot.lane.b32.xlu0 %v647, 1
      %v665 = vpop.permute.xlu0 %664
      %666 = vrot.lane.b32.xlu0 %v648, 1
      %v667 = vpop.permute.xlu0 %666
      %668 = vrot.lane.b32.xlu0 %v649, 1
      %v669 = vpop.permute.xlu0 %668
      %v670 = vsel %vm265, %v665, %v667
      %v671 = vsel %vm265, %v667, %v669
      %675 = vrot.lane.b32.xlu0 %v626, 112
      %v676 = vpop.permute.xlu0 %675
      %677 = vrot.lane.b32.xlu0 %v627, 112
      %v678 = vpop.permute.xlu0 %677
      %679 = vrot.lane.b32.xlu0 %v628, 112
      %v680 = vpop.permute.xlu0 %679
      %vm681 = vcmask 916480
      %v682 = vsel %vm681, %v676, %v678
      %v683 = vsel %vm681, %v678, %v680
      %687 = vrot.lane.b32.xlu0 %v658, 113
      %v688 = vpop.permute.xlu0 %687
      %689 = vrot.lane.b32.xlu0 %v659, 113
      %v690 = vpop.permute.xlu0 %689
      %691 = vrot.lane.b32.xlu0 %v660, 113
      %v692 = vpop.permute.xlu0 %691
      %vm693 = vcmask 924672
      %v694 = vsel %vm693, %v688, %v690
      %v695 = vsel %vm693, %v690, %v692
      %s696 = scalar_lea.vmem %s1, 8
      %v697 = vld [vmem:[%s696] sm:$0xf]
      %698 = vrot.lane.b32.xlu0 %v626, 111
      %v699 = vpop.permute.xlu0 %698
      %700 = vrot.lane.b32.xlu0 %v627, 111
      %v701 = vpop.permute.xlu0 %700
      %702 = vrot.lane.b32.xlu0 %v628, 111
      %v703 = vpop.permute.xlu0 %702
      %704 = vrot.lane.b32.xlu0 %v665, 111
      %v705 = vpop.permute.xlu0 %704
      %706 = vrot.lane.b32.xlu0 %v670, 111
      %v707 = vpop.permute.xlu0 %706
      %708 = vrot.lane.b32.xlu0 %v671, 111
      %v709 = vpop.permute.xlu0 %708
      %710 = vrot.lane.b32.xlu0 %v682, 111
      %v711 = vpop.permute.xlu0 %710
      %712 = vrot.lane.b32.xlu0 %v683, 111
      %v713 = vpop.permute.xlu0 %712
      %714 = vrot.lane.b32.xlu0 %v680, 111
      %v715 = vpop.permute.xlu0 %714
      %716 = vrot.lane.b32.xlu0 %v694, 111
      %v717 = vpop.permute.xlu0 %716
      %718 = vrot.lane.b32.xlu0 %v695, 111
      %v719 = vpop.permute.xlu0 %718
      %720 = vrot.lane.b32.xlu0 %v692, 111
      %v721 = vpop.permute.xlu0 %720
      %v722 = vsel %vm312, %v699, %v701
      %v723 = vsel %vm312, %v701, %v703
      %v724 = vsel %vm312, %v705, %v707
      %v725 = vsel %vm312, %v707, %v709
      %v726 = vsel %vm312, %v711, %v713
      %v727 = vsel %vm312, %v713, %v715
      %v728 = vsel %vm312, %v717, %v719
      %v729 = vsel %vm312, %v719, %v721
      %v739 = vsel %vm329, %v697, 0
      %741 = vmatprep.subr.mxu0 %v723
      %742 = vmatpush1.msra.mxu0 %v722
      %743 = vmatprep.subr.mxu0 %v725
      %744 = vmatpush1.msra.mxu0 %v724
      %745 = vmatprep.subr.mxu0 %v727
      %746 = vmatpush1.msra.mxu0 %v726
      %747 = vmatprep.subr.mxu0 %v729
      %748 = vmatpush1.msra.mxu0 %v728
      %749 = vmatprep.subr.mxu0 0.0
      %750 = vmatpush1.msra.mxu0 0.0
      %751 = vmatprep.subr.mxu0 0.0
      %752 = vmatpush1.msra.mxu0 0.0
      %753 = vmatprep.subr.mxu0 0.0
      %754 = vmatpush1.msra.mxu0 0.0
      %755 = vmatprep.subr.mxu0 0.0
      %756 = vmatpush1.msra.mxu0 0.0
      %757 = vmatprep.subr.mxu0 0.0
      %758 = vmatpush1.msra.mxu0 0.0
      %759 = vmatprep.subr.mxu0 0.0
      %760 = vmatpush1.msra.mxu0 0.0
      %761 = vmatprep.subr.mxu0 0.0
      %762 = vmatpush1.msra.mxu0 0.0
      %763 = vmatprep.subr.mxu0 0.0
      %764 = vmatpush1.msra.mxu0 0.0
      %765 = vmatprep.subr.mxu0 0.0
      %766 = vmatpush1.msra.mxu0 0.0
      %767 = vmatprep.subr.mxu0 0.0
      %768 = vmatpush1.msra.mxu0 0.0
      %769 = vmatprep.subr.mxu0 0.0
      %770 = vmatpush1.msra.mxu0 0.0
      %771 = vmatprep.subr.mxu0 0.0
      %772 = vmatpush1.msra.mxu0 0.0
      %773 = vmatprep.subr.mxu0 0.0
      %774 = vmatpush1.msra.mxu0 0.0
      %775 = vmatprep.subr.mxu0 0.0
      %776 = vmatpush1.msra.mxu0 0.0
      %777 = vmatprep.subr.mxu0 0.0
      %778 = vmatpush1.msra.mxu0 0.0
      %779 = vmatprep.subr.mxu0 0.0
      %780 = vmatpush1.msra.mxu0 0.0
      %781 = vmatprep.subr.mxu0 0.0
      %782 = vmatpush1.msra.mxu0 0.0
      %783 = vmatprep.subr.mxu0 0.0
      %784 = vmatpush1.msra.mxu0 0.0
      %785 = vmatprep.subr.mxu0 0.0
      %786 = vmatpush1.msra.mxu0 0.0
      %787 = vmatprep.subr.mxu0 0.0
      %788 = vmatpush1.msra.mxu0 0.0
      %789 = vmatprep.subr.mxu0 0.0
      %790 = vmatpush1.msra.mxu0 0.0
      %791 = vmatprep.subr.mxu0 0.0
      %792 = vmatpush1.msra.mxu0 0.0
      %793 = vmatprep.subr.mxu0 0.0
      %794 = vmatpush1.msra.mxu0 0.0
      %795 = vmatprep.subr.mxu0 0.0
      %796 = vmatpush1.msra.mxu0 0.0
      %797 = vmatprep.subr.mxu0 0.0
      %798 = vmatpush1.msra.mxu0 0.0
      %799 = vmatprep.subr.mxu0 0.0
      %800 = vmatpush1.msra.mxu0 0.0
      %801 = vmatprep.subr.mxu0 0.0
      %802 = vmatpush1.msra.mxu0 0.0
      %803 = vmatprep.subr.mxu0 0.0
      %804 = vmatpush1.msra.mxu0 0.0
      %805 = vmatprep.mubr.f32.mxu0 0.0
      %806 = vmatmul.mubr.f32.gmra.mrb[0].mxu0 %v739
      %v807 = vpop.f32.mrb[0].mxu0
      %v808 = vadd.f32 0.0, %v807
      %v809 = vpop.f32.mrb[0].mxu0
      %v810 = vadd.f32 0.0, %v809
      %811 = vdwg.mxu0
      %v812 = vmul.f32 %v808, %v407
      %v813 = vmul.f32 %v810, %v407
      %v814 = vadd.f32 %v812, %v414
      %v815 = vadd.f32 %v813, %v414
      %v816 = vmax.f32 %v814, 0.0
      %v817 = vmax.f32 %v815, 0.0
      %v820 = vcombine.low %v816, %v817
      %s822 = scalar_lea.vmem %s224, 16
      %823 = vst [vmem:[%s822] sm:$0xff] %v820
      %v824 = vld [vmem:[%s219] sm:$0xff]
      %v825 = vld [vmem:[%s219 + $0x8] sm:$0xff]
      %v826 = vld [vmem:[%s219 + $0x10] sm:$0xff]
      %v827 = vld [vmem:[%s428] ss:$2 sm:$0x3]
      %v829 = vlaneseq
      %v830 = vshrl.u32 %v829, 7
      %v831 = vsub.s32 0, %v830
      %v832 = vrot.slane %v827, %v831
      %v833 = vlaneseq
      %v834 = vshrl.u32 %v833, 7
      %v835 = vsub.s32 1, %v834
      %v836 = vrot.slane %v827, %v835
      %837 = vrot.lane.b32.xlu0 %v832, 18
      %v838 = vpop.permute.xlu0 %837
      %839 = vrot.lane.b32.xlu0 %v836, 18
      %v840 = vpop.permute.xlu0 %839
      %v841 = vsel %vm443, %v838, %v840
      %v845 = vmul.f32 %v824, %v838
      %v846 = vmul.f32 %v825, %v841
      %v847 = vmul.f32 %v826, %v840
      %848 = vrot.lane.b32.xlu0 %v832, 34
      %v849 = vpop.permute.xlu0 %848
      %850 = vrot.lane.b32.xlu0 %v836, 34
      %v851 = vpop.permute.xlu0 %850
      %vm852 = vcmask 277504
      %v853 = vsel %vm852, %v849, %v851
      %v857 = vmul.f32 %v824, %v849
      %v858 = vmul.f32 %v825, %v853
      %v859 = vmul.f32 %v826, %v851
      %863 = vrot.lane.b32.xlu0 %v845, 127
      %v864 = vpop.permute.xlu0 %863
      %865 = vrot.lane.b32.xlu0 %v846, 127
      %v866 = vpop.permute.xlu0 %865
      %867 = vrot.lane.b32.xlu0 %v847, 127
      %v868 = vpop.permute.xlu0 %867
      %v869 = vsel %vm472, %v864, %v866
      %v870 = vsel %vm472, %v866, %v868
      %874 = vrot.lane.b32.xlu0 %v824, 112
      %v875 = vpop.permute.xlu0 %874
      %876 = vrot.lane.b32.xlu0 %v825, 112
      %v877 = vpop.permute.xlu0 %876
      %878 = vrot.lane.b32.xlu0 %v826, 112
      %v879 = vpop.permute.xlu0 %878
      %v880 = vsel %vm681, %v875, %v877
      %v881 = vsel %vm681, %v877, %v879
      %885 = vrot.lane.b32.xlu0 %v857, 111
      %v886 = vpop.permute.xlu0 %885
      %887 = vrot.lane.b32.xlu0 %v858, 111
      %v888 = vpop.permute.xlu0 %887
      %889 = vrot.lane.b32.xlu0 %v859, 111
      %v890 = vpop.permute.xlu0 %889
      %v891 = vsel %vm312, %v886, %v888
      %v892 = vsel %vm312, %v888, %v890
      %s893 = scalar_lea.vmem %s1, 12
      %v894 = vld [vmem:[%s893] sm:$0xf]
      %895 = vrot.lane.b32.xlu0 %v824, 111
      %v896 = vpop.permute.xlu0 %895
      %897 = vrot.lane.b32.xlu0 %v825, 111
      %v898 = vpop.permute.xlu0 %897
      %899 = vrot.lane.b32.xlu0 %v826, 111
      %v900 = vpop.permute.xlu0 %899
      %901 = vrot.lane.b32.xlu0 %v869, 111
      %v902 = vpop.permute.xlu0 %901
      %903 = vrot.lane.b32.xlu0 %v870, 111
      %v904 = vpop.permute.xlu0 %903
      %905 = vrot.lane.b32.xlu0 %v868, 111
      %v906 = vpop.permute.xlu0 %905
      %907 = vrot.lane.b32.xlu0 %v880, 111
      %v908 = vpop.permute.xlu0 %907
      %909 = vrot.lane.b32.xlu0 %v881, 111
      %v910 = vpop.permute.xlu0 %909
      %911 = vrot.lane.b32.xlu0 %v879, 111
      %v912 = vpop.permute.xlu0 %911
      %913 = vrot.lane.b32.xlu0 %v891, 111
      %v914 = vpop.permute.xlu0 %913
      %915 = vrot.lane.b32.xlu0 %v892, 111
      %v916 = vpop.permute.xlu0 %915
      %917 = vrot.lane.b32.xlu0 %v890, 111
      %v918 = vpop.permute.xlu0 %917
      %v919 = vsel %vm312, %v896, %v898
      %v920 = vsel %vm312, %v898, %v900
      %v921 = vsel %vm312, %v902, %v904
      %v922 = vsel %vm312, %v904, %v906
      %v923 = vsel %vm312, %v908, %v910
      %v924 = vsel %vm312, %v910, %v912
      %v925 = vsel %vm312, %v914, %v916
      %v926 = vsel %vm312, %v916, %v918
      %v936 = vsel %vm329, %v894, 0
      %938 = vmatprep.subr.mxu0 %v920
      %939 = vmatpush1.msra.mxu0 %v919
      %940 = vmatprep.subr.mxu0 %v922
      %941 = vmatpush1.msra.mxu0 %v921
      %942 = vmatprep.subr.mxu0 %v924
      %943 = vmatpush1.msra.mxu0 %v923
      %944 = vmatprep.subr.mxu0 %v926
      %945 = vmatpush1.msra.mxu0 %v925
      %946 = vmatprep.subr.mxu0 0.0
      %947 = vmatpush1.msra.mxu0 0.0
      %948 = vmatprep.subr.mxu0 0.0
      %949 = vmatpush1.msra.mxu0 0.0
      %950 = vmatprep.subr.mxu0 0.0
      %951 = vmatpush1.msra.mxu0 0.0
      %952 = vmatprep.subr.mxu0 0.0
      %953 = vmatpush1.msra.mxu0 0.0
      %954 = vmatprep.subr.mxu0 0.0
      %955 = vmatpush1.msra.mxu0 0.0
      %956 = vmatprep.subr.mxu0 0.0
      %957 = vmatpush1.msra.mxu0 0.0
      %958 = vmatprep.subr.mxu0 0.0
      %959 = vmatpush1.msra.mxu0 0.0
      %960 = vmatprep.subr.mxu0 0.0
      %961 = vmatpush1.msra.mxu0 0.0
      %962 = vmatprep.subr.mxu0 0.0
      %963 = vmatpush1.msra.mxu0 0.0
      %964 = vmatprep.subr.mxu0 0.0
      %965 = vmatpush1.msra.mxu0 0.0
      %966 = vmatprep.subr.mxu0 0.0
      %967 = vmatpush1.msra.mxu0 0.0
      %968 = vmatprep.subr.mxu0 0.0
      %969 = vmatpush1.msra.mxu0 0.0
      %970 = vmatprep.subr.mxu0 0.0
      %971 = vmatpush1.msra.mxu0 0.0
      %972 = vmatprep.subr.mxu0 0.0
      %973 = vmatpush1.msra.mxu0 0.0
      %974 = vmatprep.subr.mxu0 0.0
      %975 = vmatpush1.msra.mxu0 0.0
      %976 = vmatprep.subr.mxu0 0.0
      %977 = vmatpush1.msra.mxu0 0.0
      %978 = vmatprep.subr.mxu0 0.0
      %979 = vmatpush1.msra.mxu0 0.0
      %980 = vmatprep.subr.mxu0 0.0
      %981 = vmatpush1.msra.mxu0 0.0
      %982 = vmatprep.subr.mxu0 0.0
      %983 = vmatpush1.msra.mxu0 0.0
      %984 = vmatprep.subr.mxu0 0.0
      %985 = vmatpush1.msra.mxu0 0.0
      %986 = vmatprep.subr.mxu0 0.0
      %987 = vmatpush1.msra.mxu0 0.0
      %988 = vmatprep.subr.mxu0 0.0
      %989 = vmatpush1.msra.mxu0 0.0
      %990 = vmatprep.subr.mxu0 0.0
      %991 = vmatpush1.msra.mxu0 0.0
      %992 = vmatprep.subr.mxu0 0.0
      %993 = vmatpush1.msra.mxu0 0.0
      %994 = vmatprep.subr.mxu0 0.0
      %995 = vmatpush1.msra.mxu0 0.0
      %996 = vmatprep.subr.mxu0 0.0
      %997 = vmatpush1.msra.mxu0 0.0
      %998 = vmatprep.subr.mxu0 0.0
      %999 = vmatpush1.msra.mxu0 0.0
      %1000 = vmatprep.subr.mxu0 0.0
      %1001 = vmatpush1.msra.mxu0 0.0
      %1002 = vmatprep.mubr.f32.mxu0 0.0
      %1003 = vmatmul.mubr.f32.gmra.mrb[0].mxu0 %v936
      %v1004 = vpop.f32.mrb[0].mxu0
      %v1005 = vadd.f32 0.0, %v1004
      %v1006 = vpop.f32.mrb[0].mxu0
      %v1007 = vadd.f32 0.0, %v1006
      %1008 = vdwg.mxu0
      %v1009 = vmul.f32 %v1005, %v407
      %v1010 = vmul.f32 %v1007, %v407
      %v1011 = vadd.f32 %v1009, %v414
      %v1012 = vadd.f32 %v1010, %v414
      %v1013 = vmax.f32 %v1011, 0.0
      %v1014 = vmax.f32 %v1012, 0.0
      %v1017 = vcombine.low %v1013, %v1014
      %s1019 = scalar_lea.vmem %s224, 24
      %1020 = vst [vmem:[%s1019] sm:$0xff] %v1017
      %p1021 = scmp.lt.s32.totalorder %s16, 1
      %s1022 = scalar_select %p1021, %s16, 1
      %s1023 = smul.addr %s1022, 8
      %s1024 = smul.addr %s1023, 4
      %s1025 = scalar_lea.vmem %s5, %s1024
      // Predicated region
      $region41: #{generator_forward.8} parent=39 // pred_check
        %p1026 = pneg %p144
      $region42: #{generator_forward.8} parent=39 // pred_check_branch
        %1028 = sbr.rel (%p1026) target = $region44
      $region43: #{generator_forward.8} parent=39 // pred_region
        _
      $region44: #{generator_forward.8} parent=39 // pred_fallthru
        _
    $region40: #{generator_forward.8} parent=5 // pred_fallthru
      _
    %p1029 = scmp.le.s32.totalorder 2, %s11
    // Predicated region
    $region45: #{generator_forward.8} parent=5 // pred_check
      %p1030 = pneg %p1029
    $region46: #{generator_forward.8} parent=5 // pred_check_branch
      %1032 = sbr.rel (%p1030) target = $region48
    $region47: #{generator_forward.8} parent=5 // pred_region
      %s1033 = ssub.s32 %s11, 2
      // Predicated region
      $region49: #{generator_forward.8} parent=47 // pred_check
        %p1034 = pneg %p150
      $region50: #{generator_forward.8} parent=47 // pred_check_branch
        %1036 = sbr.rel (%p1034) target = $region52
      $region51: #{generator_forward.8} parent=47 // pred_region
        %p1037 = scmp.lt.s32.totalorder %s17, 1
        %s1038 = scalar_select %p1037, %s17, 1
        %s1039 = smul.addr %s1038, 8
        %s1040 = smul.addr %s1039, 4
        %s1041 = scalar_lea.vmem %s5, %s1040
      $region52: #{generator_forward.8} parent=47 // pred_fallthru
        _
    $region48: #{generator_forward.8} parent=5 // pred_fallthru
      _
  $region6: #{generator_forward.8} parent=0 // loop_footer
    %s15 = sadd.s32 1, %s11
  $region7: #{generator_forward.8} parent=0 // loop_footer_branch
    %10 = sbr.rel target = $region3
  $region8: #{generator_forward.8} parent=0 // loop_exit
    _

// kernel: generator_forward.9
$region0: #{generator_forward.9}
  #allocation0 [shape = 'u32[]', space=smem, size = 0x4, offset = 0x4, fixed_abs, tag = 'smem constant byte address 0x4 - core index']
  #allocation1 [shape = 'u32[144,128]{1,0:T(1,128)}', space=vmem, size = 0x12000, scoped, tag = 'internal scratch']
  %s0 = inlined_call_operand.vmem [shape: f32[2,4,1090], index: 0, kind: input, shape index: {}]
  %s1 = inlined_call_operand.vmem [shape: f32[4,3,16], index: 1, kind: input, shape index: {}]
  %s2 = inlined_call_operand.vmem [shape: f32[2,1024], index: 2, kind: input, shape index: {}]
  %s3 = inlined_call_operand.vmem [shape: f32[3,1], index: 3, kind: input, shape index: {}]
  %s4 = inlined_call_operand.vmem [shape: f32[3,1], index: 4, kind: input, shape index: {}]
  %s5 = inlined_call_operand.vmem [shape: f32[2,4,3,1024], index: 5, kind: output, shape index: {}]
  %s6 = sld [smem:[#allocation0]]
  $region53: #{generator_forward.9} parent=0
    _
  %s8 = ssub.s32 1, %s6
  %s9 = scalar_select 0, %s8, %s6
  loop: start=0, step=1, limit=4
  $region2: #{generator_forward.9} parent=0 // loop_pre_header
    _
  $region3: #{generator_forward.9} parent=0 // loop_header
    %s11 = sphi 0, %s15
    %p12 = scmp.ge.s32.totalorder %s11, 4
    %s21 = sphi 0, %s23
    %s24 = sphi 0, %s21
    %s25 = sphi 0, %s24
    %s41 = sphi 0, %s25
    %s45 = sphi 0, %s45
    %s47 = sphi 0, %s45
    %s48 = sphi 0, %s47
    %s62 = sphi 0, %s48
    %s66 = sphi 0, %s66
    %s68 = sphi 0, %s66
    %s69 = sphi 0, %s68
    %s83 = sphi 0, %s69
    %s87 = sphi 0, %s87
    %s89 = sphi 0, %s87
    %s90 = sphi 0, %s89
    %s104 = sphi 0, %s90
    %s108 = sphi 0, %s108
    %s110 = sphi 0, %s108
    %s111 = sphi 0, %s110
    %s125 = sphi 0, %s111
    %s131 = sphi 0, %s133
    %s134 = sphi 0, %s131
    %s135 = sphi 0, %s134
    %s151 = sphi 0, %s135
  $region4: #{generator_forward.9} parent=0 // loop_header_branch
    %14 = sbr.rel (%p12) target = $region8
  $region5: #{generator_forward.9} parent=0 // loop_body
    %s16 = ssub.s32 %s11, 1
    %s17 = ssub.s32 %s11, 2
    %s18 = sadd.s32 %s11, 1
    %s19 = ssub.s32 %s11, %s18
    %p20 = scmp.eq.s32.totalorder %s19, 0
    %s22 = sadd.s32 %s21, 1
    %s23 = scalar_select %p20, %s21, %s22
    %p26 = pneg %p20
    %p27 = scmp.eq.s32.totalorder %s11, 1
    %p28 = por %p26, %p27
    %p29 = scmp.ne.s32.totalorder %s21, %s24
    %p30 = scmp.eq.s32.totalorder %s11, 0
    %p31 = por %p29, %p30
    %p32 = scmp.ne.s32.totalorder %s21, %s24
    %p33 = scmp.eq.s32.totalorder %s16, 1
    %p34 = por %p32, %p33
    %p35 = scmp.ne.s32.totalorder %s24, %s25
    %p36 = scmp.eq.s32.totalorder %s16, 0
    %p37 = por %p35, %p36
    %p38 = scmp.ne.s32.totalorder %s24, %s25
    %p39 = scmp.eq.s32.totalorder %s17, 1
    %p40 = por %p38, %p39
    %p42 = scmp.ne.s32.totalorder %s25, %s41
    %p43 = scmp.eq.s32.totalorder %s17, 0
    %p44 = por %p42, %p43
    %s46 = sadd.s32 %s45, 1
    %p49 = scmp.eq.s32.totalorder %s11, 1
    %p50 = scmp.ne.s32.totalorder %s45, %s47
    %p51 = scmp.eq.s32.totalorder %s11, 0
    %p52 = por %p50, %p51
    %p53 = scmp.ne.s32.totalorder %s45, %s47
    %p54 = scmp.eq.s32.totalorder %s16, 1
    %p55 = por %p53, %p54
    %p56 = scmp.ne.s32.totalorder %s47, %s48
    %p57 = scmp.eq.s32.totalorder %s16, 0
    %p58 = por %p56, %p57
    %p59 = scmp.ne.s32.totalorder %s47, %s48
    %p60 = scmp.eq.s32.totalorder %s17, 1
    %p61 = por %p59, %p60
    %p63 = scmp.ne.s32.totalorder %s48, %s62
    %p64 = scmp.eq.s32.totalorder %s17, 0
    %p65 = por %p63, %p64
    %s67 = sadd.s32 %s66, 1
    %p70 = scmp.eq.s32.totalorder %s11, 1
    %p71 = scmp.ne.s32.totalorder %s66, %s68
    %p72 = scmp.eq.s32.totalorder %s11, 0
    %p73 = por %p71, %p72
    %p74 = scmp.ne.s32.totalorder %s66, %s68
    %p75 = scmp.eq.s32.totalorder %s16, 1
    %p76 = por %p74, %p75
    %p77 = scmp.ne.s32.totalorder %s68, %s69
    %p78 = scmp.eq.s32.totalorder %s16, 0
    %p79 = por %p77, %p78
    %p80 = scmp.ne.s32.totalorder %s68, %s69
    %p81 = scmp.eq.s32.totalorder %s17, 1
    %p82 = por %p80, %p81
    %p84 = scmp.ne.s32.totalorder %s69, %s83
    %p85 = scmp.eq.s32.totalorder %s17, 0
    %p86 = por %p84, %p85
    %s88 = sadd.s32 %s87, 1
    %p91 = scmp.eq.s32.totalorder %s11, 1
    %p92 = scmp.ne.s32.totalorder %s87, %s89
    %p93 = scmp.eq.s32.totalorder %s11, 0
    %p94 = por %p92, %p93
    %p95 = scmp.ne.s32.totalorder %s87, %s89
    %p96 = scmp.eq.s32.totalorder %s16, 1
    %p97 = por %p95, %p96
    %p98 = scmp.ne.s32.totalorder %s89, %s90
    %p99 = scmp.eq.s32.totalorder %s16, 0
    %p100 = por %p98, %p99
    %p101 = scmp.ne.s32.totalorder %s89, %s90
    %p102 = scmp.eq.s32.totalorder %s17, 1
    %p103 = por %p101, %p102
    %p105 = scmp.ne.s32.totalorder %s90, %s104
    %p106 = scmp.eq.s32.totalorder %s17, 0
    %p107 = por %p105, %p106
    %s109 = sadd.s32 %s108, 1
    %p112 = scmp.eq.s32.totalorder %s11, 1
    %p113 = scmp.ne.s32.totalorder %s108, %s110
    %p114 = scmp.eq.s32.totalorder %s11, 0
    %p115 = por %p113, %p114
    %p116 = scmp.ne.s32.totalorder %s108, %s110
    %p117 = scmp.eq.s32.totalorder %s16, 1
    %p118 = por %p116, %p117
    %p119 = scmp.ne.s32.totalorder %s110, %s111
    %p120 = scmp.eq.s32.totalorder %s16, 0
    %p121 = por %p119, %p120
    %p122 = scmp.ne.s32.totalorder %s110, %s111
    %p123 = scmp.eq.s32.totalorder %s17, 1
    %p124 = por %p122, %p123
    %p126 = scmp.ne.s32.totalorder %s111, %s125
    %p127 = scmp.eq.s32.totalorder %s17, 0
    %p128 = por %p126, %p127
    %s129 = ssub.s32 %s11, %s18
    %p130 = scmp.eq.s32.totalorder %s129, 0
    %s132 = sadd.s32 %s131, 1
    %s133 = scalar_select %p130, %s131, %s132
    %p136 = pneg %p130
    %p137 = scmp.eq.s32.totalorder %s11, 1
    %p138 = por %p136, %p137
    %p139 = scmp.ne.s32.totalorder %s131, %s134
    %p140 = scmp.eq.s32.totalorder %s11, 0
    %p141 = por %p139, %p140
    %p142 = scmp.ne.s32.totalorder %s131, %s134
    %p143 = scmp.eq.s32.totalorder %s16, 1
    %p144 = por %p142, %p143
    %p145 = scmp.ne.s32.totalorder %s134, %s135
    %p146 = scmp.eq.s32.totalorder %s16, 0
    %p147 = por %p145, %p146
    %p148 = scmp.ne.s32.totalorder %s134, %s135
    %p149 = scmp.eq.s32.totalorder %s17, 1
    %p150 = por %p148, %p149
    %p152 = scmp.ne.s32.totalorder %s135, %s151
    %p153 = scmp.eq.s32.totalorder %s17, 0
    %p154 = por %p152, %p153
    %p155 = scmp.le.s32.totalorder 1, %s11
    %p156 = scmp.lt.s32.totalorder %s11, 3
    %p157 = pnand %p155, %p156
    %p158 = pneg %p157
    // Predicated region
    $region9: #{generator_forward.9} parent=5 // pred_check
      _
    $region10: #{generator_forward.9} parent=5 // pred_check_branch
      %160 = sbr.rel (%p157) target = $region12
    $region11: #{generator_forward.9} parent=5 // pred_region
      %s161 = ssub.s32 %s11, 1
      // Predicated region
      $region13: #{generator_forward.9} parent=11 // pred_check
        %p162 = pneg %p58
      $region14: #{generator_forward.9} parent=11 // pred_check_branch
        %164 = sbr.rel (%p162) target = $region16
      $region15: #{generator_forward.9} parent=11 // pred_region
        _
      $region16: #{generator_forward.9} parent=11 // pred_fallthru
        _
      // Predicated region
      $region17: #{generator_forward.9} parent=11 // pred_check
        %p165 = pneg %p79
      $region18: #{generator_forward.9} parent=11 // pred_check_branch
        %167 = sbr.rel (%p165) target = $region20
      $region19: #{generator_forward.9} parent=11 // pred_region
        _
      $region20: #{generator_forward.9} parent=11 // pred_fallthru
        _
      // Predicated region
      $region21: #{generator_forward.9} parent=11 // pred_check
        %p168 = pneg %p100
      $region22: #{generator_forward.9} parent=11 // pred_check_branch
        %170 = sbr.rel (%p168) target = $region24
      $region23: #{generator_forward.9} parent=11 // pred_region
        _
      $region24: #{generator_forward.9} parent=11 // pred_fallthru
        _
      // Predicated region
      $region25: #{generator_forward.9} parent=11 // pred_check
        %p171 = pneg %p121
      $region26: #{generator_forward.9} parent=11 // pred_check_branch
        %173 = sbr.rel (%p171) target = $region28
      $region27: #{generator_forward.9} parent=11 // pred_region
        _
      $region28: #{generator_forward.9} parent=11 // pred_fallthru
        _
    $region12: #{generator_forward.9} parent=5 // pred_fallthru
      _
    %p174 = scmp.lt.s32.totalorder %s11, 2
    // Predicated region
    $region29: #{generator_forward.9} parent=5 // pred_check
      %p175 = pneg %p174
    $region30: #{generator_forward.9} parent=5 // pred_check_branch
      %177 = sbr.rel (%p175) target = $region32
    $region31: #{generator_forward.9} parent=5 // pred_region
      // Predicated region
      $region33: #{generator_forward.9} parent=31 // pred_check
        %p178 = pneg %p31
      $region34: #{generator_forward.9} parent=31 // pred_check_branch
        %180 = sbr.rel (%p178) target = $region36
      $region35: #{generator_forward.9} parent=31 // pred_region
        %p181 = scmp.lt.s32.totalorder %s11, 1
        %s182 = scalar_select %p181, %s11, 1
        %s183 = smul.addr %s182, 9
        %s184 = smul.addr %s183, 4
        %s185 = scalar_lea.vmem %s0, %s184
      $region36: #{generator_forward.9} parent=31 // pred_fallthru
        _
    $region32: #{generator_forward.9} parent=5 // pred_fallthru
      _
    %p186 = scmp.le.s32.totalorder 1, %s11
    %p187 = scmp.lt.s32.totalorder %s11, 3
    %p188 = pnand %p186, %p187
    %p189 = pneg %p188
    // Predicated region
    $region37: #{generator_forward.9} parent=5 // pred_check
      _
    $region38: #{generator_forward.9} parent=5 // pred_check_branch
      %191 = sbr.rel (%p188) target = $region40
    $region39: #{generator_forward.9} parent=5 // pred_region
      %s192 = ssub.s32 %s11, 1
      %p193 = scmp.lt.s32.totalorder %s16, 1
      %s194 = scalar_select %p193, %s16, 1
      %s195 = smul.addr %s194, 9
      %s196 = smul.addr %s195, 4
      %s197 = scalar_lea.vmem %s0, %s196
      %p198 = pneg %p37
      %p199 = pneg %p34
      %p200 = pneg %p58
      %p201 = pneg %p55
      %p202 = pneg %p79
      %p203 = pneg %p76
      %p204 = pneg %p100
      %p205 = pneg %p97
      %p206 = pneg %p121
      %p207 = pneg %p118
      %p208 = pneg %p147
      %p209 = pneg %p144
      %p210 = scmp.lt.s32.totalorder %s16, 1
      %s211 = scalar_select %p210, %s16, 1
      %s212 = smul.addr %s211, 32
      %s213 = smul.addr %s212, 4
      %s214 = scalar_lea.vmem %s5, %s213
      %p215 = scmp.lt.s32.totalorder %s16, 1
      %s216 = scalar_select %p215, %s16, 1
      %s217 = smul.addr %s216, 9
      %s218 = smul.addr %s217, 4
      %s219 = scalar_lea.vmem %s0, %s218
      %p220 = scmp.lt.s32.totalorder %s16, 1
      %s221 = scalar_select %p220, %s16, 1
      %s222 = smul.addr %s221, 32
      %s223 = smul.addr %s222, 4
      %s224 = scalar_lea.vmem %s5, %s223
      %v225 = vld [vmem:[%s3] sm:$0x7]
      %v226 = vld [vmem:[%s4] sm:$0x7]
      %v227 = vld [vmem:[%s219] sm:$0xff]
      %v228 = vld [vmem:[%s219 + $0x8] sm:$0xff]
      %v229 = vld [vmem:[%s219 + $0x10] sm:$0xff]
      %v230 = vld [vmem:[%s219 + $0x18] sm:$0xff]
      %v231 = vld [vmem:[%s219 + $0x20] sm:$0xf]
      %v232 = vld [vmem:[%s2] ss:$2 sm:$0xff]
      %v234 = vlaneseq
      %v235 = vshrl.u32 %v234, 7
      %v236 = vsub.s32 0, %v235
      %v237 = vrot.slane %v232, %v236
      %v238 = vlaneseq
      %v239 = vshrl.u32 %v238, 7
      %v240 = vsub.s32 1, %v239
      %v241 = vrot.slane %v232, %v240
      %v242 = vlaneseq
      %v243 = vshrl.u32 %v242, 7
      %v244 = vsub.s32 2, %v243
      %v245 = vrot.slane %v232, %v244
      %v246 = vlaneseq
      %v247 = vshrl.u32 %v246, 7
      %v248 = vsub.s32 3, %v247
      %v249 = vrot.slane %v232, %v248
      %v250 = vlaneseq
      %v251 = vshrl.u32 %v250, 7
      %v252 = vsub.s32 4, %v251
      %v253 = vrot.slane %v232, %v252
      %v254 = vlaneseq
      %v255 = vshrl.u32 %v254, 7
      %v256 = vsub.s32 5, %v255
      %v257 = vrot.slane %v232, %v256
      %v258 = vlaneseq
      %v259 = vshrl.u32 %v258, 7
      %v260 = vsub.s32 6, %v259
      %v261 = vrot.slane %v232, %v260
      %v262 = vlaneseq
      %v263 = vshrl.u32 %v262, 7
      %v264 = vsub.s32 7, %v263
      %v265 = vrot.slane %v232, %v264
      %v266 = vcombine.low %v237, %v241
      %v267 = vcombine.low %v245, %v249
      %v268 = vcombine.low %v253, %v257
      %v269 = vcombine.low %v261, %v265
      %270 = vrot.lane.b32.xlu0 %v266, 32
      %v271 = vpop.permute.xlu0 %270
      %272 = vrot.lane.b32.xlu0 %v267, 32
      %v273 = vpop.permute.xlu0 %272
      %274 = vrot.lane.b32.xlu0 %v268, 32
      %v275 = vpop.permute.xlu0 %274
      %276 = vrot.lane.b32.xlu0 %v269, 32
      %v277 = vpop.permute.xlu0 %276
      %v278 = vrot.slane %v271, 4
      %v279 = vrot.slane %v273, 4
      %v280 = vrot.slane %v275, 4
      %v281 = vrot.slane %v277, 4
      %vm282 = vcmask 261120
      %v283 = vsel %vm282, %v278, %v271
      %vm284 = vcmask 1043456
      %v285 = vsel %vm284, %v278, %v279
      %v286 = vsel %vm282, %v285, %v273
      %v287 = vsel %vm284, %v279, %v280
      %v288 = vsel %vm282, %v287, %v275
      %v289 = vsel %vm284, %v280, %v281
      %v290 = vsel %vm282, %v289, %v277
      %v296 = vmul.f32 %v227, %v283
      %v297 = vmul.f32 %v228, %v286
      %v298 = vmul.f32 %v229, %v288
      %v299 = vmul.f32 %v230, %v290
      %v300 = vmul.f32 %v231, %v281
      %v305 = vmul.f32 %v227, %v266
      %v306 = vmul.f32 %v228, %v267
      %v307 = vmul.f32 %v229, %v268
      %v308 = vmul.f32 %v230, %v269
      %v313 = vcombine.high %v227, %v227
      %v314 = vcombine.high %v228, %v228
      %v315 = vcombine.high %v229, %v229
      %v316 = vcombine.high %v230, %v230
      %v326 = vcombine.low %v296, %v296
      %v327 = vcombine.low %v297, %v297
      %v328 = vcombine.low %v298, %v298
      %v329 = vcombine.low %v299, %v299
      %v330 = vcombine.low %v300, %v300
      %331 = vrot.lane.b32.xlu0 %v326, 1
      %v332 = vpop.permute.xlu0 %331
      %333 = vrot.lane.b32.xlu0 %v296, 1
      %v334 = vpop.permute.xlu0 %333
      %335 = vrot.lane.b32.xlu0 %v327, 1
      %v336 = vpop.permute.xlu0 %335
      %337 = vrot.lane.b32.xlu0 %v297, 1
      %v338 = vpop.permute.xlu0 %337
      %339 = vrot.lane.b32.xlu0 %v328, 1
      %v340 = vpop.permute.xlu0 %339
      %341 = vrot.lane.b32.xlu0 %v298, 1
      %v342 = vpop.permute.xlu0 %341
      %343 = vrot.lane.b32.xlu0 %v329, 1
      %v344 = vpop.permute.xlu0 %343
      %345 = vrot.lane.b32.xlu0 %v299, 1
      %v346 = vpop.permute.xlu0 %345
      %347 = vrot.lane.b32.xlu0 %v330, 1
      %v348 = vpop.permute.xlu0 %347
      %vm349 = vcmask 7168
      %v350 = vsel %vm349, %v332, %v334
      %v351 = vsel %vm349, %v334, %v336
      %v352 = vsel %vm349, %v336, %v338
      %v353 = vsel %vm349, %v338, %v340
      %v354 = vsel %vm349, %v340, %v342
      %v355 = vsel %vm349, %v342, %v344
      %v356 = vsel %vm349, %v344, %v346
      %v357 = vsel %vm349, %v346, %v348
      %368 = vrot.lane.b32.xlu0 %v227, 32
      %v369 = vpop.permute.xlu0 %368
      %370 = vrot.lane.b32.xlu0 %v313, 32
      %v371 = vpop.permute.xlu0 %370
      %372 = vrot.lane.b32.xlu0 %v228, 32
      %v373 = vpop.permute.xlu0 %372
      %374 = vrot.lane.b32.xlu0 %v314, 32
      %v375 = vpop.permute.xlu0 %374
      %376 = vrot.lane.b32.xlu0 %v229, 32
      %v377 = vpop.permute.xlu0 %376
      %378 = vrot.lane.b32.xlu0 %v315, 32
      %v379 = vpop.permute.xlu0 %378
      %380 = vrot.lane.b32.xlu0 %v230, 32
      %v381 = vpop.permute.xlu0 %380
      %382 = vrot.lane.b32.xlu0 %v316, 32
      %v383 = vpop.permute.xlu0 %382
      %384 = vrot.lane.b32.xlu0 %v231, 32
      %v385 = vpop.permute.xlu0 %384
      %v386 = vsel %vm282, %v369, %v371
      %v387 = vsel %vm282, %v371, %v373
      %v388 = vsel %vm282, %v373, %v375
      %v389 = vsel %vm282, %v375, %v377
      %v390 = vsel %vm282, %v377, %v379
      %v391 = vsel %vm282, %v379, %v381
      %v392 = vsel %vm282, %v381, %v383
      %v393 = vsel %vm282, %v383, %v385
      %v407 = vcombine.low %v305, %v305
      %v408 = vcombine.low %v306, %v306
      %v409 = vcombine.low %v307, %v307
      %v410 = vcombine.low %v308, %v308
      %411 = vrot.lane.b32.xlu0 %v407, 33
      %v412 = vpop.permute.xlu0 %411
      %413 = vrot.lane.b32.xlu0 %v305, 33
      %v414 = vpop.permute.xlu0 %413
      %415 = vrot.lane.b32.xlu0 %v408, 33
      %v416 = vpop.permute.xlu0 %415
      %417 = vrot.lane.b32.xlu0 %v306, 33
      %v418 = vpop.permute.xlu0 %417
      %419 = vrot.lane.b32.xlu0 %v409, 33
      %v420 = vpop.permute.xlu0 %419
      %421 = vrot.lane.b32.xlu0 %v307, 33
      %v422 = vpop.permute.xlu0 %421
      %423 = vrot.lane.b32.xlu0 %v410, 33
      %v424 = vpop.permute.xlu0 %423
      %425 = vrot.lane.b32.xlu0 %v308, 33
      %v426 = vpop.permute.xlu0 %425
      %vm427 = vcmask 269312
      %v428 = vsel %vm427, %v412, %v414
      %v429 = vsel %vm427, %v414, %v416
      %v430 = vsel %vm427, %v416, %v418
      %v431 = vsel %vm427, %v418, %v420
      %v432 = vsel %vm427, %v420, %v422
      %v433 = vsel %vm427, %v422, %v424
      %v434 = vsel %vm427, %v424, %v426
      %v444 = vsel %vm284, %v227, %v332
      %v445 = vsel %vm284, %v313, %v350
      %v446 = vsel %vm284, %v228, %v351
      %v447 = vsel %vm284, %v314, %v352
      %v448 = vsel %vm284, %v229, %v353
      %v449 = vsel %vm284, %v315, %v354
      %v450 = vsel %vm284, %v230, %v355
      %v451 = vsel %vm284, %v316, %v356
      %v452 = vsel %vm284, %v231, %v357
      %v453 = vsel %vm284, %v369, %v412
      %v454 = vsel %vm284, %v386, %v428
      %v455 = vsel %vm284, %v387, %v429
      %v456 = vsel %vm284, %v388, %v430
      %v457 = vsel %vm284, %v389, %v431
      %v458 = vsel %vm284, %v390, %v432
      %v459 = vsel %vm284, %v391, %v433
      %v460 = vsel %vm284, %v392, %v434
      %v461 = vsel %vm284, %v393, %v426
      %v462 = vld [vmem:[%s1] sm:$0x7]
      %481 = vrot.lane.b32.xlu0 %v444, 95
      %v482 = vpop.permute.xlu0 %481
      %483 = vrot.lane.b32.xlu0 %v445, 95
      %v484 = vpop.permute.xlu0 %483
      %485 = vrot.lane.b32.xlu0 %v446, 95
      %v486 = vpop.permute.xlu0 %485
      %487 = vrot.lane.b32.xlu0 %v447, 95
      %v488 = vpop.permute.xlu0 %487
      %489 = vrot.lane.b32.xlu0 %v448, 95
      %v490 = vpop.permute.xlu0 %489
      %491 = vrot.lane.b32.xlu0 %v449, 95
      %v492 = vpop.permute.xlu0 %491
      %493 = vrot.lane.b32.xlu0 %v450, 95
      %v494 = vpop.permute.xlu0 %493
      %495 = vrot.lane.b32.xlu0 %v451, 95
      %v496 = vpop.permute.xlu0 %495
      %497 = vrot.lane.b32.xlu0 %v452, 95
      %v498 = vpop.permute.xlu0 %497
      %499 = vrot.lane.b32.xlu0 %v453, 95
      %v500 = vpop.permute.xlu0 %499
      %501 = vrot.lane.b32.xlu0 %v454, 95
      %v502 = vpop.permute.xlu0 %501
      %503 = vrot.lane.b32.xlu0 %v455, 95
      %v504 = vpop.permute.xlu0 %503
      %505 = vrot.lane.b32.xlu0 %v456, 95
      %v506 = vpop.permute.xlu0 %505
      %507 = vrot.lane.b32.xlu0 %v457, 95
      %v508 = vpop.permute.xlu0 %507
      %509 = vrot.lane.b32.xlu0 %v458, 95
      %v510 = vpop.permute.xlu0 %509
      %511 = vrot.lane.b32.xlu0 %v459, 95
      %v512 = vpop.permute.xlu0 %511
      %513 = vrot.lane.b32.xlu0 %v460, 95
      %v514 = vpop.permute.xlu0 %513
      %515 = vrot.lane.b32.xlu0 %v461, 95
      %v516 = vpop.permute.xlu0 %515
      %vm517 = vcmask 777216
      %v518 = vsel %vm517, %v482, %v484
      %v519 = vsel %vm517, %v484, %v486
      %v520 = vsel %vm517, %v486, %v488
      %v521 = vsel %vm517, %v488, %v490
      %v522 = vsel %vm517, %v490, %v492
      %v523 = vsel %vm517, %v492, %v494
      %v524 = vsel %vm517, %v494, %v496
      %v525 = vsel %vm517, %v496, %v498
      %v526 = vsel %vm517, %v500, %v502
      %v527 = vsel %vm517, %v502, %v504
      %v528 = vsel %vm517, %v504, %v506
      %v529 = vsel %vm517, %v506, %v508
      %v530 = vsel %vm517, %v508, %v510
      %v531 = vsel %vm517, %v510, %v512
      %v532 = vsel %vm517, %v512, %v514
      %v533 = vsel %vm517, %v514, %v516
      %vm550 = vcmask 130048
      %v552 = vsel %vm550, %v462, 0
      %554 = vmatprep.subr.mxu0 %v519
      %555 = vmatpush1.msra.mxu0 %v518
      %556 = vmatprep.subr.mxu0 %v527
      %557 = vmatpush1.msra.mxu0 %v526
      %558 = vmatprep.subr.mxu0 0.0
      %559 = vmatpush1.msra.mxu0 0.0
      %560 = vmatprep.subr.mxu0 0.0
      %561 = vmatpush1.msra.mxu0 0.0
      %562 = vmatprep.subr.mxu0 0.0
      %563 = vmatpush1.msra.mxu0 0.0
      %564 = vmatprep.subr.mxu0 0.0
      %565 = vmatpush1.msra.mxu0 0.0
      %566 = vmatprep.subr.mxu0 0.0
      %567 = vmatpush1.msra.mxu0 0.0
      %568 = vmatprep.subr.mxu0 0.0
      %569 = vmatpush1.msra.mxu0 0.0
      %570 = vmatprep.subr.mxu0 0.0
      %571 = vmatpush1.msra.mxu0 0.0
      %572 = vmatprep.subr.mxu0 0.0
      %573 = vmatpush1.msra.mxu0 0.0
      %574 = vmatprep.subr.mxu0 0.0
      %575 = vmatpush1.msra.mxu0 0.0
      %576 = vmatprep.subr.mxu0 0.0
      %577 = vmatpush1.msra.mxu0 0.0
      %578 = vmatprep.subr.mxu0 0.0
      %579 = vmatpush1.msra.mxu0 0.0
      %580 = vmatprep.subr.mxu0 0.0
      %581 = vmatpush1.msra.mxu0 0.0
      %582 = vmatprep.subr.mxu0 0.0
      %583 = vmatpush1.msra.mxu0 0.0
      %584 = vmatprep.subr.mxu0 0.0
      %585 = vmatpush1.msra.mxu0 0.0
      %586 = vmatprep.subr.mxu0 0.0
      %587 = vmatpush1.msra.mxu0 0.0
      %588 = vmatprep.subr.mxu0 0.0
      %589 = vmatpush1.msra.mxu0 0.0
      %590 = vmatprep.subr.mxu0 0.0
      %591 = vmatpush1.msra.mxu0 0.0
      %592 = vmatprep.subr.mxu0 0.0
      %593 = vmatpush1.msra.mxu0 0.0
      %594 = vmatprep.subr.mxu0 0.0
      %595 = vmatpush1.msra.mxu0 0.0
      %596 = vmatprep.subr.mxu0 0.0
      %597 = vmatpush1.msra.mxu0 0.0
      %598 = vmatprep.subr.mxu0 0.0
      %599 = vmatpush1.msra.mxu0 0.0
      %600 = vmatprep.subr.mxu0 0.0
      %601 = vmatpush1.msra.mxu0 0.0
      %602 = vmatprep.subr.mxu0 0.0
      %603 = vmatpush1.msra.mxu0 0.0
      %604 = vmatprep.subr.mxu0 0.0
      %605 = vmatpush1.msra.mxu0 0.0
      %606 = vmatprep.subr.mxu0 0.0
      %607 = vmatpush1.msra.mxu0 0.0
      %608 = vmatprep.subr.mxu0 0.0
      %609 = vmatpush1.msra.mxu0 0.0
      %610 = vmatprep.subr.mxu0 0.0
      %611 = vmatpush1.msra.mxu0 0.0
      %612 = vmatprep.subr.mxu0 0.0
      %613 = vmatpush1.msra.mxu0 0.0
      %614 = vmatprep.subr.mxu0 0.0
      %615 = vmatpush1.msra.mxu0 0.0
      %616 = vmatprep.subr.mxu0 0.0
      %617 = vmatpush1.msra.mxu0 0.0
      %618 = vmatprep.mubr.f32.mxu0 0.0
      %619 = vmatmul.mubr.f32.gmra.mrb[0].mxu0 %v552
      %v620 = vpop.f32.mrb[0].mxu0
      %v621 = vadd.f32 0.0, %v620
      %v622 = vpop.f32.mrb[0].mxu0
      %v623 = vadd.f32 0.0, %v622
      %624 = vdwg.mxu0
      %625 = vmatprep.subr.mxu0 %v521
      %626 = vmatpush1.msra.mxu0 %v520
      %627 = vmatprep.subr.mxu0 %v529
      %628 = vmatpush1.msra.mxu0 %v528
      %629 = vmatprep.subr.mxu0 0.0
      %630 = vmatpush1.msra.mxu0 0.0
      %631 = vmatprep.subr.mxu0 0.0
      %632 = vmatpush1.msra.mxu0 0.0
      %633 = vmatprep.subr.mxu0 0.0
      %634 = vmatpush1.msra.mxu0 0.0
      %635 = vmatprep.subr.mxu0 0.0
      %636 = vmatpush1.msra.mxu0 0.0
      %637 = vmatprep.subr.mxu0 0.0
      %638 = vmatpush1.msra.mxu0 0.0
      %639 = vmatprep.subr.mxu0 0.0
      %640 = vmatpush1.msra.mxu0 0.0
      %641 = vmatprep.subr.mxu0 0.0
      %642 = vmatpush1.msra.mxu0 0.0
      %643 = vmatprep.subr.mxu0 0.0
      %644 = vmatpush1.msra.mxu0 0.0
      %645 = vmatprep.subr.mxu0 0.0
      %646 = vmatpush1.msra.mxu0 0.0
      %647 = vmatprep.subr.mxu0 0.0
      %648 = vmatpush1.msra.mxu0 0.0
      %649 = vmatprep.subr.mxu0 0.0
      %650 = vmatpush1.msra.mxu0 0.0
      %651 = vmatprep.subr.mxu0 0.0
      %652 = vmatpush1.msra.mxu0 0.0
      %653 = vmatprep.subr.mxu0 0.0
      %654 = vmatpush1.msra.mxu0 0.0
      %655 = vmatprep.subr.mxu0 0.0
      %656 = vmatpush1.msra.mxu0 0.0
      %657 = vmatprep.subr.mxu0 0.0
      %658 = vmatpush1.msra.mxu0 0.0
      %659 = vmatprep.subr.mxu0 0.0
      %660 = vmatpush1.msra.mxu0 0.0
      %661 = vmatprep.subr.mxu0 0.0
      %662 = vmatpush1.msra.mxu0 0.0
      %663 = vmatprep.subr.mxu0 0.0
      %664 = vmatpush1.msra.mxu0 0.0
      %665 = vmatprep.subr.mxu0 0.0
      %666 = vmatpush1.msra.mxu0 0.0
      %667 = vmatprep.subr.mxu0 0.0
      %668 = vmatpush1.msra.mxu0 0.0
      %669 = vmatprep.subr.mxu0 0.0
      %670 = vmatpush1.msra.mxu0 0.0
      %671 = vmatprep.subr.mxu0 0.0
      %672 = vmatpush1.msra.mxu0 0.0
      %673 = vmatprep.subr.mxu0 0.0
      %674 = vmatpush1.msra.mxu0 0.0
      %675 = vmatprep.subr.mxu0 0.0
      %676 = vmatpush1.msra.mxu0 0.0
      %677 = vmatprep.subr.mxu0 0.0
      %678 = vmatpush1.msra.mxu0 0.0
      %679 = vmatprep.subr.mxu0 0.0
      %680 = vmatpush1.msra.mxu0 0.0
      %681 = vmatprep.subr.mxu0 0.0
      %682 = vmatpush1.msra.mxu0 0.0
      %683 = vmatprep.subr.mxu0 0.0
      %684 = vmatpush1.msra.mxu0 0.0
      %685 = vmatprep.subr.mxu0 0.0
      %686 = vmatpush1.msra.mxu0 0.0
      %687 = vmatprep.subr.mxu0 0.0
      %688 = vmatpush1.msra.mxu0 0.0
      %689 = vmatprep.mubr.f32.mxu0 0.0
      %690 = vmatmul.mubr.f32.gmra.mrb[0].mxu0 %v552
      %v691 = vpop.f32.mrb[0].mxu0
      %v692 = vadd.f32 0.0, %v691
      %v693 = vpop.f32.mrb[0].mxu0
      %v694 = vadd.f32 0.0, %v693
      %695 = vdwg.mxu0
      %696 = vmatprep.subr.mxu0 %v523
      %697 = vmatpush1.msra.mxu0 %v522
      %698 = vmatprep.subr.mxu0 %v531
      %699 = vmatpush1.msra.mxu0 %v530
      %700 = vmatprep.subr.mxu0 0.0
      %701 = vmatpush1.msra.mxu0 0.0
      %702 = vmatprep.subr.mxu0 0.0
      %703 = vmatpush1.msra.mxu0 0.0
      %704 = vmatprep.subr.mxu0 0.0
      %705 = vmatpush1.msra.mxu0 0.0
      %706 = vmatprep.subr.mxu0 0.0
      %707 = vmatpush1.msra.mxu0 0.0
      %708 = vmatprep.subr.mxu0 0.0
      %709 = vmatpush1.msra.mxu0 0.0
      %710 = vmatprep.subr.mxu0 0.0
      %711 = vmatpush1.msra.mxu0 0.0
      %712 = vmatprep.subr.mxu0 0.0
      %713 = vmatpush1.msra.mxu0 0.0
      %714 = vmatprep.subr.mxu0 0.0
      %715 = vmatpush1.msra.mxu0 0.0
      %716 = vmatprep.subr.mxu0 0.0
      %717 = vmatpush1.msra.mxu0 0.0
      %718 = vmatprep.subr.mxu0 0.0
      %719 = vmatpush1.msra.mxu0 0.0
      %720 = vmatprep.subr.mxu0 0.0
      %721 = vmatpush1.msra.mxu0 0.0
      %722 = vmatprep.subr.mxu0 0.0
      %723 = vmatpush1.msra.mxu0 0.0
      %724 = vmatprep.subr.mxu0 0.0
      %725 = vmatpush1.msra.mxu0 0.0
      %726 = vmatprep.subr.mxu0 0.0
      %727 = vmatpush1.msra.mxu0 0.0
      %728 = vmatprep.subr.mxu0 0.0
      %729 = vmatpush1.msra.mxu0 0.0
      %730 = vmatprep.subr.mxu0 0.0
      %731 = vmatpush1.msra.mxu0 0.0
      %732 = vmatprep.subr.mxu0 0.0
      %733 = vmatpush1.msra.mxu0 0.0
      %734 = vmatprep.subr.mxu0 0.0
      %735 = vmatpush1.msra.mxu0 0.0
      %736 = vmatprep.subr.mxu0 0.0
      %737 = vmatpush1.msra.mxu0 0.0
      %738 = vmatprep.subr.mxu0 0.0
      %739 = vmatpush1.msra.mxu0 0.0
      %740 = vmatprep.subr.mxu0 0.0
      %741 = vmatpush1.msra.mxu0 0.0
      %742 = vmatprep.subr.mxu0 0.0
      %743 = vmatpush1.msra.mxu0 0.0
      %744 = vmatprep.subr.mxu0 0.0
      %745 = vmatpush1.msra.mxu0 0.0
      %746 = vmatprep.subr.mxu0 0.0
      %747 = vmatpush1.msra.mxu0 0.0
      %748 = vmatprep.subr.mxu0 0.0
      %749 = vmatpush1.msra.mxu0 0.0
      %750 = vmatprep.subr.mxu0 0.0
      %751 = vmatpush1.msra.mxu0 0.0
      %752 = vmatprep.subr.mxu0 0.0
      %753 = vmatpush1.msra.mxu0 0.0
      %754 = vmatprep.subr.mxu0 0.0
      %755 = vmatpush1.msra.mxu0 0.0
      %756 = vmatprep.subr.mxu0 0.0
      %757 = vmatpush1.msra.mxu0 0.0
      %758 = vmatprep.subr.mxu0 0.0
      %759 = vmatpush1.msra.mxu0 0.0
      %760 = vmatprep.mubr.f32.mxu0 0.0
      %761 = vmatmul.mubr.f32.gmra.mrb[0].mxu0 %v552
      %v762 = vpop.f32.mrb[0].mxu0
      %v763 = vadd.f32 0.0, %v762
      %v764 = vpop.f32.mrb[0].mxu0
      %v765 = vadd.f32 0.0, %v764
      %766 = vdwg.mxu0
      %767 = vmatprep.subr.mxu0 %v525
      %768 = vmatpush1.msra.mxu0 %v524
      %769 = vmatprep.subr.mxu0 %v533
      %770 = vmatpush1.msra.mxu0 %v532
      %771 = vmatprep.subr.mxu0 0.0
      %772 = vmatpush1.msra.mxu0 0.0
      %773 = vmatprep.subr.mxu0 0.0
      %774 = vmatpush1.msra.mxu0 0.0
      %775 = vmatprep.subr.mxu0 0.0
      %776 = vmatpush1.msra.mxu0 0.0
      %777 = vmatprep.subr.mxu0 0.0
      %778 = vmatpush1.msra.mxu0 0.0
      %779 = vmatprep.subr.mxu0 0.0
      %780 = vmatpush1.msra.mxu0 0.0
      %781 = vmatprep.subr.mxu0 0.0
      %782 = vmatpush1.msra.mxu0 0.0
      %783 = vmatprep.subr.mxu0 0.0
      %784 = vmatpush1.msra.mxu0 0.0
      %785 = vmatprep.subr.mxu0 0.0
      %786 = vmatpush1.msra.mxu0 0.0
      %787 = vmatprep.subr.mxu0 0.0
      %788 = vmatpush1.msra.mxu0 0.0
      %789 = vmatprep.subr.mxu0 0.0
      %790 = vmatpush1.msra.mxu0 0.0
      %791 = vmatprep.subr.mxu0 0.0
      %792 = vmatpush1.msra.mxu0 0.0
      %793 = vmatprep.subr.mxu0 0.0
      %794 = vmatpush1.msra.mxu0 0.0
      %795 = vmatprep.subr.mxu0 0.0
      %796 = vmatpush1.msra.mxu0 0.0
      %797 = vmatprep.subr.mxu0 0.0
      %798 = vmatpush1.msra.mxu0 0.0
      %799 = vmatprep.subr.mxu0 0.0
      %800 = vmatpush1.msra.mxu0 0.0
      %801 = vmatprep.subr.mxu0 0.0
      %802 = vmatpush1.msra.mxu0 0.0
      %803 = vmatprep.subr.mxu0 0.0
      %804 = vmatpush1.msra.mxu0 0.0
      %805 = vmatprep.subr.mxu0 0.0
      %806 = vmatpush1.msra.mxu0 0.0
      %807 = vmatprep.subr.mxu0 0.0
      %808 = vmatpush1.msra.mxu0 0.0
      %809 = vmatprep.subr.mxu0 0.0
      %810 = vmatpush1.msra.mxu0 0.0
      %811 = vmatprep.subr.mxu0 0.0
      %812 = vmatpush1.msra.mxu0 0.0
      %813 = vmatprep.subr.mxu0 0.0
      %814 = vmatpush1.msra.mxu0 0.0
      %815 = vmatprep.subr.mxu0 0.0
      %816 = vmatpush1.msra.mxu0 0.0
      %817 = vmatprep.subr.mxu0 0.0
      %818 = vmatpush1.msra.mxu0 0.0
      %819 = vmatprep.subr.mxu0 0.0
      %820 = vmatpush1.msra.mxu0 0.0
      %821 = vmatprep.subr.mxu0 0.0
      %822 = vmatpush1.msra.mxu0 0.0
      %823 = vmatprep.subr.mxu0 0.0
      %824 = vmatpush1.msra.mxu0 0.0
      %825 = vmatprep.subr.mxu0 0.0
      %826 = vmatpush1.msra.mxu0 0.0
      %827 = vmatprep.subr.mxu0 0.0
      %828 = vmatpush1.msra.mxu0 0.0
      %829 = vmatprep.subr.mxu0 0.0
      %830 = vmatpush1.msra.mxu0 0.0
      %831 = vmatprep.mubr.f32.mxu0 0.0
      %832 = vmatmul.mubr.f32.gmra.mrb[0].mxu0 %v552
      %v833 = vpop.f32.mrb[0].mxu0
      %v834 = vadd.f32 0.0, %v833
      %v835 = vpop.f32.mrb[0].mxu0
      %v836 = vadd.f32 0.0, %v835
      %837 = vdwg.mxu0
      %839 = vset.pattern.permute.xlu0 0
      %840 = vperm.xlu0 %839, %v225
      %v841 = vpop.permute.xlu0 %840
      %v843 = vmul.f32 %v621, %v841
      %v844 = vmul.f32 %v623, %v841
      %v845 = vmul.f32 %v692, %v841
      %v846 = vmul.f32 %v694, %v841
      %v847 = vmul.f32 %v763, %v841
      %v848 = vmul.f32 %v765, %v841
      %v849 = vmul.f32 %v834, %v841
      %v850 = vmul.f32 %v836, %v841
      %852 = vset.pattern.permute.xlu0 0
      %853 = vperm.xlu0 %852, %v226
      %v854 = vpop.permute.xlu0 %853
      %v856 = vadd.f32 %v843, %v854
      %v857 = vadd.f32 %v844, %v854
      %v858 = vadd.f32 %v845, %v854
      %v859 = vadd.f32 %v846, %v854
      %v860 = vadd.f32 %v847, %v854
      %v861 = vadd.f32 %v848, %v854
      %v862 = vadd.f32 %v849, %v854
      %v863 = vadd.f32 %v850, %v854
      %v864 = vtanh.pop %v856
      %v865 = vtanh.pop %v857
      %v866 = vtanh.pop %v858
      %v867 = vtanh.pop %v859
      %v868 = vtanh.pop %v860
      %v869 = vtanh.pop %v861
      %v870 = vtanh.pop %v862
      %v871 = vtanh.pop %v863
      %v880 = vcombine.low %v864, %v865
      %v881 = vcombine.low %v866, %v867
      %v882 = vcombine.low %v868, %v869
      %v883 = vcombine.low %v870, %v871
      %888 = vst [vmem:[%s224] sm:$0x77] %v880
      %889 = vst [vmem:[%s224 + $0x8] sm:$0x77] %v881
      %890 = vst [vmem:[%s224 + $0x10] sm:$0x77] %v882
      %891 = vst [vmem:[%s224 + $0x18] sm:$0x77] %v883
      %v892 = vld [vmem:[%s219] sm:$0xff]
      %v893 = vld [vmem:[%s219 + $0x8] sm:$0xff]
      %v894 = vld [vmem:[%s219 + $0x10] sm:$0xff]
      %v895 = vld [vmem:[%s219 + $0x18] sm:$0xff]
      %v896 = vld [vmem:[%s219 + $0x20] sm:$0xf]
      %s897 = scalar_lea.vmem %s2, 1
      %v898 = vld [vmem:[%s897] ss:$2 sm:$0xff]
      %v900 = vlaneseq
      %v901 = vshrl.u32 %v900, 7
      %v902 = vsub.s32 0, %v901
      %v903 = vrot.slane %v898, %v902
      %v904 = vlaneseq
      %v905 = vshrl.u32 %v904, 7
      %v906 = vsub.s32 1, %v905
      %v907 = vrot.slane %v898, %v906
      %v908 = vlaneseq
      %v909 = vshrl.u32 %v908, 7
      %v910 = vsub.s32 2, %v909
      %v911 = vrot.slane %v898, %v910
      %v912 = vlaneseq
      %v913 = vshrl.u32 %v912, 7
      %v914 = vsub.s32 3, %v913
      %v915 = vrot.slane %v898, %v914
      %v916 = vlaneseq
      %v917 = vshrl.u32 %v916, 7
      %v918 = vsub.s32 4, %v917
      %v919 = vrot.slane %v898, %v918
      %v920 = vlaneseq
      %v921 = vshrl.u32 %v920, 7
      %v922 = vsub.s32 5, %v921
      %v923 = vrot.slane %v898, %v922
      %v924 = vlaneseq
      %v925 = vshrl.u32 %v924, 7
      %v926 = vsub.s32 6, %v925
      %v927 = vrot.slane %v898, %v926
      %v928 = vlaneseq
      %v929 = vshrl.u32 %v928, 7
      %v930 = vsub.s32 7, %v929
      %v931 = vrot.slane %v898, %v930
      %v932 = vcombine.low %v903, %v907
      %v933 = vcombine.low %v911, %v915
      %v934 = vcombine.low %v919, %v923
      %v935 = vcombine.low %v927, %v931
      %936 = vrot.lane.b32.xlu0 %v932, 34
      %v937 = vpop.permute.xlu0 %936
      %938 = vrot.lane.b32.xlu0 %v933, 34
      %v939 = vpop.permute.xlu0 %938
      %940 = vrot.lane.b32.xlu0 %v934, 34
      %v941 = vpop.permute.xlu0 %940
      %942 = vrot.lane.b32.xlu0 %v935, 34
      %v943 = vpop.permute.xlu0 %942
      %v944 = vrot.slane %v937, 4
      %v945 = vrot.slane %v939, 4
      %v946 = vrot.slane %v941, 4
      %v947 = vrot.slane %v943, 4
      %vm948 = vcmask 277504
      %v949 = vsel %vm948, %v944, %v937
      %v950 = vsel %vm284, %v944, %v945
      %v951 = vsel %vm948, %v950, %v939
      %v952 = vsel %vm284, %v945, %v946
      %v953 = vsel %vm948, %v952, %v941
      %v954 = vsel %vm284, %v946, %v947
      %v955 = vsel %vm948, %v954, %v943
      %v961 = vmul.f32 %v892, %v949
      %v962 = vmul.f32 %v893, %v951
      %v963 = vmul.f32 %v894, %v953
      %v964 = vmul.f32 %v895, %v955
      %v965 = vmul.f32 %v896, %v947
      %966 = vrot.lane.b32.xlu0 %v932, 2
      %v967 = vpop.permute.xlu0 %966
      %968 = vrot.lane.b32.xlu0 %v933, 2
      %v969 = vpop.permute.xlu0 %968
      %970 = vrot.lane.b32.xlu0 %v934, 2
      %v971 = vpop.permute.xlu0 %970
      %972 = vrot.lane.b32.xlu0 %v935, 2
      %v973 = vpop.permute.xlu0 %972
      %v974 = vrot.slane %v967, 4
      %v975 = vrot.slane %v969, 4
      %v976 = vrot.slane %v971, 4
      %v977 = vrot.slane %v973, 4
      %vm978 = vcmask 15360
      %v979 = vsel %vm978, %v974, %v967
      %v980 = vsel %vm284, %v974, %v975
      %v981 = vsel %vm978, %v980, %v969
      %v982 = vsel %vm284, %v975, %v976
      %v983 = vsel %vm978, %v982, %v971
      %v984 = vsel %vm284, %v976, %v977
      %v985 = vsel %vm978, %v984, %v973
      %v991 = vmul.f32 %v892, %v979
      %v992 = vmul.f32 %v893, %v981
      %v993 = vmul.f32 %v894, %v983
      %v994 = vmul.f32 %v895, %v985
      %v995 = vmul.f32 %v896, %v977
      %v1000 = vcombine.high %v892, %v892
      %v1001 = vcombine.high %v893, %v893
      %v1002 = vcombine.high %v894, %v894
      %v1003 = vcombine.high %v895, %v895
      %v1013 = vcombine.low %v961, %v961
      %v1014 = vcombine.low %v962, %v962
      %v1015 = vcombine.low %v963, %v963
      %v1016 = vcombine.low %v964, %v964
      %v1017 = vcombine.low %v965, %v965
      %1018 = vrot.lane.b32.xlu0 %v1013, 127
      %v1019 = vpop.permute.xlu0 %1018
      %1020 = vrot.lane.b32.xlu0 %v961, 127
      %v1021 = vpop.permute.xlu0 %1020
      %1022 = vrot.lane.b32.xlu0 %v1014, 127
      %v1023 = vpop.permute.xlu0 %1022
      %1024 = vrot.lane.b32.xlu0 %v962, 127
      %v1025 = vpop.permute.xlu0 %1024
      %1026 = vrot.lane.b32.xlu0 %v1015, 127
      %v1027 = vpop.permute.xlu0 %1026
      %1028 = vrot.lane.b32.xlu0 %v963, 127
      %v1029 = vpop.permute.xlu0 %1028
      %1030 = vrot.lane.b32.xlu0 %v1016, 127
      %v1031 = vpop.permute.xlu0 %1030
      %1032 = vrot.lane.b32.xlu0 %v964, 127
      %v1033 = vpop.permute.xlu0 %1032
      %1034 = vrot.lane.b32.xlu0 %v1017, 127
      %v1035 = vpop.permute.xlu0 %1034
      %vm1036 = vcmask 1039360
      %v1037 = vsel %vm1036, %v1019, %v1021
      %v1038 = vsel %vm1036, %v1021, %v1023
      %v1039 = vsel %vm1036, %v1023, %v1025
      %v1040 = vsel %vm1036, %v1025, %v1027
      %v1041 = vsel %vm1036, %v1027, %v1029
      %v1042 = vsel %vm1036, %v1029, %v1031
      %v1043 = vsel %vm1036, %v1031, %v1033
      %v1044 = vsel %vm1036, %v1033, %v1035
      %1055 = vrot.lane.b32.xlu0 %v892, 32
      %v1056 = vpop.permute.xlu0 %1055
      %1057 = vrot.lane.b32.xlu0 %v1000, 32
      %v1058 = vpop.permute.xlu0 %1057
      %1059 = vrot.lane.b32.xlu0 %v893, 32
      %v1060 = vpop.permute.xlu0 %1059
      %1061 = vrot.lane.b32.xlu0 %v1001, 32
      %v1062 = vpop.permute.xlu0 %1061
      %1063 = vrot.lane.b32.xlu0 %v894, 32
      %v1064 = vpop.permute.xlu0 %1063
      %1065 = vrot.lane.b32.xlu0 %v1002, 32
      %v1066 = vpop.permute.xlu0 %1065
      %1067 = vrot.lane.b32.xlu0 %v895, 32
      %v1068 = vpop.permute.xlu0 %1067
      %1069 = vrot.lane.b32.xlu0 %v1003, 32
      %v1070 = vpop.permute.xlu0 %1069
      %1071 = vrot.lane.b32.xlu0 %v896, 32
      %v1072 = vpop.permute.xlu0 %1071
      %v1073 = vsel %vm282, %v1056, %v1058
      %v1074 = vsel %vm282, %v1058, %v1060
      %v1075 = vsel %vm282, %v1060, %v1062
      %v1076 = vsel %vm282, %v1062, %v1064
      %v1077 = vsel %vm282, %v1064, %v1066
      %v1078 = vsel %vm282, %v1066, %v1068
      %v1079 = vsel %vm282, %v1068, %v1070
      %v1080 = vsel %vm282, %v1070, %v1072
      %v1095 = vcombine.low %v991, %v991
      %v1096 = vcombine.low %v992, %v992
      %v1097 = vcombine.low %v993, %v993
      %v1098 = vcombine.low %v994, %v994
      %v1099 = vcombine.low %v995, %v995
      %1100 = vrot.lane.b32.xlu0 %v1095, 31
      %v1101 = vpop.permute.xlu0 %1100
      %1102 = vrot.lane.b32.xlu0 %v991, 31
      %v1103 = vpop.permute.xlu0 %1102
      %1104 = vrot.lane.b32.xlu0 %v1096, 31
      %v1105 = vpop.permute.xlu0 %1104
      %1106 = vrot.lane.b32.xlu0 %v992, 31
      %v1107 = vpop.permute.xlu0 %1106
      %1108 = vrot.lane.b32.xlu0 %v1097, 31
      %v1109 = vpop.permute.xlu0 %1108
      %1110 = vrot.lane.b32.xlu0 %v993, 31
      %v1111 = vpop.permute.xlu0 %1110
      %1112 = vrot.lane.b32.xlu0 %v1098, 31
      %v1113 = vpop.permute.xlu0 %1112
      %1114 = vrot.lane.b32.xlu0 %v994, 31
      %v1115 = vpop.permute.xlu0 %1114
      %1116 = vrot.lane.b32.xlu0 %v1099, 31
      %v1117 = vpop.permute.xlu0 %1116
      %vm1118 = vcmask 252928
      %v1119 = vsel %vm1118, %v1101, %v1103
      %v1120 = vsel %vm1118, %v1103, %v1105
      %v1121 = vsel %vm1118, %v1105, %v1107
      %v1122 = vsel %vm1118, %v1107, %v1109
      %v1123 = vsel %vm1118, %v1109, %v1111
      %v1124 = vsel %vm1118, %v1111, %v1113
      %v1125 = vsel %vm1118, %v1113, %v1115
      %v1126 = vsel %vm1118, %v1115, %v1117
      %v1136 = vsel %vm284, %v892, %v1037
      %v1137 = vsel %vm284, %v1000, %v1038
      %v1138 = vsel %vm284, %v893, %v1039
      %v1139 = vsel %vm284, %v1001, %v1040
      %v1140 = vsel %vm284, %v894, %v1041
      %v1141 = vsel %vm284, %v1002, %v1042
      %v1142 = vsel %vm284, %v895, %v1043
      %v1143 = vsel %vm284, %v1003, %v1044
      %v1144 = vsel %vm284, %v896, %v1035
      %v1145 = vsel %vm284, %v1056, %v1101
      %v1146 = vsel %vm284, %v1073, %v1119
      %v1147 = vsel %vm284, %v1074, %v1120
      %v1148 = vsel %vm284, %v1075, %v1121
      %v1149 = vsel %vm284, %v1076, %v1122
      %v1150 = vsel %vm284, %v1077, %v1123
      %v1151 = vsel %vm284, %v1078, %v1124
      %v1152 = vsel %vm284, %v1079, %v1125
      %v1153 = vsel %vm284, %v1080, %v1126
      %s1154 = scalar_lea.vmem %s1, 4
      %v1155 = vld [vmem:[%s1154] sm:$0x7]
      %1174 = vrot.lane.b32.xlu0 %v1136, 95
      %v1175 = vpop.permute.xlu0 %1174
      %1176 = vrot.lane.b32.xlu0 %v1137, 95
      %v1177 = vpop.permute.xlu0 %1176
      %1178 = vrot.lane.b32.xlu0 %v1138, 95
      %v1179 = vpop.permute.xlu0 %1178
      %1180 = vrot.lane.b32.xlu0 %v1139, 95
      %v1181 = vpop.permute.xlu0 %1180
      %1182 = vrot.lane.b32.xlu0 %v1140, 95
      %v1183 = vpop.permute.xlu0 %1182
      %1184 = vrot.lane.b32.xlu0 %v1141, 95
      %v1185 = vpop.permute.xlu0 %1184
      %1186 = vrot.lane.b32.xlu0 %v1142, 95
      %v1187 = vpop.permute.xlu0 %1186
      %1188 = vrot.lane.b32.xlu0 %v1143, 95
      %v1189 = vpop.permute.xlu0 %1188
      %1190 = vrot.lane.b32.xlu0 %v1144, 95
      %v1191 = vpop.permute.xlu0 %1190
      %1192 = vrot.lane.b32.xlu0 %v1145, 95
      %v1193 = vpop.permute.xlu0 %1192
      %1194 = vrot.lane.b32.xlu0 %v1146, 95
      %v1195 = vpop.permute.xlu0 %1194
      %1196 = vrot.lane.b32.xlu0 %v1147, 95
      %v1197 = vpop.permute.xlu0 %1196
      %1198 = vrot.lane.b32.xlu0 %v1148, 95
      %v1199 = vpop.permute.xlu0 %1198
      %1200 = vrot.lane.b32.xlu0 %v1149, 95
      %v1201 = vpop.permute.xlu0 %1200
      %1202 = vrot.lane.b32.xlu0 %v1150, 95
      %v1203 = vpop.permute.xlu0 %1202
      %1204 = vrot.lane.b32.xlu0 %v1151, 95
      %v1205 = vpop.permute.xlu0 %1204
      %1206 = vrot.lane.b32.xlu0 %v1152, 95
      %v1207 = vpop.permute.xlu0 %1206
      %1208 = vrot.lane.b32.xlu0 %v1153, 95
      %v1209 = vpop.permute.xlu0 %1208
      %v1210 = vsel %vm517, %v1175, %v1177
      %v1211 = vsel %vm517, %v1177, %v1179
      %v1212 = vsel %vm517, %v1179, %v1181
      %v1213 = vsel %vm517, %v1181, %v1183
      %v1214 = vsel %vm517, %v1183, %v1185
      %v1215 = vsel %vm517, %v1185, %v1187
      %v1216 = vsel %vm517, %v1187, %v1189
      %v1217 = vsel %vm517, %v1189, %v1191
      %v1218 = vsel %vm517, %v1193, %v1195
      %v1219 = vsel %vm517, %v1195, %v1197
      %v1220 = vsel %vm517, %v1197, %v1199
      %v1221 = vsel %vm517, %v1199, %v1201
      %v1222 = vsel %vm517, %v1201, %v1203
      %v1223 = vsel %vm517, %v1203, %v1205
      %v1224 = vsel %vm517, %v1205, %v1207
      %v1225 = vsel %vm517, %v1207, %v1209
      %v1243 = vsel %vm550, %v1155, 0
      %1245 = vmatprep.subr.mxu0 %v1211
      %1246 = vmatpush1.msra.mxu0 %v1210
      %1247 = vmatprep.subr.mxu0 %v1219
      %1248 = vmatpush1.msra.mxu0 %v1218
      %1249 = vmatprep.subr.mxu0 0.0
      %1250 = vmatpush1.msra.mxu0 0.0
      %1251 = vmatprep.subr.mxu0 0.0
      %1252 = vmatpush1.msra.mxu0 0.0
      %1253 = vmatprep.subr.mxu0 0.0
      %1254 = vmatpush1.msra.mxu0 0.0
      %1255 = vmatprep.subr.mxu0 0.0
      %1256 = vmatpush1.msra.mxu0 0.0
      %1257 = vmatprep.subr.mxu0 0.0
      %1258 = vmatpush1.msra.mxu0 0.0
      %1259 = vmatprep.subr.mxu0 0.0
      %1260 = vmatpush1.msra.mxu0 0.0
      %1261 = vmatprep.subr.mxu0 0.0
      %1262 = vmatpush1.msra.mxu0 0.0
      %1263 = vmatprep.subr.mxu0 0.0
      %1264 = vmatpush1.msra.mxu0 0.0
      %1265 = vmatprep.subr.mxu0 0.0
      %1266 = vmatpush1.msra.mxu0 0.0
      %1267 = vmatprep.subr.mxu0 0.0
      %1268 = vmatpush1.msra.mxu0 0.0
      %1269 = vmatprep.subr.mxu0 0.0
      %1270 = vmatpush1.msra.mxu0 0.0
      %1271 = vmatprep.subr.mxu0 0.0
      %1272 = vmatpush1.msra.mxu0 0.0
      %1273 = vmatprep.subr.mxu0 0.0
      %1274 = vmatpush1.msra.mxu0 0.0
      %1275 = vmatprep.subr.mxu0 0.0
      %1276 = vmatpush1.msra.mxu0 0.0
      %1277 = vmatprep.subr.mxu0 0.0
      %1278 = vmatpush1.msra.mxu0 0.0
      %1279 = vmatprep.subr.mxu0 0.0
      %1280 = vmatpush1.msra.mxu0 0.0
      %1281 = vmatprep.subr.mxu0 0.0
      %1282 = vmatpush1.msra.mxu0 0.0
      %1283 = vmatprep.subr.mxu0 0.0
      %1284 = vmatpush1.msra.mxu0 0.0
      %1285 = vmatprep.subr.mxu0 0.0
      %1286 = vmatpush1.msra.mxu0 0.0
      %1287 = vmatprep.subr.mxu0 0.0
      %1288 = vmatpush1.msra.mxu0 0.0
      %1289 = vmatprep.subr.mxu0 0.0
      %1290 = vmatpush1.msra.mxu0 0.0
      %1291 = vmatprep.subr.mxu0 0.0
      %1292 = vmatpush1.msra.mxu0 0.0
      %1293 = vmatprep.subr.mxu0 0.0
      %1294 = vmatpush1.msra.mxu0 0.0
      %1295 = vmatprep.subr.mxu0 0.0
      %1296 = vmatpush1.msra.mxu0 0.0
      %1297 = vmatprep.subr.mxu0 0.0
      %1298 = vmatpush1.msra.mxu0 0.0
      %1299 = vmatprep.subr.mxu0 0.0
      %1300 = vmatpush1.msra.mxu0 0.0
      %1301 = vmatprep.subr.mxu0 0.0
      %1302 = vmatpush1.msra.mxu0 0.0
      %1303 = vmatprep.subr.mxu0 0.0
      %1304 = vmatpush1.msra.mxu0 0.0
      %1305 = vmatprep.subr.mxu0 0.0
      %1306 = vmatpush1.msra.mxu0 0.0
      %1307 = vmatprep.subr.mxu0 0.0
      %1308 = vmatpush1.msra.mxu0 0.0
      %1309 = vmatprep.mubr.f32.mxu0 0.0
      %1310 = vmatmul.mubr.f32.gmra.mrb[0].mxu0 %v1243
      %v1311 = vpop.f32.mrb[0].mxu0
      %v1312 = vadd.f32 0.0, %v1311
      %v1313 = vpop.f32.mrb[0].mxu0
      %v1314 = vadd.f32 0.0, %v1313
      %1315 = vdwg.mxu0
      %1316 = vmatprep.subr.mxu0 %v1213
      %1317 = vmatpush1.msra.mxu0 %v1212
      %1318 = vmatprep.subr.mxu0 %v1221
      %1319 = vmatpush1.msra.mxu0 %v1220
      %1320 = vmatprep.subr.mxu0 0.0
      %1321 = vmatpush1.msra.mxu0 0.0
      %1322 = vmatprep.subr.mxu0 0.0
      %1323 = vmatpush1.msra.mxu0 0.0
      %1324 = vmatprep.subr.mxu0 0.0
      %1325 = vmatpush1.msra.mxu0 0.0
      %1326 = vmatprep.subr.mxu0 0.0
      %1327 = vmatpush1.msra.mxu0 0.0
      %1328 = vmatprep.subr.mxu0 0.0
      %1329 = vmatpush1.msra.mxu0 0.0
      %1330 = vmatprep.subr.mxu0 0.0
      %1331 = vmatpush1.msra.mxu0 0.0
      %1332 = vmatprep.subr.mxu0 0.0
      %1333 = vmatpush1.msra.mxu0 0.0
      %1334 = vmatprep.subr.mxu0 0.0
      %1335 = vmatpush1.msra.mxu0 0.0
      %1336 = vmatprep.subr.mxu0 0.0
      %1337 = vmatpush1.msra.mxu0 0.0
      %1338 = vmatprep.subr.mxu0 0.0
      %1339 = vmatpush1.msra.mxu0 0.0
      %1340 = vmatprep.subr.mxu0 0.0
      %1341 = vmatpush1.msra.mxu0 0.0
      %1342 = vmatprep.subr.mxu0 0.0
      %1343 = vmatpush1.msra.mxu0 0.0
      %1344 = vmatprep.subr.mxu0 0.0
      %1345 = vmatpush1.msra.mxu0 0.0
      %1346 = vmatprep.subr.mxu0 0.0
      %1347 = vmatpush1.msra.mxu0 0.0
      %1348 = vmatprep.subr.mxu0 0.0
      %1349 = vmatpush1.msra.mxu0 0.0
      %1350 = vmatprep.subr.mxu0 0.0
      %1351 = vmatpush1.msra.mxu0 0.0
      %1352 = vmatprep.subr.mxu0 0.0
      %1353 = vmatpush1.msra.mxu0 0.0
      %1354 = vmatprep.subr.mxu0 0.0
      %1355 = vmatpush1.msra.mxu0 0.0
      %1356 = vmatprep.subr.mxu0 0.0
      %1357 = vmatpush1.msra.mxu0 0.0
      %1358 = vmatprep.subr.mxu0 0.0
      %1359 = vmatpush1.msra.mxu0 0.0
      %1360 = vmatprep.subr.mxu0 0.0
      %1361 = vmatpush1.msra.mxu0 0.0
      %1362 = vmatprep.subr.mxu0 0.0
      %1363 = vmatpush1.msra.mxu0 0.0
      %1364 = vmatprep.subr.mxu0 0.0
      %1365 = vmatpush1.msra.mxu0 0.0
      %1366 = vmatprep.subr.mxu0 0.0
      %1367 = vmatpush1.msra.mxu0 0.0
      %1368 = vmatprep.subr.mxu0 0.0
      %1369 = vmatpush1.msra.mxu0 0.0
      %1370 = vmatprep.subr.mxu0 0.0
      %1371 = vmatpush1.msra.mxu0 0.0
      %1372 = vmatprep.subr.mxu0 0.0
      %1373 = vmatpush1.msra.mxu0 0.0
      %1374 = vmatprep.subr.mxu0 0.0
      %1375 = vmatpush1.msra.mxu0 0.0
      %1376 = vmatprep.subr.mxu0 0.0
      %1377 = vmatpush1.msra.mxu0 0.0
      %1378 = vmatprep.subr.mxu0 0.0
      %1379 = vmatpush1.msra.mxu0 0.0
      %1380 = vmatprep.mubr.f32.mxu0 0.0
      %1381 = vmatmul.mubr.f32.gmra.mrb[0].mxu0 %v1243
      %v1382 = vpop.f32.mrb[0].mxu0
      %v1383 = vadd.f32 0.0, %v1382
      %v1384 = vpop.f32.mrb[0].mxu0
      %v1385 = vadd.f32 0.0, %v1384
      %1386 = vdwg.mxu0
      %1387 = vmatprep.subr.mxu0 %v1215
      %1388 = vmatpush1.msra.mxu0 %v1214
      %1389 = vmatprep.subr.mxu0 %v1223
      %1390 = vmatpush1.msra.mxu0 %v1222
      %1391 = vmatprep.subr.mxu0 0.0
      %1392 = vmatpush1.msra.mxu0 0.0
      %1393 = vmatprep.subr.mxu0 0.0
      %1394 = vmatpush1.msra.mxu0 0.0
      %1395 = vmatprep.subr.mxu0 0.0
      %1396 = vmatpush1.msra.mxu0 0.0
      %1397 = vmatprep.subr.mxu0 0.0
      %1398 = vmatpush1.msra.mxu0 0.0
      %1399 = vmatprep.subr.mxu0 0.0
      %1400 = vmatpush1.msra.mxu0 0.0
      %1401 = vmatprep.subr.mxu0 0.0
      %1402 = vmatpush1.msra.mxu0 0.0
      %1403 = vmatprep.subr.mxu0 0.0
      %1404 = vmatpush1.msra.mxu0 0.0
      %1405 = vmatprep.subr.mxu0 0.0
      %1406 = vmatpush1.msra.mxu0 0.0
      %1407 = vmatprep.subr.mxu0 0.0
      %1408 = vmatpush1.msra.mxu0 0.0
      %1409 = vmatprep.subr.mxu0 0.0
      %1410 = vmatpush1.msra.mxu0 0.0
      %1411 = vmatprep.subr.mxu0 0.0
      %1412 = vmatpush1.msra.mxu0 0.0
      %1413 = vmatprep.subr.mxu0 0.0
      %1414 = vmatpush1.msra.mxu0 0.0
      %1415 = vmatprep.subr.mxu0 0.0
      %1416 = vmatpush1.msra.mxu0 0.0
      %1417 = vmatprep.subr.mxu0 0.0
      %1418 = vmatpush1.msra.mxu0 0.0
      %1419 = vmatprep.subr.mxu0 0.0
      %1420 = vmatpush1.msra.mxu0 0.0
      %1421 = vmatprep.subr.mxu0 0.0
      %1422 = vmatpush1.msra.mxu0 0.0
      %1423 = vmatprep.subr.mxu0 0.0
      %1424 = vmatpush1.msra.mxu0 0.0
      %1425 = vmatprep.subr.mxu0 0.0
      %1426 = vmatpush1.msra.mxu0 0.0
      %1427 = vmatprep.subr.mxu0 0.0
      %1428 = vmatpush1.msra.mxu0 0.0
      %1429 = vmatprep.subr.mxu0 0.0
      %1430 = vmatpush1.msra.mxu0 0.0
      %1431 = vmatprep.subr.mxu0 0.0
      %1432 = vmatpush1.msra.mxu0 0.0
      %1433 = vmatprep.subr.mxu0 0.0
      %1434 = vmatpush1.msra.mxu0 0.0
      %1435 = vmatprep.subr.mxu0 0.0
      %1436 = vmatpush1.msra.mxu0 0.0
      %1437 = vmatprep.subr.mxu0 0.0
      %1438 = vmatpush1.msra.mxu0 0.0
      %1439 = vmatprep.subr.mxu0 0.0
      %1440 = vmatpush1.msra.mxu0 0.0
      %1441 = vmatprep.subr.mxu0 0.0
      %1442 = vmatpush1.msra.mxu0 0.0
      %1443 = vmatprep.subr.mxu0 0.0
      %1444 = vmatpush1.msra.mxu0 0.0
      %1445 = vmatprep.subr.mxu0 0.0
      %1446 = vmatpush1.msra.mxu0 0.0
      %1447 = vmatprep.subr.mxu0 0.0
      %1448 = vmatpush1.msra.mxu0 0.0
      %1449 = vmatprep.subr.mxu0 0.0
      %1450 = vmatpush1.msra.mxu0 0.0
      %1451 = vmatprep.mubr.f32.mxu0 0.0
      %1452 = vmatmul.mubr.f32.gmra.mrb[0].mxu0 %v1243
      %v1453 = vpop.f32.mrb[0].mxu0
      %v1454 = vadd.f32 0.0, %v1453
      %v1455 = vpop.f32.mrb[0].mxu0
      %v1456 = vadd.f32 0.0, %v1455
      %1457 = vdwg.mxu0
      %1458 = vmatprep.subr.mxu0 %v1217
      %1459 = vmatpush1.msra.mxu0 %v1216
      %1460 = vmatprep.subr.mxu0 %v1225
      %1461 = vmatpush1.msra.mxu0 %v1224
      %1462 = vmatprep.subr.mxu0 0.0
      %1463 = vmatpush1.msra.mxu0 0.0
      %1464 = vmatprep.subr.mxu0 0.0
      %1465 = vmatpush1.msra.mxu0 0.0
      %1466 = vmatprep.subr.mxu0 0.0
      %1467 = vmatpush1.msra.mxu0 0.0
      %1468 = vmatprep.subr.mxu0 0.0
      %1469 = vmatpush1.msra.mxu0 0.0
      %1470 = vmatprep.subr.mxu0 0.0
      %1471 = vmatpush1.msra.mxu0 0.0
      %1472 = vmatprep.subr.mxu0 0.0
      %1473 = vmatpush1.msra.mxu0 0.0
      %1474 = vmatprep.subr.mxu0 0.0
      %1475 = vmatpush1.msra.mxu0 0.0
      %1476 = vmatprep.subr.mxu0 0.0
      %1477 = vmatpush1.msra.mxu0 0.0
      %1478 = vmatprep.subr.mxu0 0.0
      %1479 = vmatpush1.msra.mxu0 0.0
      %1480 = vmatprep.subr.mxu0 0.0
      %1481 = vmatpush1.msra.mxu0 0.0
      %1482 = vmatprep.subr.mxu0 0.0
      %1483 = vmatpush1.msra.mxu0 0.0
      %1484 = vmatprep.subr.mxu0 0.0
      %1485 = vmatpush1.msra.mxu0 0.0
      %1486 = vmatprep.subr.mxu0 0.0
      %1487 = vmatpush1.msra.mxu0 0.0
      %1488 = vmatprep.subr.mxu0 0.0
      %1489 = vmatpush1.msra.mxu0 0.0
      %1490 = vmatprep.subr.mxu0 0.0
      %1491 = vmatpush1.msra.mxu0 0.0
      %1492 = vmatprep.subr.mxu0 0.0
      %1493 = vmatpush1.msra.mxu0 0.0
      %1494 = vmatprep.subr.mxu0 0.0
      %1495 = vmatpush1.msra.mxu0 0.0
      %1496 = vmatprep.subr.mxu0 0.0
      %1497 = vmatpush1.msra.mxu0 0.0
      %1498 = vmatprep.subr.mxu0 0.0
      %1499 = vmatpush1.msra.mxu0 0.0
      %1500 = vmatprep.subr.mxu0 0.0
      %1501 = vmatpush1.msra.mxu0 0.0
      %1502 = vmatprep.subr.mxu0 0.0
      %1503 = vmatpush1.msra.mxu0 0.0
      %1504 = vmatprep.subr.mxu0 0.0
      %1505 = vmatpush1.msra.mxu0 0.0
      %1506 = vmatprep.subr.mxu0 0.0
      %1507 = vmatpush1.msra.mxu0 0.0
      %1508 = vmatprep.subr.mxu0 0.0
      %1509 = vmatpush1.msra.mxu0 0.0
      %1510 = vmatprep.subr.mxu0 0.0
      %1511 = vmatpush1.msra.mxu0 0.0
      %1512 = vmatprep.subr.mxu0 0.0
      %1513 = vmatpush1.msra.mxu0 0.0
      %1514 = vmatprep.subr.mxu0 0.0
      %1515 = vmatpush1.msra.mxu0 0.0
      %1516 = vmatprep.subr.mxu0 0.0
      %1517 = vmatpush1.msra.mxu0 0.0
      %1518 = vmatprep.subr.mxu0 0.0
      %1519 = vmatpush1.msra.mxu0 0.0
      %1520 = vmatprep.subr.mxu0 0.0
      %1521 = vmatpush1.msra.mxu0 0.0
      %1522 = vmatprep.mubr.f32.mxu0 0.0
      %1523 = vmatmul.mubr.f32.gmra.mrb[0].mxu0 %v1243
      %v1524 = vpop.f32.mrb[0].mxu0
      %v1525 = vadd.f32 0.0, %v1524
      %v1526 = vpop.f32.mrb[0].mxu0
      %v1527 = vadd.f32 0.0, %v1526
      %1528 = vdwg.mxu0
      %v1529 = vmul.f32 %v1312, %v841
      %v1530 = vmul.f32 %v1314, %v841
      %v1531 = vmul.f32 %v1383, %v841
      %v1532 = vmul.f32 %v1385, %v841
      %v1533 = vmul.f32 %v1454, %v841
      %v1534 = vmul.f32 %v1456, %v841
      %v1535 = vmul.f32 %v1525, %v841
      %v1536 = vmul.f32 %v1527, %v841
      %v1537 = vadd.f32 %v1529, %v854
      %v1538 = vadd.f32 %v1530, %v854
      %v1539 = vadd.f32 %v1531, %v854
      %v1540 = vadd.f32 %v1532, %v854
      %v1541 = vadd.f32 %v1533, %v854
      %v1542 = vadd.f32 %v1534, %v854
      %v1543 = vadd.f32 %v1535, %v854
      %v1544 = vadd.f32 %v1536, %v854
      %v1545 = vtanh.pop %v1537
      %v1546 = vtanh.pop %v1538
      %v1547 = vtanh.pop %v1539
      %v1548 = vtanh.pop %v1540
      %v1549 = vtanh.pop %v1541
      %v1550 = vtanh.pop %v1542
      %v1551 = vtanh.pop %v1543
      %v1552 = vtanh.pop %v1544
      %v1561 = vcombine.low %v1545, %v1546
      %v1562 = vcombine.low %v1547, %v1548
      %v1563 = vcombine.low %v1549, %v1550
      %v1564 = vcombine.low %v1551, %v1552
      %s1569 = scalar_lea.vmem %s224, 32
      %1570 = vst [vmem:[%s1569] sm:$0x77] %v1561
      %1571 = vst [vmem:[%s1569 + $0x8] sm:$0x77] %v1562
      %1572 = vst [vmem:[%s1569 + $0x10] sm:$0x77] %v1563
      %1573 = vst [vmem:[%s1569 + $0x18] sm:$0x77] %v1564
      %v1574 = vld [vmem:[%s219] sm:$0xff]
      %v1575 = vld [vmem:[%s219 + $0x8] sm:$0xff]
      %v1576 = vld [vmem:[%s219 + $0x10] sm:$0xff]
      %v1577 = vld [vmem:[%s219 + $0x18] sm:$0xff]
      %v1578 = vld [vmem:[%s219 + $0x20] sm:$0xf]
      %v1579 = vld [vmem:[%s2] ss:$2 sm:$0xff]
      %v1581 = vlaneseq
      %v1582 = vshrl.u32 %v1581, 7
      %v1583 = vsub.s32 0, %v1582
      %v1584 = vrot.slane %v1579, %v1583
      %v1585 = vlaneseq
      %v1586 = vshrl.u32 %v1585, 7
      %v1587 = vsub.s32 1, %v1586
      %v1588 = vrot.slane %v1579, %v1587
      %v1589 = vlaneseq
      %v1590 = vshrl.u32 %v1589, 7
      %v1591 = vsub.s32 2, %v1590
      %v1592 = vrot.slane %v1579, %v1591
      %v1593 = vlaneseq
      %v1594 = vshrl.u32 %v1593, 7
      %v1595 = vsub.s32 3, %v1594
      %v1596 = vrot.slane %v1579, %v1595
      %v1597 = vlaneseq
      %v1598 = vshrl.u32 %v1597, 7
      %v1599 = vsub.s32 4, %v1598
      %v1600 = vrot.slane %v1579, %v1599
      %v1601 = vlaneseq
      %v1602 = vshrl.u32 %v1601, 7
      %v1603 = vsub.s32 5, %v1602
      %v1604 = vrot.slane %v1579, %v1603
      %v1605 = vlaneseq
      %v1606 = vshrl.u32 %v1605, 7
      %v1607 = vsub.s32 6, %v1606
      %v1608 = vrot.slane %v1579, %v1607
      %v1609 = vlaneseq
      %v1610 = vshrl.u32 %v1609, 7
      %v1611 = vsub.s32 7, %v1610
      %v1612 = vrot.slane %v1579, %v1611
      %v1613 = vcombine.low %v1584, %v1588
      %v1614 = vcombine.low %v1592, %v1596
      %v1615 = vcombine.low %v1600, %v1604
      %v1616 = vcombine.low %v1608, %v1612
      %1617 = vrot.lane.b32.xlu0 %v1613, 32
      %v1618 = vpop.permute.xlu0 %1617
      %1619 = vrot.lane.b32.xlu0 %v1614, 32
      %v1620 = vpop.permute.xlu0 %1619
      %1621 = vrot.lane.b32.xlu0 %v1615, 32
      %v1622 = vpop.permute.xlu0 %1621
      %1623 = vrot.lane.b32.xlu0 %v1616, 32
      %v1624 = vpop.permute.xlu0 %1623
      %v1625 = vrot.slane %v1618, 4
      %v1626 = vrot.slane %v1620, 4
      %v1627 = vrot.slane %v1622, 4
      %v1628 = vrot.slane %v1624, 4
      %v1629 = vsel %vm282, %v1625, %v1618
      %v1630 = vsel %vm284, %v1625, %v1626
      %v1631 = vsel %vm282, %v1630, %v1620
      %v1632 = vsel %vm284, %v1626, %v1627
      %v1633 = vsel %vm282, %v1632, %v1622
      %v1634 = vsel %vm284, %v1627, %v1628
      %v1635 = vsel %vm282, %v1634, %v1624
      %v1641 = vmul.f32 %v1574, %v1629
      %v1642 = vmul.f32 %v1575, %v1631
      %v1643 = vmul.f32 %v1576, %v1633
      %v1644 = vmul.f32 %v1577, %v1635
      %v1645 = vmul.f32 %v1578, %v1628
      %1646 = vrot.lane.b32.xlu0 %v1613, 64
      %v1647 = vpop.permute.xlu0 %1646
      %1648 = vrot.lane.b32.xlu0 %v1614, 64
      %v1649 = vpop.permute.xlu0 %1648
      %1650 = vrot.lane.b32.xlu0 %v1615, 64
      %v1651 = vpop.permute.xlu0 %1650
      %1652 = vrot.lane.b32.xlu0 %v1616, 64
      %v1653 = vpop.permute.xlu0 %1652
      %v1654 = vrot.slane %v1647, 4
      %v1655 = vrot.slane %v1649, 4
      %v1656 = vrot.slane %v1651, 4
      %v1657 = vrot.slane %v1653, 4
      %vm1658 = vcmask 523264
      %v1659 = vsel %vm1658, %v1654, %v1647
      %v1660 = vsel %vm284, %v1654, %v1655
      %v1661 = vsel %vm1658, %v1660, %v1649
      %v1662 = vsel %vm284, %v1655, %v1656
      %v1663 = vsel %vm1658, %v1662, %v1651
      %v1664 = vsel %vm284, %v1656, %v1657
      %v1665 = vsel %vm1658, %v1664, %v1653
      %v1671 = vmul.f32 %v1574, %v1659
      %v1672 = vmul.f32 %v1575, %v1661
      %v1673 = vmul.f32 %v1576, %v1663
      %v1674 = vmul.f32 %v1577, %v1665
      %v1675 = vmul.f32 %v1578, %v1657
      %v1680 = vcombine.high %v1574, %v1574
      %v1681 = vcombine.high %v1575, %v1575
      %v1682 = vcombine.high %v1576, %v1576
      %v1683 = vcombine.high %v1577, %v1577
      %v1693 = vcombine.low %v1641, %v1641
      %v1694 = vcombine.low %v1642, %v1642
      %v1695 = vcombine.low %v1643, %v1643
      %v1696 = vcombine.low %v1644, %v1644
      %v1697 = vcombine.low %v1645, %v1645
      %1698 = vrot.lane.b32.xlu0 %v1693, 1
      %v1699 = vpop.permute.xlu0 %1698
      %1700 = vrot.lane.b32.xlu0 %v1641, 1
      %v1701 = vpop.permute.xlu0 %1700
      %1702 = vrot.lane.b32.xlu0 %v1694, 1
      %v1703 = vpop.permute.xlu0 %1702
      %1704 = vrot.lane.b32.xlu0 %v1642, 1
      %v1705 = vpop.permute.xlu0 %1704
      %1706 = vrot.lane.b32.xlu0 %v1695, 1
      %v1707 = vpop.permute.xlu0 %1706
      %1708 = vrot.lane.b32.xlu0 %v1643, 1
      %v1709 = vpop.permute.xlu0 %1708
      %1710 = vrot.lane.b32.xlu0 %v1696, 1
      %v1711 = vpop.permute.xlu0 %1710
      %1712 = vrot.lane.b32.xlu0 %v1644, 1
      %v1713 = vpop.permute.xlu0 %1712
      %1714 = vrot.lane.b32.xlu0 %v1697, 1
      %v1715 = vpop.permute.xlu0 %1714
      %v1716 = vsel %vm349, %v1699, %v1701
      %v1717 = vsel %vm349, %v1701, %v1703
      %v1718 = vsel %vm349, %v1703, %v1705
      %v1719 = vsel %vm349, %v1705, %v1707
      %v1720 = vsel %vm349, %v1707, %v1709
      %v1721 = vsel %vm349, %v1709, %v1711
      %v1722 = vsel %vm349, %v1711, %v1713
      %v1723 = vsel %vm349, %v1713, %v1715
      %1734 = vrot.lane.b32.xlu0 %v1574, 96
      %v1735 = vpop.permute.xlu0 %1734
      %1736 = vrot.lane.b32.xlu0 %v1680, 96
      %v1737 = vpop.permute.xlu0 %1736
      %1738 = vrot.lane.b32.xlu0 %v1575, 96
      %v1739 = vpop.permute.xlu0 %1738
      %1740 = vrot.lane.b32.xlu0 %v1681, 96
      %v1741 = vpop.permute.xlu0 %1740
      %1742 = vrot.lane.b32.xlu0 %v1576, 96
      %v1743 = vpop.permute.xlu0 %1742
      %1744 = vrot.lane.b32.xlu0 %v1682, 96
      %v1745 = vpop.permute.xlu0 %1744
      %1746 = vrot.lane.b32.xlu0 %v1577, 96
      %v1747 = vpop.permute.xlu0 %1746
      %1748 = vrot.lane.b32.xlu0 %v1683, 96
      %v1749 = vpop.permute.xlu0 %1748
      %1750 = vrot.lane.b32.xlu0 %v1578, 96
      %v1751 = vpop.permute.xlu0 %1750
      %vm1752 = vcmask 785408
      %v1753 = vsel %vm1752, %v1735, %v1737
      %v1754 = vsel %vm1752, %v1737, %v1739
      %v1755 = vsel %vm1752, %v1739, %v1741
      %v1756 = vsel %vm1752, %v1741, %v1743
      %v1757 = vsel %vm1752, %v1743, %v1745
      %v1758 = vsel %vm1752, %v1745, %v1747
      %v1759 = vsel %vm1752, %v1747, %v1749
      %v1760 = vsel %vm1752, %v1749, %v1751
      %v1775 = vcombine.low %v1671, %v1671
      %v1776 = vcombine.low %v1672, %v1672
      %v1777 = vcombine.low %v1673, %v1673
      %v1778 = vcombine.low %v1674, %v1674
      %v1779 = vcombine.low %v1675, %v1675
      %1780 = vrot.lane.b32.xlu0 %v1775, 97
      %v1781 = vpop.permute.xlu0 %1780
      %1782 = vrot.lane.b32.xlu0 %v1671, 97
      %v1783 = vpop.permute.xlu0 %1782
      %1784 = vrot.lane.b32.xlu0 %v1776, 97
      %v1785 = vpop.permute.xlu0 %1784
      %1786 = vrot.lane.b32.xlu0 %v1672, 97
      %v1787 = vpop.permute.xlu0 %1786
      %1788 = vrot.lane.b32.xlu0 %v1777, 97
      %v1789 = vpop.permute.xlu0 %1788
      %1790 = vrot.lane.b32.xlu0 %v1673, 97
      %v1791 = vpop.permute.xlu0 %1790
      %1792 = vrot.lane.b32.xlu0 %v1778, 97
      %v1793 = vpop.permute.xlu0 %1792
      %1794 = vrot.lane.b32.xlu0 %v1674, 97
      %v1795 = vpop.permute.xlu0 %1794
      %1796 = vrot.lane.b32.xlu0 %v1779, 97
      %v1797 = vpop.permute.xlu0 %1796
      %vm1798 = vcmask 793600
      %v1799 = vsel %vm1798, %v1781, %v1783
      %v1800 = vsel %vm1798, %v1783, %v1785
      %v1801 = vsel %vm1798, %v1785, %v1787
      %v1802 = vsel %vm1798, %v1787, %v1789
      %v1803 = vsel %vm1798, %v1789, %v1791
      %v1804 = vsel %vm1798, %v1791, %v1793
      %v1805 = vsel %vm1798, %v1793, %v1795
      %v1806 = vsel %vm1798, %v1795, %v1797
      %v1816 = vsel %vm284, %v1574, %v1699
      %v1817 = vsel %vm284, %v1680, %v1716
      %v1818 = vsel %vm284, %v1575, %v1717
      %v1819 = vsel %vm284, %v1681, %v1718
      %v1820 = vsel %vm284, %v1576, %v1719
      %v1821 = vsel %vm284, %v1682, %v1720
      %v1822 = vsel %vm284, %v1577, %v1721
      %v1823 = vsel %vm284, %v1683, %v1722
      %v1824 = vsel %vm284, %v1578, %v1723
      %v1825 = vsel %vm284, %v1753, %v1799
      %v1826 = vsel %vm284, %v1754, %v1800
      %v1827 = vsel %vm284, %v1755, %v1801
      %v1828 = vsel %vm284, %v1756, %v1802
      %v1829 = vsel %vm284, %v1757, %v1803
      %v1830 = vsel %vm284, %v1758, %v1804
      %v1831 = vsel %vm284, %v1759, %v1805
      %v1832 = vsel %vm284, %v1760, %v1806
      %v1833 = vsel %vm284, %v1751, %v1797
      %s1834 = scalar_lea.vmem %s1, 8
      %v1835 = vld [vmem:[%s1834] sm:$0x7]
      %1854 = vrot.lane.b32.xlu0 %v1816, 95
      %v1855 = vpop.permute.xlu0 %1854
      %1856 = vrot.lane.b32.xlu0 %v1817, 95
      %v1857 = vpop.permute.xlu0 %1856
      %1858 = vrot.lane.b32.xlu0 %v1818, 95
      %v1859 = vpop.permute.xlu0 %1858
      %1860 = vrot.lane.b32.xlu0 %v1819, 95
      %v1861 = vpop.permute.xlu0 %1860
      %1862 = vrot.lane.b32.xlu0 %v1820, 95
      %v1863 = vpop.permute.xlu0 %1862
      %1864 = vrot.lane.b32.xlu0 %v1821, 95
      %v1865 = vpop.permute.xlu0 %1864
      %1866 = vrot.lane.b32.xlu0 %v1822, 95
      %v1867 = vpop.permute.xlu0 %1866
      %1868 = vrot.lane.b32.xlu0 %v1823, 95
      %v1869 = vpop.permute.xlu0 %1868
      %1870 = vrot.lane.b32.xlu0 %v1824, 95
      %v1871 = vpop.permute.xlu0 %1870
      %1872 = vrot.lane.b32.xlu0 %v1825, 95
      %v1873 = vpop.permute.xlu0 %1872
      %1874 = vrot.lane.b32.xlu0 %v1826, 95
      %v1875 = vpop.permute.xlu0 %1874
      %1876 = vrot.lane.b32.xlu0 %v1827, 95
      %v1877 = vpop.permute.xlu0 %1876
      %1878 = vrot.lane.b32.xlu0 %v1828, 95
      %v1879 = vpop.permute.xlu0 %1878
      %1880 = vrot.lane.b32.xlu0 %v1829, 95
      %v1881 = vpop.permute.xlu0 %1880
      %1882 = vrot.lane.b32.xlu0 %v1830, 95
      %v1883 = vpop.permute.xlu0 %1882
      %1884 = vrot.lane.b32.xlu0 %v1831, 95
      %v1885 = vpop.permute.xlu0 %1884
      %1886 = vrot.lane.b32.xlu0 %v1832, 95
      %v1887 = vpop.permute.xlu0 %1886
      %1888 = vrot.lane.b32.xlu0 %v1833, 95
      %v1889 = vpop.permute.xlu0 %1888
      %v1890 = vsel %vm517, %v1855, %v1857
      %v1891 = vsel %vm517, %v1857, %v1859
      %v1892 = vsel %vm517, %v1859, %v1861
      %v1893 = vsel %vm517, %v1861, %v1863
      %v1894 = vsel %vm517, %v1863, %v1865
      %v1895 = vsel %vm517, %v1865, %v1867
      %v1896 = vsel %vm517, %v1867, %v1869
      %v1897 = vsel %vm517, %v1869, %v1871
      %v1898 = vsel %vm517, %v1873, %v1875
      %v1899 = vsel %vm517, %v1875, %v1877
      %v1900 = vsel %vm517, %v1877, %v1879
      %v1901 = vsel %vm517, %v1879, %v1881
      %v1902 = vsel %vm517, %v1881, %v1883
      %v1903 = vsel %vm517, %v1883, %v1885
      %v1904 = vsel %vm517, %v1885, %v1887
      %v1905 = vsel %vm517, %v1887, %v1889
      %v1923 = vsel %vm550, %v1835, 0
      %1925 = vmatprep.subr.mxu0 %v1891
      %1926 = vmatpush1.msra.mxu0 %v1890
      %1927 = vmatprep.subr.mxu0 %v1899
      %1928 = vmatpush1.msra.mxu0 %v1898
      %1929 = vmatprep.subr.mxu0 0.0
      %1930 = vmatpush1.msra.mxu0 0.0
      %1931 = vmatprep.subr.mxu0 0.0
      %1932 = vmatpush1.msra.mxu0 0.0
      %1933 = vmatprep.subr.mxu0 0.0
      %1934 = vmatpush1.msra.mxu0 0.0
      %1935 = vmatprep.subr.mxu0 0.0
      %1936 = vmatpush1.msra.mxu0 0.0
      %1937 = vmatprep.subr.mxu0 0.0
      %1938 = vmatpush1.msra.mxu0 0.0
      %1939 = vmatprep.subr.mxu0 0.0
      %1940 = vmatpush1.msra.mxu0 0.0
      %1941 = vmatprep.subr.mxu0 0.0
      %1942 = vmatpush1.msra.mxu0 0.0
      %1943 = vmatprep.subr.mxu0 0.0
      %1944 = vmatpush1.msra.mxu0 0.0
      %1945 = vmatprep.subr.mxu0 0.0
      %1946 = vmatpush1.msra.mxu0 0.0
      %1947 = vmatprep.subr.mxu0 0.0
      %1948 = vmatpush1.msra.mxu0 0.0
      %1949 = vmatprep.subr.mxu0 0.0
      %1950 = vmatpush1.msra.mxu0 0.0
      %1951 = vmatprep.subr.mxu0 0.0
      %1952 = vmatpush1.msra.mxu0 0.0
      %1953 = vmatprep.subr.mxu0 0.0
      %1954 = vmatpush1.msra.mxu0 0.0
      %1955 = vmatprep.subr.mxu0 0.0
      %1956 = vmatpush1.msra.mxu0 0.0
      %1957 = vmatprep.subr.mxu0 0.0
      %1958 = vmatpush1.msra.mxu0 0.0
      %1959 = vmatprep.subr.mxu0 0.0
      %1960 = vmatpush1.msra.mxu0 0.0
      %1961 = vmatprep.subr.mxu0 0.0
      %1962 = vmatpush1.msra.mxu0 0.0
      %1963 = vmatprep.subr.mxu0 0.0
      %1964 = vmatpush1.msra.mxu0 0.0
      %1965 = vmatprep.subr.mxu0 0.0
      %1966 = vmatpush1.msra.mxu0 0.0
      %1967 = vmatprep.subr.mxu0 0.0
      %1968 = vmatpush1.msra.mxu0 0.0
      %1969 = vmatprep.subr.mxu0 0.0
      %1970 = vmatpush1.msra.mxu0 0.0
      %1971 = vmatprep.subr.mxu0 0.0
      %1972 = vmatpush1.msra.mxu0 0.0
      %1973 = vmatprep.subr.mxu0 0.0
      %1974 = vmatpush1.msra.mxu0 0.0
      %1975 = vmatprep.subr.mxu0 0.0
      %1976 = vmatpush1.msra.mxu0 0.0
      %1977 = vmatprep.subr.mxu0 0.0
      %1978 = vmatpush1.msra.mxu0 0.0
      %1979 = vmatprep.subr.mxu0 0.0
      %1980 = vmatpush1.msra.mxu0 0.0
      %1981 = vmatprep.subr.mxu0 0.0
      %1982 = vmatpush1.msra.mxu0 0.0
      %1983 = vmatprep.subr.mxu0 0.0
      %1984 = vmatpush1.msra.mxu0 0.0
      %1985 = vmatprep.subr.mxu0 0.0
      %1986 = vmatpush1.msra.mxu0 0.0
      %1987 = vmatprep.subr.mxu0 0.0
      %1988 = vmatpush1.msra.mxu0 0.0
      %1989 = vmatprep.mubr.f32.mxu0 0.0
      %1990 = vmatmul.mubr.f32.gmra.mrb[0].mxu0 %v1923
      %v1991 = vpop.f32.mrb[0].mxu0
      %v1992 = vadd.f32 0.0, %v1991
      %v1993 = vpop.f32.mrb[0].mxu0
      %v1994 = vadd.f32 0.0, %v1993
      %1995 = vdwg.mxu0
      %1996 = vmatprep.subr.mxu0 %v1893
      %1997 = vmatpush1.msra.mxu0 %v1892
      %1998 = vmatprep.subr.mxu0 %v1901
      %1999 = vmatpush1.msra.mxu0 %v1900
      %2000 = vmatprep.subr.mxu0 0.0
      %2001 = vmatpush1.msra.mxu0 0.0
      %2002 = vmatprep.subr.mxu0 0.0
      %2003 = vmatpush1.msra.mxu0 0.0
      %2004 = vmatprep.subr.mxu0 0.0
      %2005 = vmatpush1.msra.mxu0 0.0
      %2006 = vmatprep.subr.mxu0 0.0
      %2007 = vmatpush1.msra.mxu0 0.0
      %2008 = vmatprep.subr.mxu0 0.0
      %2009 = vmatpush1.msra.mxu0 0.0
      %2010 = vmatprep.subr.mxu0 0.0
      %2011 = vmatpush1.msra.mxu0 0.0
      %2012 = vmatprep.subr.mxu0 0.0
      %2013 = vmatpush1.msra.mxu0 0.0
      %2014 = vmatprep.subr.mxu0 0.0
      %2015 = vmatpush1.msra.mxu0 0.0
      %2016 = vmatprep.subr.mxu0 0.0
      %2017 = vmatpush1.msra.mxu0 0.0
      %2018 = vmatprep.subr.mxu0 0.0
      %2019 = vmatpush1.msra.mxu0 0.0
      %2020 = vmatprep.subr.mxu0 0.0
      %2021 = vmatpush1.msra.mxu0 0.0
      %2022 = vmatprep.subr.mxu0 0.0
      %2023 = vmatpush1.msra.mxu0 0.0
      %2024 = vmatprep.subr.mxu0 0.0
      %2025 = vmatpush1.msra.mxu0 0.0
      %2026 = vmatprep.subr.mxu0 0.0
      %2027 = vmatpush1.msra.mxu0 0.0
      %2028 = vmatprep.subr.mxu0 0.0
      %2029 = vmatpush1.msra.mxu0 0.0
      %2030 = vmatprep.subr.mxu0 0.0
      %2031 = vmatpush1.msra.mxu0 0.0
      %2032 = vmatprep.subr.mxu0 0.0
      %2033 = vmatpush1.msra.mxu0 0.0
      %2034 = vmatprep.subr.mxu0 0.0
      %2035 = vmatpush1.msra.mxu0 0.0
      %2036 = vmatprep.subr.mxu0 0.0
      %2037 = vmatpush1.msra.mxu0 0.0
      %2038 = vmatprep.subr.mxu0 0.0
      %2039 = vmatpush1.msra.mxu0 0.0
      %2040 = vmatprep.subr.mxu0 0.0
      %2041 = vmatpush1.msra.mxu0 0.0
      %2042 = vmatprep.subr.mxu0 0.0
      %2043 = vmatpush1.msra.mxu0 0.0
      %2044 = vmatprep.subr.mxu0 0.0
      %2045 = vmatpush1.msra.mxu0 0.0
      %2046 = vmatprep.subr.mxu0 0.0
      %2047 = vmatpush1.msra.mxu0 0.0
      %2048 = vmatprep.subr.mxu0 0.0
      %2049 = vmatpush1.msra.mxu0 0.0
      %2050 = vmatprep.subr.mxu0 0.0
      %2051 = vmatpush1.msra.mxu0 0.0
      %2052 = vmatprep.subr.mxu0 0.0
      %2053 = vmatpush1.msra.mxu0 0.0
      %2054 = vmatprep.subr.mxu0 0.0
      %2055 = vmatpush1.msra.mxu0 0.0
      %2056 = vmatprep.subr.mxu0 0.0
      %2057 = vmatpush1.msra.mxu0 0.0
      %2058 = vmatprep.subr.mxu0 0.0
      %2059 = vmatpush1.msra.mxu0 0.0
      %2060 = vmatprep.mubr.f32.mxu0 0.0
      %2061 = vmatmul.mubr.f32.gmra.mrb[0].mxu0 %v1923
      %v2062 = vpop.f32.mrb[0].mxu0
      %v2063 = vadd.f32 0.0, %v2062
      %v2064 = vpop.f32.mrb[0].mxu0
      %v2065 = vadd.f32 0.0, %v2064
      %2066 = vdwg.mxu0
      %2067 = vmatprep.subr.mxu0 %v1895
      %2068 = vmatpush1.msra.mxu0 %v1894
      %2069 = vmatprep.subr.mxu0 %v1903
      %2070 = vmatpush1.msra.mxu0 %v1902
      %2071 = vmatprep.subr.mxu0 0.0
      %2072 = vmatpush1.msra.mxu0 0.0
      %2073 = vmatprep.subr.mxu0 0.0
      %2074 = vmatpush1.msra.mxu0 0.0
      %2075 = vmatprep.subr.mxu0 0.0
      %2076 = vmatpush1.msra.mxu0 0.0
      %2077 = vmatprep.subr.mxu0 0.0
      %2078 = vmatpush1.msra.mxu0 0.0
      %2079 = vmatprep.subr.mxu0 0.0
      %2080 = vmatpush1.msra.mxu0 0.0
      %2081 = vmatprep.subr.mxu0 0.0
      %2082 = vmatpush1.msra.mxu0 0.0
      %2083 = vmatprep.subr.mxu0 0.0
      %2084 = vmatpush1.msra.mxu0 0.0
      %2085 = vmatprep.subr.mxu0 0.0
      %2086 = vmatpush1.msra.mxu0 0.0
      %2087 = vmatprep.subr.mxu0 0.0
      %2088 = vmatpush1.msra.mxu0 0.0
      %2089 = vmatprep.subr.mxu0 0.0
      %2090 = vmatpush1.msra.mxu0 0.0
      %2091 = vmatprep.subr.mxu0 0.0
      %2092 = vmatpush1.msra.mxu0 0.0
      %2093 = vmatprep.subr.mxu0 0.0
      %2094 = vmatpush1.msra.mxu0 0.0
      %2095 = vmatprep.subr.mxu0 0.0
      %2096 = vmatpush1.msra.mxu0 0.0
      %2097 = vmatprep.subr.mxu0 0.0
      %2098 = vmatpush1.msra.mxu0 0.0
      %2099 = vmatprep.subr.mxu0 0.0
      %2100 = vmatpush1.msra.mxu0 0.0
      %2101 = vmatprep.subr.mxu0 0.0
      %2102 = vmatpush1.msra.mxu0 0.0
      %2103 = vmatprep.subr.mxu0 0.0
      %2104 = vmatpush1.msra.mxu0 0.0
      %2105 = vmatprep.subr.mxu0 0.0
      %2106 = vmatpush1.msra.mxu0 0.0
      %2107 = vmatprep.subr.mxu0 0.0
      %2108 = vmatpush1.msra.mxu0 0.0
      %2109 = vmatprep.subr.mxu0 0.0
      %2110 = vmatpush1.msra.mxu0 0.0
      %2111 = vmatprep.subr.mxu0 0.0
      %2112 = vmatpush1.msra.mxu0 0.0
      %2113 = vmatprep.subr.mxu0 0.0
      %2114 = vmatpush1.msra.mxu0 0.0
      %2115 = vmatprep.subr.mxu0 0.0
      %2116 = vmatpush1.msra.mxu0 0.0
      %2117 = vmatprep.subr.mxu0 0.0
      %2118 = vmatpush1.msra.mxu0 0.0
      %2119 = vmatprep.subr.mxu0 0.0
      %2120 = vmatpush1.msra.mxu0 0.0
      %2121 = vmatprep.subr.mxu0 0.0
      %2122 = vmatpush1.msra.mxu0 0.0
      %2123 = vmatprep.subr.mxu0 0.0
      %2124 = vmatpush1.msra.mxu0 0.0
      %2125 = vmatprep.subr.mxu0 0.0
      %2126 = vmatpush1.msra.mxu0 0.0
      %2127 = vmatprep.subr.mxu0 0.0
      %2128 = vmatpush1.msra.mxu0 0.0
      %2129 = vmatprep.subr.mxu0 0.0
      %2130 = vmatpush1.msra.mxu0 0.0
      %2131 = vmatprep.mubr.f32.mxu0 0.0
      %2132 = vmatmul.mubr.f32.gmra.mrb[0].mxu0 %v1923
      %v2133 = vpop.f32.mrb[0].mxu0
      %v2134 = vadd.f32 0.0, %v2133
      %v2135 = vpop.f32.mrb[0].mxu0
      %v2136 = vadd.f32 0.0, %v2135
      %2137 = vdwg.mxu0
      %2138 = vmatprep.subr.mxu0 %v1897
      %2139 = vmatpush1.msra.mxu0 %v1896
      %2140 = vmatprep.subr.mxu0 %v1905
      %2141 = vmatpush1.msra.mxu0 %v1904
      %2142 = vmatprep.subr.mxu0 0.0
      %2143 = vmatpush1.msra.mxu0 0.0
      %2144 = vmatprep.subr.mxu0 0.0
      %2145 = vmatpush1.msra.mxu0 0.0
      %2146 = vmatprep.subr.mxu0 0.0
      %2147 = vmatpush1.msra.mxu0 0.0
      %2148 = vmatprep.subr.mxu0 0.0
      %2149 = vmatpush1.msra.mxu0 0.0
      %2150 = vmatprep.subr.mxu0 0.0
      %2151 = vmatpush1.msra.mxu0 0.0
      %2152 = vmatprep.subr.mxu0 0.0
      %2153 = vmatpush1.msra.mxu0 0.0
      %2154 = vmatprep.subr.mxu0 0.0
      %2155 = vmatpush1.msra.mxu0 0.0
      %2156 = vmatprep.subr.mxu0 0.0
      %2157 = vmatpush1.msra.mxu0 0.0
      %2158 = vmatprep.subr.mxu0 0.0
      %2159 = vmatpush1.msra.mxu0 0.0
      %2160 = vmatprep.subr.mxu0 0.0
      %2161 = vmatpush1.msra.mxu0 0.0
      %2162 = vmatprep.subr.mxu0 0.0
      %2163 = vmatpush1.msra.mxu0 0.0
      %2164 = vmatprep.subr.mxu0 0.0
      %2165 = vmatpush1.msra.mxu0 0.0
      %2166 = vmatprep.subr.mxu0 0.0
      %2167 = vmatpush1.msra.mxu0 0.0
      %2168 = vmatprep.subr.mxu0 0.0
      %2169 = vmatpush1.msra.mxu0 0.0
      %2170 = vmatprep.subr.mxu0 0.0
      %2171 = vmatpush1.msra.mxu0 0.0
      %2172 = vmatprep.subr.mxu0 0.0
      %2173 = vmatpush1.msra.mxu0 0.0
      %2174 = vmatprep.subr.mxu0 0.0
      %2175 = vmatpush1.msra.mxu0 0.0
      %2176 = vmatprep.subr.mxu0 0.0
      %2177 = vmatpush1.msra.mxu0 0.0
      %2178 = vmatprep.subr.mxu0 0.0
      %2179 = vmatpush1.msra.mxu0 0.0
      %2180 = vmatprep.subr.mxu0 0.0
      %2181 = vmatpush1.msra.mxu0 0.0
      %2182 = vmatprep.subr.mxu0 0.0
      %2183 = vmatpush1.msra.mxu0 0.0
      %2184 = vmatprep.subr.mxu0 0.0
      %2185 = vmatpush1.msra.mxu0 0.0
      %2186 = vmatprep.subr.mxu0 0.0
      %2187 = vmatpush1.msra.mxu0 0.0
      %2188 = vmatprep.subr.mxu0 0.0
      %2189 = vmatpush1.msra.mxu0 0.0
      %2190 = vmatprep.subr.mxu0 0.0
      %2191 = vmatpush1.msra.mxu0 0.0
      %2192 = vmatprep.subr.mxu0 0.0
      %2193 = vmatpush1.msra.mxu0 0.0
      %2194 = vmatprep.subr.mxu0 0.0
      %2195 = vmatpush1.msra.mxu0 0.0
      %2196 = vmatprep.subr.mxu0 0.0
      %2197 = vmatpush1.msra.mxu0 0.0
      %2198 = vmatprep.subr.mxu0 0.0
      %2199 = vmatpush1.msra.mxu0 0.0
      %2200 = vmatprep.subr.mxu0 0.0
      %2201 = vmatpush1.msra.mxu0 0.0
      %2202 = vmatprep.mubr.f32.mxu0 0.0
      %2203 = vmatmul.mubr.f32.gmra.mrb[0].mxu0 %v1923
      %v2204 = vpop.f32.mrb[0].mxu0
      %v2205 = vadd.f32 0.0, %v2204
      %v2206 = vpop.f32.mrb[0].mxu0
      %v2207 = vadd.f32 0.0, %v2206
      %2208 = vdwg.mxu0
      %v2209 = vmul.f32 %v1992, %v841
      %v2210 = vmul.f32 %v1994, %v841
      %v2211 = vmul.f32 %v2063, %v841
      %v2212 = vmul.f32 %v2065, %v841
      %v2213 = vmul.f32 %v2134, %v841
      %v2214 = vmul.f32 %v2136, %v841
      %v2215 = vmul.f32 %v2205, %v841
      %v2216 = vmul.f32 %v2207, %v841
      %v2217 = vadd.f32 %v2209, %v854
      %v2218 = vadd.f32 %v2210, %v854
      %v2219 = vadd.f32 %v2211, %v854
      %v2220 = vadd.f32 %v2212, %v854
      %v2221 = vadd.f32 %v2213, %v854
      %v2222 = vadd.f32 %v2214, %v854
      %v2223 = vadd.f32 %v2215, %v854
      %v2224 = vadd.f32 %v2216, %v854
      %v2225 = vtanh.pop %v2217
      %v2226 = vtanh.pop %v2218
      %v2227 = vtanh.pop %v2219
      %v2228 = vtanh.pop %v2220
      %v2229 = vtanh.pop %v2221
      %v2230 = vtanh.pop %v2222
      %v2231 = vtanh.pop %v2223
      %v2232 = vtanh.pop %v2224
      %v2241 = vcombine.low %v2225, %v2226
      %v2242 = vcombine.low %v2227, %v2228
      %v2243 = vcombine.low %v2229, %v2230
      %v2244 = vcombine.low %v2231, %v2232
      %s2249 = scalar_lea.vmem %s224, 64
      %2250 = vst [vmem:[%s2249] sm:$0x77] %v2241
      %2251 = vst [vmem:[%s2249 + $0x8] sm:$0x77] %v2242
      %2252 = vst [vmem:[%s2249 + $0x10] sm:$0x77] %v2243
      %2253 = vst [vmem:[%s2249 + $0x18] sm:$0x77] %v2244
      %v2254 = vld [vmem:[%s219] sm:$0xff]
      %v2255 = vld [vmem:[%s219 + $0x8] sm:$0xff]
      %v2256 = vld [vmem:[%s219 + $0x10] sm:$0xff]
      %v2257 = vld [vmem:[%s219 + $0x18] sm:$0xff]
      %v2258 = vld [vmem:[%s219 + $0x20] sm:$0xf]
      %v2259 = vld [vmem:[%s897] ss:$2 sm:$0xff]
      %v2261 = vlaneseq
      %v2262 = vshrl.u32 %v2261, 7
      %v2263 = vsub.s32 0, %v2262
      %v2264 = vrot.slane %v2259, %v2263
      %v2265 = vlaneseq
      %v2266 = vshrl.u32 %v2265, 7
      %v2267 = vsub.s32 1, %v2266
      %v2268 = vrot.slane %v2259, %v2267
      %v2269 = vlaneseq
      %v2270 = vshrl.u32 %v2269, 7
      %v2271 = vsub.s32 2, %v2270
      %v2272 = vrot.slane %v2259, %v2271
      %v2273 = vlaneseq
      %v2274 = vshrl.u32 %v2273, 7
      %v2275 = vsub.s32 3, %v2274
      %v2276 = vrot.slane %v2259, %v2275
      %v2277 = vlaneseq
      %v2278 = vshrl.u32 %v2277, 7
      %v2279 = vsub.s32 4, %v2278
      %v2280 = vrot.slane %v2259, %v2279
      %v2281 = vlaneseq
      %v2282 = vshrl.u32 %v2281, 7
      %v2283 = vsub.s32 5, %v2282
      %v2284 = vrot.slane %v2259, %v2283
      %v2285 = vlaneseq
      %v2286 = vshrl.u32 %v2285, 7
      %v2287 = vsub.s32 6, %v2286
      %v2288 = vrot.slane %v2259, %v2287
      %v2289 = vlaneseq
      %v2290 = vshrl.u32 %v2289, 7
      %v2291 = vsub.s32 7, %v2290
      %v2292 = vrot.slane %v2259, %v2291
      %v2293 = vcombine.low %v2264, %v2268
      %v2294 = vcombine.low %v2272, %v2276
      %v2295 = vcombine.low %v2280, %v2284
      %v2296 = vcombine.low %v2288, %v2292
      %2297 = vrot.lane.b32.xlu0 %v2293, 34
      %v2298 = vpop.permute.xlu0 %2297
      %2299 = vrot.lane.b32.xlu0 %v2294, 34
      %v2300 = vpop.permute.xlu0 %2299
      %2301 = vrot.lane.b32.xlu0 %v2295, 34
      %v2302 = vpop.permute.xlu0 %2301
      %2303 = vrot.lane.b32.xlu0 %v2296, 34
      %v2304 = vpop.permute.xlu0 %2303
      %v2305 = vrot.slane %v2298, 4
      %v2306 = vrot.slane %v2300, 4
      %v2307 = vrot.slane %v2302, 4
      %v2308 = vrot.slane %v2304, 4
      %v2309 = vsel %vm948, %v2305, %v2298
      %v2310 = vsel %vm284, %v2305, %v2306
      %v2311 = vsel %vm948, %v2310, %v2300
      %v2312 = vsel %vm284, %v2306, %v2307
      %v2313 = vsel %vm948, %v2312, %v2302
      %v2314 = vsel %vm284, %v2307, %v2308
      %v2315 = vsel %vm948, %v2314, %v2304
      %v2321 = vmul.f32 %v2254, %v2309
      %v2322 = vmul.f32 %v2255, %v2311
      %v2323 = vmul.f32 %v2256, %v2313
      %v2324 = vmul.f32 %v2257, %v2315
      %v2325 = vmul.f32 %v2258, %v2308
      %2326 = vrot.lane.b32.xlu0 %v2293, 66
      %v2327 = vpop.permute.xlu0 %2326
      %2328 = vrot.lane.b32.xlu0 %v2294, 66
      %v2329 = vpop.permute.xlu0 %2328
      %2330 = vrot.lane.b32.xlu0 %v2295, 66
      %v2331 = vpop.permute.xlu0 %2330
      %2332 = vrot.lane.b32.xlu0 %v2296, 66
      %v2333 = vpop.permute.xlu0 %2332
      %v2334 = vrot.slane %v2327, 4
      %v2335 = vrot.slane %v2329, 4
      %v2336 = vrot.slane %v2331, 4
      %v2337 = vrot.slane %v2333, 4
      %vm2338 = vcmask 539648
      %v2339 = vsel %vm2338, %v2334, %v2327
      %v2340 = vsel %vm284, %v2334, %v2335
      %v2341 = vsel %vm2338, %v2340, %v2329
      %v2342 = vsel %vm284, %v2335, %v2336
      %v2343 = vsel %vm2338, %v2342, %v2331
      %v2344 = vsel %vm284, %v2336, %v2337
      %v2345 = vsel %vm2338, %v2344, %v2333
      %v2351 = vmul.f32 %v2254, %v2339
      %v2352 = vmul.f32 %v2255, %v2341
      %v2353 = vmul.f32 %v2256, %v2343
      %v2354 = vmul.f32 %v2257, %v2345
      %v2355 = vmul.f32 %v2258, %v2337
      %v2360 = vcombine.high %v2254, %v2254
      %v2361 = vcombine.high %v2255, %v2255
      %v2362 = vcombine.high %v2256, %v2256
      %v2363 = vcombine.high %v2257, %v2257
      %v2373 = vcombine.low %v2321, %v2321
      %v2374 = vcombine.low %v2322, %v2322
      %v2375 = vcombine.low %v2323, %v2323
      %v2376 = vcombine.low %v2324, %v2324
      %v2377 = vcombine.low %v2325, %v2325
      %2378 = vrot.lane.b32.xlu0 %v2373, 127
      %v2379 = vpop.permute.xlu0 %2378
      %2380 = vrot.lane.b32.xlu0 %v2321, 127
      %v2381 = vpop.permute.xlu0 %2380
      %2382 = vrot.lane.b32.xlu0 %v2374, 127
      %v2383 = vpop.permute.xlu0 %2382
      %2384 = vrot.lane.b32.xlu0 %v2322, 127
      %v2385 = vpop.permute.xlu0 %2384
      %2386 = vrot.lane.b32.xlu0 %v2375, 127
      %v2387 = vpop.permute.xlu0 %2386
      %2388 = vrot.lane.b32.xlu0 %v2323, 127
      %v2389 = vpop.permute.xlu0 %2388
      %2390 = vrot.lane.b32.xlu0 %v2376, 127
      %v2391 = vpop.permute.xlu0 %2390
      %2392 = vrot.lane.b32.xlu0 %v2324, 127
      %v2393 = vpop.permute.xlu0 %2392
      %2394 = vrot.lane.b32.xlu0 %v2377, 127
      %v2395 = vpop.permute.xlu0 %2394
      %v2396 = vsel %vm1036, %v2379, %v2381
      %v2397 = vsel %vm1036, %v2381, %v2383
      %v2398 = vsel %vm1036, %v2383, %v2385
      %v2399 = vsel %vm1036, %v2385, %v2387
      %v2400 = vsel %vm1036, %v2387, %v2389
      %v2401 = vsel %vm1036, %v2389, %v2391
      %v2402 = vsel %vm1036, %v2391, %v2393
      %v2403 = vsel %vm1036, %v2393, %v2395
      %2414 = vrot.lane.b32.xlu0 %v2254, 96
      %v2415 = vpop.permute.xlu0 %2414
      %2416 = vrot.lane.b32.xlu0 %v2360, 96
      %v2417 = vpop.permute.xlu0 %2416
      %2418 = vrot.lane.b32.xlu0 %v2255, 96
      %v2419 = vpop.permute.xlu0 %2418
      %2420 = vrot.lane.b32.xlu0 %v2361, 96
      %v2421 = vpop.permute.xlu0 %2420
      %2422 = vrot.lane.b32.xlu0 %v2256, 96
      %v2423 = vpop.permute.xlu0 %2422
      %2424 = vrot.lane.b32.xlu0 %v2362, 96
      %v2425 = vpop.permute.xlu0 %2424
      %2426 = vrot.lane.b32.xlu0 %v2257, 96
      %v2427 = vpop.permute.xlu0 %2426
      %2428 = vrot.lane.b32.xlu0 %v2363, 96
      %v2429 = vpop.permute.xlu0 %2428
      %2430 = vrot.lane.b32.xlu0 %v2258, 96
      %v2431 = vpop.permute.xlu0 %2430
      %v2432 = vsel %vm1752, %v2415, %v2417
      %v2433 = vsel %vm1752, %v2417, %v2419
      %v2434 = vsel %vm1752, %v2419, %v2421
      %v2435 = vsel %vm1752, %v2421, %v2423
      %v2436 = vsel %vm1752, %v2423, %v2425
      %v2437 = vsel %vm1752, %v2425, %v2427
      %v2438 = vsel %vm1752, %v2427, %v2429
      %v2439 = vsel %vm1752, %v2429, %v2431
      %v2454 = vcombine.low %v2351, %v2351
      %v2455 = vcombine.low %v2352, %v2352
      %v2456 = vcombine.low %v2353, %v2353
      %v2457 = vcombine.low %v2354, %v2354
      %v2458 = vcombine.low %v2355, %v2355
      %2459 = vrot.lane.b32.xlu0 %v2454, 95
      %v2460 = vpop.permute.xlu0 %2459
      %2461 = vrot.lane.b32.xlu0 %v2351, 95
      %v2462 = vpop.permute.xlu0 %2461
      %2463 = vrot.lane.b32.xlu0 %v2455, 95
      %v2464 = vpop.permute.xlu0 %2463
      %2465 = vrot.lane.b32.xlu0 %v2352, 95
      %v2466 = vpop.permute.xlu0 %2465
      %2467 = vrot.lane.b32.xlu0 %v2456, 95
      %v2468 = vpop.permute.xlu0 %2467
      %2469 = vrot.lane.b32.xlu0 %v2353, 95
      %v2470 = vpop.permute.xlu0 %2469
      %2471 = vrot.lane.b32.xlu0 %v2457, 95
      %v2472 = vpop.permute.xlu0 %2471
      %2473 = vrot.lane.b32.xlu0 %v2354, 95
      %v2474 = vpop.permute.xlu0 %2473
      %2475 = vrot.lane.b32.xlu0 %v2458, 95
      %v2476 = vpop.permute.xlu0 %2475
      %v2477 = vsel %vm517, %v2460, %v2462
      %v2478 = vsel %vm517, %v2462, %v2464
      %v2479 = vsel %vm517, %v2464, %v2466
      %v2480 = vsel %vm517, %v2466, %v2468
      %v2481 = vsel %vm517, %v2468, %v2470
      %v2482 = vsel %vm517, %v2470, %v2472
      %v2483 = vsel %vm517, %v2472, %v2474
      %v2484 = vsel %vm517, %v2474, %v2476
      %v2494 = vsel %vm284, %v2254, %v2396
      %v2495 = vsel %vm284, %v2360, %v2397
      %v2496 = vsel %vm284, %v2255, %v2398
      %v2497 = vsel %vm284, %v2361, %v2399
      %v2498 = vsel %vm284, %v2256, %v2400
      %v2499 = vsel %vm284, %v2362, %v2401
      %v2500 = vsel %vm284, %v2257, %v2402
      %v2501 = vsel %vm284, %v2363, %v2403
      %v2502 = vsel %vm284, %v2258, %v2395
      %v2503 = vsel %vm284, %v2432, %v2477
      %v2504 = vsel %vm284, %v2433, %v2478
      %v2505 = vsel %vm284, %v2434, %v2479
      %v2506 = vsel %vm284, %v2435, %v2480
      %v2507 = vsel %vm284, %v2436, %v2481
      %v2508 = vsel %vm284, %v2437, %v2482
      %v2509 = vsel %vm284, %v2438, %v2483
      %v2510 = vsel %vm284, %v2439, %v2484
      %v2511 = vsel %vm284, %v2431, %v2476
      %s2512 = scalar_lea.vmem %s1, 12
      %v2513 = vld [vmem:[%s2512] sm:$0x7]
      %2532 = vrot.lane.b32.xlu0 %v2494, 95
      %v2533 = vpop.permute.xlu0 %2532
      %2534 = vrot.lane.b32.xlu0 %v2495, 95
      %v2535 = vpop.permute.xlu0 %2534
      %2536 = vrot.lane.b32.xlu0 %v2496, 95
      %v2537 = vpop.permute.xlu0 %2536
      %2538 = vrot.lane.b32.xlu0 %v2497, 95
      %v2539 = vpop.permute.xlu0 %2538
      %2540 = vrot.lane.b32.xlu0 %v2498, 95
      %v2541 = vpop.permute.xlu0 %2540
      %2542 = vrot.lane.b32.xlu0 %v2499, 95
      %v2543 = vpop.permute.xlu0 %2542
      %2544 = vrot.lane.b32.xlu0 %v2500, 95
      %v2545 = vpop.permute.xlu0 %2544
      %2546 = vrot.lane.b32.xlu0 %v2501, 95
      %v2547 = vpop.permute.xlu0 %2546
      %2548 = vrot.lane.b32.xlu0 %v2502, 95
      %v2549 = vpop.permute.xlu0 %2548
      %2550 = vrot.lane.b32.xlu0 %v2503, 95
      %v2551 = vpop.permute.xlu0 %2550
      %2552 = vrot.lane.b32.xlu0 %v2504, 95
      %v2553 = vpop.permute.xlu0 %2552
      %2554 = vrot.lane.b32.xlu0 %v2505, 95
      %v2555 = vpop.permute.xlu0 %2554
      %2556 = vrot.lane.b32.xlu0 %v2506, 95
      %v2557 = vpop.permute.xlu0 %2556
      %2558 = vrot.lane.b32.xlu0 %v2507, 95
      %v2559 = vpop.permute.xlu0 %2558
      %2560 = vrot.lane.b32.xlu0 %v2508, 95
      %v2561 = vpop.permute.xlu0 %2560
      %2562 = vrot.lane.b32.xlu0 %v2509, 95
      %v2563 = vpop.permute.xlu0 %2562
      %2564 = vrot.lane.b32.xlu0 %v2510, 95
      %v2565 = vpop.permute.xlu0 %2564
      %2566 = vrot.lane.b32.xlu0 %v2511, 95
      %v2567 = vpop.permute.xlu0 %2566
      %v2568 = vsel %vm517, %v2533, %v2535
      %v2569 = vsel %vm517, %v2535, %v2537
      %v2570 = vsel %vm517, %v2537, %v2539
      %v2571 = vsel %vm517, %v2539, %v2541
      %v2572 = vsel %vm517, %v2541, %v2543
      %v2573 = vsel %vm517, %v2543, %v2545
      %v2574 = vsel %vm517, %v2545, %v2547
      %v2575 = vsel %vm517, %v2547, %v2549
      %v2576 = vsel %vm517, %v2551, %v2553
      %v2577 = vsel %vm517, %v2553, %v2555
      %v2578 = vsel %vm517, %v2555, %v2557
      %v2579 = vsel %vm517, %v2557, %v2559
      %v2580 = vsel %vm517, %v2559, %v2561
      %v2581 = vsel %vm517, %v2561, %v2563
      %v2582 = vsel %vm517, %v2563, %v2565
      %v2583 = vsel %vm517, %v2565, %v2567
      %v2601 = vsel %vm550, %v2513, 0
      %2603 = vmatprep.subr.mxu0 %v2569
      %2604 = vmatpush1.msra.mxu0 %v2568
      %2605 = vmatprep.subr.mxu0 %v2577
      %2606 = vmatpush1.msra.mxu0 %v2576
      %2607 = vmatprep.subr.mxu0 0.0
      %2608 = vmatpush1.msra.mxu0 0.0
      %2609 = vmatprep.subr.mxu0 0.0
      %2610 = vmatpush1.msra.mxu0 0.0
      %2611 = vmatprep.subr.mxu0 0.0
      %2612 = vmatpush1.msra.mxu0 0.0
      %2613 = vmatprep.subr.mxu0 0.0
      %2614 = vmatpush1.msra.mxu0 0.0
      %2615 = vmatprep.subr.mxu0 0.0
      %2616 = vmatpush1.msra.mxu0 0.0
      %2617 = vmatprep.subr.mxu0 0.0
      %2618 = vmatpush1.msra.mxu0 0.0
      %2619 = vmatprep.subr.mxu0 0.0
      %2620 = vmatpush1.msra.mxu0 0.0
      %2621 = vmatprep.subr.mxu0 0.0
      %2622 = vmatpush1.msra.mxu0 0.0
      %2623 = vmatprep.subr.mxu0 0.0
      %2624 = vmatpush1.msra.mxu0 0.0
      %2625 = vmatprep.subr.mxu0 0.0
      %2626 = vmatpush1.msra.mxu0 0.0
      %2627 = vmatprep.subr.mxu0 0.0
      %2628 = vmatpush1.msra.mxu0 0.0
      %2629 = vmatprep.subr.mxu0 0.0
      %2630 = vmatpush1.msra.mxu0 0.0
      %2631 = vmatprep.subr.mxu0 0.0
      %2632 = vmatpush1.msra.mxu0 0.0
      %2633 = vmatprep.subr.mxu0 0.0
      %2634 = vmatpush1.msra.mxu0 0.0
      %2635 = vmatprep.subr.mxu0 0.0
      %2636 = vmatpush1.msra.mxu0 0.0
      %2637 = vmatprep.subr.mxu0 0.0
      %2638 = vmatpush1.msra.mxu0 0.0
      %2639 = vmatprep.subr.mxu0 0.0
      %2640 = vmatpush1.msra.mxu0 0.0
      %2641 = vmatprep.subr.mxu0 0.0
      %2642 = vmatpush1.msra.mxu0 0.0
      %2643 = vmatprep.subr.mxu0 0.0
      %2644 = vmatpush1.msra.mxu0 0.0
      %2645 = vmatprep.subr.mxu0 0.0
      %2646 = vmatpush1.msra.mxu0 0.0
      %2647 = vmatprep.subr.mxu0 0.0
      %2648 = vmatpush1.msra.mxu0 0.0
      %2649 = vmatprep.subr.mxu0 0.0
      %2650 = vmatpush1.msra.mxu0 0.0
      %2651 = vmatprep.subr.mxu0 0.0
      %2652 = vmatpush1.msra.mxu0 0.0
      %2653 = vmatprep.subr.mxu0 0.0
      %2654 = vmatpush1.msra.mxu0 0.0
      %2655 = vmatprep.subr.mxu0 0.0
      %2656 = vmatpush1.msra.mxu0 0.0
      %2657 = vmatprep.subr.mxu0 0.0
      %2658 = vmatpush1.msra.mxu0 0.0
      %2659 = vmatprep.subr.mxu0 0.0
      %2660 = vmatpush1.msra.mxu0 0.0
      %2661 = vmatprep.subr.mxu0 0.0
      %2662 = vmatpush1.msra.mxu0 0.0
      %2663 = vmatprep.subr.mxu0 0.0
      %2664 = vmatpush1.msra.mxu0 0.0
      %2665 = vmatprep.subr.mxu0 0.0
      %2666 = vmatpush1.msra.mxu0 0.0
      %2667 = vmatprep.mubr.f32.mxu0 0.0
      %2668 = vmatmul.mubr.f32.gmra.mrb[0].mxu0 %v2601
      %v2669 = vpop.f32.mrb[0].mxu0
      %v2670 = vadd.f32 0.0, %v2669
      %v2671 = vpop.f32.mrb[0].mxu0
      %v2672 = vadd.f32 0.0, %v2671
      %2673 = vdwg.mxu0
      %2674 = vmatprep.subr.mxu0 %v2571
      %2675 = vmatpush1.msra.mxu0 %v2570
      %2676 = vmatprep.subr.mxu0 %v2579
      %2677 = vmatpush1.msra.mxu0 %v2578
      %2678 = vmatprep.subr.mxu0 0.0
      %2679 = vmatpush1.msra.mxu0 0.0
      %2680 = vmatprep.subr.mxu0 0.0
      %2681 = vmatpush1.msra.mxu0 0.0
      %2682 = vmatprep.subr.mxu0 0.0
      %2683 = vmatpush1.msra.mxu0 0.0
      %2684 = vmatprep.subr.mxu0 0.0
      %2685 = vmatpush1.msra.mxu0 0.0
      %2686 = vmatprep.subr.mxu0 0.0
      %2687 = vmatpush1.msra.mxu0 0.0
      %2688 = vmatprep.subr.mxu0 0.0
      %2689 = vmatpush1.msra.mxu0 0.0
      %2690 = vmatprep.subr.mxu0 0.0
      %2691 = vmatpush1.msra.mxu0 0.0
      %2692 = vmatprep.subr.mxu0 0.0
      %2693 = vmatpush1.msra.mxu0 0.0
      %2694 = vmatprep.subr.mxu0 0.0
      %2695 = vmatpush1.msra.mxu0 0.0
      %2696 = vmatprep.subr.mxu0 0.0
      %2697 = vmatpush1.msra.mxu0 0.0
      %2698 = vmatprep.subr.mxu0 0.0
      %2699 = vmatpush1.msra.mxu0 0.0
      %2700 = vmatprep.subr.mxu0 0.0
      %2701 = vmatpush1.msra.mxu0 0.0
      %2702 = vmatprep.subr.mxu0 0.0
      %2703 = vmatpush1.msra.mxu0 0.0
      %2704 = vmatprep.subr.mxu0 0.0
      %2705 = vmatpush1.msra.mxu0 0.0
      %2706 = vmatprep.subr.mxu0 0.0
      %2707 = vmatpush1.msra.mxu0 0.0
      %2708 = vmatprep.subr.mxu0 0.0
      %2709 = vmatpush1.msra.mxu0 0.0
      %2710 = vmatprep.subr.mxu0 0.0
      %2711 = vmatpush1.msra.mxu0 0.0
      %2712 = vmatprep.subr.mxu0 0.0
      %2713 = vmatpush1.msra.mxu0 0.0
      %2714 = vmatprep.subr.mxu0 0.0
      %2715 = vmatpush1.msra.mxu0 0.0
      %2716 = vmatprep.subr.mxu0 0.0
      %2717 = vmatpush1.msra.mxu0 0.0
      %2718 = vmatprep.subr.mxu0 0.0
      %2719 = vmatpush1.msra.mxu0 0.0
      %2720 = vmatprep.subr.mxu0 0.0
      %2721 = vmatpush1.msra.mxu0 0.0
      %2722 = vmatprep.subr.mxu0 0.0
      %2723 = vmatpush1.msra.mxu0 0.0
      %2724 = vmatprep.subr.mxu0 0.0
      %2725 = vmatpush1.msra.mxu0 0.0
      %2726 = vmatprep.subr.mxu0 0.0
      %2727 = vmatpush1.msra.mxu0 0.0
      %2728 = vmatprep.subr.mxu0 0.0
      %2729 = vmatpush1.msra.mxu0 0.0
      %2730 = vmatprep.subr.mxu0 0.0
      %2731 = vmatpush1.msra.mxu0 0.0
      %2732 = vmatprep.subr.mxu0 0.0
      %2733 = vmatpush1.msra.mxu0 0.0
      %2734 = vmatprep.subr.mxu0 0.0
      %2735 = vmatpush1.msra.mxu0 0.0
      %2736 = vmatprep.subr.mxu0 0.0
      %2737 = vmatpush1.msra.mxu0 0.0
      %2738 = vmatprep.mubr.f32.mxu0 0.0
      %2739 = vmatmul.mubr.f32.gmra.mrb[0].mxu0 %v2601
      %v2740 = vpop.f32.mrb[0].mxu0
      %v2741 = vadd.f32 0.0, %v2740
      %v2742 = vpop.f32.mrb[0].mxu0
      %v2743 = vadd.f32 0.0, %v2742
      %2744 = vdwg.mxu0
      %2745 = vmatprep.subr.mxu0 %v2573
      %2746 = vmatpush1.msra.mxu0 %v2572
      %2747 = vmatprep.subr.mxu0 %v2581
      %2748 = vmatpush1.msra.mxu0 %v2580
      %2749 = vmatprep.subr.mxu0 0.0
      %2750 = vmatpush1.msra.mxu0 0.0
      %2751 = vmatprep.subr.mxu0 0.0
      %2752 = vmatpush1.msra.mxu0 0.0
      %2753 = vmatprep.subr.mxu0 0.0
      %2754 = vmatpush1.msra.mxu0 0.0
      %2755 = vmatprep.subr.mxu0 0.0
      %2756 = vmatpush1.msra.mxu0 0.0
      %2757 = vmatprep.subr.mxu0 0.0
      %2758 = vmatpush1.msra.mxu0 0.0
      %2759 = vmatprep.subr.mxu0 0.0
      %2760 = vmatpush1.msra.mxu0 0.0
      %2761 = vmatprep.subr.mxu0 0.0
      %2762 = vmatpush1.msra.mxu0 0.0
      %2763 = vmatprep.subr.mxu0 0.0
      %2764 = vmatpush1.msra.mxu0 0.0
      %2765 = vmatprep.subr.mxu0 0.0
      %2766 = vmatpush1.msra.mxu0 0.0
      %2767 = vmatprep.subr.mxu0 0.0
      %2768 = vmatpush1.msra.mxu0 0.0
      %2769 = vmatprep.subr.mxu0 0.0
      %2770 = vmatpush1.msra.mxu0 0.0
      %2771 = vmatprep.subr.mxu0 0.0
      %2772 = vmatpush1.msra.mxu0 0.0
      %2773 = vmatprep.subr.mxu0 0.0
      %2774 = vmatpush1.msra.mxu0 0.0
      %2775 = vmatprep.subr.mxu0 0.0
      %2776 = vmatpush1.msra.mxu0 0.0
      %2777 = vmatprep.subr.mxu0 0.0
      %2778 = vmatpush1.msra.mxu0 0.0
      %2779 = vmatprep.subr.mxu0 0.0
      %2780 = vmatpush1.msra.mxu0 0.0
      %2781 = vmatprep.subr.mxu0 0.0
      %2782 = vmatpush1.msra.mxu0 0.0
      %2783 = vmatprep.subr.mxu0 0.0
      %2784 = vmatpush1.msra.mxu0 0.0
      %2785 = vmatprep.subr.mxu0 0.0
      %2786 = vmatpush1.msra.mxu0 0.0
      %2787 = vmatprep.subr.mxu0 0.0
      %2788 = vmatpush1.msra.mxu0 0.0
      %2789 = vmatprep.subr.mxu0 0.0
      %2790 = vmatpush1.msra.mxu0 0.0
      %2791 = vmatprep.subr.mxu0 0.0
      %2792 = vmatpush1.msra.mxu0 0.0
      %2793 = vmatprep.subr.mxu0 0.0
      %2794 = vmatpush1.msra.mxu0 0.0
      %2795 = vmatprep.subr.mxu0 0.0
      %2796 = vmatpush1.msra.mxu0 0.0
      %2797 = vmatprep.subr.mxu0 0.0
      %2798 = vmatpush1.msra.mxu0 0.0
      %2799 = vmatprep.subr.mxu0 0.0
      %2800 = vmatpush1.msra.mxu0 0.0
      %2801 = vmatprep.subr.mxu0 0.0
      %2802 = vmatpush1.msra.mxu0 0.0
      %2803 = vmatprep.subr.mxu0 0.0
      %2804 = vmatpush1.msra.mxu0 0.0
      %2805 = vmatprep.subr.mxu0 0.0
      %2806 = vmatpush1.msra.mxu0 0.0
      %2807 = vmatprep.subr.mxu0 0.0
      %2808 = vmatpush1.msra.mxu0 0.0
      %2809 = vmatprep.mubr.f32.mxu0 0.0
      %2810 = vmatmul.mubr.f32.gmra.mrb[0].mxu0 %v2601
      %v2811 = vpop.f32.mrb[0].mxu0
      %v2812 = vadd.f32 0.0, %v2811
      %v2813 = vpop.f32.mrb[0].mxu0
      %v2814 = vadd.f32 0.0, %v2813
      %2815 = vdwg.mxu0
      %2816 = vmatprep.subr.mxu0 %v2575
      %2817 = vmatpush1.msra.mxu0 %v2574
      %2818 = vmatprep.subr.mxu0 %v2583
      %2819 = vmatpush1.msra.mxu0 %v2582
      %2820 = vmatprep.subr.mxu0 0.0
      %2821 = vmatpush1.msra.mxu0 0.0
      %2822 = vmatprep.subr.mxu0 0.0
      %2823 = vmatpush1.msra.mxu0 0.0
      %2824 = vmatprep.subr.mxu0 0.0
      %2825 = vmatpush1.msra.mxu0 0.0
      %2826 = vmatprep.subr.mxu0 0.0
      %2827 = vmatpush1.msra.mxu0 0.0
      %2828 = vmatprep.subr.mxu0 0.0
      %2829 = vmatpush1.msra.mxu0 0.0
      %2830 = vmatprep.subr.mxu0 0.0
      %2831 = vmatpush1.msra.mxu0 0.0
      %2832 = vmatprep.subr.mxu0 0.0
      %2833 = vmatpush1.msra.mxu0 0.0
      %2834 = vmatprep.subr.mxu0 0.0
      %2835 = vmatpush1.msra.mxu0 0.0
      %2836 = vmatprep.subr.mxu0 0.0
      %2837 = vmatpush1.msra.mxu0 0.0
      %2838 = vmatprep.subr.mxu0 0.0
      %2839 = vmatpush1.msra.mxu0 0.0
      %2840 = vmatprep.subr.mxu0 0.0
      %2841 = vmatpush1.msra.mxu0 0.0
      %2842 = vmatprep.subr.mxu0 0.0
      %2843 = vmatpush1.msra.mxu0 0.0
      %2844 = vmatprep.subr.mxu0 0.0
      %2845 = vmatpush1.msra.mxu0 0.0
      %2846 = vmatprep.subr.mxu0 0.0
      %2847 = vmatpush1.msra.mxu0 0.0
      %2848 = vmatprep.subr.mxu0 0.0
      %2849 = vmatpush1.msra.mxu0 0.0
      %2850 = vmatprep.subr.mxu0 0.0
      %2851 = vmatpush1.msra.mxu0 0.0
      %2852 = vmatprep.subr.mxu0 0.0
      %2853 = vmatpush1.msra.mxu0 0.0
      %2854 = vmatprep.subr.mxu0 0.0
      %2855 = vmatpush1.msra.mxu0 0.0
      %2856 = vmatprep.subr.mxu0 0.0
      %2857 = vmatpush1.msra.mxu0 0.0
      %2858 = vmatprep.subr.mxu0 0.0
      %2859 = vmatpush1.msra.mxu0 0.0
      %2860 = vmatprep.subr.mxu0 0.0
      %2861 = vmatpush1.msra.mxu0 0.0
      %2862 = vmatprep.subr.mxu0 0.0
      %2863 = vmatpush1.msra.mxu0 0.0
      %2864 = vmatprep.subr.mxu0 0.0
      %2865 = vmatpush1.msra.mxu0 0.0
      %2866 = vmatprep.subr.mxu0 0.0
      %2867 = vmatpush1.msra.mxu0 0.0
      %2868 = vmatprep.subr.mxu0 0.0
      %2869 = vmatpush1.msra.mxu0 0.0
      %2870 = vmatprep.subr.mxu0 0.0
      %2871 = vmatpush1.msra.mxu0 0.0
      %2872 = vmatprep.subr.mxu0 0.0
      %2873 = vmatpush1.msra.mxu0 0.0
      %2874 = vmatprep.subr.mxu0 0.0
      %2875 = vmatpush1.msra.mxu0 0.0
      %2876 = vmatprep.subr.mxu0 0.0
      %2877 = vmatpush1.msra.mxu0 0.0
      %2878 = vmatprep.subr.mxu0 0.0
      %2879 = vmatpush1.msra.mxu0 0.0
      %2880 = vmatprep.mubr.f32.mxu0 0.0
      %2881 = vmatmul.mubr.f32.gmra.mrb[0].mxu0 %v2601
      %v2882 = vpop.f32.mrb[0].mxu0
      %v2883 = vadd.f32 0.0, %v2882
      %v2884 = vpop.f32.mrb[0].mxu0
      %v2885 = vadd.f32 0.0, %v2884
      %2886 = vdwg.mxu0
      %v2887 = vmul.f32 %v2670, %v841
      %v2888 = vmul.f32 %v2672, %v841
      %v2889 = vmul.f32 %v2741, %v841
      %v2890 = vmul.f32 %v2743, %v841
      %v2891 = vmul.f32 %v2812, %v841
      %v2892 = vmul.f32 %v2814, %v841
      %v2893 = vmul.f32 %v2883, %v841
      %v2894 = vmul.f32 %v2885, %v841
      %v2895 = vadd.f32 %v2887, %v854
      %v2896 = vadd.f32 %v2888, %v854
      %v2897 = vadd.f32 %v2889, %v854
      %v2898 = vadd.f32 %v2890, %v854
      %v2899 = vadd.f32 %v2891, %v854
      %v2900 = vadd.f32 %v2892, %v854
      %v2901 = vadd.f32 %v2893, %v854
      %v2902 = vadd.f32 %v2894, %v854
      %v2903 = vtanh.pop %v2895
      %v2904 = vtanh.pop %v2896
      %v2905 = vtanh.pop %v2897
      %v2906 = vtanh.pop %v2898
      %v2907 = vtanh.pop %v2899
      %v2908 = vtanh.pop %v2900
      %v2909 = vtanh.pop %v2901
      %v2910 = vtanh.pop %v2902
      %v2919 = vcombine.low %v2903, %v2904
      %v2920 = vcombine.low %v2905, %v2906
      %v2921 = vcombine.low %v2907, %v2908
      %v2922 = vcombine.low %v2909, %v2910
      %s2927 = scalar_lea.vmem %s224, 96
      %2928 = vst [vmem:[%s2927] sm:$0x77] %v2919
      %2929 = vst [vmem:[%s2927 + $0x8] sm:$0x77] %v2920
      %2930 = vst [vmem:[%s2927 + $0x10] sm:$0x77] %v2921
      %2931 = vst [vmem:[%s2927 + $0x18] sm:$0x77] %v2922
      %p2932 = scmp.lt.s32.totalorder %s16, 1
      %s2933 = scalar_select %p2932, %s16, 1
      %s2934 = smul.addr %s2933, 32
      %s2935 = smul.addr %s2934, 4
      %s2936 = scalar_lea.vmem %s5, %s2935
      // Predicated region
      $region41: #{generator_forward.9} parent=39 // pred_check
        %p2937 = pneg %p144
      $region42: #{generator_forward.9} parent=39 // pred_check_branch
        %2939 = sbr.rel (%p2937) target = $region44
      $region43: #{generator_forward.9} parent=39 // pred_region
        _
      $region44: #{generator_forward.9} parent=39 // pred_fallthru
        _
    $region40: #{generator_forward.9} parent=5 // pred_fallthru
      _
    %p2940 = scmp.le.s32.totalorder 2, %s11
    // Predicated region
    $region45: #{generator_forward.9} parent=5 // pred_check
      %p2941 = pneg %p2940
    $region46: #{generator_forward.9} parent=5 // pred_check_branch
      %2943 = sbr.rel (%p2941) target = $region48
    $region47: #{generator_forward.9} parent=5 // pred_region
      %s2944 = ssub.s32 %s11, 2
      // Predicated region
      $region49: #{generator_forward.9} parent=47 // pred_check
        %p2945 = pneg %p150
      $region50: #{generator_forward.9} parent=47 // pred_check_branch
        %2947 = sbr.rel (%p2945) target = $region52
      $region51: #{generator_forward.9} parent=47 // pred_region
        %p2948 = scmp.lt.s32.totalorder %s17, 1
        %s2949 = scalar_select %p2948, %s17, 1
        %s2950 = smul.addr %s2949, 32
        %s2951 = smul.addr %s2950, 4
        %s2952 = scalar_lea.vmem %s5, %s2951
      $region52: #{generator_forward.9} parent=47 // pred_fallthru
        _
    $region48: #{generator_forward.9} parent=5 // pred_fallthru
      _
  $region6: #{generator_forward.9} parent=0 // loop_footer
    %s15 = sadd.s32 1, %s11
  $region7: #{generator_forward.9} parent=0 // loop_footer_branch
    %10 = sbr.rel target = $region3
  $region8: #{generator_forward.9} parent=0 // loop_exit
    _

</llo_original>
